<compile_context>
chip_gen: v5e
topology: v5e:2x2
jax: 0.10.0
libtpu: 0.0.40
codegen_flags: <defaults>
</compile_context>

<pallas_src>
import functools

import jax
import jax.numpy as jnp
from jax import lax
from jax.experimental import pallas as pl
from jax.experimental.pallas import tpu as pltpu

VMEM_SPEC = pl.BlockSpec(memory_space=pltpu.MemorySpace.VMEM)

# Set to jnp.bfloat16 on v6e/v7x for ~2x MXU throughput (f32 accumulation is kept
# either way via preferred_element_type); f32 default preserves exact PyTorch numerics.
MXU_INPUT_DTYPE = jnp.float32


def mdot(a, b):
    return jnp.dot(a.astype(MXU_INPUT_DTYPE), b.astype(MXU_INPUT_DTYPE),
                   preferred_element_type=jnp.float32)


# ----------------------------- fused VGG2L kernel -----------------------------

def vgg2l_kernel(x_ref, w11, b11, w12, b12, w21, b21, w22, b22, o_ref,
                 pad11, col11, pad12, col12, pad21, col21, pad22, col22):
    # x_ref: (B, T, F, Cin) NHWC.  conv weights are im2col-ready (9*Cin, Cout),
    # row index = (ky*3+kx)*Cin + cin.  o_ref: (B, T2, F2, 128) NHWC.

    def conv3x3_relu(x, w_ref, b_ref, pad_ref, col_ref):
        B, H, W, Cin = x.shape
        Cout = w_ref.shape[1]
        # 'same' padding done on a VMEM scratch (no host-side jnp.pad / HBM copies)
        pad_ref[...] = jnp.zeros(pad_ref.shape, pad_ref.dtype)
        pad_ref[:, 1:H + 1, 1:W + 1, :] = x
        # im2col: build the (B,H,W,9*Cin) patch tensor with 9 lane-slice stores,
        # then ONE matmul with K = 9*Cin.
        for dy in range(3):
            for dx in range(3):
                k = dy * 3 + dx
                col_ref[:, :, :, k * Cin:(k + 1) * Cin] = \
                    pad_ref[:, dy:dy + H, dx:dx + W, :]
        patches = col_ref[...].reshape(B * H * W, 9 * Cin)
        y = mdot(patches, w_ref[...]) + b_ref[...]
        return jnp.maximum(y, 0.0).reshape(B, H, W, Cout)

    def maxpool2x2_ceil(x):
        # vectorized 2x2/stride-2 max pool with ceil_mode (edge row/col duplicated,
        # which is exact because the window then covers only that real row/col).
        B, H, W, C = x.shape
        if H % 2 == 1:
            x = jnp.concatenate([x, x[:, H - 1:H]], axis=1)
            H += 1
        if W % 2 == 1:
            x = jnp.concatenate([x, x[:, :, W - 1:W]], axis=2)
            W += 1
        Ho, Wo = H // 2, W // 2
        x = jnp.max(x.reshape(B, H, Wo, 2, C), axis=3)   # pool along freq (W)
        x = jnp.max(x.reshape(B, Ho, 2, Wo, C), axis=2)  # pool along time (H)
        return x

    x = x_ref[...]
    x = conv3x3_relu(x, w11, b11, pad11, col11)
    x = conv3x3_relu(x, w12, b12, pad12, col12)
    x = maxpool2x2_ceil(x)
    x = conv3x3_relu(x, w21, b21, pad21, col21)
    x = conv3x3_relu(x, w22, b22, pad22, col22)
    x = maxpool2x2_ceil(x)
    o_ref[...] = x                                       # lane-dense (C = 128) store


def vgg2l(x_nhwc, p):
    B, T, F, Cin = x_nhwc.shape
    T1, F1 = -(-T // 2), -(-F // 2)
    T2, F2 = -(-T1 // 2), -(-F1 // 2)
    return pl.pallas_call(
        vgg2l_kernel,
        out_shape=jax.ShapeDtypeStruct((B, T2, F2, 128), jnp.float32),
        in_specs=[VMEM_SPEC] * 9,
        out_specs=VMEM_SPEC,
        scratch_shapes=[
            pltpu.VMEM((B, T + 2, F + 2, Cin), jnp.float32),      # pad11
            pltpu.VMEM((B, T, F, 9 * Cin), jnp.float32),          # col11
            pltpu.VMEM((B, T + 2, F + 2, 64), jnp.float32),       # pad12
            pltpu.VMEM((B, T, F, 9 * 64), jnp.float32),           # col12
            pltpu.VMEM((B, T1 + 2, F1 + 2, 64), jnp.float32),     # pad21
            pltpu.VMEM((B, T1, F1, 9 * 64), jnp.float32),         # col21
            pltpu.VMEM((B, T1 + 2, F1 + 2, 128), jnp.float32),    # pad22
            pltpu.VMEM((B, T1, F1, 9 * 128), jnp.float32),        # col22
        ],
    )(x_nhwc, p['c11_w'], p['c11_b'], p['c12_w'], p['c12_b'],
      p['c21_w'], p['c21_b'], p['c22_w'], p['c22_b'])


# ------------- fused BiLSTM + l_last projection + tanh + pad-mask kernel -------------

def bilstm_proj_kernel(x_ref, lens_step_ref, lens_mask_ref, wih_ref, bih_ref,
                       whh_f_ref, whh_b_ref, llw_ref, llb_ref, o_ref,
                       gf_ref, gb_ref, yf_ref, yb_ref, h_f, c_f, h_b, c_b):
    # x_ref: (B, T, D); lens_step_ref: (B,1) int32; lens_mask_ref: (B,1,1) int32
    # wih_ref: (D, 8H) = [Wih_f | Wih_b]; bih_ref: (1, 8H); whh_*: (H, 4H)
    # llw_ref: (2H, P); llb_ref: (1, P); o_ref: (B, T, P).  gate order i,f,g,o.
    B, T, D = x_ref.shape
    H = h_f.shape[-1]
    P = o_ref.shape[-1]
    H4 = 4 * H

    # (1) hoisted input projection: one MXU matmul over all timesteps, both directions
    x_all = x_ref[...].reshape(B * T, D)
    gall = (mdot(x_all, wih_ref[...]) + bih_ref[...]).reshape(B, T, 2 * H4)
    gf_ref[...] = gall[:, :, 0:H4]
    gb_ref[...] = gall[:, :, H4:2 * H4]

    h_f[...] = jnp.zeros(h_f.shape, h_f.dtype)
    c_f[...] = jnp.zeros(c_f.shape, c_f.dtype)
    h_b[...] = jnp.zeros(h_b.shape, h_b.dtype)
    c_b[...] = jnp.zeros(c_b.shape, c_b.dtype)

    lens = lens_step_ref[...]                 # (B, 1) int32
    whh_f = whh_f_ref[...]
    whh_b = whh_b_ref[...]

    def cell(gin, h, c, whh):
        gates = gin + jnp.dot(h, whh, preferred_element_type=jnp.float32)   # (B, 4H)
        sg = jax.nn.sigmoid(gates)            # full 128-lane EUP op, then aligned slices
        tg = jnp.tanh(gates)
        i_g = sg[:, 0:H]
        f_g = sg[:, H:2 * H]
        o_g = sg[:, 3 * H:4 * H]
        g_g = tg[:, 2 * H:3 * H]
        c_new = f_g * c + i_g * g_g
        h_new = o_g * jnp.tanh(c_new)
        return h_new, c_new

    # (2) forward and backward directions interleaved in a single serial loop;
    #     packed-sequence semantics: state only updates while t < len, padded
    #     steps emit 0 (== pad_packed_sequence), backward starts at t = len-1.
    def body(t, carry):
        tb = T - 1 - t
        gin_f = gf_ref[:, pl.ds(t, 1), :].reshape(B, H4)
        gin_b = gb_ref[:, pl.ds(tb, 1), :].reshape(B, H4)
        valid_f = t < lens
        valid_b = tb < lens
        hf_new, cf_new = cell(gin_f, h_f[...], c_f[...], whh_f)
        hb_new, cb_new = cell(gin_b, h_b[...], c_b[...], whh_b)
        h_f[...] = jnp.where(valid_f, hf_new, h_f[...])
        c_f[...] = jnp.where(valid_f, cf_new, c_f[...])
        h_b[...] = jnp.where(valid_b, hb_new, h_b[...])
        c_b[...] = jnp.where(valid_b, cb_new, c_b[...])
        yf_ref[:, pl.ds(t, 1), :] = jnp.where(valid_f, hf_new, 0.0)[:, None, :]
        yb_ref[:, pl.ds(tb, 1), :] = jnp.where(valid_b, hb_new, 0.0)[:, None, :]
        return carry

    lax.fori_loop(0, T, body, 0, unroll=(T <= 8))

    # (3) fused l_last + tanh + Encoder pad-mask, one bulk store
    yf = yf_ref[...].reshape(B * T, H)
    yb = yb_ref[...].reshape(B * T, H)
    llw = llw_ref[...]
    z = mdot(yf, llw[0:H, :]) + mdot(yb, llw[H:2 * H, :]) + llb_ref[...]
    z = jnp.tanh(z).reshape(B, T, P)
    t_idx = lax.broadcasted_iota(jnp.int32, (B, T, P), 1)
    o_ref[...] = jnp.where(t_idx < lens_mask_ref[...], z, 0.0)


def bilstm_proj(x, olens, p, F2, C2):
    B, T, D = x.shape
    H = p['whh_f'].shape[0]
    P = p['ll_w'].shape[1]

    # Weight-layout plumbing only: permute W_ih rows from PyTorch's channel-major
    # VGG feature order (c*F2 + f) to this kernel's freq-major order (f*C2 + c).
    def perm(w):
        return w.reshape(C2, F2, w.shape[1]).transpose(1, 0, 2).reshape(F2 * C2, w.shape[1])

    wih = jnp.concatenate([perm(p['wih_f']), perm(p['wih_b'])], axis=1)   # (D, 8H)
    bih = jnp.concatenate([p['b_f'], p['b_b']], axis=1)                   # (1, 8H)
    lens_step = olens.reshape(B, 1).astype(jnp.int32)
    lens_mask = olens.reshape(B, 1, 1).astype(jnp.int32)

    return pl.pallas_call(
        bilstm_proj_kernel,
        out_shape=jax.ShapeDtypeStruct((B, T, P), jnp.float32),
        in_specs=[VMEM_SPEC] * 9,
        out_specs=VMEM_SPEC,
        scratch_shapes=[
            pltpu.VMEM((B, T, 4 * H), jnp.float32),   # gf: precomputed fwd input gates
            pltpu.VMEM((B, T, 4 * H), jnp.float32),   # gb: precomputed bwd input gates
            pltpu.VMEM((B, T, H), jnp.float32),       # yf: fwd hidden states buffer
            pltpu.VMEM((B, T, H), jnp.float32),       # yb: bwd hidden states buffer
            pltpu.VMEM((B, H), jnp.float32),          # h_f
            pltpu.VMEM((B, H), jnp.float32),          # c_f
            pltpu.VMEM((B, H), jnp.float32),          # h_b
            pltpu.VMEM((B, H), jnp.float32),          # c_b
        ],
    )(x, lens_step, lens_mask, wih, bih,
      p['whh_f'], p['whh_b'], p['ll_w'], p['ll_b'])


# ------------------------------ parameter init ------------------------------

def get_vgg2l_odim(idim, in_channel=1, out_channel=128):
    f = idim // in_channel
    f = -(-f // 2)
    f = -(-f // 2)
    return f * out_channel


def init_params(key, idim=16, in_channel=1, cdim=32, hdim=32):
    ks = list(jax.random.split(key, 16))

    def nrm(k, shape, fan_in):
        return jax.random.normal(k, shape, jnp.float32) / jnp.sqrt(float(fan_in))

    p = {}
    # conv weights im2col-ready: (9*Cin, Cout), row index = (ky*3+kx)*Cin + cin
    p['c11_w'] = nrm(ks[0], (9 * in_channel, 64), 9 * in_channel)
    p['c11_b'] = nrm(ks[1], (1, 64), 64)
    p['c12_w'] = nrm(ks[2], (9 * 64, 64), 9 * 64)
    p['c12_b'] = nrm(ks[3], (1, 64), 64)
    p['c21_w'] = nrm(ks[4], (9 * 64, 128), 9 * 64)
    p['c21_b'] = nrm(ks[5], (1, 128), 128)
    p['c22_w'] = nrm(ks[6], (9 * 128, 128), 9 * 128)
    p['c22_b'] = nrm(ks[7], (1, 128), 128)
    D = get_vgg2l_odim(idim, in_channel)        # 512 for idim=16
    p['wih_f'] = nrm(ks[8], (D, 4 * cdim), D)
    p['whh_f'] = nrm(ks[9], (cdim, 4 * cdim), cdim)
    p['b_f'] = nrm(ks[10], (1, 4 * cdim), cdim)
    p['wih_b'] = nrm(ks[11], (D, 4 * cdim), D)
    p['whh_b'] = nrm(ks[12], (cdim, 4 * cdim), cdim)
    p['b_b'] = nrm(ks[13], (1, 4 * cdim), cdim)
    p['ll_w'] = nrm(ks[14], (2 * cdim, hdim), 2 * cdim)
    p['ll_b'] = nrm(ks[15], (1, hdim), hdim)
    return p


# ------------------------------ Encoder forward ------------------------------

@functools.partial(jax.jit, static_argnames=('in_channel',))
def encoder_forward(p, xs_pad, ilens, in_channel=1):
    B, T, D = xs_pad.shape
    # torch: (B,T,D) -> (B,T,C,D/C).transpose(1,2) = NCHW ; here NHWC (B,T,D/C,C)
    x = xs_pad.reshape(B, T, in_channel, D // in_channel).transpose(0, 1, 3, 2)

    # --- fused VGG2L (conv-conv-pool-conv-conv-pool) ---
    feat = vgg2l(x, p)                               # (B, T2, F2, 128) NHWC
    Bv, T2, F2, C2 = feat.shape
    feat = feat.reshape(Bv, T2, F2 * C2)             # freq-major feature flattening

    ilens = ilens.astype(jnp.int32)
    olens = (ilens + 1) // 2                         # ceil(ilens / 2)
    olens = (olens + 1) // 2                         # ceil(ilens / 2)

    # --- fused BiLSTM + l_last + tanh + pad-mask ---
    out = bilstm_proj(feat, olens, p, F2, C2)
    return out, olens


if __name__ == "__main__":
    key = jax.random.PRNGKey(0)
    k_x, k_p = jax.random.split(key)

    B, T, D = 2, 8, 16                     # batch, Tmax, idim
    xs_pad = jax.random.normal(k_x, (B, T, D), jnp.float32)
    ilens = jnp.array([8, 6], jnp.int32)   # sorted decreasing (pack_padded requirement)

    params = init_params(k_p, idim=D, in_channel=1, cdim=32, hdim=32)

    out, olens = encoder_forward(params, xs_pad, ilens)
    out = jax.block_until_ready(out)
    olens = jax.block_until_ready(olens)

    assert out.shape == (B, 2, 32), out.shape        # (B, ceil(ceil(T/2)/2), eprojs)
    assert bool(jnp.all(jnp.isfinite(out)))
    assert list(jax.device_get(olens)) == [2, 2], olens
    print("KERNEL_OK")
</pallas_src>

<mosaic_0001>
module attributes {stable_mosaic.version = 11 : i64} {
  func.func @vgg2l_kernel(%arg0: memref<2x8x16x1xf32, #tpu.memory_space<vmem>>, %arg1: memref<9x64xf32, #tpu.memory_space<vmem>>, %arg2: memref<1x64xf32, #tpu.memory_space<vmem>>, %arg3: memref<576x64xf32, #tpu.memory_space<vmem>>, %arg4: memref<1x64xf32, #tpu.memory_space<vmem>>, %arg5: memref<576x128xf32, #tpu.memory_space<vmem>>, %arg6: memref<1x128xf32, #tpu.memory_space<vmem>>, %arg7: memref<1152x128xf32, #tpu.memory_space<vmem>>, %arg8: memref<1x128xf32, #tpu.memory_space<vmem>>, %arg9: memref<2x2x4x128xf32, #tpu.memory_space<vmem>>, %arg10: memref<2x10x18x1xf32, #tpu.memory_space<vmem>>, %arg11: memref<2x8x16x9xf32, #tpu.memory_space<vmem>>, %arg12: memref<2x10x18x64xf32, #tpu.memory_space<vmem>>, %arg13: memref<2x8x16x576xf32, #tpu.memory_space<vmem>>, %arg14: memref<2x6x10x64xf32, #tpu.memory_space<vmem>>, %arg15: memref<2x4x8x576xf32, #tpu.memory_space<vmem>>, %arg16: memref<2x6x10x128xf32, #tpu.memory_space<vmem>>, %arg17: memref<2x4x8x1152xf32, #tpu.memory_space<vmem>>) attributes {dimension_semantics = [], scalar_prefetch = 0 : i64, scratch_operands = 8 : i64, tpu.core_type = #tpu.core_type<tc>} {
    %c0 = arith.constant 0 : index
    %c0_0 = arith.constant 0 : index
    %c0_1 = arith.constant 0 : index
    %c0_2 = arith.constant 0 : index
    %0 = vector.load %arg0[%c0, %c0_0, %c0_1, %c0_2] : memref<2x8x16x1xf32, #tpu.memory_space<vmem>>, vector<2x8x16x1xf32>
    %cst = arith.constant 0.000000e+00 : f32
    %1 = vector.broadcast %cst : f32 to vector<2x10x18x1xf32>
    %c0_3 = arith.constant 0 : index
    %c0_4 = arith.constant 0 : index
    %c0_5 = arith.constant 0 : index
    %c0_6 = arith.constant 0 : index
    %2 = vector.load %arg10[%c0_3, %c0_4, %c0_5, %c0_6] : memref<2x10x18x1xf32, #tpu.memory_space<vmem>>, vector<2x10x18x1xf32>
    tpu.vector_store %arg10[%c0_3, %c0_4, %c0_5, %c0_6], %1 {strides = array<i32>} : memref<2x10x18x1xf32, #tpu.memory_space<vmem>>, vector<2x10x18x1xf32>,
    %c0_7 = arith.constant 0 : index
    %c1 = arith.constant 1 : index
    %c1_8 = arith.constant 1 : index
    %c0_9 = arith.constant 0 : index
    %3 = vector.load %arg10[%c0_7, %c1, %c1_8, %c0_9] : memref<2x10x18x1xf32, #tpu.memory_space<vmem>>, vector<2x8x16x1xf32>
    tpu.vector_store %arg10[%c0_7, %c1, %c1_8, %c0_9], %0 {strides = array<i32>} : memref<2x10x18x1xf32, #tpu.memory_space<vmem>>, vector<2x8x16x1xf32>,
    %c0_10 = arith.constant 0 : index
    %c0_11 = arith.constant 0 : index
    %c0_12 = arith.constant 0 : index
    %c0_13 = arith.constant 0 : index
    %4 = vector.load %arg10[%c0_10, %c0_11, %c0_12, %c0_13] : memref<2x10x18x1xf32, #tpu.memory_space<vmem>>, vector<2x8x16x1xf32>
    %c0_14 = arith.constant 0 : index
    %c0_15 = arith.constant 0 : index
    %c0_16 = arith.constant 0 : index
    %c0_17 = arith.constant 0 : index
    %5 = vector.load %arg11[%c0_14, %c0_15, %c0_16, %c0_17] : memref<2x8x16x9xf32, #tpu.memory_space<vmem>>, vector<2x8x16x1xf32>
    tpu.vector_store %arg11[%c0_14, %c0_15, %c0_16, %c0_17], %4 {strides = array<i32>} : memref<2x8x16x9xf32, #tpu.memory_space<vmem>>, vector<2x8x16x1xf32>,
    %c0_18 = arith.constant 0 : index
    %c0_19 = arith.constant 0 : index
    %c1_20 = arith.constant 1 : index
    %c0_21 = arith.constant 0 : index
    %6 = vector.load %arg10[%c0_18, %c0_19, %c1_20, %c0_21] : memref<2x10x18x1xf32, #tpu.memory_space<vmem>>, vector<2x8x16x1xf32>
    %c0_22 = arith.constant 0 : index
    %c0_23 = arith.constant 0 : index
    %c0_24 = arith.constant 0 : index
    %c1_25 = arith.constant 1 : index
    %7 = vector.load %arg11[%c0_22, %c0_23, %c0_24, %c1_25] : memref<2x8x16x9xf32, #tpu.memory_space<vmem>>, vector<2x8x16x1xf32>
    tpu.vector_store %arg11[%c0_22, %c0_23, %c0_24, %c1_25], %6 {strides = array<i32>} : memref<2x8x16x9xf32, #tpu.memory_space<vmem>>, vector<2x8x16x1xf32>,
    %c0_26 = arith.constant 0 : index
    %c0_27 = arith.constant 0 : index
    %c2 = arith.constant 2 : index
    %c0_28 = arith.constant 0 : index
    %8 = vector.load %arg10[%c0_26, %c0_27, %c2, %c0_28] : memref<2x10x18x1xf32, #tpu.memory_space<vmem>>, vector<2x8x16x1xf32>
    %c0_29 = arith.constant 0 : index
    %c0_30 = arith.constant 0 : index
    %c0_31 = arith.constant 0 : index
    %c2_32 = arith.constant 2 : index
    %9 = vector.load %arg11[%c0_29, %c0_30, %c0_31, %c2_32] : memref<2x8x16x9xf32, #tpu.memory_space<vmem>>, vector<2x8x16x1xf32>
    tpu.vector_store %arg11[%c0_29, %c0_30, %c0_31, %c2_32], %8 {strides = array<i32>} : memref<2x8x16x9xf32, #tpu.memory_space<vmem>>, vector<2x8x16x1xf32>,
    %c0_33 = arith.constant 0 : index
    %c1_34 = arith.constant 1 : index
    %c0_35 = arith.constant 0 : index
    %c0_36 = arith.constant 0 : index
    %10 = vector.load %arg10[%c0_33, %c1_34, %c0_35, %c0_36] : memref<2x10x18x1xf32, #tpu.memory_space<vmem>>, vector<2x8x16x1xf32>
    %c0_37 = arith.constant 0 : index
    %c0_38 = arith.constant 0 : index
    %c0_39 = arith.constant 0 : index
    %c3 = arith.constant 3 : index
    %11 = vector.load %arg11[%c0_37, %c0_38, %c0_39, %c3] : memref<2x8x16x9xf32, #tpu.memory_space<vmem>>, vector<2x8x16x1xf32>
    tpu.vector_store %arg11[%c0_37, %c0_38, %c0_39, %c3], %10 {strides = array<i32>} : memref<2x8x16x9xf32, #tpu.memory_space<vmem>>, vector<2x8x16x1xf32>,
    %c0_40 = arith.constant 0 : index
    %c1_41 = arith.constant 1 : index
    %c1_42 = arith.constant 1 : index
    %c0_43 = arith.constant 0 : index
    %12 = vector.load %arg10[%c0_40, %c1_41, %c1_42, %c0_43] : memref<2x10x18x1xf32, #tpu.memory_space<vmem>>, vector<2x8x16x1xf32>
    %c0_44 = arith.constant 0 : index
    %c0_45 = arith.constant 0 : index
    %c0_46 = arith.constant 0 : index
    %c4 = arith.constant 4 : index
    %13 = vector.load %arg11[%c0_44, %c0_45, %c0_46, %c4] : memref<2x8x16x9xf32, #tpu.memory_space<vmem>>, vector<2x8x16x1xf32>
    tpu.vector_store %arg11[%c0_44, %c0_45, %c0_46, %c4], %12 {strides = array<i32>} : memref<2x8x16x9xf32, #tpu.memory_space<vmem>>, vector<2x8x16x1xf32>,
    %c0_47 = arith.constant 0 : index
    %c1_48 = arith.constant 1 : index
    %c2_49 = arith.constant 2 : index
    %c0_50 = arith.constant 0 : index
    %14 = vector.load %arg10[%c0_47, %c1_48, %c2_49, %c0_50] : memref<2x10x18x1xf32, #tpu.memory_space<vmem>>, vector<2x8x16x1xf32>
    %c0_51 = arith.constant 0 : index
    %c0_52 = arith.constant 0 : index
    %c0_53 = arith.constant 0 : index
    %c5 = arith.constant 5 : index
    %15 = vector.load %arg11[%c0_51, %c0_52, %c0_53, %c5] : memref<2x8x16x9xf32, #tpu.memory_space<vmem>>, vector<2x8x16x1xf32>
    tpu.vector_store %arg11[%c0_51, %c0_52, %c0_53, %c5], %14 {strides = array<i32>} : memref<2x8x16x9xf32, #tpu.memory_space<vmem>>, vector<2x8x16x1xf32>,
    %c0_54 = arith.constant 0 : index
    %c2_55 = arith.constant 2 : index
    %c0_56 = arith.constant 0 : index
    %c0_57 = arith.constant 0 : index
    %16 = vector.load %arg10[%c0_54, %c2_55, %c0_56, %c0_57] : memref<2x10x18x1xf32, #tpu.memory_space<vmem>>, vector<2x8x16x1xf32>
    %c0_58 = arith.constant 0 : index
    %c0_59 = arith.constant 0 : index
    %c0_60 = arith.constant 0 : index
    %c6 = arith.constant 6 : index
    %17 = vector.load %arg11[%c0_58, %c0_59, %c0_60, %c6] : memref<2x8x16x9xf32, #tpu.memory_space<vmem>>, vector<2x8x16x1xf32>
    tpu.vector_store %arg11[%c0_58, %c0_59, %c0_60, %c6], %16 {strides = array<i32>} : memref<2x8x16x9xf32, #tpu.memory_space<vmem>>, vector<2x8x16x1xf32>,
    %c0_61 = arith.constant 0 : index
    %c2_62 = arith.constant 2 : index
    %c1_63 = arith.constant 1 : index
    %c0_64 = arith.constant 0 : index
    %18 = vector.load %arg10[%c0_61, %c2_62, %c1_63, %c0_64] : memref<2x10x18x1xf32, #tpu.memory_space<vmem>>, vector<2x8x16x1xf32>
    %c0_65 = arith.constant 0 : index
    %c0_66 = arith.constant 0 : index
    %c0_67 = arith.constant 0 : index
    %c7 = arith.constant 7 : index
    %19 = vector.load %arg11[%c0_65, %c0_66, %c0_67, %c7] : memref<2x8x16x9xf32, #tpu.memory_space<vmem>>, vector<2x8x16x1xf32>
    tpu.vector_store %arg11[%c0_65, %c0_66, %c0_67, %c7], %18 {strides = array<i32>} : memref<2x8x16x9xf32, #tpu.memory_space<vmem>>, vector<2x8x16x1xf32>,
    %c0_68 = arith.constant 0 : index
    %c2_69 = arith.constant 2 : index
    %c2_70 = arith.constant 2 : index
    %c0_71 = arith.constant 0 : index
    %20 = vector.load %arg10[%c0_68, %c2_69, %c2_70, %c0_71] : memref<2x10x18x1xf32, #tpu.memory_space<vmem>>, vector<2x8x16x1xf32>
    %c0_72 = arith.constant 0 : index
    %c0_73 = arith.constant 0 : index
    %c0_74 = arith.constant 0 : index
    %c8 = arith.constant 8 : index
    %21 = vector.load %arg11[%c0_72, %c0_73, %c0_74, %c8] : memref<2x8x16x9xf32, #tpu.memory_space<vmem>>, vector<2x8x16x1xf32>
    tpu.vector_store %arg11[%c0_72, %c0_73, %c0_74, %c8], %20 {strides = array<i32>} : memref<2x8x16x9xf32, #tpu.memory_space<vmem>>, vector<2x8x16x1xf32>,
    %c0_75 = arith.constant 0 : index
    %c0_76 = arith.constant 0 : index
    %c0_77 = arith.constant 0 : index
    %c0_78 = arith.constant 0 : index
    %22 = vector.load %arg11[%c0_75, %c0_76, %c0_77, %c0_78] : memref<2x8x16x9xf32, #tpu.memory_space<vmem>>, vector<2x8x16x9xf32>
    %23 = vector.shape_cast %22 : vector<2x8x16x9xf32> to vector<256x9xf32>
    %c0_79 = arith.constant 0 : index
    %c0_80 = arith.constant 0 : index
    %24 = vector.load %arg1[%c0_79, %c0_80] : memref<9x64xf32, #tpu.memory_space<vmem>>, vector<9x64xf32>
    %cst_81 = arith.constant dense<0.000000e+00> : vector<256x64xf32>
    %25 = tpu.matmul %23, %24, %cst_81 {dimension_numbers = #tpu.dot_dimension_numbers<[1], [0], [0], [1], [0, 0, 1, 1], [], []>} : vector<256x9xf32>, vector<9x64xf32>, vector<256x64xf32> -> vector<256x64xf32>
    %c0_82 = arith.constant 0 : index
    %c0_83 = arith.constant 0 : index
    %26 = vector.load %arg2[%c0_82, %c0_83] : memref<1x64xf32, #tpu.memory_space<vmem>>, vector<1x64xf32>
    %27 = vector.broadcast %26 : vector<1x64xf32> to vector<256x64xf32>
    %28 = arith.addf %25, %27 : vector<256x64xf32>
    %cst_84 = arith.constant 0.000000e+00 : f32
    %29 = vector.broadcast %cst_84 : f32 to vector<256x64xf32>
    %30 = arith.maximumf %28, %29 : vector<256x64xf32>
    %31 = vector.shape_cast %30 : vector<256x64xf32> to vector<2x8x16x64xf32>
    %cst_85 = arith.constant 0.000000e+00 : f32
    %32 = vector.broadcast %cst_85 : f32 to vector<2x10x18x64xf32>
    %c0_86 = arith.constant 0 : index
    %c0_87 = arith.constant 0 : index
    %c0_88 = arith.constant 0 : index
    %c0_89 = arith.constant 0 : index
    %33 = vector.load %arg12[%c0_86, %c0_87, %c0_88, %c0_89] : memref<2x10x18x64xf32, #tpu.memory_space<vmem>>, vector<2x10x18x64xf32>
    tpu.vector_store %arg12[%c0_86, %c0_87, %c0_88, %c0_89], %32 {strides = array<i32>} : memref<2x10x18x64xf32, #tpu.memory_space<vmem>>, vector<2x10x18x64xf32>,
    %c0_90 = arith.constant 0 : index
    %c1_91 = arith.constant 1 : index
    %c1_92 = arith.constant 1 : index
    %c0_93 = arith.constant 0 : index
    %34 = vector.load %arg12[%c0_90, %c1_91, %c1_92, %c0_93] : memref<2x10x18x64xf32, #tpu.memory_space<vmem>>, vector<2x8x16x64xf32>
    tpu.vector_store %arg12[%c0_90, %c1_91, %c1_92, %c0_93], %31 {strides = array<i32>} : memref<2x10x18x64xf32, #tpu.memory_space<vmem>>, vector<2x8x16x64xf32>,
    %c0_94 = arith.constant 0 : index
    %c0_95 = arith.constant 0 : index
    %c0_96 = arith.constant 0 : index
    %c0_97 = arith.constant 0 : index
    %35 = vector.load %arg12[%c0_94, %c0_95, %c0_96, %c0_97] : memref<2x10x18x64xf32, #tpu.memory_space<vmem>>, vector<2x8x16x64xf32>
    %c0_98 = arith.constant 0 : index
    %c0_99 = arith.constant 0 : index
    %c0_100 = arith.constant 0 : index
    %c0_101 = arith.constant 0 : index
    %36 = vector.load %arg13[%c0_98, %c0_99, %c0_100, %c0_101] : memref<2x8x16x576xf32, #tpu.memory_space<vmem>>, vector<2x8x16x64xf32>
    tpu.vector_store %arg13[%c0_98, %c0_99, %c0_100, %c0_101], %35 {strides = array<i32>} : memref<2x8x16x576xf32, #tpu.memory_space<vmem>>, vector<2x8x16x64xf32>,
    %c0_102 = arith.constant 0 : index
    %c0_103 = arith.constant 0 : index
    %c1_104 = arith.constant 1 : index
    %c0_105 = arith.constant 0 : index
    %37 = vector.load %arg12[%c0_102, %c0_103, %c1_104, %c0_105] : memref<2x10x18x64xf32, #tpu.memory_space<vmem>>, vector<2x8x16x64xf32>
    %c0_106 = arith.constant 0 : index
    %c0_107 = arith.constant 0 : index
    %c0_108 = arith.constant 0 : index
    %c64 = arith.constant 64 : index
    %38 = vector.load %arg13[%c0_106, %c0_107, %c0_108, %c64] : memref<2x8x16x576xf32, #tpu.memory_space<vmem>>, vector<2x8x16x64xf32>
    tpu.vector_store %arg13[%c0_106, %c0_107, %c0_108, %c64], %37 {strides = array<i32>} : memref<2x8x16x576xf32, #tpu.memory_space<vmem>>, vector<2x8x16x64xf32>,
    %c0_109 = arith.constant 0 : index
    %c0_110 = arith.constant 0 : index
    %c2_111 = arith.constant 2 : index
    %c0_112 = arith.constant 0 : index
    %39 = vector.load %arg12[%c0_109, %c0_110, %c2_111, %c0_112] : memref<2x10x18x64xf32, #tpu.memory_space<vmem>>, vector<2x8x16x64xf32>
    %c0_113 = arith.constant 0 : index
    %c0_114 = arith.constant 0 : index
    %c0_115 = arith.constant 0 : index
    %c128 = arith.constant 128 : index
    %40 = vector.load %arg13[%c0_113, %c0_114, %c0_115, %c128] : memref<2x8x16x576xf32, #tpu.memory_space<vmem>>, vector<2x8x16x64xf32>
    tpu.vector_store %arg13[%c0_113, %c0_114, %c0_115, %c128], %39 {strides = array<i32>} : memref<2x8x16x576xf32, #tpu.memory_space<vmem>>, vector<2x8x16x64xf32>,
    %c0_116 = arith.constant 0 : index
    %c1_117 = arith.constant 1 : index
    %c0_118 = arith.constant 0 : index
    %c0_119 = arith.constant 0 : index
    %41 = vector.load %arg12[%c0_116, %c1_117, %c0_118, %c0_119] : memref<2x10x18x64xf32, #tpu.memory_space<vmem>>, vector<2x8x16x64xf32>
    %c0_120 = arith.constant 0 : index
    %c0_121 = arith.constant 0 : index
    %c0_122 = arith.constant 0 : index
    %c192 = arith.constant 192 : index
    %42 = vector.load %arg13[%c0_120, %c0_121, %c0_122, %c192] : memref<2x8x16x576xf32, #tpu.memory_space<vmem>>, vector<2x8x16x64xf32>
    tpu.vector_store %arg13[%c0_120, %c0_121, %c0_122, %c192], %41 {strides = array<i32>} : memref<2x8x16x576xf32, #tpu.memory_space<vmem>>, vector<2x8x16x64xf32>,
    %c0_123 = arith.constant 0 : index
    %c1_124 = arith.constant 1 : index
    %c1_125 = arith.constant 1 : index
    %c0_126 = arith.constant 0 : index
    %43 = vector.load %arg12[%c0_123, %c1_124, %c1_125, %c0_126] : memref<2x10x18x64xf32, #tpu.memory_space<vmem>>, vector<2x8x16x64xf32>
    %c0_127 = arith.constant 0 : index
    %c0_128 = arith.constant 0 : index
    %c0_129 = arith.constant 0 : index
    %c256 = arith.constant 256 : index
    %44 = vector.load %arg13[%c0_127, %c0_128, %c0_129, %c256] : memref<2x8x16x576xf32, #tpu.memory_space<vmem>>, vector<2x8x16x64xf32>
    tpu.vector_store %arg13[%c0_127, %c0_128, %c0_129, %c256], %43 {strides = array<i32>} : memref<2x8x16x576xf32, #tpu.memory_space<vmem>>, vector<2x8x16x64xf32>,
    %c0_130 = arith.constant 0 : index
    %c1_131 = arith.constant 1 : index
    %c2_132 = arith.constant 2 : index
    %c0_133 = arith.constant 0 : index
    %45 = vector.load %arg12[%c0_130, %c1_131, %c2_132, %c0_133] : memref<2x10x18x64xf32, #tpu.memory_space<vmem>>, vector<2x8x16x64xf32>
    %c0_134 = arith.constant 0 : index
    %c0_135 = arith.constant 0 : index
    %c0_136 = arith.constant 0 : index
    %c320 = arith.constant 320 : index
    %46 = vector.load %arg13[%c0_134, %c0_135, %c0_136, %c320] : memref<2x8x16x576xf32, #tpu.memory_space<vmem>>, vector<2x8x16x64xf32>
    tpu.vector_store %arg13[%c0_134, %c0_135, %c0_136, %c320], %45 {strides = array<i32>} : memref<2x8x16x576xf32, #tpu.memory_space<vmem>>, vector<2x8x16x64xf32>,
    %c0_137 = arith.constant 0 : index
    %c2_138 = arith.constant 2 : index
    %c0_139 = arith.constant 0 : index
    %c0_140 = arith.constant 0 : index
    %47 = vector.load %arg12[%c0_137, %c2_138, %c0_139, %c0_140] : memref<2x10x18x64xf32, #tpu.memory_space<vmem>>, vector<2x8x16x64xf32>
    %c0_141 = arith.constant 0 : index
    %c0_142 = arith.constant 0 : index
    %c0_143 = arith.constant 0 : index
    %c384 = arith.constant 384 : index
    %48 = vector.load %arg13[%c0_141, %c0_142, %c0_143, %c384] : memref<2x8x16x576xf32, #tpu.memory_space<vmem>>, vector<2x8x16x64xf32>
    tpu.vector_store %arg13[%c0_141, %c0_142, %c0_143, %c384], %47 {strides = array<i32>} : memref<2x8x16x576xf32, #tpu.memory_space<vmem>>, vector<2x8x16x64xf32>,
    %c0_144 = arith.constant 0 : index
    %c2_145 = arith.constant 2 : index
    %c1_146 = arith.constant 1 : index
    %c0_147 = arith.constant 0 : index
    %49 = vector.load %arg12[%c0_144, %c2_145, %c1_146, %c0_147] : memref<2x10x18x64xf32, #tpu.memory_space<vmem>>, vector<2x8x16x64xf32>
    %c0_148 = arith.constant 0 : index
    %c0_149 = arith.constant 0 : index
    %c0_150 = arith.constant 0 : index
    %c448 = arith.constant 448 : index
    %50 = vector.load %arg13[%c0_148, %c0_149, %c0_150, %c448] : memref<2x8x16x576xf32, #tpu.memory_space<vmem>>, vector<2x8x16x64xf32>
    tpu.vector_store %arg13[%c0_148, %c0_149, %c0_150, %c448], %49 {strides = array<i32>} : memref<2x8x16x576xf32, #tpu.memory_space<vmem>>, vector<2x8x16x64xf32>,
    %c0_151 = arith.constant 0 : index
    %c2_152 = arith.constant 2 : index
    %c2_153 = arith.constant 2 : index
    %c0_154 = arith.constant 0 : index
    %51 = vector.load %arg12[%c0_151, %c2_152, %c2_153, %c0_154] : memref<2x10x18x64xf32, #tpu.memory_space<vmem>>, vector<2x8x16x64xf32>
    %c0_155 = arith.constant 0 : index
    %c0_156 = arith.constant 0 : index
    %c0_157 = arith.constant 0 : index
    %c512 = arith.constant 512 : index
    %52 = vector.load %arg13[%c0_155, %c0_156, %c0_157, %c512] : memref<2x8x16x576xf32, #tpu.memory_space<vmem>>, vector<2x8x16x64xf32>
    tpu.vector_store %arg13[%c0_155, %c0_156, %c0_157, %c512], %51 {strides = array<i32>} : memref<2x8x16x576xf32, #tpu.memory_space<vmem>>, vector<2x8x16x64xf32>,
    %c0_158 = arith.constant 0 : index
    %c0_159 = arith.constant 0 : index
    %c0_160 = arith.constant 0 : index
    %c0_161 = arith.constant 0 : index
    %53 = vector.load %arg13[%c0_158, %c0_159, %c0_160, %c0_161] : memref<2x8x16x576xf32, #tpu.memory_space<vmem>>, vector<2x8x16x576xf32>
    %54 = vector.shape_cast %53 : vector<2x8x16x576xf32> to vector<256x576xf32>
    %c0_162 = arith.constant 0 : index
    %c0_163 = arith.constant 0 : index
    %55 = vector.load %arg3[%c0_162, %c0_163] : memref<576x64xf32, #tpu.memory_space<vmem>>, vector<576x64xf32>
    %cst_164 = arith.constant dense<0.000000e+00> : vector<256x64xf32>
    %56 = tpu.matmul %54, %55, %cst_164 {dimension_numbers = #tpu.dot_dimension_numbers<[1], [0], [0], [1], [0, 0, 1, 1], [], []>} : vector<256x576xf32>, vector<576x64xf32>, vector<256x64xf32> -> vector<256x64xf32>
    %c0_165 = arith.constant 0 : index
    %c0_166 = arith.constant 0 : index
    %57 = vector.load %arg4[%c0_165, %c0_166] : memref<1x64xf32, #tpu.memory_space<vmem>>, vector<1x64xf32>
    %58 = vector.broadcast %57 : vector<1x64xf32> to vector<256x64xf32>
    %59 = arith.addf %56, %58 : vector<256x64xf32>
    %cst_167 = arith.constant 0.000000e+00 : f32
    %60 = vector.broadcast %cst_167 : f32 to vector<256x64xf32>
    %61 = arith.maximumf %59, %60 : vector<256x64xf32>
    %62 = vector.shape_cast %61 : vector<256x64xf32> to vector<2x8x16x64xf32>
    %63 = vector.shape_cast %62 : vector<2x8x16x64xf32> to vector<2x8x8x2x64xf32>
    %cst_168 = arith.constant dense<0xFF800000> : vector<2x8x8x64xf32>
    %64 = vector.multi_reduction <maximumf>, %63, %cst_168 [3] : vector<2x8x8x2x64xf32> to vector<2x8x8x64xf32>
    %65 = vector.shape_cast %64 : vector<2x8x8x64xf32> to vector<2x4x2x8x64xf32>
    %cst_169 = arith.constant dense<0xFF800000> : vector<2x4x8x64xf32>
    %66 = vector.multi_reduction <maximumf>, %65, %cst_169 [2] : vector<2x4x2x8x64xf32> to vector<2x4x8x64xf32>
    %cst_170 = arith.constant 0.000000e+00 : f32
    %67 = vector.broadcast %cst_170 : f32 to vector<2x6x10x64xf32>
    %c0_171 = arith.constant 0 : index
    %c0_172 = arith.constant 0 : index
    %c0_173 = arith.constant 0 : index
    %c0_174 = arith.constant 0 : index
    %68 = vector.load %arg14[%c0_171, %c0_172, %c0_173, %c0_174] : memref<2x6x10x64xf32, #tpu.memory_space<vmem>>, vector<2x6x10x64xf32>
    tpu.vector_store %arg14[%c0_171, %c0_172, %c0_173, %c0_174], %67 {strides = array<i32>} : memref<2x6x10x64xf32, #tpu.memory_space<vmem>>, vector<2x6x10x64xf32>,
    %c0_175 = arith.constant 0 : index
    %c1_176 = arith.constant 1 : index
    %c1_177 = arith.constant 1 : index
    %c0_178 = arith.constant 0 : index
    %69 = vector.load %arg14[%c0_175, %c1_176, %c1_177, %c0_178] : memref<2x6x10x64xf32, #tpu.memory_space<vmem>>, vector<2x4x8x64xf32>
    tpu.vector_store %arg14[%c0_175, %c1_176, %c1_177, %c0_178], %66 {strides = array<i32>} : memref<2x6x10x64xf32, #tpu.memory_space<vmem>>, vector<2x4x8x64xf32>,
    %c0_179 = arith.constant 0 : index
    %c0_180 = arith.constant 0 : index
    %c0_181 = arith.constant 0 : index
    %c0_182 = arith.constant 0 : index
    %70 = vector.load %arg14[%c0_179, %c0_180, %c0_181, %c0_182] : memref<2x6x10x64xf32, #tpu.memory_space<vmem>>, vector<2x4x8x64xf32>
    %c0_183 = arith.constant 0 : index
    %c0_184 = arith.constant 0 : index
    %c0_185 = arith.constant 0 : index
    %c0_186 = arith.constant 0 : index
    %71 = vector.load %arg15[%c0_183, %c0_184, %c0_185, %c0_186] : memref<2x4x8x576xf32, #tpu.memory_space<vmem>>, vector<2x4x8x64xf32>
    tpu.vector_store %arg15[%c0_183, %c0_184, %c0_185, %c0_186], %70 {strides = array<i32>} : memref<2x4x8x576xf32, #tpu.memory_space<vmem>>, vector<2x4x8x64xf32>,
    %c0_187 = arith.constant 0 : index
    %c0_188 = arith.constant 0 : index
    %c1_189 = arith.constant 1 : index
    %c0_190 = arith.constant 0 : index
    %72 = vector.load %arg14[%c0_187, %c0_188, %c1_189, %c0_190] : memref<2x6x10x64xf32, #tpu.memory_space<vmem>>, vector<2x4x8x64xf32>
    %c0_191 = arith.constant 0 : index
    %c0_192 = arith.constant 0 : index
    %c0_193 = arith.constant 0 : index
    %c64_194 = arith.constant 64 : index
    %73 = vector.load %arg15[%c0_191, %c0_192, %c0_193, %c64_194] : memref<2x4x8x576xf32, #tpu.memory_space<vmem>>, vector<2x4x8x64xf32>
    tpu.vector_store %arg15[%c0_191, %c0_192, %c0_193, %c64_194], %72 {strides = array<i32>} : memref<2x4x8x576xf32, #tpu.memory_space<vmem>>, vector<2x4x8x64xf32>,
    %c0_195 = arith.constant 0 : index
    %c0_196 = arith.constant 0 : index
    %c2_197 = arith.constant 2 : index
    %c0_198 = arith.constant 0 : index
    %74 = vector.load %arg14[%c0_195, %c0_196, %c2_197, %c0_198] : memref<2x6x10x64xf32, #tpu.memory_space<vmem>>, vector<2x4x8x64xf32>
    %c0_199 = arith.constant 0 : index
    %c0_200 = arith.constant 0 : index
    %c0_201 = arith.constant 0 : index
    %c128_202 = arith.constant 128 : index
    %75 = vector.load %arg15[%c0_199, %c0_200, %c0_201, %c128_202] : memref<2x4x8x576xf32, #tpu.memory_space<vmem>>, vector<2x4x8x64xf32>
    tpu.vector_store %arg15[%c0_199, %c0_200, %c0_201, %c128_202], %74 {strides = array<i32>} : memref<2x4x8x576xf32, #tpu.memory_space<vmem>>, vector<2x4x8x64xf32>,
    %c0_203 = arith.constant 0 : index
    %c1_204 = arith.constant 1 : index
    %c0_205 = arith.constant 0 : index
    %c0_206 = arith.constant 0 : index
    %76 = vector.load %arg14[%c0_203, %c1_204, %c0_205, %c0_206] : memref<2x6x10x64xf32, #tpu.memory_space<vmem>>, vector<2x4x8x64xf32>
    %c0_207 = arith.constant 0 : index
    %c0_208 = arith.constant 0 : index
    %c0_209 = arith.constant 0 : index
    %c192_210 = arith.constant 192 : index
    %77 = vector.load %arg15[%c0_207, %c0_208, %c0_209, %c192_210] : memref<2x4x8x576xf32, #tpu.memory_space<vmem>>, vector<2x4x8x64xf32>
    tpu.vector_store %arg15[%c0_207, %c0_208, %c0_209, %c192_210], %76 {strides = array<i32>} : memref<2x4x8x576xf32, #tpu.memory_space<vmem>>, vector<2x4x8x64xf32>,
    %c0_211 = arith.constant 0 : index
    %c1_212 = arith.constant 1 : index
    %c1_213 = arith.constant 1 : index
    %c0_214 = arith.constant 0 : index
    %78 = vector.load %arg14[%c0_211, %c1_212, %c1_213, %c0_214] : memref<2x6x10x64xf32, #tpu.memory_space<vmem>>, vector<2x4x8x64xf32>
    %c0_215 = arith.constant 0 : index
    %c0_216 = arith.constant 0 : index
    %c0_217 = arith.constant 0 : index
    %c256_218 = arith.constant 256 : index
    %79 = vector.load %arg15[%c0_215, %c0_216, %c0_217, %c256_218] : memref<2x4x8x576xf32, #tpu.memory_space<vmem>>, vector<2x4x8x64xf32>
    tpu.vector_store %arg15[%c0_215, %c0_216, %c0_217, %c256_218], %78 {strides = array<i32>} : memref<2x4x8x576xf32, #tpu.memory_space<vmem>>, vector<2x4x8x64xf32>,
    %c0_219 = arith.constant 0 : index
    %c1_220 = arith.constant 1 : index
    %c2_221 = arith.constant 2 : index
    %c0_222 = arith.constant 0 : index
    %80 = vector.load %arg14[%c0_219, %c1_220, %c2_221, %c0_222] : memref<2x6x10x64xf32, #tpu.memory_space<vmem>>, vector<2x4x8x64xf32>
    %c0_223 = arith.constant 0 : index
    %c0_224 = arith.constant 0 : index
    %c0_225 = arith.constant 0 : index
    %c320_226 = arith.constant 320 : index
    %81 = vector.load %arg15[%c0_223, %c0_224, %c0_225, %c320_226] : memref<2x4x8x576xf32, #tpu.memory_space<vmem>>, vector<2x4x8x64xf32>
    tpu.vector_store %arg15[%c0_223, %c0_224, %c0_225, %c320_226], %80 {strides = array<i32>} : memref<2x4x8x576xf32, #tpu.memory_space<vmem>>, vector<2x4x8x64xf32>,
    %c0_227 = arith.constant 0 : index
    %c2_228 = arith.constant 2 : index
    %c0_229 = arith.constant 0 : index
    %c0_230 = arith.constant 0 : index
    %82 = vector.load %arg14[%c0_227, %c2_228, %c0_229, %c0_230] : memref<2x6x10x64xf32, #tpu.memory_space<vmem>>, vector<2x4x8x64xf32>
    %c0_231 = arith.constant 0 : index
    %c0_232 = arith.constant 0 : index
    %c0_233 = arith.constant 0 : index
    %c384_234 = arith.constant 384 : index
    %83 = vector.load %arg15[%c0_231, %c0_232, %c0_233, %c384_234] : memref<2x4x8x576xf32, #tpu.memory_space<vmem>>, vector<2x4x8x64xf32>
    tpu.vector_store %arg15[%c0_231, %c0_232, %c0_233, %c384_234], %82 {strides = array<i32>} : memref<2x4x8x576xf32, #tpu.memory_space<vmem>>, vector<2x4x8x64xf32>,
    %c0_235 = arith.constant 0 : index
    %c2_236 = arith.constant 2 : index
    %c1_237 = arith.constant 1 : index
    %c0_238 = arith.constant 0 : index
    %84 = vector.load %arg14[%c0_235, %c2_236, %c1_237, %c0_238] : memref<2x6x10x64xf32, #tpu.memory_space<vmem>>, vector<2x4x8x64xf32>
    %c0_239 = arith.constant 0 : index
    %c0_240 = arith.constant 0 : index
    %c0_241 = arith.constant 0 : index
    %c448_242 = arith.constant 448 : index
    %85 = vector.load %arg15[%c0_239, %c0_240, %c0_241, %c448_242] : memref<2x4x8x576xf32, #tpu.memory_space<vmem>>, vector<2x4x8x64xf32>
    tpu.vector_store %arg15[%c0_239, %c0_240, %c0_241, %c448_242], %84 {strides = array<i32>} : memref<2x4x8x576xf32, #tpu.memory_space<vmem>>, vector<2x4x8x64xf32>,
    %c0_243 = arith.constant 0 : index
    %c2_244 = arith.constant 2 : index
    %c2_245 = arith.constant 2 : index
    %c0_246 = arith.constant 0 : index
    %86 = vector.load %arg14[%c0_243, %c2_244, %c2_245, %c0_246] : memref<2x6x10x64xf32, #tpu.memory_space<vmem>>, vector<2x4x8x64xf32>
    %c0_247 = arith.constant 0 : index
    %c0_248 = arith.constant 0 : index
    %c0_249 = arith.constant 0 : index
    %c512_250 = arith.constant 512 : index
    %87 = vector.load %arg15[%c0_247, %c0_248, %c0_249, %c512_250] : memref<2x4x8x576xf32, #tpu.memory_space<vmem>>, vector<2x4x8x64xf32>
    tpu.vector_store %arg15[%c0_247, %c0_248, %c0_249, %c512_250], %86 {strides = array<i32>} : memref<2x4x8x576xf32, #tpu.memory_space<vmem>>, vector<2x4x8x64xf32>,
    %c0_251 = arith.constant 0 : index
    %c0_252 = arith.constant 0 : index
    %c0_253 = arith.constant 0 : index
    %c0_254 = arith.constant 0 : index
    %88 = vector.load %arg15[%c0_251, %c0_252, %c0_253, %c0_254] : memref<2x4x8x576xf32, #tpu.memory_space<vmem>>, vector<2x4x8x576xf32>
    %89 = vector.shape_cast %88 : vector<2x4x8x576xf32> to vector<64x576xf32>
    %c0_255 = arith.constant 0 : index
    %c0_256 = arith.constant 0 : index
    %90 = vector.load %arg5[%c0_255, %c0_256] : memref<576x128xf32, #tpu.memory_space<vmem>>, vector<576x128xf32>
    %cst_257 = arith.constant dense<0.000000e+00> : vector<64x128xf32>
    %91 = tpu.matmul %89, %90, %cst_257 {dimension_numbers = #tpu.dot_dimension_numbers<[1], [0], [0], [1], [0, 0, 1, 1], [], []>} : vector<64x576xf32>, vector<576x128xf32>, vector<64x128xf32> -> vector<64x128xf32>
    %c0_258 = arith.constant 0 : index
    %c0_259 = arith.constant 0 : index
    %92 = vector.load %arg6[%c0_258, %c0_259] : memref<1x128xf32, #tpu.memory_space<vmem>>, vector<1x128xf32>
    %93 = vector.broadcast %92 : vector<1x128xf32> to vector<64x128xf32>
    %94 = arith.addf %91, %93 : vector<64x128xf32>
    %cst_260 = arith.constant 0.000000e+00 : f32
    %95 = vector.broadcast %cst_260 : f32 to vector<64x128xf32>
    %96 = arith.maximumf %94, %95 : vector<64x128xf32>
    %97 = vector.shape_cast %96 : vector<64x128xf32> to vector<2x4x8x128xf32>
    %cst_261 = arith.constant 0.000000e+00 : f32
    %98 = vector.broadcast %cst_261 : f32 to vector<2x6x10x128xf32>
    %c0_262 = arith.constant 0 : index
    %c0_263 = arith.constant 0 : index
    %c0_264 = arith.constant 0 : index
    %c0_265 = arith.constant 0 : index
    %99 = vector.load %arg16[%c0_262, %c0_263, %c0_264, %c0_265] : memref<2x6x10x128xf32, #tpu.memory_space<vmem>>, vector<2x6x10x128xf32>
    tpu.vector_store %arg16[%c0_262, %c0_263, %c0_264, %c0_265], %98 {strides = array<i32>} : memref<2x6x10x128xf32, #tpu.memory_space<vmem>>, vector<2x6x10x128xf32>,
    %c0_266 = arith.constant 0 : index
    %c1_267 = arith.constant 1 : index
    %c1_268 = arith.constant 1 : index
    %c0_269 = arith.constant 0 : index
    %100 = vector.load %arg16[%c0_266, %c1_267, %c1_268, %c0_269] : memref<2x6x10x128xf32, #tpu.memory_space<vmem>>, vector<2x4x8x128xf32>
    tpu.vector_store %arg16[%c0_266, %c1_267, %c1_268, %c0_269], %97 {strides = array<i32>} : memref<2x6x10x128xf32, #tpu.memory_space<vmem>>, vector<2x4x8x128xf32>,
    %c0_270 = arith.constant 0 : index
    %c0_271 = arith.constant 0 : index
    %c0_272 = arith.constant 0 : index
    %c0_273 = arith.constant 0 : index
    %101 = vector.load %arg16[%c0_270, %c0_271, %c0_272, %c0_273] : memref<2x6x10x128xf32, #tpu.memory_space<vmem>>, vector<2x4x8x128xf32>
    %c0_274 = arith.constant 0 : index
    %c0_275 = arith.constant 0 : index
    %c0_276 = arith.constant 0 : index
    %c0_277 = arith.constant 0 : index
    %102 = vector.load %arg17[%c0_274, %c0_275, %c0_276, %c0_277] : memref<2x4x8x1152xf32, #tpu.memory_space<vmem>>, vector<2x4x8x128xf32>
    tpu.vector_store %arg17[%c0_274, %c0_275, %c0_276, %c0_277], %101 {strides = array<i32>} : memref<2x4x8x1152xf32, #tpu.memory_space<vmem>>, vector<2x4x8x128xf32>,
    %c0_278 = arith.constant 0 : index
    %c0_279 = arith.constant 0 : index
    %c1_280 = arith.constant 1 : index
    %c0_281 = arith.constant 0 : index
    %103 = vector.load %arg16[%c0_278, %c0_279, %c1_280, %c0_281] : memref<2x6x10x128xf32, #tpu.memory_space<vmem>>, vector<2x4x8x128xf32>
    %c0_282 = arith.constant 0 : index
    %c0_283 = arith.constant 0 : index
    %c0_284 = arith.constant 0 : index
    %c128_285 = arith.constant 128 : index
    %104 = vector.load %arg17[%c0_282, %c0_283, %c0_284, %c128_285] : memref<2x4x8x1152xf32, #tpu.memory_space<vmem>>, vector<2x4x8x128xf32>
    tpu.vector_store %arg17[%c0_282, %c0_283, %c0_284, %c128_285], %103 {strides = array<i32>} : memref<2x4x8x1152xf32, #tpu.memory_space<vmem>>, vector<2x4x8x128xf32>,
    %c0_286 = arith.constant 0 : index
    %c0_287 = arith.constant 0 : index
    %c2_288 = arith.constant 2 : index
    %c0_289 = arith.constant 0 : index
    %105 = vector.load %arg16[%c0_286, %c0_287, %c2_288, %c0_289] : memref<2x6x10x128xf32, #tpu.memory_space<vmem>>, vector<2x4x8x128xf32>
    %c0_290 = arith.constant 0 : index
    %c0_291 = arith.constant 0 : index
    %c0_292 = arith.constant 0 : index
    %c256_293 = arith.constant 256 : index
    %106 = vector.load %arg17[%c0_290, %c0_291, %c0_292, %c256_293] : memref<2x4x8x1152xf32, #tpu.memory_space<vmem>>, vector<2x4x8x128xf32>
    tpu.vector_store %arg17[%c0_290, %c0_291, %c0_292, %c256_293], %105 {strides = array<i32>} : memref<2x4x8x1152xf32, #tpu.memory_space<vmem>>, vector<2x4x8x128xf32>,
    %c0_294 = arith.constant 0 : index
    %c1_295 = arith.constant 1 : index
    %c0_296 = arith.constant 0 : index
    %c0_297 = arith.constant 0 : index
    %107 = vector.load %arg16[%c0_294, %c1_295, %c0_296, %c0_297] : memref<2x6x10x128xf32, #tpu.memory_space<vmem>>, vector<2x4x8x128xf32>
    %c0_298 = arith.constant 0 : index
    %c0_299 = arith.constant 0 : index
    %c0_300 = arith.constant 0 : index
    %c384_301 = arith.constant 384 : index
    %108 = vector.load %arg17[%c0_298, %c0_299, %c0_300, %c384_301] : memref<2x4x8x1152xf32, #tpu.memory_space<vmem>>, vector<2x4x8x128xf32>
    tpu.vector_store %arg17[%c0_298, %c0_299, %c0_300, %c384_301], %107 {strides = array<i32>} : memref<2x4x8x1152xf32, #tpu.memory_space<vmem>>, vector<2x4x8x128xf32>,
    %c0_302 = arith.constant 0 : index
    %c1_303 = arith.constant 1 : index
    %c1_304 = arith.constant 1 : index
    %c0_305 = arith.constant 0 : index
    %109 = vector.load %arg16[%c0_302, %c1_303, %c1_304, %c0_305] : memref<2x6x10x128xf32, #tpu.memory_space<vmem>>, vector<2x4x8x128xf32>
    %c0_306 = arith.constant 0 : index
    %c0_307 = arith.constant 0 : index
    %c0_308 = arith.constant 0 : index
    %c512_309 = arith.constant 512 : index
    %110 = vector.load %arg17[%c0_306, %c0_307, %c0_308, %c512_309] : memref<2x4x8x1152xf32, #tpu.memory_space<vmem>>, vector<2x4x8x128xf32>
    tpu.vector_store %arg17[%c0_306, %c0_307, %c0_308, %c512_309], %109 {strides = array<i32>} : memref<2x4x8x1152xf32, #tpu.memory_space<vmem>>, vector<2x4x8x128xf32>,
    %c0_310 = arith.constant 0 : index
    %c1_311 = arith.constant 1 : index
    %c2_312 = arith.constant 2 : index
    %c0_313 = arith.constant 0 : index
    %111 = vector.load %arg16[%c0_310, %c1_311, %c2_312, %c0_313] : memref<2x6x10x128xf32, #tpu.memory_space<vmem>>, vector<2x4x8x128xf32>
    %c0_314 = arith.constant 0 : index
    %c0_315 = arith.constant 0 : index
    %c0_316 = arith.constant 0 : index
    %c640 = arith.constant 640 : index
    %112 = vector.load %arg17[%c0_314, %c0_315, %c0_316, %c640] : memref<2x4x8x1152xf32, #tpu.memory_space<vmem>>, vector<2x4x8x128xf32>
    tpu.vector_store %arg17[%c0_314, %c0_315, %c0_316, %c640], %111 {strides = array<i32>} : memref<2x4x8x1152xf32, #tpu.memory_space<vmem>>, vector<2x4x8x128xf32>,
    %c0_317 = arith.constant 0 : index
    %c2_318 = arith.constant 2 : index
    %c0_319 = arith.constant 0 : index
    %c0_320 = arith.constant 0 : index
    %113 = vector.load %arg16[%c0_317, %c2_318, %c0_319, %c0_320] : memref<2x6x10x128xf32, #tpu.memory_space<vmem>>, vector<2x4x8x128xf32>
    %c0_321 = arith.constant 0 : index
    %c0_322 = arith.constant 0 : index
    %c0_323 = arith.constant 0 : index
    %c768 = arith.constant 768 : index
    %114 = vector.load %arg17[%c0_321, %c0_322, %c0_323, %c768] : memref<2x4x8x1152xf32, #tpu.memory_space<vmem>>, vector<2x4x8x128xf32>
    tpu.vector_store %arg17[%c0_321, %c0_322, %c0_323, %c768], %113 {strides = array<i32>} : memref<2x4x8x1152xf32, #tpu.memory_space<vmem>>, vector<2x4x8x128xf32>,
    %c0_324 = arith.constant 0 : index
    %c2_325 = arith.constant 2 : index
    %c1_326 = arith.constant 1 : index
    %c0_327 = arith.constant 0 : index
    %115 = vector.load %arg16[%c0_324, %c2_325, %c1_326, %c0_327] : memref<2x6x10x128xf32, #tpu.memory_space<vmem>>, vector<2x4x8x128xf32>
    %c0_328 = arith.constant 0 : index
    %c0_329 = arith.constant 0 : index
    %c0_330 = arith.constant 0 : index
    %c896 = arith.constant 896 : index
    %116 = vector.load %arg17[%c0_328, %c0_329, %c0_330, %c896] : memref<2x4x8x1152xf32, #tpu.memory_space<vmem>>, vector<2x4x8x128xf32>
    tpu.vector_store %arg17[%c0_328, %c0_329, %c0_330, %c896], %115 {strides = array<i32>} : memref<2x4x8x1152xf32, #tpu.memory_space<vmem>>, vector<2x4x8x128xf32>,
    %c0_331 = arith.constant 0 : index
    %c2_332 = arith.constant 2 : index
    %c2_333 = arith.constant 2 : index
    %c0_334 = arith.constant 0 : index
    %117 = vector.load %arg16[%c0_331, %c2_332, %c2_333, %c0_334] : memref<2x6x10x128xf32, #tpu.memory_space<vmem>>, vector<2x4x8x128xf32>
    %c0_335 = arith.constant 0 : index
    %c0_336 = arith.constant 0 : index
    %c0_337 = arith.constant 0 : index
    %c1024 = arith.constant 1024 : index
    %118 = vector.load %arg17[%c0_335, %c0_336, %c0_337, %c1024] : memref<2x4x8x1152xf32, #tpu.memory_space<vmem>>, vector<2x4x8x128xf32>
    tpu.vector_store %arg17[%c0_335, %c0_336, %c0_337, %c1024], %117 {strides = array<i32>} : memref<2x4x8x1152xf32, #tpu.memory_space<vmem>>, vector<2x4x8x128xf32>,
    %c0_338 = arith.constant 0 : index
    %c0_339 = arith.constant 0 : index
    %c0_340 = arith.constant 0 : index
    %c0_341 = arith.constant 0 : index
    %119 = vector.load %arg17[%c0_338, %c0_339, %c0_340, %c0_341] : memref<2x4x8x1152xf32, #tpu.memory_space<vmem>>, vector<2x4x8x1152xf32>
    %120 = vector.shape_cast %119 : vector<2x4x8x1152xf32> to vector<64x1152xf32>
    %c0_342 = arith.constant 0 : index
    %c0_343 = arith.constant 0 : index
    %121 = vector.load %arg7[%c0_342, %c0_343] : memref<1152x128xf32, #tpu.memory_space<vmem>>, vector<1152x128xf32>
    %cst_344 = arith.constant dense<0.000000e+00> : vector<64x128xf32>
    %122 = tpu.matmul %120, %121, %cst_344 {dimension_numbers = #tpu.dot_dimension_numbers<[1], [0], [0], [1], [0, 0, 1, 1], [], []>} : vector<64x1152xf32>, vector<1152x128xf32>, vector<64x128xf32> -> vector<64x128xf32>
    %c0_345 = arith.constant 0 : index
    %c0_346 = arith.constant 0 : index
    %123 = vector.load %arg8[%c0_345, %c0_346] : memref<1x128xf32, #tpu.memory_space<vmem>>, vector<1x128xf32>
    %124 = vector.broadcast %123 : vector<1x128xf32> to vector<64x128xf32>
    %125 = arith.addf %122, %124 : vector<64x128xf32>
    %cst_347 = arith.constant 0.000000e+00 : f32
    %126 = vector.broadcast %cst_347 : f32 to vector<64x128xf32>
    %127 = arith.maximumf %125, %126 : vector<64x128xf32>
    %128 = vector.shape_cast %127 : vector<64x128xf32> to vector<2x4x8x128xf32>
    %129 = vector.shape_cast %128 : vector<2x4x8x128xf32> to vector<2x4x4x2x128xf32>
    %cst_348 = arith.constant dense<0xFF800000> : vector<2x4x4x128xf32>
    %130 = vector.multi_reduction <maximumf>, %129, %cst_348 [3] : vector<2x4x4x2x128xf32> to vector<2x4x4x128xf32>
    %131 = vector.shape_cast %130 : vector<2x4x4x128xf32> to vector<2x2x2x4x128xf32>
    %cst_349 = arith.constant dense<0xFF800000> : vector<2x2x4x128xf32>
    %132 = vector.multi_reduction <maximumf>, %131, %cst_349 [2] : vector<2x2x2x4x128xf32> to vector<2x2x4x128xf32>
    %c0_350 = arith.constant 0 : index
    %c0_351 = arith.constant 0 : index
    %c0_352 = arith.constant 0 : index
    %c0_353 = arith.constant 0 : index
    %133 = vector.load %arg9[%c0_350, %c0_351, %c0_352, %c0_353] : memref<2x2x4x128xf32, #tpu.memory_space<vmem>>, vector<2x2x4x128xf32>
    tpu.vector_store %arg9[%c0_350, %c0_351, %c0_352, %c0_353], %132 {strides = array<i32>} : memref<2x2x4x128xf32, #tpu.memory_space<vmem>>, vector<2x2x4x128xf32>,
    return
  }
}

module attributes {stable_mosaic.version = 11 : i64} {
  func.func @bilstm_proj_kernel(%arg0: memref<2x2x512xf32, #tpu.memory_space<vmem>>, %arg1: memref<2x1xi32, #tpu.memory_space<vmem>>, %arg2: memref<2x1x1xi32, #tpu.memory_space<vmem>>, %arg3: memref<512x256xf32, #tpu.memory_space<vmem>>, %arg4: memref<1x256xf32, #tpu.memory_space<vmem>>, %arg5: memref<32x128xf32, #tpu.memory_space<vmem>>, %arg6: memref<32x128xf32, #tpu.memory_space<vmem>>, %arg7: memref<64x32xf32, #tpu.memory_space<vmem>>, %arg8: memref<1x32xf32, #tpu.memory_space<vmem>>, %arg9: memref<2x2x32xf32, #tpu.memory_space<vmem>>, %arg10: memref<2x2x128xf32, #tpu.memory_space<vmem>>, %arg11: memref<2x2x128xf32, #tpu.memory_space<vmem>>, %arg12: memref<2x2x32xf32, #tpu.memory_space<vmem>>, %arg13: memref<2x2x32xf32, #tpu.memory_space<vmem>>, %arg14: memref<2x32xf32, #tpu.memory_space<vmem>>, %arg15: memref<2x32xf32, #tpu.memory_space<vmem>>, %arg16: memref<2x32xf32, #tpu.memory_space<vmem>>, %arg17: memref<2x32xf32, #tpu.memory_space<vmem>>) attributes {dimension_semantics = [], scalar_prefetch = 0 : i64, scratch_operands = 8 : i64, tpu.core_type = #tpu.core_type<tc>} {
    %c0 = arith.constant 0 : index
    %c0_0 = arith.constant 0 : index
    %c0_1 = arith.constant 0 : index
    %0 = vector.load %arg0[%c0, %c0_0, %c0_1] : memref<2x2x512xf32, #tpu.memory_space<vmem>>, vector<2x2x512xf32>
    %1 = vector.shape_cast %0 : vector<2x2x512xf32> to vector<4x512xf32>
    %c0_2 = arith.constant 0 : index
    %c0_3 = arith.constant 0 : index
    %2 = vector.load %arg3[%c0_2, %c0_3] : memref<512x256xf32, #tpu.memory_space<vmem>>, vector<512x256xf32>
    %cst = arith.constant dense<0.000000e+00> : vector<4x256xf32>
    %3 = tpu.matmul %1, %2, %cst {dimension_numbers = #tpu.dot_dimension_numbers<[1], [0], [0], [1], [0, 0, 1, 1], [], []>} : vector<4x512xf32>, vector<512x256xf32>, vector<4x256xf32> -> vector<4x256xf32>
    %c0_4 = arith.constant 0 : index
    %c0_5 = arith.constant 0 : index
    %4 = vector.load %arg4[%c0_4, %c0_5] : memref<1x256xf32, #tpu.memory_space<vmem>>, vector<1x256xf32>
    %5 = vector.broadcast %4 : vector<1x256xf32> to vector<4x256xf32>
    %6 = arith.addf %3, %5 : vector<4x256xf32>
    %7 = vector.shape_cast %6 : vector<4x256xf32> to vector<2x2x256xf32>
    %8 = vector.extract_strided_slice %7 {offsets = [0, 0, 0], sizes = [2, 2, 128], strides = [1, 1, 1]} : vector<2x2x256xf32> to vector<2x2x128xf32>
    %c0_6 = arith.constant 0 : index
    %c0_7 = arith.constant 0 : index
    %c0_8 = arith.constant 0 : index
    %9 = vector.load %arg10[%c0_6, %c0_7, %c0_8] : memref<2x2x128xf32, #tpu.memory_space<vmem>>, vector<2x2x128xf32>
    tpu.vector_store %arg10[%c0_6, %c0_7, %c0_8], %8 {strides = array<i32>} : memref<2x2x128xf32, #tpu.memory_space<vmem>>, vector<2x2x128xf32>,
    %10 = vector.extract_strided_slice %7 {offsets = [0, 0, 128], sizes = [2, 2, 128], strides = [1, 1, 1]} : vector<2x2x256xf32> to vector<2x2x128xf32>
    %c0_9 = arith.constant 0 : index
    %c0_10 = arith.constant 0 : index
    %c0_11 = arith.constant 0 : index
    %11 = vector.load %arg11[%c0_9, %c0_10, %c0_11] : memref<2x2x128xf32, #tpu.memory_space<vmem>>, vector<2x2x128xf32>
    tpu.vector_store %arg11[%c0_9, %c0_10, %c0_11], %10 {strides = array<i32>} : memref<2x2x128xf32, #tpu.memory_space<vmem>>, vector<2x2x128xf32>,
    %cst_12 = arith.constant 0.000000e+00 : f32
    %12 = vector.broadcast %cst_12 : f32 to vector<2x32xf32>
    %c0_13 = arith.constant 0 : index
    %c0_14 = arith.constant 0 : index
    %13 = vector.load %arg14[%c0_13, %c0_14] : memref<2x32xf32, #tpu.memory_space<vmem>>, vector<2x32xf32>
    tpu.vector_store %arg14[%c0_13, %c0_14], %12 {strides = array<i32>} : memref<2x32xf32, #tpu.memory_space<vmem>>, vector<2x32xf32>,
    %cst_15 = arith.constant 0.000000e+00 : f32
    %14 = vector.broadcast %cst_15 : f32 to vector<2x32xf32>
    %c0_16 = arith.constant 0 : index
    %c0_17 = arith.constant 0 : index
    %15 = vector.load %arg15[%c0_16, %c0_17] : memref<2x32xf32, #tpu.memory_space<vmem>>, vector<2x32xf32>
    tpu.vector_store %arg15[%c0_16, %c0_17], %14 {strides = array<i32>} : memref<2x32xf32, #tpu.memory_space<vmem>>, vector<2x32xf32>,
    %cst_18 = arith.constant 0.000000e+00 : f32
    %16 = vector.broadcast %cst_18 : f32 to vector<2x32xf32>
    %c0_19 = arith.constant 0 : index
    %c0_20 = arith.constant 0 : index
    %17 = vector.load %arg16[%c0_19, %c0_20] : memref<2x32xf32, #tpu.memory_space<vmem>>, vector<2x32xf32>
    tpu.vector_store %arg16[%c0_19, %c0_20], %16 {strides = array<i32>} : memref<2x32xf32, #tpu.memory_space<vmem>>, vector<2x32xf32>,
    %cst_21 = arith.constant 0.000000e+00 : f32
    %18 = vector.broadcast %cst_21 : f32 to vector<2x32xf32>
    %c0_22 = arith.constant 0 : index
    %c0_23 = arith.constant 0 : index
    %19 = vector.load %arg17[%c0_22, %c0_23] : memref<2x32xf32, #tpu.memory_space<vmem>>, vector<2x32xf32>
    tpu.vector_store %arg17[%c0_22, %c0_23], %18 {strides = array<i32>} : memref<2x32xf32, #tpu.memory_space<vmem>>, vector<2x32xf32>,
    %c0_24 = arith.constant 0 : index
    %c0_25 = arith.constant 0 : index
    %20 = vector.load %arg1[%c0_24, %c0_25] : memref<2x1xi32, #tpu.memory_space<vmem>>, vector<2x1xi32>
    %c0_26 = arith.constant 0 : index
    %c0_27 = arith.constant 0 : index
    %21 = vector.load %arg5[%c0_26, %c0_27] : memref<32x128xf32, #tpu.memory_space<vmem>>, vector<32x128xf32>
    %c0_28 = arith.constant 0 : index
    %c0_29 = arith.constant 0 : index
    %22 = vector.load %arg6[%c0_28, %c0_29] : memref<32x128xf32, #tpu.memory_space<vmem>>, vector<32x128xf32>
    %c0_i32 = arith.constant 0 : i32
    %c1_i32 = arith.constant 1 : i32
    %23 = arith.subi %c1_i32, %c0_i32 : i32
    %c0_30 = arith.constant 0 : index
    %24 = arith.index_cast %c0_i32 : i32 to index
    %c0_31 = arith.constant 0 : index
    %25 = vector.load %arg10[%c0_30, %24, %c0_31] : memref<2x2x128xf32, #tpu.memory_space<vmem>>, vector<2x1x128xf32>
    %26 = vector.shape_cast %25 : vector<2x1x128xf32> to vector<2x128xf32>
    %c0_32 = arith.constant 0 : index
    %27 = arith.index_cast %23 : i32 to index
    %c0_33 = arith.constant 0 : index
    %28 = vector.load %arg11[%c0_32, %27, %c0_33] : memref<2x2x128xf32, #tpu.memory_space<vmem>>, vector<2x1x128xf32>
    %29 = vector.shape_cast %28 : vector<2x1x128xf32> to vector<2x128xf32>
    %30 = vector.broadcast %c0_i32 : i32 to vector<2x1xi32>
    %31 = arith.cmpi slt, %30, %20 : vector<2x1xi32>
    %32 = vector.broadcast %23 : i32 to vector<2x1xi32>
    %33 = arith.cmpi slt, %32, %20 : vector<2x1xi32>
    %c0_34 = arith.constant 0 : index
    %c0_35 = arith.constant 0 : index
    %34 = vector.load %arg14[%c0_34, %c0_35] : memref<2x32xf32, #tpu.memory_space<vmem>>, vector<2x32xf32>
    %c0_36 = arith.constant 0 : index
    %c0_37 = arith.constant 0 : index
    %35 = vector.load %arg15[%c0_36, %c0_37] : memref<2x32xf32, #tpu.memory_space<vmem>>, vector<2x32xf32>
    %cst_38 = arith.constant dense<0.000000e+00> : vector<2x128xf32>
    %36 = tpu.matmul %34, %21, %cst_38 {dimension_numbers = #tpu.dot_dimension_numbers<[1], [0], [0], [1], [0, 0, 1, 1], [], []>} : vector<2x32xf32>, vector<32x128xf32>, vector<2x128xf32> -> vector<2x128xf32>
    %37 = arith.addf %26, %36 : vector<2x128xf32>
    %38 = arith.negf %37 : vector<2x128xf32>
    %39 = math.exp %38 : vector<2x128xf32>
    %cst_39 = arith.constant 1.000000e+00 : f32
    %40 = vector.broadcast %cst_39 : f32 to vector<2x128xf32>
    %41 = arith.addf %40, %39 : vector<2x128xf32>
    %42 = arith.divf %40, %41 : vector<2x128xf32>
    %43 = math.tanh %37 : vector<2x128xf32>
    %44 = vector.extract_strided_slice %42 {offsets = [0, 0], sizes = [2, 32], strides = [1, 1]} : vector<2x128xf32> to vector<2x32xf32>
    %45 = vector.extract_strided_slice %42 {offsets = [0, 32], sizes = [2, 32], strides = [1, 1]} : vector<2x128xf32> to vector<2x32xf32>
    %46 = vector.extract_strided_slice %42 {offsets = [0, 96], sizes = [2, 32], strides = [1, 1]} : vector<2x128xf32> to vector<2x32xf32>
    %47 = vector.extract_strided_slice %43 {offsets = [0, 64], sizes = [2, 32], strides = [1, 1]} : vector<2x128xf32> to vector<2x32xf32>
    %48 = arith.mulf %45, %35 : vector<2x32xf32>
    %49 = arith.mulf %44, %47 : vector<2x32xf32>
    %50 = arith.addf %48, %49 : vector<2x32xf32>
    %51 = math.tanh %50 : vector<2x32xf32>
    %52 = arith.mulf %46, %51 : vector<2x32xf32>
    %c0_40 = arith.constant 0 : index
    %c0_41 = arith.constant 0 : index
    %53 = vector.load %arg16[%c0_40, %c0_41] : memref<2x32xf32, #tpu.memory_space<vmem>>, vector<2x32xf32>
    %c0_42 = arith.constant 0 : index
    %c0_43 = arith.constant 0 : index
    %54 = vector.load %arg17[%c0_42, %c0_43] : memref<2x32xf32, #tpu.memory_space<vmem>>, vector<2x32xf32>
    %cst_44 = arith.constant dense<0.000000e+00> : vector<2x128xf32>
    %55 = tpu.matmul %53, %22, %cst_44 {dimension_numbers = #tpu.dot_dimension_numbers<[1], [0], [0], [1], [0, 0, 1, 1], [], []>} : vector<2x32xf32>, vector<32x128xf32>, vector<2x128xf32> -> vector<2x128xf32>
    %56 = arith.addf %29, %55 : vector<2x128xf32>
    %57 = arith.negf %56 : vector<2x128xf32>
    %58 = math.exp %57 : vector<2x128xf32>
    %cst_45 = arith.constant 1.000000e+00 : f32
    %59 = vector.broadcast %cst_45 : f32 to vector<2x128xf32>
    %60 = arith.addf %59, %58 : vector<2x128xf32>
    %61 = arith.divf %59, %60 : vector<2x128xf32>
    %62 = math.tanh %56 : vector<2x128xf32>
    %63 = vector.extract_strided_slice %61 {offsets = [0, 0], sizes = [2, 32], strides = [1, 1]} : vector<2x128xf32> to vector<2x32xf32>
    %64 = vector.extract_strided_slice %61 {offsets = [0, 32], sizes = [2, 32], strides = [1, 1]} : vector<2x128xf32> to vector<2x32xf32>
    %65 = vector.extract_strided_slice %61 {offsets = [0, 96], sizes = [2, 32], strides = [1, 1]} : vector<2x128xf32> to vector<2x32xf32>
    %66 = vector.extract_strided_slice %62 {offsets = [0, 64], sizes = [2, 32], strides = [1, 1]} : vector<2x128xf32> to vector<2x32xf32>
    %67 = arith.mulf %64, %54 : vector<2x32xf32>
    %68 = arith.mulf %63, %66 : vector<2x32xf32>
    %69 = arith.addf %67, %68 : vector<2x32xf32>
    %70 = math.tanh %69 : vector<2x32xf32>
    %71 = arith.mulf %65, %70 : vector<2x32xf32>
    %c0_46 = arith.constant 0 : index
    %c0_47 = arith.constant 0 : index
    %72 = vector.load %arg14[%c0_46, %c0_47] : memref<2x32xf32, #tpu.memory_space<vmem>>, vector<2x32xf32>
    %73 = vector.shape_cast %31 : vector<2x1xi1> to vector<2x1xi1>
    %74 = vector.broadcast %73 : vector<2x1xi1> to vector<2x32xi1>
    %75 = arith.select %74, %52, %72 : vector<2x32xi1>, vector<2x32xf32>
    %c0_48 = arith.constant 0 : index
    %c0_49 = arith.constant 0 : index
    %76 = vector.load %arg14[%c0_48, %c0_49] : memref<2x32xf32, #tpu.memory_space<vmem>>, vector<2x32xf32>
    tpu.vector_store %arg14[%c0_48, %c0_49], %75 {strides = array<i32>} : memref<2x32xf32, #tpu.memory_space<vmem>>, vector<2x32xf32>,
    %c0_50 = arith.constant 0 : index
    %c0_51 = arith.constant 0 : index
    %77 = vector.load %arg15[%c0_50, %c0_51] : memref<2x32xf32, #tpu.memory_space<vmem>>, vector<2x32xf32>
    %78 = vector.shape_cast %31 : vector<2x1xi1> to vector<2x1xi1>
    %79 = vector.broadcast %78 : vector<2x1xi1> to vector<2x32xi1>
    %80 = arith.select %79, %50, %77 : vector<2x32xi1>, vector<2x32xf32>
    %c0_52 = arith.constant 0 : index
    %c0_53 = arith.constant 0 : index
    %81 = vector.load %arg15[%c0_52, %c0_53] : memref<2x32xf32, #tpu.memory_space<vmem>>, vector<2x32xf32>
    tpu.vector_store %arg15[%c0_52, %c0_53], %80 {strides = array<i32>} : memref<2x32xf32, #tpu.memory_space<vmem>>, vector<2x32xf32>,
    %c0_54 = arith.constant 0 : index
    %c0_55 = arith.constant 0 : index
    %82 = vector.load %arg16[%c0_54, %c0_55] : memref<2x32xf32, #tpu.memory_space<vmem>>, vector<2x32xf32>
    %83 = vector.shape_cast %33 : vector<2x1xi1> to vector<2x1xi1>
    %84 = vector.broadcast %83 : vector<2x1xi1> to vector<2x32xi1>
    %85 = arith.select %84, %71, %82 : vector<2x32xi1>, vector<2x32xf32>
    %c0_56 = arith.constant 0 : index
    %c0_57 = arith.constant 0 : index
    %86 = vector.load %arg16[%c0_56, %c0_57] : memref<2x32xf32, #tpu.memory_space<vmem>>, vector<2x32xf32>
    tpu.vector_store %arg16[%c0_56, %c0_57], %85 {strides = array<i32>} : memref<2x32xf32, #tpu.memory_space<vmem>>, vector<2x32xf32>,
    %c0_58 = arith.constant 0 : index
    %c0_59 = arith.constant 0 : index
    %87 = vector.load %arg17[%c0_58, %c0_59] : memref<2x32xf32, #tpu.memory_space<vmem>>, vector<2x32xf32>
    %88 = vector.shape_cast %33 : vector<2x1xi1> to vector<2x1xi1>
    %89 = vector.broadcast %88 : vector<2x1xi1> to vector<2x32xi1>
    %90 = arith.select %89, %69, %87 : vector<2x32xi1>, vector<2x32xf32>
    %c0_60 = arith.constant 0 : index
    %c0_61 = arith.constant 0 : index
    %91 = vector.load %arg17[%c0_60, %c0_61] : memref<2x32xf32, #tpu.memory_space<vmem>>, vector<2x32xf32>
    tpu.vector_store %arg17[%c0_60, %c0_61], %90 {strides = array<i32>} : memref<2x32xf32, #tpu.memory_space<vmem>>, vector<2x32xf32>,
    %cst_62 = arith.constant 0.000000e+00 : f32
    %92 = vector.shape_cast %31 : vector<2x1xi1> to vector<2x1xi1>
    %93 = vector.broadcast %92 : vector<2x1xi1> to vector<2x32xi1>
    %94 = vector.broadcast %cst_62 : f32 to vector<2x32xf32>
    %95 = arith.select %93, %52, %94 : vector<2x32xi1>, vector<2x32xf32>
    %96 = vector.shape_cast %95 : vector<2x32xf32> to vector<2x1x32xf32>
    %c0_63 = arith.constant 0 : index
    %97 = arith.index_cast %c0_i32 : i32 to index
    %c0_64 = arith.constant 0 : index
    %98 = vector.load %arg12[%c0_63, %97, %c0_64] : memref<2x2x32xf32, #tpu.memory_space<vmem>>, vector<2x1x32xf32>
    tpu.vector_store %arg12[%c0_63, %97, %c0_64], %96 {strides = array<i32>} : memref<2x2x32xf32, #tpu.memory_space<vmem>>, vector<2x1x32xf32>,
    %cst_65 = arith.constant 0.000000e+00 : f32
    %99 = vector.shape_cast %33 : vector<2x1xi1> to vector<2x1xi1>
    %100 = vector.broadcast %99 : vector<2x1xi1> to vector<2x32xi1>
    %101 = vector.broadcast %cst_65 : f32 to vector<2x32xf32>
    %102 = arith.select %100, %71, %101 : vector<2x32xi1>, vector<2x32xf32>
    %103 = vector.shape_cast %102 : vector<2x32xf32> to vector<2x1x32xf32>
    %c0_66 = arith.constant 0 : index
    %104 = arith.index_cast %23 : i32 to index
    %c0_67 = arith.constant 0 : index
    %105 = vector.load %arg13[%c0_66, %104, %c0_67] : memref<2x2x32xf32, #tpu.memory_space<vmem>>, vector<2x1x32xf32>
    tpu.vector_store %arg13[%c0_66, %104, %c0_67], %103 {strides = array<i32>} : memref<2x2x32xf32, #tpu.memory_space<vmem>>, vector<2x1x32xf32>,
    %c1_i32_68 = arith.constant 1 : i32
    %c1_i32_69 = arith.constant 1 : i32
    %106 = arith.subi %c1_i32_69, %c1_i32_68 : i32
    %c0_70 = arith.constant 0 : index
    %107 = arith.index_cast %c1_i32_68 : i32 to index
    %c0_71 = arith.constant 0 : index
    %108 = vector.load %arg10[%c0_70, %107, %c0_71] : memref<2x2x128xf32, #tpu.memory_space<vmem>>, vector<2x1x128xf32>
    %109 = vector.shape_cast %108 : vector<2x1x128xf32> to vector<2x128xf32>
    %c0_72 = arith.constant 0 : index
    %110 = arith.index_cast %106 : i32 to index
    %c0_73 = arith.constant 0 : index
    %111 = vector.load %arg11[%c0_72, %110, %c0_73] : memref<2x2x128xf32, #tpu.memory_space<vmem>>, vector<2x1x128xf32>
    %112 = vector.shape_cast %111 : vector<2x1x128xf32> to vector<2x128xf32>
    %113 = vector.broadcast %c1_i32_68 : i32 to vector<2x1xi32>
    %114 = arith.cmpi slt, %113, %20 : vector<2x1xi32>
    %115 = vector.broadcast %106 : i32 to vector<2x1xi32>
    %116 = arith.cmpi slt, %115, %20 : vector<2x1xi32>
    %c0_74 = arith.constant 0 : index
    %c0_75 = arith.constant 0 : index
    %117 = vector.load %arg14[%c0_74, %c0_75] : memref<2x32xf32, #tpu.memory_space<vmem>>, vector<2x32xf32>
    %c0_76 = arith.constant 0 : index
    %c0_77 = arith.constant 0 : index
    %118 = vector.load %arg15[%c0_76, %c0_77] : memref<2x32xf32, #tpu.memory_space<vmem>>, vector<2x32xf32>
    %cst_78 = arith.constant dense<0.000000e+00> : vector<2x128xf32>
    %119 = tpu.matmul %117, %21, %cst_78 {dimension_numbers = #tpu.dot_dimension_numbers<[1], [0], [0], [1], [0, 0, 1, 1], [], []>} : vector<2x32xf32>, vector<32x128xf32>, vector<2x128xf32> -> vector<2x128xf32>
    %120 = arith.addf %109, %119 : vector<2x128xf32>
    %121 = arith.negf %120 : vector<2x128xf32>
    %122 = math.exp %121 : vector<2x128xf32>
    %cst_79 = arith.constant 1.000000e+00 : f32
    %123 = vector.broadcast %cst_79 : f32 to vector<2x128xf32>
    %124 = arith.addf %123, %122 : vector<2x128xf32>
    %125 = arith.divf %123, %124 : vector<2x128xf32>
    %126 = math.tanh %120 : vector<2x128xf32>
    %127 = vector.extract_strided_slice %125 {offsets = [0, 0], sizes = [2, 32], strides = [1, 1]} : vector<2x128xf32> to vector<2x32xf32>
    %128 = vector.extract_strided_slice %125 {offsets = [0, 32], sizes = [2, 32], strides = [1, 1]} : vector<2x128xf32> to vector<2x32xf32>
    %129 = vector.extract_strided_slice %125 {offsets = [0, 96], sizes = [2, 32], strides = [1, 1]} : vector<2x128xf32> to vector<2x32xf32>
    %130 = vector.extract_strided_slice %126 {offsets = [0, 64], sizes = [2, 32], strides = [1, 1]} : vector<2x128xf32> to vector<2x32xf32>
    %131 = arith.mulf %128, %118 : vector<2x32xf32>
    %132 = arith.mulf %127, %130 : vector<2x32xf32>
    %133 = arith.addf %131, %132 : vector<2x32xf32>
    %134 = math.tanh %133 : vector<2x32xf32>
    %135 = arith.mulf %129, %134 : vector<2x32xf32>
    %c0_80 = arith.constant 0 : index
    %c0_81 = arith.constant 0 : index
    %136 = vector.load %arg16[%c0_80, %c0_81] : memref<2x32xf32, #tpu.memory_space<vmem>>, vector<2x32xf32>
    %c0_82 = arith.constant 0 : index
    %c0_83 = arith.constant 0 : index
    %137 = vector.load %arg17[%c0_82, %c0_83] : memref<2x32xf32, #tpu.memory_space<vmem>>, vector<2x32xf32>
    %cst_84 = arith.constant dense<0.000000e+00> : vector<2x128xf32>
    %138 = tpu.matmul %136, %22, %cst_84 {dimension_numbers = #tpu.dot_dimension_numbers<[1], [0], [0], [1], [0, 0, 1, 1], [], []>} : vector<2x32xf32>, vector<32x128xf32>, vector<2x128xf32> -> vector<2x128xf32>
    %139 = arith.addf %112, %138 : vector<2x128xf32>
    %140 = arith.negf %139 : vector<2x128xf32>
    %141 = math.exp %140 : vector<2x128xf32>
    %cst_85 = arith.constant 1.000000e+00 : f32
    %142 = vector.broadcast %cst_85 : f32 to vector<2x128xf32>
    %143 = arith.addf %142, %141 : vector<2x128xf32>
    %144 = arith.divf %142, %143 : vector<2x128xf32>
    %145 = math.tanh %139 : vector<2x128xf32>
    %146 = vector.extract_strided_slice %144 {offsets = [0, 0], sizes = [2, 32], strides = [1, 1]} : vector<2x128xf32> to vector<2x32xf32>
    %147 = vector.extract_strided_slice %144 {offsets = [0, 32], sizes = [2, 32], strides = [1, 1]} : vector<2x128xf32> to vector<2x32xf32>
    %148 = vector.extract_strided_slice %144 {offsets = [0, 96], sizes = [2, 32], strides = [1, 1]} : vector<2x128xf32> to vector<2x32xf32>
    %149 = vector.extract_strided_slice %145 {offsets = [0, 64], sizes = [2, 32], strides = [1, 1]} : vector<2x128xf32> to vector<2x32xf32>
    %150 = arith.mulf %147, %137 : vector<2x32xf32>
    %151 = arith.mulf %146, %149 : vector<2x32xf32>
    %152 = arith.addf %150, %151 : vector<2x32xf32>
    %153 = math.tanh %152 : vector<2x32xf32>
    %154 = arith.mulf %148, %153 : vector<2x32xf32>
    %c0_86 = arith.constant 0 : index
    %c0_87 = arith.constant 0 : index
    %155 = vector.load %arg14[%c0_86, %c0_87] : memref<2x32xf32, #tpu.memory_space<vmem>>, vector<2x32xf32>
    %156 = vector.shape_cast %114 : vector<2x1xi1> to vector<2x1xi1>
    %157 = vector.broadcast %156 : vector<2x1xi1> to vector<2x32xi1>
    %158 = arith.select %157, %135, %155 : vector<2x32xi1>, vector<2x32xf32>
    %c0_88 = arith.constant 0 : index
    %c0_89 = arith.constant 0 : index
    %159 = vector.load %arg14[%c0_88, %c0_89] : memref<2x32xf32, #tpu.memory_space<vmem>>, vector<2x32xf32>
    tpu.vector_store %arg14[%c0_88, %c0_89], %158 {strides = array<i32>} : memref<2x32xf32, #tpu.memory_space<vmem>>, vector<2x32xf32>,
    %c0_90 = arith.constant 0 : index
    %c0_91 = arith.constant 0 : index
    %160 = vector.load %arg15[%c0_90, %c0_91] : memref<2x32xf32, #tpu.memory_space<vmem>>, vector<2x32xf32>
    %161 = vector.shape_cast %114 : vector<2x1xi1> to vector<2x1xi1>
    %162 = vector.broadcast %161 : vector<2x1xi1> to vector<2x32xi1>
    %163 = arith.select %162, %133, %160 : vector<2x32xi1>, vector<2x32xf32>
    %c0_92 = arith.constant 0 : index
    %c0_93 = arith.constant 0 : index
    %164 = vector.load %arg15[%c0_92, %c0_93] : memref<2x32xf32, #tpu.memory_space<vmem>>, vector<2x32xf32>
    tpu.vector_store %arg15[%c0_92, %c0_93], %163 {strides = array<i32>} : memref<2x32xf32, #tpu.memory_space<vmem>>, vector<2x32xf32>,
    %c0_94 = arith.constant 0 : index
    %c0_95 = arith.constant 0 : index
    %165 = vector.load %arg16[%c0_94, %c0_95] : memref<2x32xf32, #tpu.memory_space<vmem>>, vector<2x32xf32>
    %166 = vector.shape_cast %116 : vector<2x1xi1> to vector<2x1xi1>
    %167 = vector.broadcast %166 : vector<2x1xi1> to vector<2x32xi1>
    %168 = arith.select %167, %154, %165 : vector<2x32xi1>, vector<2x32xf32>
    %c0_96 = arith.constant 0 : index
    %c0_97 = arith.constant 0 : index
    %169 = vector.load %arg16[%c0_96, %c0_97] : memref<2x32xf32, #tpu.memory_space<vmem>>, vector<2x32xf32>
    tpu.vector_store %arg16[%c0_96, %c0_97], %168 {strides = array<i32>} : memref<2x32xf32, #tpu.memory_space<vmem>>, vector<2x32xf32>,
    %c0_98 = arith.constant 0 : index
    %c0_99 = arith.constant 0 : index
    %170 = vector.load %arg17[%c0_98, %c0_99] : memref<2x32xf32, #tpu.memory_space<vmem>>, vector<2x32xf32>
    %171 = vector.shape_cast %116 : vector<2x1xi1> to vector<2x1xi1>
    %172 = vector.broadcast %171 : vector<2x1xi1> to vector<2x32xi1>
    %173 = arith.select %172, %152, %170 : vector<2x32xi1>, vector<2x32xf32>
    %c0_100 = arith.constant 0 : index
    %c0_101 = arith.constant 0 : index
    %174 = vector.load %arg17[%c0_100, %c0_101] : memref<2x32xf32, #tpu.memory_space<vmem>>, vector<2x32xf32>
    tpu.vector_store %arg17[%c0_100, %c0_101], %173 {strides = array<i32>} : memref<2x32xf32, #tpu.memory_space<vmem>>, vector<2x32xf32>,
    %cst_102 = arith.constant 0.000000e+00 : f32
    %175 = vector.shape_cast %114 : vector<2x1xi1> to vector<2x1xi1>
    %176 = vector.broadcast %175 : vector<2x1xi1> to vector<2x32xi1>
    %177 = vector.broadcast %cst_102 : f32 to vector<2x32xf32>
    %178 = arith.select %176, %135, %177 : vector<2x32xi1>, vector<2x32xf32>
    %179 = vector.shape_cast %178 : vector<2x32xf32> to vector<2x1x32xf32>
    %c0_103 = arith.constant 0 : index
    %180 = arith.index_cast %c1_i32_68 : i32 to index
    %c0_104 = arith.constant 0 : index
    %181 = vector.load %arg12[%c0_103, %180, %c0_104] : memref<2x2x32xf32, #tpu.memory_space<vmem>>, vector<2x1x32xf32>
    tpu.vector_store %arg12[%c0_103, %180, %c0_104], %179 {strides = array<i32>} : memref<2x2x32xf32, #tpu.memory_space<vmem>>, vector<2x1x32xf32>,
    %cst_105 = arith.constant 0.000000e+00 : f32
    %182 = vector.shape_cast %116 : vector<2x1xi1> to vector<2x1xi1>
    %183 = vector.broadcast %182 : vector<2x1xi1> to vector<2x32xi1>
    %184 = vector.broadcast %cst_105 : f32 to vector<2x32xf32>
    %185 = arith.select %183, %154, %184 : vector<2x32xi1>, vector<2x32xf32>
    %186 = vector.shape_cast %185 : vector<2x32xf32> to vector<2x1x32xf32>
    %c0_106 = arith.constant 0 : index
    %187 = arith.index_cast %106 : i32 to index
    %c0_107 = arith.constant 0 : index
    %188 = vector.load %arg13[%c0_106, %187, %c0_107] : memref<2x2x32xf32, #tpu.memory_space<vmem>>, vector<2x1x32xf32>
    tpu.vector_store %arg13[%c0_106, %187, %c0_107], %186 {strides = array<i32>} : memref<2x2x32xf32, #tpu.memory_space<vmem>>, vector<2x1x32xf32>,
    %c2_i32 = arith.constant 2 : i32
    %c0_108 = arith.constant 0 : index
    %c0_109 = arith.constant 0 : index
    %c0_110 = arith.constant 0 : index
    %189 = vector.load %arg12[%c0_108, %c0_109, %c0_110] : memref<2x2x32xf32, #tpu.memory_space<vmem>>, vector<2x2x32xf32>
    %190 = vector.shape_cast %189 : vector<2x2x32xf32> to vector<4x32xf32>
    %c0_111 = arith.constant 0 : index
    %c0_112 = arith.constant 0 : index
    %c0_113 = arith.constant 0 : index
    %191 = vector.load %arg13[%c0_111, %c0_112, %c0_113] : memref<2x2x32xf32, #tpu.memory_space<vmem>>, vector<2x2x32xf32>
    %192 = vector.shape_cast %191 : vector<2x2x32xf32> to vector<4x32xf32>
    %c0_114 = arith.constant 0 : index
    %c0_115 = arith.constant 0 : index
    %193 = vector.load %arg7[%c0_114, %c0_115] : memref<64x32xf32, #tpu.memory_space<vmem>>, vector<64x32xf32>
    %194 = vector.extract_strided_slice %193 {offsets = [0, 0], sizes = [32, 32], strides = [1, 1]} : vector<64x32xf32> to vector<32x32xf32>
    %cst_116 = arith.constant dense<0.000000e+00> : vector<4x32xf32>
    %195 = tpu.matmul %190, %194, %cst_116 {dimension_numbers = #tpu.dot_dimension_numbers<[1], [0], [0], [1], [0, 0, 1, 1], [], []>} : vector<4x32xf32>, vector<32x32xf32>, vector<4x32xf32> -> vector<4x32xf32>
    %196 = vector.extract_strided_slice %193 {offsets = [32, 0], sizes = [32, 32], strides = [1, 1]} : vector<64x32xf32> to vector<32x32xf32>
    %cst_117 = arith.constant dense<0.000000e+00> : vector<4x32xf32>
    %197 = tpu.matmul %192, %196, %cst_117 {dimension_numbers = #tpu.dot_dimension_numbers<[1], [0], [0], [1], [0, 0, 1, 1], [], []>} : vector<4x32xf32>, vector<32x32xf32>, vector<4x32xf32> -> vector<4x32xf32>
    %198 = arith.addf %195, %197 : vector<4x32xf32>
    %c0_118 = arith.constant 0 : index
    %c0_119 = arith.constant 0 : index
    %199 = vector.load %arg8[%c0_118, %c0_119] : memref<1x32xf32, #tpu.memory_space<vmem>>, vector<1x32xf32>
    %200 = vector.broadcast %199 : vector<1x32xf32> to vector<4x32xf32>
    %201 = arith.addf %198, %200 : vector<4x32xf32>
    %202 = math.tanh %201 : vector<4x32xf32>
    %203 = vector.shape_cast %202 : vector<4x32xf32> to vector<2x2x32xf32>
    %204 = tpu.iota {dimensions = array<i32: 1>} : vector<2x2x32xi32>
    %c0_120 = arith.constant 0 : index
    %c0_121 = arith.constant 0 : index
    %c0_122 = arith.constant 0 : index
    %205 = vector.load %arg2[%c0_120, %c0_121, %c0_122] : memref<2x1x1xi32, #tpu.memory_space<vmem>>, vector<2x1x1xi32>
    %206 = vector.broadcast %205 : vector<2x1x1xi32> to vector<2x2x32xi32>
    %207 = arith.cmpi slt, %204, %206 : vector<2x2x32xi32>
    %cst_123 = arith.constant 0.000000e+00 : f32
    %208 = vector.broadcast %cst_123 : f32 to vector<2x2x32xf32>
    %209 = arith.select %207, %203, %208 : vector<2x2x32xi1>, vector<2x2x32xf32>
    %c0_124 = arith.constant 0 : index
    %c0_125 = arith.constant 0 : index
    %c0_126 = arith.constant 0 : index
    %210 = vector.load %arg9[%c0_124, %c0_125, %c0_126] : memref<2x2x32xf32, #tpu.memory_space<vmem>>, vector<2x2x32xf32>
    tpu.vector_store %arg9[%c0_124, %c0_125, %c0_126], %209 {strides = array<i32>} : memref<2x2x32xf32, #tpu.memory_space<vmem>>, vector<2x2x32xf32>,
    return
  }
}

</mosaic_0001>

<llo_original>
// kernel: encoder_forward.3
$region0: #{encoder_forward.3}
  #allocation0 [shape = 'u32[]', space=smem, size = 0x4, offset = 0x4, fixed_abs, tag = 'smem constant byte address 0x4 - core index']
  #allocation1 [shape = 'u32[72,128]{1,0:T(1,128)}', space=vmem, size = 0x9000, scoped, tag = 'internal scratch']
  #allocation2 [shape = 'f32[2,2,128]{2,1,0:T(2,128)}', space=vmem, size = 0x800, scoped, tag = 'scratch operand']
  #allocation3 [shape = 'f32[2,2,128]{2,1,0:T(2,128)}', space=vmem, size = 0x800, scoped, tag = 'scratch operand']
  #allocation4 [shape = 'f32[2,2,32]{2,1,0:T(2,128)}', space=vmem, size = 0x800, scoped, tag = 'scratch operand']
  #allocation5 [shape = 'f32[2,2,32]{2,1,0:T(2,128)}', space=vmem, size = 0x800, scoped, tag = 'scratch operand']
  #allocation6 [shape = 'f32[2,32]{1,0:T(2,128)}', space=vmem, size = 0x400, scoped, tag = 'scratch operand']
  #allocation7 [shape = 'f32[2,32]{1,0:T(2,128)}', space=vmem, size = 0x400, scoped, tag = 'scratch operand']
  #allocation8 [shape = 'f32[2,32]{1,0:T(2,128)}', space=vmem, size = 0x400, scoped, tag = 'scratch operand']
  #allocation9 [shape = 'f32[2,32]{1,0:T(2,128)}', space=vmem, size = 0x400, scoped, tag = 'scratch operand']
  %s0 = inlined_call_operand.vmem [shape: f32[2,2,512], index: 0, kind: input, shape index: {}]
  %s1 = inlined_call_operand.vmem [shape: s32[2,1], index: 1, kind: input, shape index: {}]
  %s2 = inlined_call_operand.vmem [shape: s32[2,1,1], index: 2, kind: input, shape index: {}]
  %s3 = inlined_call_operand.vmem [shape: f32[512,256], index: 3, kind: input, shape index: {}]
  %s4 = inlined_call_operand.vmem [shape: f32[1,256], index: 4, kind: input, shape index: {}]
  %s5 = inlined_call_operand.vmem [shape: f32[32,128], index: 5, kind: input, shape index: {}]
  %s6 = inlined_call_operand.vmem [shape: f32[32,128], index: 6, kind: input, shape index: {}]
  %s7 = inlined_call_operand.vmem [shape: f32[64,32], index: 7, kind: input, shape index: {}]
  %s8 = inlined_call_operand.vmem [shape: f32[1,32], index: 8, kind: input, shape index: {}]
  %s9 = inlined_call_operand.hbm [shape: f32[2,2,32], index: 9, kind: output, shape index: {}]
  %s10 = sld [smem:[#allocation0]]
  $region46: #{encoder_forward.3} parent=0
    _
  %s12 = ssub.s32 1, %s10
  %s13 = scalar_select 0, %s12, %s10
  $region1: #{encoder_forward.3} parent=0
    #allocation10 [shape = 'u8[2048]{0}', space=vmem, size = 0x800, scoped, tag = 'output window, operand 0, single buffered']
    #allocation11 [shape = 's32[1]{0}', space=sflag, size = 0x4, scoped, tag = 'scoped memory for encoder_forward.3']
    %14 = vsyncpa [#allocation11], 0
    // Predicated region
    $region2: #{encoder_forward.3} parent=1 // pred_check
      _
    $region3: #{encoder_forward.3} parent=1 // pred_check_branch
      %16 = sbr.rel (0) target = $region5
    $region4: #{encoder_forward.3} parent=1 // pred_region
      _
    $region5: #{encoder_forward.3} parent=1 // pred_fallthru
      _
    // Predicated region
    $region6: #{encoder_forward.3} parent=1 // pred_check
      _
    $region7: #{encoder_forward.3} parent=1 // pred_check_branch
      %18 = sbr.rel (0) target = $region9
    $region8: #{encoder_forward.3} parent=1 // pred_region
      _
    $region9: #{encoder_forward.3} parent=1 // pred_fallthru
      _
    // Predicated region
    $region10: #{encoder_forward.3} parent=1 // pred_check
      _
    $region11: #{encoder_forward.3} parent=1 // pred_check_branch
      %20 = sbr.rel (0) target = $region13
    $region12: #{encoder_forward.3} parent=1 // pred_region
      _
    $region13: #{encoder_forward.3} parent=1 // pred_fallthru
      _
    // Predicated region
    $region14: #{encoder_forward.3} parent=1 // pred_check
      _
    $region15: #{encoder_forward.3} parent=1 // pred_check_branch
      %22 = sbr.rel (0) target = $region17
    $region16: #{encoder_forward.3} parent=1 // pred_region
      _
    $region17: #{encoder_forward.3} parent=1 // pred_fallthru
      _
    // Predicated region
    $region18: #{encoder_forward.3} parent=1 // pred_check
      _
    $region19: #{encoder_forward.3} parent=1 // pred_check_branch
      %24 = sbr.rel (0) target = $region21
    $region20: #{encoder_forward.3} parent=1 // pred_region
      _
    $region21: #{encoder_forward.3} parent=1 // pred_fallthru
      _
    // Predicated region
    $region22: #{encoder_forward.3} parent=1 // pred_check
      _
    $region23: #{encoder_forward.3} parent=1 // pred_check_branch
      %26 = sbr.rel (0) target = $region25
    $region24: #{encoder_forward.3} parent=1 // pred_region
      _
    $region25: #{encoder_forward.3} parent=1 // pred_fallthru
      _
    // Predicated region
    $region26: #{encoder_forward.3} parent=1 // pred_check
      _
    $region27: #{encoder_forward.3} parent=1 // pred_check_branch
      %28 = sbr.rel (0) target = $region29
    $region28: #{encoder_forward.3} parent=1 // pred_region
      _
    $region29: #{encoder_forward.3} parent=1 // pred_fallthru
      _
    // Predicated region
    $region30: #{encoder_forward.3} parent=1 // pred_check
      _
    $region31: #{encoder_forward.3} parent=1 // pred_check_branch
      %30 = sbr.rel (0) target = $region33
    $region32: #{encoder_forward.3} parent=1 // pred_region
      _
    $region33: #{encoder_forward.3} parent=1 // pred_fallthru
      _
    // Predicated region
    $region34: #{encoder_forward.3} parent=1 // pred_check
      _
    $region35: #{encoder_forward.3} parent=1 // pred_check_branch
      %32 = sbr.rel (0) target = $region37
    $region36: #{encoder_forward.3} parent=1 // pred_region
      _
    $region37: #{encoder_forward.3} parent=1 // pred_fallthru
      _
    %v33 = vld [vmem:[%s0] sm:$0xff]
    %v34 = vld [vmem:[%s0 + $0x8] sm:$0xff]
    %v35 = vld [vmem:[%s3] sm:$0xff]
    %v36 = vld [vmem:[%s3 + $0x8] sm:$0xff]
    %v37 = vld [vmem:[%s3 + $0x10] sm:$0xff]
    %v38 = vld [vmem:[%s3 + $0x18] sm:$0xff]
    %v39 = vld [vmem:[%s3 + $0x20] sm:$0xff]
    %v40 = vld [vmem:[%s3 + $0x28] sm:$0xff]
    %v41 = vld [vmem:[%s3 + $0x30] sm:$0xff]
    %v42 = vld [vmem:[%s3 + $0x38] sm:$0xff]
    %v43 = vld [vmem:[%s3 + $0x40] sm:$0xff]
    %v44 = vld [vmem:[%s3 + $0x48] sm:$0xff]
    %v45 = vld [vmem:[%s3 + $0x50] sm:$0xff]
    %v46 = vld [vmem:[%s3 + $0x58] sm:$0xff]
    %v47 = vld [vmem:[%s3 + $0x60] sm:$0xff]
    %v48 = vld [vmem:[%s3 + $0x68] sm:$0xff]
    %v49 = vld [vmem:[%s3 + $0x70] sm:$0xff]
    %v50 = vld [vmem:[%s3 + $0x78] sm:$0xff]
    %v51 = vld [vmem:[%s3 + $0x80] sm:$0xff]
    %v52 = vld [vmem:[%s3 + $0x88] sm:$0xff]
    %v53 = vld [vmem:[%s3 + $0x90] sm:$0xff]
    %v54 = vld [vmem:[%s3 + $0x98] sm:$0xff]
    %v55 = vld [vmem:[%s3 + $0xa0] sm:$0xff]
    %v56 = vld [vmem:[%s3 + $0xa8] sm:$0xff]
    %v57 = vld [vmem:[%s3 + $0xb0] sm:$0xff]
    %v58 = vld [vmem:[%s3 + $0xb8] sm:$0xff]
    %v59 = vld [vmem:[%s3 + $0xc0] sm:$0xff]
    %v60 = vld [vmem:[%s3 + $0xc8] sm:$0xff]
    %v61 = vld [vmem:[%s3 + $0xd0] sm:$0xff]
    %v62 = vld [vmem:[%s3 + $0xd8] sm:$0xff]
    %v63 = vld [vmem:[%s3 + $0xe0] sm:$0xff]
    %v64 = vld [vmem:[%s3 + $0xe8] sm:$0xff]
    %v65 = vld [vmem:[%s3 + $0xf0] sm:$0xff]
    %v66 = vld [vmem:[%s3 + $0xf8] sm:$0xff]
    %v67 = vld [vmem:[%s3 + $0x100] sm:$0xff]
    %v68 = vld [vmem:[%s3 + $0x108] sm:$0xff]
    %v69 = vld [vmem:[%s3 + $0x110] sm:$0xff]
    %v70 = vld [vmem:[%s3 + $0x118] sm:$0xff]
    %v71 = vld [vmem:[%s3 + $0x120] sm:$0xff]
    %v72 = vld [vmem:[%s3 + $0x128] sm:$0xff]
    %v73 = vld [vmem:[%s3 + $0x130] sm:$0xff]
    %v74 = vld [vmem:[%s3 + $0x138] sm:$0xff]
    %v75 = vld [vmem:[%s3 + $0x140] sm:$0xff]
    %v76 = vld [vmem:[%s3 + $0x148] sm:$0xff]
    %v77 = vld [vmem:[%s3 + $0x150] sm:$0xff]
    %v78 = vld [vmem:[%s3 + $0x158] sm:$0xff]
    %v79 = vld [vmem:[%s3 + $0x160] sm:$0xff]
    %v80 = vld [vmem:[%s3 + $0x168] sm:$0xff]
    %v81 = vld [vmem:[%s3 + $0x170] sm:$0xff]
    %v82 = vld [vmem:[%s3 + $0x178] sm:$0xff]
    %v83 = vld [vmem:[%s3 + $0x180] sm:$0xff]
    %v84 = vld [vmem:[%s3 + $0x188] sm:$0xff]
    %v85 = vld [vmem:[%s3 + $0x190] sm:$0xff]
    %v86 = vld [vmem:[%s3 + $0x198] sm:$0xff]
    %v87 = vld [vmem:[%s3 + $0x1a0] sm:$0xff]
    %v88 = vld [vmem:[%s3 + $0x1a8] sm:$0xff]
    %v89 = vld [vmem:[%s3 + $0x1b0] sm:$0xff]
    %v90 = vld [vmem:[%s3 + $0x1b8] sm:$0xff]
    %v91 = vld [vmem:[%s3 + $0x1c0] sm:$0xff]
    %v92 = vld [vmem:[%s3 + $0x1c8] sm:$0xff]
    %v93 = vld [vmem:[%s3 + $0x1d0] sm:$0xff]
    %v94 = vld [vmem:[%s3 + $0x1d8] sm:$0xff]
    %v95 = vld [vmem:[%s3 + $0x1e0] sm:$0xff]
    %v96 = vld [vmem:[%s3 + $0x1e8] sm:$0xff]
    %v97 = vld [vmem:[%s3 + $0x1f0] sm:$0xff]
    %v98 = vld [vmem:[%s3 + $0x1f8] sm:$0xff]
    %v99 = vld [vmem:[%s3 + $0x200] sm:$0xff]
    %v100 = vld [vmem:[%s3 + $0x208] sm:$0xff]
    %v101 = vld [vmem:[%s3 + $0x210] sm:$0xff]
    %v102 = vld [vmem:[%s3 + $0x218] sm:$0xff]
    %v103 = vld [vmem:[%s3 + $0x220] sm:$0xff]
    %v104 = vld [vmem:[%s3 + $0x228] sm:$0xff]
    %v105 = vld [vmem:[%s3 + $0x230] sm:$0xff]
    %v106 = vld [vmem:[%s3 + $0x238] sm:$0xff]
    %v107 = vld [vmem:[%s3 + $0x240] sm:$0xff]
    %v108 = vld [vmem:[%s3 + $0x248] sm:$0xff]
    %v109 = vld [vmem:[%s3 + $0x250] sm:$0xff]
    %v110 = vld [vmem:[%s3 + $0x258] sm:$0xff]
    %v111 = vld [vmem:[%s3 + $0x260] sm:$0xff]
    %v112 = vld [vmem:[%s3 + $0x268] sm:$0xff]
    %v113 = vld [vmem:[%s3 + $0x270] sm:$0xff]
    %v114 = vld [vmem:[%s3 + $0x278] sm:$0xff]
    %v115 = vld [vmem:[%s3 + $0x280] sm:$0xff]
    %v116 = vld [vmem:[%s3 + $0x288] sm:$0xff]
    %v117 = vld [vmem:[%s3 + $0x290] sm:$0xff]
    %v118 = vld [vmem:[%s3 + $0x298] sm:$0xff]
    %v119 = vld [vmem:[%s3 + $0x2a0] sm:$0xff]
    %v120 = vld [vmem:[%s3 + $0x2a8] sm:$0xff]
    %v121 = vld [vmem:[%s3 + $0x2b0] sm:$0xff]
    %v122 = vld [vmem:[%s3 + $0x2b8] sm:$0xff]
    %v123 = vld [vmem:[%s3 + $0x2c0] sm:$0xff]
    %v124 = vld [vmem:[%s3 + $0x2c8] sm:$0xff]
    %v125 = vld [vmem:[%s3 + $0x2d0] sm:$0xff]
    %v126 = vld [vmem:[%s3 + $0x2d8] sm:$0xff]
    %v127 = vld [vmem:[%s3 + $0x2e0] sm:$0xff]
    %v128 = vld [vmem:[%s3 + $0x2e8] sm:$0xff]
    %v129 = vld [vmem:[%s3 + $0x2f0] sm:$0xff]
    %v130 = vld [vmem:[%s3 + $0x2f8] sm:$0xff]
    %v131 = vld [vmem:[%s3 + $0x300] sm:$0xff]
    %v132 = vld [vmem:[%s3 + $0x308] sm:$0xff]
    %v133 = vld [vmem:[%s3 + $0x310] sm:$0xff]
    %v134 = vld [vmem:[%s3 + $0x318] sm:$0xff]
    %v135 = vld [vmem:[%s3 + $0x320] sm:$0xff]
    %v136 = vld [vmem:[%s3 + $0x328] sm:$0xff]
    %v137 = vld [vmem:[%s3 + $0x330] sm:$0xff]
    %v138 = vld [vmem:[%s3 + $0x338] sm:$0xff]
    %v139 = vld [vmem:[%s3 + $0x340] sm:$0xff]
    %v140 = vld [vmem:[%s3 + $0x348] sm:$0xff]
    %v141 = vld [vmem:[%s3 + $0x350] sm:$0xff]
    %v142 = vld [vmem:[%s3 + $0x358] sm:$0xff]
    %v143 = vld [vmem:[%s3 + $0x360] sm:$0xff]
    %v144 = vld [vmem:[%s3 + $0x368] sm:$0xff]
    %v145 = vld [vmem:[%s3 + $0x370] sm:$0xff]
    %v146 = vld [vmem:[%s3 + $0x378] sm:$0xff]
    %v147 = vld [vmem:[%s3 + $0x380] sm:$0xff]
    %v148 = vld [vmem:[%s3 + $0x388] sm:$0xff]
    %v149 = vld [vmem:[%s3 + $0x390] sm:$0xff]
    %v150 = vld [vmem:[%s3 + $0x398] sm:$0xff]
    %v151 = vld [vmem:[%s3 + $0x3a0] sm:$0xff]
    %v152 = vld [vmem:[%s3 + $0x3a8] sm:$0xff]
    %v153 = vld [vmem:[%s3 + $0x3b0] sm:$0xff]
    %v154 = vld [vmem:[%s3 + $0x3b8] sm:$0xff]
    %v155 = vld [vmem:[%s3 + $0x3c0] sm:$0xff]
    %v156 = vld [vmem:[%s3 + $0x3c8] sm:$0xff]
    %v157 = vld [vmem:[%s3 + $0x3d0] sm:$0xff]
    %v158 = vld [vmem:[%s3 + $0x3d8] sm:$0xff]
    %v159 = vld [vmem:[%s3 + $0x3e0] sm:$0xff]
    %v160 = vld [vmem:[%s3 + $0x3e8] sm:$0xff]
    %v161 = vld [vmem:[%s3 + $0x3f0] sm:$0xff]
    %v162 = vld [vmem:[%s3 + $0x3f8] sm:$0xff]
    %v163 = vld [vmem:[%s4] sm:$0x3]
    %v165 = vperm.slane %v163, 0
    %v166 = vperm.slane %v163, 1
    %171 = vst [vmem:[#allocation1] ss:$4 sm:$0xff] %v33
    %s172 = scalar_lea.vmem [#allocation1], 1
    %173 = vst [vmem:[%s172] ss:$4 sm:$0xff] %v34
    %v174 = vld.sshfl [vmem:[#allocation1] sm:$0xff pattern:$0x73625140]
    %v175 = vld.sshfl [vmem:[#allocation1 + $0x8] sm:$0xff pattern:$0x73625140]
    %v176 = vld.sshfl [vmem:[#allocation1 + $0x10] sm:$0xff pattern:$0x73625140]
    %v177 = vld.sshfl [vmem:[#allocation1 + $0x18] sm:$0xff pattern:$0x73625140]
    %182 = vmatpush.msra.mxu0 %v65
    %183 = vmatpush.msra.mxu0 %v63
    %184 = vmatpush.msra.mxu0 %v61
    %185 = vmatpush.msra.mxu0 %v59
    %186 = vmatpush.msra.mxu0 %v57
    %187 = vmatpush.msra.mxu0 %v55
    %188 = vmatpush.msra.mxu0 %v53
    %189 = vmatpush.msra.mxu0 %v51
    %190 = vmatpush.msra.mxu0 %v49
    %191 = vmatpush.msra.mxu0 %v47
    %192 = vmatpush.msra.mxu0 %v45
    %193 = vmatpush.msra.mxu0 %v43
    %194 = vmatpush.msra.mxu0 %v41
    %195 = vmatpush.msra.mxu0 %v39
    %196 = vmatpush.msra.mxu0 %v37
    %197 = vmatpush.msra.mxu0 %v35
    %198 = vmatmul.f32.gmra.mxu0 %v174
    %v199 = vpop.f32.mrf.mxu0
    %v200 = vadd.f32 %v165, %v199
    %201 = vdwg.mxu0
    %202 = vmatpush.msra.mxu0 %v97
    %203 = vmatpush.msra.mxu0 %v95
    %204 = vmatpush.msra.mxu0 %v93
    %205 = vmatpush.msra.mxu0 %v91
    %206 = vmatpush.msra.mxu0 %v89
    %207 = vmatpush.msra.mxu0 %v87
    %208 = vmatpush.msra.mxu0 %v85
    %209 = vmatpush.msra.mxu0 %v83
    %210 = vmatpush.msra.mxu0 %v81
    %211 = vmatpush.msra.mxu0 %v79
    %212 = vmatpush.msra.mxu0 %v77
    %213 = vmatpush.msra.mxu0 %v75
    %214 = vmatpush.msra.mxu0 %v73
    %215 = vmatpush.msra.mxu0 %v71
    %216 = vmatpush.msra.mxu0 %v69
    %217 = vmatpush.msra.mxu0 %v67
    %218 = vmatmul.f32.gmra.mxu0 %v175
    %v219 = vpop.f32.mrf.mxu0
    %v220 = vadd.f32 %v200, %v219
    %221 = vdwg.mxu0
    %222 = vmatpush.msra.mxu0 %v129
    %223 = vmatpush.msra.mxu0 %v127
    %224 = vmatpush.msra.mxu0 %v125
    %225 = vmatpush.msra.mxu0 %v123
    %226 = vmatpush.msra.mxu0 %v121
    %227 = vmatpush.msra.mxu0 %v119
    %228 = vmatpush.msra.mxu0 %v117
    %229 = vmatpush.msra.mxu0 %v115
    %230 = vmatpush.msra.mxu0 %v113
    %231 = vmatpush.msra.mxu0 %v111
    %232 = vmatpush.msra.mxu0 %v109
    %233 = vmatpush.msra.mxu0 %v107
    %234 = vmatpush.msra.mxu0 %v105
    %235 = vmatpush.msra.mxu0 %v103
    %236 = vmatpush.msra.mxu0 %v101
    %237 = vmatpush.msra.mxu0 %v99
    %238 = vmatmul.f32.gmra.mxu0 %v176
    %v239 = vpop.f32.mrf.mxu0
    %v240 = vadd.f32 %v220, %v239
    %241 = vdwg.mxu0
    %242 = vmatpush.msra.mxu0 %v161
    %243 = vmatpush.msra.mxu0 %v159
    %244 = vmatpush.msra.mxu0 %v157
    %245 = vmatpush.msra.mxu0 %v155
    %246 = vmatpush.msra.mxu0 %v153
    %247 = vmatpush.msra.mxu0 %v151
    %248 = vmatpush.msra.mxu0 %v149
    %249 = vmatpush.msra.mxu0 %v147
    %250 = vmatpush.msra.mxu0 %v145
    %251 = vmatpush.msra.mxu0 %v143
    %252 = vmatpush.msra.mxu0 %v141
    %253 = vmatpush.msra.mxu0 %v139
    %254 = vmatpush.msra.mxu0 %v137
    %255 = vmatpush.msra.mxu0 %v135
    %256 = vmatpush.msra.mxu0 %v133
    %257 = vmatpush.msra.mxu0 %v131
    %258 = vmatmul.f32.gmra.mxu0 %v177
    %v259 = vpop.f32.mrf.mxu0
    %v260 = vadd.f32 %v240, %v259
    %261 = vdwg.mxu0
    %262 = vmatpush.msra.mxu0 %v66
    %263 = vmatpush.msra.mxu0 %v64
    %264 = vmatpush.msra.mxu0 %v62
    %265 = vmatpush.msra.mxu0 %v60
    %266 = vmatpush.msra.mxu0 %v58
    %267 = vmatpush.msra.mxu0 %v56
    %268 = vmatpush.msra.mxu0 %v54
    %269 = vmatpush.msra.mxu0 %v52
    %270 = vmatpush.msra.mxu0 %v50
    %271 = vmatpush.msra.mxu0 %v48
    %272 = vmatpush.msra.mxu0 %v46
    %273 = vmatpush.msra.mxu0 %v44
    %274 = vmatpush.msra.mxu0 %v42
    %275 = vmatpush.msra.mxu0 %v40
    %276 = vmatpush.msra.mxu0 %v38
    %277 = vmatpush.msra.mxu0 %v36
    %278 = vmatmul.f32.gmra.mxu0 %v174
    %v279 = vpop.f32.mrf.mxu0
    %v280 = vadd.f32 %v166, %v279
    %281 = vdwg.mxu0
    %282 = vmatpush.msra.mxu0 %v98
    %283 = vmatpush.msra.mxu0 %v96
    %284 = vmatpush.msra.mxu0 %v94
    %285 = vmatpush.msra.mxu0 %v92
    %286 = vmatpush.msra.mxu0 %v90
    %287 = vmatpush.msra.mxu0 %v88
    %288 = vmatpush.msra.mxu0 %v86
    %289 = vmatpush.msra.mxu0 %v84
    %290 = vmatpush.msra.mxu0 %v82
    %291 = vmatpush.msra.mxu0 %v80
    %292 = vmatpush.msra.mxu0 %v78
    %293 = vmatpush.msra.mxu0 %v76
    %294 = vmatpush.msra.mxu0 %v74
    %295 = vmatpush.msra.mxu0 %v72
    %296 = vmatpush.msra.mxu0 %v70
    %297 = vmatpush.msra.mxu0 %v68
    %298 = vmatmul.f32.gmra.mxu0 %v175
    %v299 = vpop.f32.mrf.mxu0
    %v300 = vadd.f32 %v280, %v299
    %301 = vdwg.mxu0
    %302 = vmatpush.msra.mxu0 %v130
    %303 = vmatpush.msra.mxu0 %v128
    %304 = vmatpush.msra.mxu0 %v126
    %305 = vmatpush.msra.mxu0 %v124
    %306 = vmatpush.msra.mxu0 %v122
    %307 = vmatpush.msra.mxu0 %v120
    %308 = vmatpush.msra.mxu0 %v118
    %309 = vmatpush.msra.mxu0 %v116
    %310 = vmatpush.msra.mxu0 %v114
    %311 = vmatpush.msra.mxu0 %v112
    %312 = vmatpush.msra.mxu0 %v110
    %313 = vmatpush.msra.mxu0 %v108
    %314 = vmatpush.msra.mxu0 %v106
    %315 = vmatpush.msra.mxu0 %v104
    %316 = vmatpush.msra.mxu0 %v102
    %317 = vmatpush.msra.mxu0 %v100
    %318 = vmatmul.f32.gmra.mxu0 %v176
    %v319 = vpop.f32.mrf.mxu0
    %v320 = vadd.f32 %v300, %v319
    %321 = vdwg.mxu0
    %322 = vmatpush.msra.mxu0 %v162
    %323 = vmatpush.msra.mxu0 %v160
    %324 = vmatpush.msra.mxu0 %v158
    %325 = vmatpush.msra.mxu0 %v156
    %326 = vmatpush.msra.mxu0 %v154
    %327 = vmatpush.msra.mxu0 %v152
    %328 = vmatpush.msra.mxu0 %v150
    %329 = vmatpush.msra.mxu0 %v148
    %330 = vmatpush.msra.mxu0 %v146
    %331 = vmatpush.msra.mxu0 %v144
    %332 = vmatpush.msra.mxu0 %v142
    %333 = vmatpush.msra.mxu0 %v140
    %334 = vmatpush.msra.mxu0 %v138
    %335 = vmatpush.msra.mxu0 %v136
    %336 = vmatpush.msra.mxu0 %v134
    %337 = vmatpush.msra.mxu0 %v132
    %338 = vmatmul.f32.gmra.mxu0 %v177
    %v339 = vpop.f32.mrf.mxu0
    %v340 = vadd.f32 %v320, %v339
    %341 = vdwg.mxu0
    %v344 = vrot.slane %v340, 6
    %vm345 = vcmask 1041408
    %v346 = vsel %vm345, %v260, %v344
    %vm347 = vcmask 1043458
    %v348 = vsel %vm347, %v260, %v344
    %v349 = vrot.slane %v348, 2
    %352 = vst [vmem:[#allocation2] sm:$0x3] %v346
    %353 = vst [vmem:[#allocation2 + $0x2] sm:$0x3] %v349
    %354 = vst [vmem:[#allocation1] ss:$4 sm:$0xff] %v346
    %v355 = vld.sshfl [vmem:[#allocation1 + $0x8] sm:$0xff pattern:$0x73625140]
    %s356 = scalar_lea.vmem [#allocation1], 32
    %357 = vst [vmem:[%s356] ss:$4 sm:$0xff] %v349
    %v358 = vld.sshfl [vmem:[#allocation1 + $0x28] sm:$0xff pattern:$0x73625140]
    %361 = vst [vmem:[#allocation3] sm:$0x3] %v355
    %362 = vst [vmem:[#allocation3 + $0x2] sm:$0x3] %v358
    %vm363 = vcmask 254976
    %364 = vst.msk [vmem:[#allocation6] sm:$0x3] %vm363, 0.0
    %365 = vst.msk [vmem:[#allocation7] sm:$0x3] %vm363, 0.0
    %366 = vst.msk [vmem:[#allocation8] sm:$0x3] %vm363, 0.0
    %367 = vst.msk [vmem:[#allocation9] sm:$0x3] %vm363, 0.0
    %v368 = vld [vmem:[%s1] sm:$0x3]
    %v369 = vld [vmem:[%s5] sm:$0xff]
    %v370 = vld [vmem:[%s5 + $0x8] sm:$0xff]
    %v371 = vld [vmem:[%s5 + $0x10] sm:$0xff]
    %v372 = vld [vmem:[%s5 + $0x18] sm:$0xff]
    %v373 = vld [vmem:[%s6] sm:$0xff]
    %v374 = vld [vmem:[%s6 + $0x8] sm:$0xff]
    %v375 = vld [vmem:[%s6 + $0x10] sm:$0xff]
    %v376 = vld [vmem:[%s6 + $0x18] sm:$0xff]
    %v377 = vld [vmem:[#allocation2] sm:$0x1]
    %v378 = vld [vmem:[#allocation2 + $0x2] sm:$0x1]
    %v379 = vld [vmem:[#allocation3 + $0x1] sm:$0x1]
    %v380 = vld [vmem:[#allocation3 + $0x3] sm:$0x1]
    %vm381 = vcmp.gt.s32.totalorder %v368, 0
    %vm382 = vcmp.gt.s32.totalorder %v368, 1
    %v383 = vld [vmem:[#allocation6] sm:$0x3]
    %v384 = vld [vmem:[#allocation7] sm:$0x3]
    %vm385 = vcmask 261120
    %v387 = vsel %vm385, %v383, 0
    %389 = vmatpush.msra.mxu0 0.0
    %390 = vmatpush.msra.mxu0 0.0
    %391 = vmatpush.msra.mxu0 0.0
    %392 = vmatpush.msra.mxu0 0.0
    %393 = vmatpush.msra.mxu0 0.0
    %394 = vmatpush.msra.mxu0 0.0
    %395 = vmatpush.msra.mxu0 0.0
    %396 = vmatpush.msra.mxu0 0.0
    %397 = vmatpush.msra.mxu0 0.0
    %398 = vmatpush.msra.mxu0 0.0
    %399 = vmatpush.msra.mxu0 0.0
    %400 = vmatpush.msra.mxu0 0.0
    %401 = vmatpush.msra.mxu0 %v372
    %402 = vmatpush.msra.mxu0 %v371
    %403 = vmatpush.msra.mxu0 %v370
    %404 = vmatpush.msra.mxu0 %v369
    %405 = vmatmul.f32.gmra.mxu0 %v387
    %v406 = vpop.f32.mrf.mxu0
    %v407 = vadd.f32 0.0, %v406
    %408 = vdwg.mxu0
    %v410 = vrot.slane %v407, 1
    %v413 = vadd.f32 %v377, %v407
    %v414 = vadd.f32 %v378, %v410
    %v415 = vxor.u32 %v413, 2147483648
    %v416 = vxor.u32 %v414, 2147483648
    %v417 = vmul.f32 %v415, 1.442695
    %v418 = vpow.pop %v417
    %v419 = vmul.f32 %v416, 1.442695
    %v420 = vpow.pop %v419
    %v421 = vadd.f32 %v418, 1.0
    %v422 = vadd.f32 %v420, 1.0
    %v423 = vrcp.pop %v421
    %v424 = vmul.f32 %v421, %v423
    %v425 = vsub.f32 1.0, %v424
    %v426 = vmul.f32 %v423, %v425
    %v427 = vadd.f32 %v423, %v426
    %vm428 = vweird.f32 %v421
    %vm429 = vweird.f32 %v423
    %vm430 = vmor %vm428, %vm429
    %v431 = vsel %vm430, %v423, %v427
    %v432 = vand.u32 2147483647, %v421
    %vm433 = vcmp.eq.f32.partialorder %v432, 8.507059e+37
    %v434 = vand.u32 %v421, 2147483648
    %v435 = vor.u32 1.1754944e-38, %v434
    %v436 = vsel %vm433, %v435, %v431
    %v437 = vmul.f32 1.0, %v436
    %v438 = vrcp.pop %v422
    %v439 = vmul.f32 %v422, %v438
    %v440 = vsub.f32 1.0, %v439
    %v441 = vmul.f32 %v438, %v440
    %v442 = vadd.f32 %v438, %v441
    %vm443 = vweird.f32 %v422
    %vm444 = vweird.f32 %v438
    %vm445 = vmor %vm443, %vm444
    %v446 = vsel %vm445, %v438, %v442
    %v447 = vand.u32 2147483647, %v422
    %vm448 = vcmp.eq.f32.partialorder %v447, 8.507059e+37
    %v449 = vand.u32 %v422, 2147483648
    %v450 = vor.u32 1.1754944e-38, %v449
    %v451 = vsel %vm448, %v450, %v446
    %v452 = vmul.f32 1.0, %v451
    %v453 = vtanh.pop %v413
    %v454 = vtanh.pop %v414
    %v456 = vrot.slane %v384, 1
    %457 = vrot.lane.b32.xlu0 %v384, 32
    %v458 = vpop.permute.xlu0 %457
    %459 = vrot.lane.b32.xlu0 %v456, 32
    %v460 = vpop.permute.xlu0 %459
    %v463 = vmul.f32 %v437, %v458
    %v464 = vmul.f32 %v452, %v460
    %467 = vrot.lane.b32.xlu0 %v453, 64
    %v468 = vpop.permute.xlu0 %467
    %469 = vrot.lane.b32.xlu0 %v454, 64
    %v470 = vpop.permute.xlu0 %469
    %v473 = vmul.f32 %v437, %v468
    %v474 = vmul.f32 %v452, %v470
    %477 = vrot.lane.b32.xlu0 %v473, 32
    %v478 = vpop.permute.xlu0 %477
    %479 = vrot.lane.b32.xlu0 %v474, 32
    %v480 = vpop.permute.xlu0 %479
    %v483 = vadd.f32 %v463, %v478
    %v484 = vadd.f32 %v464, %v480
    %v485 = vtanh.pop %v483
    %v486 = vtanh.pop %v484
    %489 = vrot.lane.b32.xlu0 %v485, 64
    %v490 = vpop.permute.xlu0 %489
    %491 = vrot.lane.b32.xlu0 %v486, 64
    %v492 = vpop.permute.xlu0 %491
    %v495 = vmul.f32 %v437, %v490
    %v496 = vmul.f32 %v452, %v492
    %v497 = vld [vmem:[#allocation8] sm:$0x3]
    %v498 = vld [vmem:[#allocation9] sm:$0x3]
    %v500 = vsel %vm385, %v497, 0
    %502 = vmatpush.msra.mxu0 0.0
    %503 = vmatpush.msra.mxu0 0.0
    %504 = vmatpush.msra.mxu0 0.0
    %505 = vmatpush.msra.mxu0 0.0
    %506 = vmatpush.msra.mxu0 0.0
    %507 = vmatpush.msra.mxu0 0.0
    %508 = vmatpush.msra.mxu0 0.0
    %509 = vmatpush.msra.mxu0 0.0
    %510 = vmatpush.msra.mxu0 0.0
    %511 = vmatpush.msra.mxu0 0.0
    %512 = vmatpush.msra.mxu0 0.0
    %513 = vmatpush.msra.mxu0 0.0
    %514 = vmatpush.msra.mxu0 %v376
    %515 = vmatpush.msra.mxu0 %v375
    %516 = vmatpush.msra.mxu0 %v374
    %517 = vmatpush.msra.mxu0 %v373
    %518 = vmatmul.f32.gmra.mxu0 %v500
    %v519 = vpop.f32.mrf.mxu0
    %v520 = vadd.f32 0.0, %v519
    %521 = vdwg.mxu0
    %v523 = vrot.slane %v520, 1
    %v526 = vadd.f32 %v379, %v520
    %v527 = vadd.f32 %v380, %v523
    %v528 = vxor.u32 %v526, 2147483648
    %v529 = vxor.u32 %v527, 2147483648
    %v530 = vmul.f32 %v528, 1.442695
    %v531 = vpow.pop %v530
    %v532 = vmul.f32 %v529, 1.442695
    %v533 = vpow.pop %v532
    %v534 = vadd.f32 %v531, 1.0
    %v535 = vadd.f32 %v533, 1.0
    %v536 = vrcp.pop %v534
    %v537 = vmul.f32 %v534, %v536
    %v538 = vsub.f32 1.0, %v537
    %v539 = vmul.f32 %v536, %v538
    %v540 = vadd.f32 %v536, %v539
    %vm541 = vweird.f32 %v534
    %vm542 = vweird.f32 %v536
    %vm543 = vmor %vm541, %vm542
    %v544 = vsel %vm543, %v536, %v540
    %v545 = vand.u32 2147483647, %v534
    %vm546 = vcmp.eq.f32.partialorder %v545, 8.507059e+37
    %v547 = vand.u32 %v534, 2147483648
    %v548 = vor.u32 1.1754944e-38, %v547
    %v549 = vsel %vm546, %v548, %v544
    %v550 = vmul.f32 1.0, %v549
    %v551 = vrcp.pop %v535
    %v552 = vmul.f32 %v535, %v551
    %v553 = vsub.f32 1.0, %v552
    %v554 = vmul.f32 %v551, %v553
    %v555 = vadd.f32 %v551, %v554
    %vm556 = vweird.f32 %v535
    %vm557 = vweird.f32 %v551
    %vm558 = vmor %vm556, %vm557
    %v559 = vsel %vm558, %v551, %v555
    %v560 = vand.u32 2147483647, %v535
    %vm561 = vcmp.eq.f32.partialorder %v560, 8.507059e+37
    %v562 = vand.u32 %v535, 2147483648
    %v563 = vor.u32 1.1754944e-38, %v562
    %v564 = vsel %vm561, %v563, %v559
    %v565 = vmul.f32 1.0, %v564
    %v566 = vtanh.pop %v526
    %v567 = vtanh.pop %v527
    %v569 = vrot.slane %v498, 1
    %570 = vrot.lane.b32.xlu0 %v498, 32
    %v571 = vpop.permute.xlu0 %570
    %572 = vrot.lane.b32.xlu0 %v569, 32
    %v573 = vpop.permute.xlu0 %572
    %v576 = vmul.f32 %v550, %v571
    %v577 = vmul.f32 %v565, %v573
    %580 = vrot.lane.b32.xlu0 %v566, 64
    %v581 = vpop.permute.xlu0 %580
    %582 = vrot.lane.b32.xlu0 %v567, 64
    %v583 = vpop.permute.xlu0 %582
    %v586 = vmul.f32 %v550, %v581
    %v587 = vmul.f32 %v565, %v583
    %590 = vrot.lane.b32.xlu0 %v586, 32
    %v591 = vpop.permute.xlu0 %590
    %592 = vrot.lane.b32.xlu0 %v587, 32
    %v593 = vpop.permute.xlu0 %592
    %v596 = vadd.f32 %v576, %v591
    %v597 = vadd.f32 %v577, %v593
    %v598 = vtanh.pop %v596
    %v599 = vtanh.pop %v597
    %602 = vrot.lane.b32.xlu0 %v598, 64
    %v603 = vpop.permute.xlu0 %602
    %604 = vrot.lane.b32.xlu0 %v599, 64
    %v605 = vpop.permute.xlu0 %604
    %v608 = vmul.f32 %v550, %v603
    %v609 = vmul.f32 %v565, %v605
    %v610 = vsel %vm381, 1, 0
    %611 = vset.pattern.permute.xlu0 0
    %612 = vperm.xlu0 %611, %v610
    %v613 = vpop.permute.xlu0 %612
    %vm614 = vcmp.eq.s32.totalorder %v613, 1
    %v617 = vrot.slane %v496, 7
    %vm618 = vcmask 1041409
    %v619 = vsel %vm618, %v617, %v495
    %620 = vrot.lane.b32.xlu0 %v619, 32
    %v621 = vpop.permute.xlu0 %620
    %v623 = vsel %vm614, %v621, %v383
    %624 = vst.msk [vmem:[#allocation6] sm:$0x3] %vm363, %v623
    %v625 = vld [vmem:[#allocation7] sm:$0x3]
    %v628 = vrot.slane %v484, 7
    %v629 = vsel %vm618, %v628, %v483
    %630 = vrot.lane.b32.xlu0 %v629, 96
    %v631 = vpop.permute.xlu0 %630
    %v633 = vsel %vm614, %v631, %v625
    %634 = vst.msk [vmem:[#allocation7] sm:$0x3] %vm363, %v633
    %v635 = vld [vmem:[#allocation8] sm:$0x3]
    %v636 = vsel %vm382, 1, 0
    %637 = vset.pattern.permute.xlu0 0
    %638 = vperm.xlu0 %637, %v636
    %v639 = vpop.permute.xlu0 %638
    %vm640 = vcmp.eq.s32.totalorder %v639, 1
    %v643 = vrot.slane %v609, 7
    %v644 = vsel %vm618, %v643, %v608
    %645 = vrot.lane.b32.xlu0 %v644, 32
    %v646 = vpop.permute.xlu0 %645
    %v648 = vsel %vm640, %v646, %v635
    %649 = vst.msk [vmem:[#allocation8] sm:$0x3] %vm363, %v648
    %v650 = vld [vmem:[#allocation9] sm:$0x3]
    %v653 = vrot.slane %v597, 7
    %v654 = vsel %vm618, %v653, %v596
    %655 = vrot.lane.b32.xlu0 %v654, 96
    %v656 = vpop.permute.xlu0 %655
    %v658 = vsel %vm640, %v656, %v650
    %659 = vst.msk [vmem:[#allocation9] sm:$0x3] %vm363, %v658
    %v660 = vsel %vm614, %v621, 0.0
    %v662 = vrot.slane %v660, 1
    %vm664 = vcmask 253952
    %665 = vst.msk [vmem:[#allocation4] sm:$0x1] %vm664, %v660
    %666 = vst.msk [vmem:[#allocation4 + $0x2] sm:$0x1] %vm664, %v662
    %v667 = vsel %vm640, %v646, 0.0
    %v669 = vrot.slane %v667, 1
    %671 = vst.msk [vmem:[#allocation5 + $0x1] sm:$0x1] %vm664, %v667
    %672 = vst.msk [vmem:[#allocation5 + $0x3] sm:$0x1] %vm664, %v669
    %v673 = vld [vmem:[#allocation2 + $0x1] sm:$0x1]
    %v674 = vld [vmem:[#allocation2 + $0x3] sm:$0x1]
    %v675 = vld [vmem:[#allocation3] sm:$0x1]
    %v676 = vld [vmem:[#allocation3 + $0x2] sm:$0x1]
    %v677 = vld [vmem:[#allocation6] sm:$0x3]
    %v678 = vld [vmem:[#allocation7] sm:$0x3]
    %v680 = vsel %vm385, %v677, 0
    %682 = vmatpush.msra.mxu0 0.0
    %683 = vmatpush.msra.mxu0 0.0
    %684 = vmatpush.msra.mxu0 0.0
    %685 = vmatpush.msra.mxu0 0.0
    %686 = vmatpush.msra.mxu0 0.0
    %687 = vmatpush.msra.mxu0 0.0
    %688 = vmatpush.msra.mxu0 0.0
    %689 = vmatpush.msra.mxu0 0.0
    %690 = vmatpush.msra.mxu0 0.0
    %691 = vmatpush.msra.mxu0 0.0
    %692 = vmatpush.msra.mxu0 0.0
    %693 = vmatpush.msra.mxu0 0.0
    %694 = vmatpush.msra.mxu0 %v372
    %695 = vmatpush.msra.mxu0 %v371
    %696 = vmatpush.msra.mxu0 %v370
    %697 = vmatpush.msra.mxu0 %v369
    %698 = vmatmul.f32.gmra.mxu0 %v680
    %v699 = vpop.f32.mrf.mxu0
    %v700 = vadd.f32 0.0, %v699
    %701 = vdwg.mxu0
    %v703 = vrot.slane %v700, 1
    %v706 = vadd.f32 %v673, %v700
    %v707 = vadd.f32 %v674, %v703
    %v708 = vxor.u32 %v706, 2147483648
    %v709 = vxor.u32 %v707, 2147483648
    %v710 = vmul.f32 %v708, 1.442695
    %v711 = vpow.pop %v710
    %v712 = vmul.f32 %v709, 1.442695
    %v713 = vpow.pop %v712
    %v714 = vadd.f32 %v711, 1.0
    %v715 = vadd.f32 %v713, 1.0
    %v716 = vrcp.pop %v714
    %v717 = vmul.f32 %v714, %v716
    %v718 = vsub.f32 1.0, %v717
    %v719 = vmul.f32 %v716, %v718
    %v720 = vadd.f32 %v716, %v719
    %vm721 = vweird.f32 %v714
    %vm722 = vweird.f32 %v716
    %vm723 = vmor %vm721, %vm722
    %v724 = vsel %vm723, %v716, %v720
    %v725 = vand.u32 2147483647, %v714
    %vm726 = vcmp.eq.f32.partialorder %v725, 8.507059e+37
    %v727 = vand.u32 %v714, 2147483648
    %v728 = vor.u32 1.1754944e-38, %v727
    %v729 = vsel %vm726, %v728, %v724
    %v730 = vmul.f32 1.0, %v729
    %v731 = vrcp.pop %v715
    %v732 = vmul.f32 %v715, %v731
    %v733 = vsub.f32 1.0, %v732
    %v734 = vmul.f32 %v731, %v733
    %v735 = vadd.f32 %v731, %v734
    %vm736 = vweird.f32 %v715
    %vm737 = vweird.f32 %v731
    %vm738 = vmor %vm736, %vm737
    %v739 = vsel %vm738, %v731, %v735
    %v740 = vand.u32 2147483647, %v715
    %vm741 = vcmp.eq.f32.partialorder %v740, 8.507059e+37
    %v742 = vand.u32 %v715, 2147483648
    %v743 = vor.u32 1.1754944e-38, %v742
    %v744 = vsel %vm741, %v743, %v739
    %v745 = vmul.f32 1.0, %v744
    %v746 = vtanh.pop %v706
    %v747 = vtanh.pop %v707
    %v749 = vrot.slane %v678, 1
    %750 = vrot.lane.b32.xlu0 %v678, 32
    %v751 = vpop.permute.xlu0 %750
    %752 = vrot.lane.b32.xlu0 %v749, 32
    %v753 = vpop.permute.xlu0 %752
    %v756 = vmul.f32 %v730, %v751
    %v757 = vmul.f32 %v745, %v753
    %760 = vrot.lane.b32.xlu0 %v746, 64
    %v761 = vpop.permute.xlu0 %760
    %762 = vrot.lane.b32.xlu0 %v747, 64
    %v763 = vpop.permute.xlu0 %762
    %v766 = vmul.f32 %v730, %v761
    %v767 = vmul.f32 %v745, %v763
    %770 = vrot.lane.b32.xlu0 %v766, 32
    %v771 = vpop.permute.xlu0 %770
    %772 = vrot.lane.b32.xlu0 %v767, 32
    %v773 = vpop.permute.xlu0 %772
    %v776 = vadd.f32 %v756, %v771
    %v777 = vadd.f32 %v757, %v773
    %v778 = vtanh.pop %v776
    %v779 = vtanh.pop %v777
    %782 = vrot.lane.b32.xlu0 %v778, 64
    %v783 = vpop.permute.xlu0 %782
    %784 = vrot.lane.b32.xlu0 %v779, 64
    %v785 = vpop.permute.xlu0 %784
    %v788 = vmul.f32 %v730, %v783
    %v789 = vmul.f32 %v745, %v785
    %v790 = vld [vmem:[#allocation8] sm:$0x3]
    %v791 = vld [vmem:[#allocation9] sm:$0x3]
    %v793 = vsel %vm385, %v790, 0
    %795 = vmatpush.msra.mxu0 0.0
    %796 = vmatpush.msra.mxu0 0.0
    %797 = vmatpush.msra.mxu0 0.0
    %798 = vmatpush.msra.mxu0 0.0
    %799 = vmatpush.msra.mxu0 0.0
    %800 = vmatpush.msra.mxu0 0.0
    %801 = vmatpush.msra.mxu0 0.0
    %802 = vmatpush.msra.mxu0 0.0
    %803 = vmatpush.msra.mxu0 0.0
    %804 = vmatpush.msra.mxu0 0.0
    %805 = vmatpush.msra.mxu0 0.0
    %806 = vmatpush.msra.mxu0 0.0
    %807 = vmatpush.msra.mxu0 %v376
    %808 = vmatpush.msra.mxu0 %v375
    %809 = vmatpush.msra.mxu0 %v374
    %810 = vmatpush.msra.mxu0 %v373
    %811 = vmatmul.f32.gmra.mxu0 %v793
    %v812 = vpop.f32.mrf.mxu0
    %v813 = vadd.f32 0.0, %v812
    %814 = vdwg.mxu0
    %v816 = vrot.slane %v813, 1
    %v819 = vadd.f32 %v675, %v813
    %v820 = vadd.f32 %v676, %v816
    %v821 = vxor.u32 %v819, 2147483648
    %v822 = vxor.u32 %v820, 2147483648
    %v823 = vmul.f32 %v821, 1.442695
    %v824 = vpow.pop %v823
    %v825 = vmul.f32 %v822, 1.442695
    %v826 = vpow.pop %v825
    %v827 = vadd.f32 %v824, 1.0
    %v828 = vadd.f32 %v826, 1.0
    %v829 = vrcp.pop %v827
    %v830 = vmul.f32 %v827, %v829
    %v831 = vsub.f32 1.0, %v830
    %v832 = vmul.f32 %v829, %v831
    %v833 = vadd.f32 %v829, %v832
    %vm834 = vweird.f32 %v827
    %vm835 = vweird.f32 %v829
    %vm836 = vmor %vm834, %vm835
    %v837 = vsel %vm836, %v829, %v833
    %v838 = vand.u32 2147483647, %v827
    %vm839 = vcmp.eq.f32.partialorder %v838, 8.507059e+37
    %v840 = vand.u32 %v827, 2147483648
    %v841 = vor.u32 1.1754944e-38, %v840
    %v842 = vsel %vm839, %v841, %v837
    %v843 = vmul.f32 1.0, %v842
    %v844 = vrcp.pop %v828
    %v845 = vmul.f32 %v828, %v844
    %v846 = vsub.f32 1.0, %v845
    %v847 = vmul.f32 %v844, %v846
    %v848 = vadd.f32 %v844, %v847
    %vm849 = vweird.f32 %v828
    %vm850 = vweird.f32 %v844
    %vm851 = vmor %vm849, %vm850
    %v852 = vsel %vm851, %v844, %v848
    %v853 = vand.u32 2147483647, %v828
    %vm854 = vcmp.eq.f32.partialorder %v853, 8.507059e+37
    %v855 = vand.u32 %v828, 2147483648
    %v856 = vor.u32 1.1754944e-38, %v855
    %v857 = vsel %vm854, %v856, %v852
    %v858 = vmul.f32 1.0, %v857
    %v859 = vtanh.pop %v819
    %v860 = vtanh.pop %v820
    %v862 = vrot.slane %v791, 1
    %863 = vrot.lane.b32.xlu0 %v791, 32
    %v864 = vpop.permute.xlu0 %863
    %865 = vrot.lane.b32.xlu0 %v862, 32
    %v866 = vpop.permute.xlu0 %865
    %v869 = vmul.f32 %v843, %v864
    %v870 = vmul.f32 %v858, %v866
    %873 = vrot.lane.b32.xlu0 %v859, 64
    %v874 = vpop.permute.xlu0 %873
    %875 = vrot.lane.b32.xlu0 %v860, 64
    %v876 = vpop.permute.xlu0 %875
    %v879 = vmul.f32 %v843, %v874
    %v880 = vmul.f32 %v858, %v876
    %883 = vrot.lane.b32.xlu0 %v879, 32
    %v884 = vpop.permute.xlu0 %883
    %885 = vrot.lane.b32.xlu0 %v880, 32
    %v886 = vpop.permute.xlu0 %885
    %v889 = vadd.f32 %v869, %v884
    %v890 = vadd.f32 %v870, %v886
    %v891 = vtanh.pop %v889
    %v892 = vtanh.pop %v890
    %895 = vrot.lane.b32.xlu0 %v891, 64
    %v896 = vpop.permute.xlu0 %895
    %897 = vrot.lane.b32.xlu0 %v892, 64
    %v898 = vpop.permute.xlu0 %897
    %v901 = vmul.f32 %v843, %v896
    %v902 = vmul.f32 %v858, %v898
    %v905 = vrot.slane %v789, 7
    %v906 = vsel %vm618, %v905, %v788
    %907 = vrot.lane.b32.xlu0 %v906, 32
    %v908 = vpop.permute.xlu0 %907
    %v910 = vsel %vm640, %v908, %v677
    %911 = vst.msk [vmem:[#allocation6] sm:$0x3] %vm363, %v910
    %v912 = vld [vmem:[#allocation7] sm:$0x3]
    %v915 = vrot.slane %v777, 7
    %v916 = vsel %vm618, %v915, %v776
    %917 = vrot.lane.b32.xlu0 %v916, 96
    %v918 = vpop.permute.xlu0 %917
    %v920 = vsel %vm640, %v918, %v912
    %921 = vst.msk [vmem:[#allocation7] sm:$0x3] %vm363, %v920
    %v922 = vld [vmem:[#allocation8] sm:$0x3]
    %v925 = vrot.slane %v902, 7
    %v926 = vsel %vm618, %v925, %v901
    %927 = vrot.lane.b32.xlu0 %v926, 32
    %v928 = vpop.permute.xlu0 %927
    %v930 = vsel %vm614, %v928, %v922
    %931 = vst.msk [vmem:[#allocation8] sm:$0x3] %vm363, %v930
    %v932 = vld [vmem:[#allocation9] sm:$0x3]
    %v935 = vrot.slane %v890, 7
    %v936 = vsel %vm618, %v935, %v889
    %937 = vrot.lane.b32.xlu0 %v936, 96
    %v938 = vpop.permute.xlu0 %937
    %v940 = vsel %vm614, %v938, %v932
    %941 = vst.msk [vmem:[#allocation9] sm:$0x3] %vm363, %v940
    %v942 = vsel %vm640, %v908, 0.0
    %v944 = vrot.slane %v942, 1
    %946 = vst.msk [vmem:[#allocation4 + $0x1] sm:$0x1] %vm664, %v942
    %947 = vst.msk [vmem:[#allocation4 + $0x3] sm:$0x1] %vm664, %v944
    %v948 = vsel %vm614, %v928, 0.0
    %v950 = vrot.slane %v948, 1
    %952 = vst.msk [vmem:[#allocation5] sm:$0x1] %vm664, %v948
    %953 = vst.msk [vmem:[#allocation5 + $0x2] sm:$0x1] %vm664, %v950
    %v954 = vld [vmem:[#allocation4] sm:$0x3]
    %v955 = vld [vmem:[#allocation4 + $0x2] sm:$0x3]
    %v956 = vld [vmem:[#allocation5] sm:$0x3]
    %v957 = vld [vmem:[#allocation5 + $0x2] sm:$0x3]
    %v958 = vld [vmem:[%s7] sm:$0xff]
    %v959 = vld [vmem:[%s7 + $0x8] sm:$0xff]
    %v960 = vld [vmem:[%s7 + $0x10] sm:$0xff]
    %v961 = vld [vmem:[%s7 + $0x18] sm:$0xff]
    %v962 = vld [vmem:[%s7 + $0x20] sm:$0xff]
    %v963 = vld [vmem:[%s7 + $0x28] sm:$0xff]
    %v964 = vld [vmem:[%s7 + $0x30] sm:$0xff]
    %v965 = vld [vmem:[%s7 + $0x38] sm:$0xff]
    %968 = vst [vmem:[#allocation1] ss:$4 sm:$0xff] %v956
    %s969 = scalar_lea.vmem [#allocation1], 1
    %970 = vst [vmem:[%s969] ss:$4 sm:$0xff] %v957
    %v971 = vld.sshfl [vmem:[#allocation1] sm:$0xff pattern:$0x73625140]
    %v972 = vsel %vm385, %v971, 0
    %974 = vmatpush.msra.mxu0 0.0
    %975 = vmatpush.msra.mxu0 0.0
    %976 = vmatpush.msra.mxu0 0.0
    %977 = vmatpush.msra.mxu0 0.0
    %978 = vmatpush.msra.mxu0 0.0
    %979 = vmatpush.msra.mxu0 0.0
    %980 = vmatpush.msra.mxu0 0.0
    %981 = vmatpush.msra.mxu0 0.0
    %982 = vmatpush.msra.mxu0 0.0
    %983 = vmatpush.msra.mxu0 0.0
    %984 = vmatpush.msra.mxu0 0.0
    %985 = vmatpush.msra.mxu0 0.0
    %986 = vmatpush.msra.mxu0 %v965
    %987 = vmatpush.msra.mxu0 %v964
    %988 = vmatpush.msra.mxu0 %v963
    %989 = vmatpush.msra.mxu0 %v962
    %990 = vmatmul.f32.gmra.mxu0 %v972
    %v991 = vpop.f32.mrf.mxu0
    %v992 = vadd.f32 0.0, %v991
    %993 = vdwg.mxu0
    %996 = vst [vmem:[#allocation1] ss:$4 sm:$0xff] %v954
    %s997 = scalar_lea.vmem [#allocation1], 1
    %998 = vst [vmem:[%s997] ss:$4 sm:$0xff] %v955
    %v999 = vld.sshfl [vmem:[#allocation1] sm:$0xff pattern:$0x73625140]
    %v1000 = vsel %vm385, %v999, 0
    %1002 = vmatpush.msra.mxu0 0.0
    %1003 = vmatpush.msra.mxu0 0.0
    %1004 = vmatpush.msra.mxu0 0.0
    %1005 = vmatpush.msra.mxu0 0.0
    %1006 = vmatpush.msra.mxu0 0.0
    %1007 = vmatpush.msra.mxu0 0.0
    %1008 = vmatpush.msra.mxu0 0.0
    %1009 = vmatpush.msra.mxu0 0.0
    %1010 = vmatpush.msra.mxu0 0.0
    %1011 = vmatpush.msra.mxu0 0.0
    %1012 = vmatpush.msra.mxu0 0.0
    %1013 = vmatpush.msra.mxu0 0.0
    %1014 = vmatpush.msra.mxu0 %v961
    %1015 = vmatpush.msra.mxu0 %v960
    %1016 = vmatpush.msra.mxu0 %v959
    %1017 = vmatpush.msra.mxu0 %v958
    %1018 = vmatmul.f32.gmra.mxu0 %v1000
    %v1019 = vpop.f32.mrf.mxu0
    %v1020 = vadd.f32 %v992, %v1019
    %1021 = vdwg.mxu0
    %v1022 = vld [vmem:[%s8] sm:$0x1]
    %v1024 = vperm.slane %v1022, 0
    %v1026 = vadd.f32 %v1020, %v1024
    %v1027 = vtanh.pop %v1026
    %v1029 = vrot.slane %v1027, 2
    %v1031 = vlaneseq
    %v1032 = vshrl.u32 %v1031, 7
    %v1033 = vld [vmem:[%s2] sm:$0x1]
    %v1034 = vld [vmem:[%s2 + $0x1] sm:$0x1]
    %v1035 = vperm.slane %v1033, 0
    %v1036 = vperm.slane %v1034, 0
    %1037 = vset.pattern.permute.xlu0 0
    %1038 = vperm.xlu0 %1037, %v1035
    %v1039 = vpop.permute.xlu0 %1038
    %1040 = vset.pattern.permute.xlu0 0
    %1041 = vperm.xlu0 %1040, %v1036
    %v1042 = vpop.permute.xlu0 %1041
    %vm1043 = vcmp.lt.s32.totalorder %v1032, %v1039
    %vm1044 = vcmp.lt.s32.totalorder %v1032, %v1042
    %v1045 = vsel %vm1043, %v1027, 0.0
    %v1046 = vsel %vm1044, %v1029, 0.0
    %1047 = vst.msk [vmem:[#allocation10] sm:$0x3] %vm363, %v1045
    %1048 = vst.msk [vmem:[#allocation10 + $0x2] sm:$0x3] %vm363, %v1046
    // Predicated region
    $region38: #{encoder_forward.3} parent=1 // pred_check
      _
    $region39: #{encoder_forward.3} parent=1 // pred_check_branch
      %1050 = sbr.rel (0) target = $region41
    $region40: #{encoder_forward.3} parent=1 // pred_region
      %1052 = vsyncadd [#allocation11], 0
      %s1053 = sshll.u32 [#allocation10], 4
      %s1054 = int_to_ptr.vmem [resolvable:$true] %s1053
      %s1055 = sshll.u32 %s9, 4
      %s1056 = int_to_ptr.hbm [resolvable:$true] %s1055
      %1061 = dma.vmem_to_hbm [thread:$0]  %s1054, 64, %s1056, [#allocation11], 32, 32, 2
    $region41: #{encoder_forward.3} parent=1 // pred_fallthru
      _
    // Predicated region
    $region42: #{encoder_forward.3} parent=1 // pred_check
      _
    $region43: #{encoder_forward.3} parent=1 // pred_check_branch
      %1063 = sbr.rel (0) target = $region45
    $region44: #{encoder_forward.3} parent=1 // pred_region
      %1065 = dma.done [#allocation11], 64
    $region45: #{encoder_forward.3} parent=1 // pred_fallthru
      _
    %1066 = vsyncpa [#allocation11], 1

// kernel: encoder_forward.2
$region0: #{encoder_forward.2}
  #allocation0 [shape = 'u32[]', space=smem, size = 0x4, offset = 0x4, fixed_abs, tag = 'smem constant byte address 0x4 - core index']
  #allocation1 [shape = 'u32[72,128]{1,0:T(1,128)}', space=vmem, size = 0x9000, scoped, tag = 'internal scratch']
  #allocation2 [shape = 'f32[2,10,18,1]{3,2,1,0:T(8,128)}', space=vmem, size = 0x3c000, scoped, tag = 'scratch operand']
  #allocation3 [shape = 'f32[2,8,16,9]{3,2,1,0:T(8,128)}', space=vmem, size = 0x20000, scoped, tag = 'scratch operand']
  #allocation4 [shape = 'f32[2,10,18,64]{3,2,1,0:T(8,128)}', space=vmem, size = 0x3c000, scoped, tag = 'scratch operand']
  #allocation5 [shape = 'f32[2,8,16,576]{3,2,1,0:T(8,128)}', space=vmem, size = 0xa0000, scoped, tag = 'scratch operand']
  #allocation6 [shape = 'f32[2,6,10,64]{3,2,1,0:T(8,128)}', space=vmem, size = 0x18000, scoped, tag = 'scratch operand']
  #allocation7 [shape = 'f32[2,4,8,576]{3,2,1,0:T(8,128)}', space=vmem, size = 0x28000, scoped, tag = 'scratch operand']
  #allocation8 [shape = 'f32[2,6,10,128]{3,2,1,0:T(8,128)}', space=vmem, size = 0x18000, scoped, tag = 'scratch operand']
  #allocation9 [shape = 'f32[2,4,8,1152]{3,2,1,0:T(8,128)}', space=vmem, size = 0x48000, scoped, tag = 'scratch operand']
  %s0 = inlined_call_operand.vmem [shape: f32[2,8,16,1], index: 0, kind: input, shape index: {}]
  %s1 = inlined_call_operand.vmem [shape: f32[9,64], index: 1, kind: input, shape index: {}]
  %s2 = inlined_call_operand.vmem [shape: f32[1,64], index: 2, kind: input, shape index: {}]
  %s3 = inlined_call_operand.vmem [shape: f32[576,64], index: 3, kind: input, shape index: {}]
  %s4 = inlined_call_operand.vmem [shape: f32[1,64], index: 4, kind: input, shape index: {}]
  %s5 = inlined_call_operand.vmem [shape: f32[576,128], index: 5, kind: input, shape index: {}]
  %s6 = inlined_call_operand.vmem [shape: f32[1,128], index: 6, kind: input, shape index: {}]
  %s7 = inlined_call_operand.vmem [shape: f32[1152,128], index: 7, kind: input, shape index: {}]
  %s8 = inlined_call_operand.vmem [shape: f32[1,128], index: 8, kind: input, shape index: {}]
  %s9 = inlined_call_operand.vmem [shape: f32[2,2,4,128], index: 9, kind: output, shape index: {}]
  %s10 = sld [smem:[#allocation0]]
  $region46: #{encoder_forward.2} parent=0
    _
  %s12 = ssub.s32 1, %s10
  %s13 = scalar_select 0, %s12, %s10
  // Predicated region
  $region2: #{encoder_forward.2} parent=0 // pred_check
    _
  $region3: #{encoder_forward.2} parent=0 // pred_check_branch
    %15 = sbr.rel (0) target = $region5
  $region4: #{encoder_forward.2} parent=0 // pred_region
    _
  $region5: #{encoder_forward.2} parent=0 // pred_fallthru
    _
  // Predicated region
  $region6: #{encoder_forward.2} parent=0 // pred_check
    _
  $region7: #{encoder_forward.2} parent=0 // pred_check_branch
    %17 = sbr.rel (0) target = $region9
  $region8: #{encoder_forward.2} parent=0 // pred_region
    _
  $region9: #{encoder_forward.2} parent=0 // pred_fallthru
    _
  // Predicated region
  $region10: #{encoder_forward.2} parent=0 // pred_check
    _
  $region11: #{encoder_forward.2} parent=0 // pred_check_branch
    %19 = sbr.rel (0) target = $region13
  $region12: #{encoder_forward.2} parent=0 // pred_region
    _
  $region13: #{encoder_forward.2} parent=0 // pred_fallthru
    _
  // Predicated region
  $region14: #{encoder_forward.2} parent=0 // pred_check
    _
  $region15: #{encoder_forward.2} parent=0 // pred_check_branch
    %21 = sbr.rel (0) target = $region17
  $region16: #{encoder_forward.2} parent=0 // pred_region
    _
  $region17: #{encoder_forward.2} parent=0 // pred_fallthru
    _
  // Predicated region
  $region18: #{encoder_forward.2} parent=0 // pred_check
    _
  $region19: #{encoder_forward.2} parent=0 // pred_check_branch
    %23 = sbr.rel (0) target = $region21
  $region20: #{encoder_forward.2} parent=0 // pred_region
    _
  $region21: #{encoder_forward.2} parent=0 // pred_fallthru
    _
  // Predicated region
  $region22: #{encoder_forward.2} parent=0 // pred_check
    _
  $region23: #{encoder_forward.2} parent=0 // pred_check_branch
    %25 = sbr.rel (0) target = $region25
  $region24: #{encoder_forward.2} parent=0 // pred_region
    _
  $region25: #{encoder_forward.2} parent=0 // pred_fallthru
    _
  // Predicated region
  $region26: #{encoder_forward.2} parent=0 // pred_check
    _
  $region27: #{encoder_forward.2} parent=0 // pred_check_branch
    %27 = sbr.rel (0) target = $region29
  $region28: #{encoder_forward.2} parent=0 // pred_region
    _
  $region29: #{encoder_forward.2} parent=0 // pred_fallthru
    _
  // Predicated region
  $region30: #{encoder_forward.2} parent=0 // pred_check
    _
  $region31: #{encoder_forward.2} parent=0 // pred_check_branch
    %29 = sbr.rel (0) target = $region33
  $region32: #{encoder_forward.2} parent=0 // pred_region
    _
  $region33: #{encoder_forward.2} parent=0 // pred_fallthru
    _
  // Predicated region
  $region34: #{encoder_forward.2} parent=0 // pred_check
    _
  $region35: #{encoder_forward.2} parent=0 // pred_check_branch
    %31 = sbr.rel (0) target = $region37
  $region36: #{encoder_forward.2} parent=0 // pred_region
    _
  $region37: #{encoder_forward.2} parent=0 // pred_fallthru
    _
  %v32 = vld [vmem:[%s0] sm:$0xff]
  %v33 = vld [vmem:[%s0 + $0x8] sm:$0xff]
  %v34 = vld [vmem:[%s0 + $0x10] sm:$0xff]
  %v35 = vld [vmem:[%s0 + $0x18] sm:$0xff]
  %v36 = vld [vmem:[%s0 + $0x20] sm:$0xff]
  %v37 = vld [vmem:[%s0 + $0x28] sm:$0xff]
  %v38 = vld [vmem:[%s0 + $0x30] sm:$0xff]
  %v39 = vld [vmem:[%s0 + $0x38] sm:$0xff]
  %v40 = vld [vmem:[%s0 + $0x40] sm:$0xff]
  %v41 = vld [vmem:[%s0 + $0x48] sm:$0xff]
  %v42 = vld [vmem:[%s0 + $0x50] sm:$0xff]
  %v43 = vld [vmem:[%s0 + $0x58] sm:$0xff]
  %v44 = vld [vmem:[%s0 + $0x60] sm:$0xff]
  %v45 = vld [vmem:[%s0 + $0x68] sm:$0xff]
  %v46 = vld [vmem:[%s0 + $0x70] sm:$0xff]
  %v47 = vld [vmem:[%s0 + $0x78] sm:$0xff]
  %v48 = vld [vmem:[%s0 + $0x80] sm:$0xff]
  %v49 = vld [vmem:[%s0 + $0x88] sm:$0xff]
  %v50 = vld [vmem:[%s0 + $0x90] sm:$0xff]
  %v51 = vld [vmem:[%s0 + $0x98] sm:$0xff]
  %v52 = vld [vmem:[%s0 + $0xa0] sm:$0xff]
  %v53 = vld [vmem:[%s0 + $0xa8] sm:$0xff]
  %v54 = vld [vmem:[%s0 + $0xb0] sm:$0xff]
  %v55 = vld [vmem:[%s0 + $0xb8] sm:$0xff]
  %v56 = vld [vmem:[%s0 + $0xc0] sm:$0xff]
  %v57 = vld [vmem:[%s0 + $0xc8] sm:$0xff]
  %v58 = vld [vmem:[%s0 + $0xd0] sm:$0xff]
  %v59 = vld [vmem:[%s0 + $0xd8] sm:$0xff]
  %v60 = vld [vmem:[%s0 + $0xe0] sm:$0xff]
  %v61 = vld [vmem:[%s0 + $0xe8] sm:$0xff]
  %v62 = vld [vmem:[%s0 + $0xf0] sm:$0xff]
  %v63 = vld [vmem:[%s0 + $0xf8] sm:$0xff]
  %vm64 = vcmask 7168
  %65 = vst.msk [vmem:[#allocation2] sm:$0xff] %vm64, 0.0
  %66 = vst.msk [vmem:[#allocation2 + $0x8] sm:$0xff] %vm64, 0.0
  %vm67 = vcmask 1024
  %68 = vst.msk [vmem:[#allocation2 + $0x10] sm:$0x3] %vm67, 0.0
  %69 = vst.msk [vmem:[#allocation2 + $0x18] sm:$0xff] %vm64, 0.0
  %70 = vst.msk [vmem:[#allocation2 + $0x20] sm:$0xff] %vm64, 0.0
  %71 = vst.msk [vmem:[#allocation2 + $0x28] sm:$0x3] %vm67, 0.0
  %72 = vst.msk [vmem:[#allocation2 + $0x30] sm:$0xff] %vm64, 0.0
  %73 = vst.msk [vmem:[#allocation2 + $0x38] sm:$0xff] %vm64, 0.0
  %74 = vst.msk [vmem:[#allocation2 + $0x40] sm:$0x3] %vm67, 0.0
  %75 = vst.msk [vmem:[#allocation2 + $0x48] sm:$0xff] %vm64, 0.0
  %76 = vst.msk [vmem:[#allocation2 + $0x50] sm:$0xff] %vm64, 0.0
  %77 = vst.msk [vmem:[#allocation2 + $0x58] sm:$0x3] %vm67, 0.0
  %78 = vst.msk [vmem:[#allocation2 + $0x60] sm:$0xff] %vm64, 0.0
  %79 = vst.msk [vmem:[#allocation2 + $0x68] sm:$0xff] %vm64, 0.0
  %80 = vst.msk [vmem:[#allocation2 + $0x70] sm:$0x3] %vm67, 0.0
  %81 = vst.msk [vmem:[#allocation2 + $0x78] sm:$0xff] %vm64, 0.0
  %82 = vst.msk [vmem:[#allocation2 + $0x80] sm:$0xff] %vm64, 0.0
  %83 = vst.msk [vmem:[#allocation2 + $0x88] sm:$0x3] %vm67, 0.0
  %84 = vst.msk [vmem:[#allocation2 + $0x90] sm:$0xff] %vm64, 0.0
  %85 = vst.msk [vmem:[#allocation2 + $0x98] sm:$0xff] %vm64, 0.0
  %86 = vst.msk [vmem:[#allocation2 + $0xa0] sm:$0x3] %vm67, 0.0
  %87 = vst.msk [vmem:[#allocation2 + $0xa8] sm:$0xff] %vm64, 0.0
  %88 = vst.msk [vmem:[#allocation2 + $0xb0] sm:$0xff] %vm64, 0.0
  %89 = vst.msk [vmem:[#allocation2 + $0xb8] sm:$0x3] %vm67, 0.0
  %90 = vst.msk [vmem:[#allocation2 + $0xc0] sm:$0xff] %vm64, 0.0
  %91 = vst.msk [vmem:[#allocation2 + $0xc8] sm:$0xff] %vm64, 0.0
  %92 = vst.msk [vmem:[#allocation2 + $0xd0] sm:$0x3] %vm67, 0.0
  %93 = vst.msk [vmem:[#allocation2 + $0xd8] sm:$0xff] %vm64, 0.0
  %94 = vst.msk [vmem:[#allocation2 + $0xe0] sm:$0xff] %vm64, 0.0
  %95 = vst.msk [vmem:[#allocation2 + $0xe8] sm:$0x3] %vm67, 0.0
  %96 = vst.msk [vmem:[#allocation2 + $0xf0] sm:$0xff] %vm64, 0.0
  %97 = vst.msk [vmem:[#allocation2 + $0xf8] sm:$0xff] %vm64, 0.0
  %98 = vst.msk [vmem:[#allocation2 + $0x100] sm:$0x3] %vm67, 0.0
  %99 = vst.msk [vmem:[#allocation2 + $0x108] sm:$0xff] %vm64, 0.0
  %100 = vst.msk [vmem:[#allocation2 + $0x110] sm:$0xff] %vm64, 0.0
  %101 = vst.msk [vmem:[#allocation2 + $0x118] sm:$0x3] %vm67, 0.0
  %102 = vst.msk [vmem:[#allocation2 + $0x120] sm:$0xff] %vm64, 0.0
  %103 = vst.msk [vmem:[#allocation2 + $0x128] sm:$0xff] %vm64, 0.0
  %104 = vst.msk [vmem:[#allocation2 + $0x130] sm:$0x3] %vm67, 0.0
  %105 = vst.msk [vmem:[#allocation2 + $0x138] sm:$0xff] %vm64, 0.0
  %106 = vst.msk [vmem:[#allocation2 + $0x140] sm:$0xff] %vm64, 0.0
  %107 = vst.msk [vmem:[#allocation2 + $0x148] sm:$0x3] %vm67, 0.0
  %108 = vst.msk [vmem:[#allocation2 + $0x150] sm:$0xff] %vm64, 0.0
  %109 = vst.msk [vmem:[#allocation2 + $0x158] sm:$0xff] %vm64, 0.0
  %110 = vst.msk [vmem:[#allocation2 + $0x160] sm:$0x3] %vm67, 0.0
  %111 = vst.msk [vmem:[#allocation2 + $0x168] sm:$0xff] %vm64, 0.0
  %112 = vst.msk [vmem:[#allocation2 + $0x170] sm:$0xff] %vm64, 0.0
  %113 = vst.msk [vmem:[#allocation2 + $0x178] sm:$0x3] %vm67, 0.0
  %114 = vst.msk [vmem:[#allocation2 + $0x180] sm:$0xff] %vm64, 0.0
  %115 = vst.msk [vmem:[#allocation2 + $0x188] sm:$0xff] %vm64, 0.0
  %116 = vst.msk [vmem:[#allocation2 + $0x190] sm:$0x3] %vm67, 0.0
  %117 = vst.msk [vmem:[#allocation2 + $0x198] sm:$0xff] %vm64, 0.0
  %118 = vst.msk [vmem:[#allocation2 + $0x1a0] sm:$0xff] %vm64, 0.0
  %119 = vst.msk [vmem:[#allocation2 + $0x1a8] sm:$0x3] %vm67, 0.0
  %120 = vst.msk [vmem:[#allocation2 + $0x1b0] sm:$0xff] %vm64, 0.0
  %121 = vst.msk [vmem:[#allocation2 + $0x1b8] sm:$0xff] %vm64, 0.0
  %122 = vst.msk [vmem:[#allocation2 + $0x1c0] sm:$0x3] %vm67, 0.0
  %123 = vst.msk [vmem:[#allocation2 + $0x1c8] sm:$0xff] %vm64, 0.0
  %124 = vst.msk [vmem:[#allocation2 + $0x1d0] sm:$0xff] %vm64, 0.0
  %125 = vst.msk [vmem:[#allocation2 + $0x1d8] sm:$0x3] %vm67, 0.0
  %s126 = scalar_lea.vmem [#allocation2], 24
  %127 = vst.msk [vmem:[%s126 + $0x1] sm:$0xff] %vm64, %v32
  %128 = vst.msk [vmem:[%s126 + $0x9] sm:$0xff] %vm64, %v33
  %129 = vst.msk [vmem:[%s126 + $0x19] sm:$0xff] %vm64, %v34
  %130 = vst.msk [vmem:[%s126 + $0x21] sm:$0xff] %vm64, %v35
  %131 = vst.msk [vmem:[%s126 + $0x31] sm:$0xff] %vm64, %v36
  %132 = vst.msk [vmem:[%s126 + $0x39] sm:$0xff] %vm64, %v37
  %133 = vst.msk [vmem:[%s126 + $0x49] sm:$0xff] %vm64, %v38
  %134 = vst.msk [vmem:[%s126 + $0x51] sm:$0xff] %vm64, %v39
  %135 = vst.msk [vmem:[%s126 + $0x61] sm:$0xff] %vm64, %v40
  %136 = vst.msk [vmem:[%s126 + $0x69] sm:$0xff] %vm64, %v41
  %137 = vst.msk [vmem:[%s126 + $0x79] sm:$0xff] %vm64, %v42
  %138 = vst.msk [vmem:[%s126 + $0x81] sm:$0xff] %vm64, %v43
  %139 = vst.msk [vmem:[%s126 + $0x91] sm:$0xff] %vm64, %v44
  %140 = vst.msk [vmem:[%s126 + $0x99] sm:$0xff] %vm64, %v45
  %141 = vst.msk [vmem:[%s126 + $0xa9] sm:$0xff] %vm64, %v46
  %142 = vst.msk [vmem:[%s126 + $0xb1] sm:$0xff] %vm64, %v47
  %143 = vst.msk [vmem:[%s126 + $0xf1] sm:$0xff] %vm64, %v48
  %144 = vst.msk [vmem:[%s126 + $0xf9] sm:$0xff] %vm64, %v49
  %145 = vst.msk [vmem:[%s126 + $0x109] sm:$0xff] %vm64, %v50
  %146 = vst.msk [vmem:[%s126 + $0x111] sm:$0xff] %vm64, %v51
  %147 = vst.msk [vmem:[%s126 + $0x121] sm:$0xff] %vm64, %v52
  %148 = vst.msk [vmem:[%s126 + $0x129] sm:$0xff] %vm64, %v53
  %149 = vst.msk [vmem:[%s126 + $0x139] sm:$0xff] %vm64, %v54
  %150 = vst.msk [vmem:[%s126 + $0x141] sm:$0xff] %vm64, %v55
  %151 = vst.msk [vmem:[%s126 + $0x151] sm:$0xff] %vm64, %v56
  %152 = vst.msk [vmem:[%s126 + $0x159] sm:$0xff] %vm64, %v57
  %153 = vst.msk [vmem:[%s126 + $0x169] sm:$0xff] %vm64, %v58
  %154 = vst.msk [vmem:[%s126 + $0x171] sm:$0xff] %vm64, %v59
  %155 = vst.msk [vmem:[%s126 + $0x181] sm:$0xff] %vm64, %v60
  %156 = vst.msk [vmem:[%s126 + $0x189] sm:$0xff] %vm64, %v61
  %157 = vst.msk [vmem:[%s126 + $0x199] sm:$0xff] %vm64, %v62
  %158 = vst.msk [vmem:[%s126 + $0x1a1] sm:$0xff] %vm64, %v63
  %v159 = vld [vmem:[#allocation2] sm:$0xff]
  %v160 = vld [vmem:[#allocation2 + $0x8] sm:$0xff]
  %v161 = vld [vmem:[#allocation2 + $0x18] sm:$0xff]
  %v162 = vld [vmem:[#allocation2 + $0x20] sm:$0xff]
  %v163 = vld [vmem:[#allocation2 + $0x30] sm:$0xff]
  %v164 = vld [vmem:[#allocation2 + $0x38] sm:$0xff]
  %v165 = vld [vmem:[#allocation2 + $0x48] sm:$0xff]
  %v166 = vld [vmem:[#allocation2 + $0x50] sm:$0xff]
  %v167 = vld [vmem:[#allocation2 + $0x60] sm:$0xff]
  %v168 = vld [vmem:[#allocation2 + $0x68] sm:$0xff]
  %v169 = vld [vmem:[#allocation2 + $0x78] sm:$0xff]
  %v170 = vld [vmem:[#allocation2 + $0x80] sm:$0xff]
  %v171 = vld [vmem:[#allocation2 + $0x90] sm:$0xff]
  %v172 = vld [vmem:[#allocation2 + $0x98] sm:$0xff]
  %v173 = vld [vmem:[#allocation2 + $0xa8] sm:$0xff]
  %v174 = vld [vmem:[#allocation2 + $0xb0] sm:$0xff]
  %v175 = vld [vmem:[#allocation2 + $0xf0] sm:$0xff]
  %v176 = vld [vmem:[#allocation2 + $0xf8] sm:$0xff]
  %v177 = vld [vmem:[#allocation2 + $0x108] sm:$0xff]
  %v178 = vld [vmem:[#allocation2 + $0x110] sm:$0xff]
  %v179 = vld [vmem:[#allocation2 + $0x120] sm:$0xff]
  %v180 = vld [vmem:[#allocation2 + $0x128] sm:$0xff]
  %v181 = vld [vmem:[#allocation2 + $0x138] sm:$0xff]
  %v182 = vld [vmem:[#allocation2 + $0x140] sm:$0xff]
  %v183 = vld [vmem:[#allocation2 + $0x150] sm:$0xff]
  %v184 = vld [vmem:[#allocation2 + $0x158] sm:$0xff]
  %v185 = vld [vmem:[#allocation2 + $0x168] sm:$0xff]
  %v186 = vld [vmem:[#allocation2 + $0x170] sm:$0xff]
  %v187 = vld [vmem:[#allocation2 + $0x180] sm:$0xff]
  %v188 = vld [vmem:[#allocation2 + $0x188] sm:$0xff]
  %v189 = vld [vmem:[#allocation2 + $0x198] sm:$0xff]
  %v190 = vld [vmem:[#allocation2 + $0x1a0] sm:$0xff]
  %191 = vst.msk [vmem:[#allocation3] sm:$0xff] %vm64, %v159
  %192 = vst.msk [vmem:[#allocation3 + $0x8] sm:$0xff] %vm64, %v160
  %193 = vst.msk [vmem:[#allocation3 + $0x10] sm:$0xff] %vm64, %v161
  %194 = vst.msk [vmem:[#allocation3 + $0x18] sm:$0xff] %vm64, %v162
  %195 = vst.msk [vmem:[#allocation3 + $0x20] sm:$0xff] %vm64, %v163
  %196 = vst.msk [vmem:[#allocation3 + $0x28] sm:$0xff] %vm64, %v164
  %197 = vst.msk [vmem:[#allocation3 + $0x30] sm:$0xff] %vm64, %v165
  %198 = vst.msk [vmem:[#allocation3 + $0x38] sm:$0xff] %vm64, %v166
  %199 = vst.msk [vmem:[#allocation3 + $0x40] sm:$0xff] %vm64, %v167
  %200 = vst.msk [vmem:[#allocation3 + $0x48] sm:$0xff] %vm64, %v168
  %201 = vst.msk [vmem:[#allocation3 + $0x50] sm:$0xff] %vm64, %v169
  %202 = vst.msk [vmem:[#allocation3 + $0x58] sm:$0xff] %vm64, %v170
  %203 = vst.msk [vmem:[#allocation3 + $0x60] sm:$0xff] %vm64, %v171
  %204 = vst.msk [vmem:[#allocation3 + $0x68] sm:$0xff] %vm64, %v172
  %205 = vst.msk [vmem:[#allocation3 + $0x70] sm:$0xff] %vm64, %v173
  %206 = vst.msk [vmem:[#allocation3 + $0x78] sm:$0xff] %vm64, %v174
  %207 = vst.msk [vmem:[#allocation3 + $0x80] sm:$0xff] %vm64, %v175
  %208 = vst.msk [vmem:[#allocation3 + $0x88] sm:$0xff] %vm64, %v176
  %209 = vst.msk [vmem:[#allocation3 + $0x90] sm:$0xff] %vm64, %v177
  %210 = vst.msk [vmem:[#allocation3 + $0x98] sm:$0xff] %vm64, %v178
  %211 = vst.msk [vmem:[#allocation3 + $0xa0] sm:$0xff] %vm64, %v179
  %212 = vst.msk [vmem:[#allocation3 + $0xa8] sm:$0xff] %vm64, %v180
  %213 = vst.msk [vmem:[#allocation3 + $0xb0] sm:$0xff] %vm64, %v181
  %214 = vst.msk [vmem:[#allocation3 + $0xb8] sm:$0xff] %vm64, %v182
  %215 = vst.msk [vmem:[#allocation3 + $0xc0] sm:$0xff] %vm64, %v183
  %216 = vst.msk [vmem:[#allocation3 + $0xc8] sm:$0xff] %vm64, %v184
  %217 = vst.msk [vmem:[#allocation3 + $0xd0] sm:$0xff] %vm64, %v185
  %218 = vst.msk [vmem:[#allocation3 + $0xd8] sm:$0xff] %vm64, %v186
  %219 = vst.msk [vmem:[#allocation3 + $0xe0] sm:$0xff] %vm64, %v187
  %220 = vst.msk [vmem:[#allocation3 + $0xe8] sm:$0xff] %vm64, %v188
  %221 = vst.msk [vmem:[#allocation3 + $0xf0] sm:$0xff] %vm64, %v189
  %222 = vst.msk [vmem:[#allocation3 + $0xf8] sm:$0xff] %vm64, %v190
  %v223 = vld [vmem:[#allocation2 + $0x1] sm:$0xff]
  %v224 = vld [vmem:[#allocation2 + $0x9] sm:$0xff]
  %v225 = vld [vmem:[#allocation2 + $0x19] sm:$0xff]
  %v226 = vld [vmem:[#allocation2 + $0x21] sm:$0xff]
  %v227 = vld [vmem:[#allocation2 + $0x31] sm:$0xff]
  %v228 = vld [vmem:[#allocation2 + $0x39] sm:$0xff]
  %v229 = vld [vmem:[#allocation2 + $0x49] sm:$0xff]
  %v230 = vld [vmem:[#allocation2 + $0x51] sm:$0xff]
  %v231 = vld [vmem:[#allocation2 + $0x61] sm:$0xff]
  %v232 = vld [vmem:[#allocation2 + $0x69] sm:$0xff]
  %v233 = vld [vmem:[#allocation2 + $0x79] sm:$0xff]
  %v234 = vld [vmem:[#allocation2 + $0x81] sm:$0xff]
  %v235 = vld [vmem:[#allocation2 + $0x91] sm:$0xff]
  %v236 = vld [vmem:[#allocation2 + $0x99] sm:$0xff]
  %v237 = vld [vmem:[#allocation2 + $0xa9] sm:$0xff]
  %v238 = vld [vmem:[#allocation2 + $0xb1] sm:$0xff]
  %v239 = vld [vmem:[#allocation2 + $0xf1] sm:$0xff]
  %v240 = vld [vmem:[#allocation2 + $0xf9] sm:$0xff]
  %v241 = vld [vmem:[#allocation2 + $0x109] sm:$0xff]
  %v242 = vld [vmem:[#allocation2 + $0x111] sm:$0xff]
  %v243 = vld [vmem:[#allocation2 + $0x121] sm:$0xff]
  %v244 = vld [vmem:[#allocation2 + $0x129] sm:$0xff]
  %v245 = vld [vmem:[#allocation2 + $0x139] sm:$0xff]
  %v246 = vld [vmem:[#allocation2 + $0x141] sm:$0xff]
  %v247 = vld [vmem:[#allocation2 + $0x151] sm:$0xff]
  %v248 = vld [vmem:[#allocation2 + $0x159] sm:$0xff]
  %v249 = vld [vmem:[#allocation2 + $0x169] sm:$0xff]
  %v250 = vld [vmem:[#allocation2 + $0x171] sm:$0xff]
  %v251 = vld [vmem:[#allocation2 + $0x181] sm:$0xff]
  %v252 = vld [vmem:[#allocation2 + $0x189] sm:$0xff]
  %v253 = vld [vmem:[#allocation2 + $0x199] sm:$0xff]
  %v254 = vld [vmem:[#allocation2 + $0x1a1] sm:$0xff]
  %287 = vrot.lane.b32.xlu0 %v223, 1
  %v288 = vpop.permute.xlu0 %287
  %289 = vrot.lane.b32.xlu0 %v224, 1
  %v290 = vpop.permute.xlu0 %289
  %291 = vrot.lane.b32.xlu0 %v225, 1
  %v292 = vpop.permute.xlu0 %291
  %293 = vrot.lane.b32.xlu0 %v226, 1
  %v294 = vpop.permute.xlu0 %293
  %295 = vrot.lane.b32.xlu0 %v227, 1
  %v296 = vpop.permute.xlu0 %295
  %297 = vrot.lane.b32.xlu0 %v228, 1
  %v298 = vpop.permute.xlu0 %297
  %299 = vrot.lane.b32.xlu0 %v229, 1
  %v300 = vpop.permute.xlu0 %299
  %301 = vrot.lane.b32.xlu0 %v230, 1
  %v302 = vpop.permute.xlu0 %301
  %303 = vrot.lane.b32.xlu0 %v231, 1
  %v304 = vpop.permute.xlu0 %303
  %305 = vrot.lane.b32.xlu0 %v232, 1
  %v306 = vpop.permute.xlu0 %305
  %307 = vrot.lane.b32.xlu0 %v233, 1
  %v308 = vpop.permute.xlu0 %307
  %309 = vrot.lane.b32.xlu0 %v234, 1
  %v310 = vpop.permute.xlu0 %309
  %311 = vrot.lane.b32.xlu0 %v235, 1
  %v312 = vpop.permute.xlu0 %311
  %313 = vrot.lane.b32.xlu0 %v236, 1
  %v314 = vpop.permute.xlu0 %313
  %315 = vrot.lane.b32.xlu0 %v237, 1
  %v316 = vpop.permute.xlu0 %315
  %317 = vrot.lane.b32.xlu0 %v238, 1
  %v318 = vpop.permute.xlu0 %317
  %319 = vrot.lane.b32.xlu0 %v239, 1
  %v320 = vpop.permute.xlu0 %319
  %321 = vrot.lane.b32.xlu0 %v240, 1
  %v322 = vpop.permute.xlu0 %321
  %323 = vrot.lane.b32.xlu0 %v241, 1
  %v324 = vpop.permute.xlu0 %323
  %325 = vrot.lane.b32.xlu0 %v242, 1
  %v326 = vpop.permute.xlu0 %325
  %327 = vrot.lane.b32.xlu0 %v243, 1
  %v328 = vpop.permute.xlu0 %327
  %329 = vrot.lane.b32.xlu0 %v244, 1
  %v330 = vpop.permute.xlu0 %329
  %331 = vrot.lane.b32.xlu0 %v245, 1
  %v332 = vpop.permute.xlu0 %331
  %333 = vrot.lane.b32.xlu0 %v246, 1
  %v334 = vpop.permute.xlu0 %333
  %335 = vrot.lane.b32.xlu0 %v247, 1
  %v336 = vpop.permute.xlu0 %335
  %337 = vrot.lane.b32.xlu0 %v248, 1
  %v338 = vpop.permute.xlu0 %337
  %339 = vrot.lane.b32.xlu0 %v249, 1
  %v340 = vpop.permute.xlu0 %339
  %341 = vrot.lane.b32.xlu0 %v250, 1
  %v342 = vpop.permute.xlu0 %341
  %343 = vrot.lane.b32.xlu0 %v251, 1
  %v344 = vpop.permute.xlu0 %343
  %345 = vrot.lane.b32.xlu0 %v252, 1
  %v346 = vpop.permute.xlu0 %345
  %347 = vrot.lane.b32.xlu0 %v253, 1
  %v348 = vpop.permute.xlu0 %347
  %349 = vrot.lane.b32.xlu0 %v254, 1
  %v350 = vpop.permute.xlu0 %349
  %vm383 = vcmask 15368
  %384 = vst.msk [vmem:[#allocation3] sm:$0xff] %vm383, %v288
  %385 = vst.msk [vmem:[#allocation3 + $0x8] sm:$0xff] %vm383, %v290
  %386 = vst.msk [vmem:[#allocation3 + $0x10] sm:$0xff] %vm383, %v292
  %387 = vst.msk [vmem:[#allocation3 + $0x18] sm:$0xff] %vm383, %v294
  %388 = vst.msk [vmem:[#allocation3 + $0x20] sm:$0xff] %vm383, %v296
  %389 = vst.msk [vmem:[#allocation3 + $0x28] sm:$0xff] %vm383, %v298
  %390 = vst.msk [vmem:[#allocation3 + $0x30] sm:$0xff] %vm383, %v300
  %391 = vst.msk [vmem:[#allocation3 + $0x38] sm:$0xff] %vm383, %v302
  %392 = vst.msk [vmem:[#allocation3 + $0x40] sm:$0xff] %vm383, %v304
  %393 = vst.msk [vmem:[#allocation3 + $0x48] sm:$0xff] %vm383, %v306
  %394 = vst.msk [vmem:[#allocation3 + $0x50] sm:$0xff] %vm383, %v308
  %395 = vst.msk [vmem:[#allocation3 + $0x58] sm:$0xff] %vm383, %v310
  %396 = vst.msk [vmem:[#allocation3 + $0x60] sm:$0xff] %vm383, %v312
  %397 = vst.msk [vmem:[#allocation3 + $0x68] sm:$0xff] %vm383, %v314
  %398 = vst.msk [vmem:[#allocation3 + $0x70] sm:$0xff] %vm383, %v316
  %399 = vst.msk [vmem:[#allocation3 + $0x78] sm:$0xff] %vm383, %v318
  %400 = vst.msk [vmem:[#allocation3 + $0x80] sm:$0xff] %vm383, %v320
  %401 = vst.msk [vmem:[#allocation3 + $0x88] sm:$0xff] %vm383, %v322
  %402 = vst.msk [vmem:[#allocation3 + $0x90] sm:$0xff] %vm383, %v324
  %403 = vst.msk [vmem:[#allocation3 + $0x98] sm:$0xff] %vm383, %v326
  %404 = vst.msk [vmem:[#allocation3 + $0xa0] sm:$0xff] %vm383, %v328
  %405 = vst.msk [vmem:[#allocation3 + $0xa8] sm:$0xff] %vm383, %v330
  %406 = vst.msk [vmem:[#allocation3 + $0xb0] sm:$0xff] %vm383, %v332
  %407 = vst.msk [vmem:[#allocation3 + $0xb8] sm:$0xff] %vm383, %v334
  %408 = vst.msk [vmem:[#allocation3 + $0xc0] sm:$0xff] %vm383, %v336
  %409 = vst.msk [vmem:[#allocation3 + $0xc8] sm:$0xff] %vm383, %v338
  %410 = vst.msk [vmem:[#allocation3 + $0xd0] sm:$0xff] %vm383, %v340
  %411 = vst.msk [vmem:[#allocation3 + $0xd8] sm:$0xff] %vm383, %v342
  %412 = vst.msk [vmem:[#allocation3 + $0xe0] sm:$0xff] %vm383, %v344
  %413 = vst.msk [vmem:[#allocation3 + $0xe8] sm:$0xff] %vm383, %v346
  %414 = vst.msk [vmem:[#allocation3 + $0xf0] sm:$0xff] %vm383, %v348
  %415 = vst.msk [vmem:[#allocation3 + $0xf8] sm:$0xff] %vm383, %v350
  %v416 = vld [vmem:[#allocation2 + $0x2] sm:$0xff]
  %v417 = vld [vmem:[#allocation2 + $0xa] sm:$0xff]
  %v418 = vld [vmem:[#allocation2 + $0x1a] sm:$0xff]
  %v419 = vld [vmem:[#allocation2 + $0x22] sm:$0xff]
  %v420 = vld [vmem:[#allocation2 + $0x32] sm:$0xff]
  %v421 = vld [vmem:[#allocation2 + $0x3a] sm:$0xff]
  %v422 = vld [vmem:[#allocation2 + $0x4a] sm:$0xff]
  %v423 = vld [vmem:[#allocation2 + $0x52] sm:$0xff]
  %v424 = vld [vmem:[#allocation2 + $0x62] sm:$0xff]
  %v425 = vld [vmem:[#allocation2 + $0x6a] sm:$0xff]
  %v426 = vld [vmem:[#allocation2 + $0x7a] sm:$0xff]
  %v427 = vld [vmem:[#allocation2 + $0x82] sm:$0xff]
  %v428 = vld [vmem:[#allocation2 + $0x92] sm:$0xff]
  %v429 = vld [vmem:[#allocation2 + $0x9a] sm:$0xff]
  %v430 = vld [vmem:[#allocation2 + $0xaa] sm:$0xff]
  %v431 = vld [vmem:[#allocation2 + $0xb2] sm:$0xff]
  %v432 = vld [vmem:[#allocation2 + $0xf2] sm:$0xff]
  %v433 = vld [vmem:[#allocation2 + $0xfa] sm:$0xff]
  %v434 = vld [vmem:[#allocation2 + $0x10a] sm:$0xff]
  %v435 = vld [vmem:[#allocation2 + $0x112] sm:$0xff]
  %v436 = vld [vmem:[#allocation2 + $0x122] sm:$0xff]
  %v437 = vld [vmem:[#allocation2 + $0x12a] sm:$0xff]
  %v438 = vld [vmem:[#allocation2 + $0x13a] sm:$0xff]
  %v439 = vld [vmem:[#allocation2 + $0x142] sm:$0xff]
  %v440 = vld [vmem:[#allocation2 + $0x152] sm:$0xff]
  %v441 = vld [vmem:[#allocation2 + $0x15a] sm:$0xff]
  %v442 = vld [vmem:[#allocation2 + $0x16a] sm:$0xff]
  %v443 = vld [vmem:[#allocation2 + $0x172] sm:$0xff]
  %v444 = vld [vmem:[#allocation2 + $0x182] sm:$0xff]
  %v445 = vld [vmem:[#allocation2 + $0x18a] sm:$0xff]
  %v446 = vld [vmem:[#allocation2 + $0x19a] sm:$0xff]
  %v447 = vld [vmem:[#allocation2 + $0x1a2] sm:$0xff]
  %480 = vrot.lane.b32.xlu0 %v416, 2
  %v481 = vpop.permute.xlu0 %480
  %482 = vrot.lane.b32.xlu0 %v417, 2
  %v483 = vpop.permute.xlu0 %482
  %484 = vrot.lane.b32.xlu0 %v418, 2
  %v485 = vpop.permute.xlu0 %484
  %486 = vrot.lane.b32.xlu0 %v419, 2
  %v487 = vpop.permute.xlu0 %486
  %488 = vrot.lane.b32.xlu0 %v420, 2
  %v489 = vpop.permute.xlu0 %488
  %490 = vrot.lane.b32.xlu0 %v421, 2
  %v491 = vpop.permute.xlu0 %490
  %492 = vrot.lane.b32.xlu0 %v422, 2
  %v493 = vpop.permute.xlu0 %492
  %494 = vrot.lane.b32.xlu0 %v423, 2
  %v495 = vpop.permute.xlu0 %494
  %496 = vrot.lane.b32.xlu0 %v424, 2
  %v497 = vpop.permute.xlu0 %496
  %498 = vrot.lane.b32.xlu0 %v425, 2
  %v499 = vpop.permute.xlu0 %498
  %500 = vrot.lane.b32.xlu0 %v426, 2
  %v501 = vpop.permute.xlu0 %500
  %502 = vrot.lane.b32.xlu0 %v427, 2
  %v503 = vpop.permute.xlu0 %502
  %504 = vrot.lane.b32.xlu0 %v428, 2
  %v505 = vpop.permute.xlu0 %504
  %506 = vrot.lane.b32.xlu0 %v429, 2
  %v507 = vpop.permute.xlu0 %506
  %508 = vrot.lane.b32.xlu0 %v430, 2
  %v509 = vpop.permute.xlu0 %508
  %510 = vrot.lane.b32.xlu0 %v431, 2
  %v511 = vpop.permute.xlu0 %510
  %512 = vrot.lane.b32.xlu0 %v432, 2
  %v513 = vpop.permute.xlu0 %512
  %514 = vrot.lane.b32.xlu0 %v433, 2
  %v515 = vpop.permute.xlu0 %514
  %516 = vrot.lane.b32.xlu0 %v434, 2
  %v517 = vpop.permute.xlu0 %516
  %518 = vrot.lane.b32.xlu0 %v435, 2
  %v519 = vpop.permute.xlu0 %518
  %520 = vrot.lane.b32.xlu0 %v436, 2
  %v521 = vpop.permute.xlu0 %520
  %522 = vrot.lane.b32.xlu0 %v437, 2
  %v523 = vpop.permute.xlu0 %522
  %524 = vrot.lane.b32.xlu0 %v438, 2
  %v525 = vpop.permute.xlu0 %524
  %526 = vrot.lane.b32.xlu0 %v439, 2
  %v527 = vpop.permute.xlu0 %526
  %528 = vrot.lane.b32.xlu0 %v440, 2
  %v529 = vpop.permute.xlu0 %528
  %530 = vrot.lane.b32.xlu0 %v441, 2
  %v531 = vpop.permute.xlu0 %530
  %532 = vrot.lane.b32.xlu0 %v442, 2
  %v533 = vpop.permute.xlu0 %532
  %534 = vrot.lane.b32.xlu0 %v443, 2
  %v535 = vpop.permute.xlu0 %534
  %536 = vrot.lane.b32.xlu0 %v444, 2
  %v537 = vpop.permute.xlu0 %536
  %538 = vrot.lane.b32.xlu0 %v445, 2
  %v539 = vpop.permute.xlu0 %538
  %540 = vrot.lane.b32.xlu0 %v446, 2
  %v541 = vpop.permute.xlu0 %540
  %542 = vrot.lane.b32.xlu0 %v447, 2
  %v543 = vpop.permute.xlu0 %542
  %vm576 = vcmask 23568
  %577 = vst.msk [vmem:[#allocation3] sm:$0xff] %vm576, %v481
  %578 = vst.msk [vmem:[#allocation3 + $0x8] sm:$0xff] %vm576, %v483
  %579 = vst.msk [vmem:[#allocation3 + $0x10] sm:$0xff] %vm576, %v485
  %580 = vst.msk [vmem:[#allocation3 + $0x18] sm:$0xff] %vm576, %v487
  %581 = vst.msk [vmem:[#allocation3 + $0x20] sm:$0xff] %vm576, %v489
  %582 = vst.msk [vmem:[#allocation3 + $0x28] sm:$0xff] %vm576, %v491
  %583 = vst.msk [vmem:[#allocation3 + $0x30] sm:$0xff] %vm576, %v493
  %584 = vst.msk [vmem:[#allocation3 + $0x38] sm:$0xff] %vm576, %v495
  %585 = vst.msk [vmem:[#allocation3 + $0x40] sm:$0xff] %vm576, %v497
  %586 = vst.msk [vmem:[#allocation3 + $0x48] sm:$0xff] %vm576, %v499
  %587 = vst.msk [vmem:[#allocation3 + $0x50] sm:$0xff] %vm576, %v501
  %588 = vst.msk [vmem:[#allocation3 + $0x58] sm:$0xff] %vm576, %v503
  %589 = vst.msk [vmem:[#allocation3 + $0x60] sm:$0xff] %vm576, %v505
  %590 = vst.msk [vmem:[#allocation3 + $0x68] sm:$0xff] %vm576, %v507
  %591 = vst.msk [vmem:[#allocation3 + $0x70] sm:$0xff] %vm576, %v509
  %592 = vst.msk [vmem:[#allocation3 + $0x78] sm:$0xff] %vm576, %v511
  %593 = vst.msk [vmem:[#allocation3 + $0x80] sm:$0xff] %vm576, %v513
  %594 = vst.msk [vmem:[#allocation3 + $0x88] sm:$0xff] %vm576, %v515
  %595 = vst.msk [vmem:[#allocation3 + $0x90] sm:$0xff] %vm576, %v517
  %596 = vst.msk [vmem:[#allocation3 + $0x98] sm:$0xff] %vm576, %v519
  %597 = vst.msk [vmem:[#allocation3 + $0xa0] sm:$0xff] %vm576, %v521
  %598 = vst.msk [vmem:[#allocation3 + $0xa8] sm:$0xff] %vm576, %v523
  %599 = vst.msk [vmem:[#allocation3 + $0xb0] sm:$0xff] %vm576, %v525
  %600 = vst.msk [vmem:[#allocation3 + $0xb8] sm:$0xff] %vm576, %v527
  %601 = vst.msk [vmem:[#allocation3 + $0xc0] sm:$0xff] %vm576, %v529
  %602 = vst.msk [vmem:[#allocation3 + $0xc8] sm:$0xff] %vm576, %v531
  %603 = vst.msk [vmem:[#allocation3 + $0xd0] sm:$0xff] %vm576, %v533
  %604 = vst.msk [vmem:[#allocation3 + $0xd8] sm:$0xff] %vm576, %v535
  %605 = vst.msk [vmem:[#allocation3 + $0xe0] sm:$0xff] %vm576, %v537
  %606 = vst.msk [vmem:[#allocation3 + $0xe8] sm:$0xff] %vm576, %v539
  %607 = vst.msk [vmem:[#allocation3 + $0xf0] sm:$0xff] %vm576, %v541
  %608 = vst.msk [vmem:[#allocation3 + $0xf8] sm:$0xff] %vm576, %v543
  %v609 = vld [vmem:[%s126] sm:$0xff]
  %v610 = vld [vmem:[%s126 + $0x8] sm:$0xff]
  %v611 = vld [vmem:[%s126 + $0x18] sm:$0xff]
  %v612 = vld [vmem:[%s126 + $0x20] sm:$0xff]
  %v613 = vld [vmem:[%s126 + $0x30] sm:$0xff]
  %v614 = vld [vmem:[%s126 + $0x38] sm:$0xff]
  %v615 = vld [vmem:[%s126 + $0x48] sm:$0xff]
  %v616 = vld [vmem:[%s126 + $0x50] sm:$0xff]
  %v617 = vld [vmem:[%s126 + $0x60] sm:$0xff]
  %v618 = vld [vmem:[%s126 + $0x68] sm:$0xff]
  %v619 = vld [vmem:[%s126 + $0x78] sm:$0xff]
  %v620 = vld [vmem:[%s126 + $0x80] sm:$0xff]
  %v621 = vld [vmem:[%s126 + $0x90] sm:$0xff]
  %v622 = vld [vmem:[%s126 + $0x98] sm:$0xff]
  %v623 = vld [vmem:[%s126 + $0xa8] sm:$0xff]
  %v624 = vld [vmem:[%s126 + $0xb0] sm:$0xff]
  %v625 = vld [vmem:[%s126 + $0xf0] sm:$0xff]
  %v626 = vld [vmem:[%s126 + $0xf8] sm:$0xff]
  %v627 = vld [vmem:[%s126 + $0x108] sm:$0xff]
  %v628 = vld [vmem:[%s126 + $0x110] sm:$0xff]
  %v629 = vld [vmem:[%s126 + $0x120] sm:$0xff]
  %v630 = vld [vmem:[%s126 + $0x128] sm:$0xff]
  %v631 = vld [vmem:[%s126 + $0x138] sm:$0xff]
  %v632 = vld [vmem:[%s126 + $0x140] sm:$0xff]
  %v633 = vld [vmem:[%s126 + $0x150] sm:$0xff]
  %v634 = vld [vmem:[%s126 + $0x158] sm:$0xff]
  %v635 = vld [vmem:[%s126 + $0x168] sm:$0xff]
  %v636 = vld [vmem:[%s126 + $0x170] sm:$0xff]
  %v637 = vld [vmem:[%s126 + $0x180] sm:$0xff]
  %v638 = vld [vmem:[%s126 + $0x188] sm:$0xff]
  %v639 = vld [vmem:[%s126 + $0x198] sm:$0xff]
  %v640 = vld [vmem:[%s126 + $0x1a0] sm:$0xff]
  %673 = vrot.lane.b32.xlu0 %v609, 3
  %v674 = vpop.permute.xlu0 %673
  %675 = vrot.lane.b32.xlu0 %v610, 3
  %v676 = vpop.permute.xlu0 %675
  %677 = vrot.lane.b32.xlu0 %v611, 3
  %v678 = vpop.permute.xlu0 %677
  %679 = vrot.lane.b32.xlu0 %v612, 3
  %v680 = vpop.permute.xlu0 %679
  %681 = vrot.lane.b32.xlu0 %v613, 3
  %v682 = vpop.permute.xlu0 %681
  %683 = vrot.lane.b32.xlu0 %v614, 3
  %v684 = vpop.permute.xlu0 %683
  %685 = vrot.lane.b32.xlu0 %v615, 3
  %v686 = vpop.permute.xlu0 %685
  %687 = vrot.lane.b32.xlu0 %v616, 3
  %v688 = vpop.permute.xlu0 %687
  %689 = vrot.lane.b32.xlu0 %v617, 3
  %v690 = vpop.permute.xlu0 %689
  %691 = vrot.lane.b32.xlu0 %v618, 3
  %v692 = vpop.permute.xlu0 %691
  %693 = vrot.lane.b32.xlu0 %v619, 3
  %v694 = vpop.permute.xlu0 %693
  %695 = vrot.lane.b32.xlu0 %v620, 3
  %v696 = vpop.permute.xlu0 %695
  %697 = vrot.lane.b32.xlu0 %v621, 3
  %v698 = vpop.permute.xlu0 %697
  %699 = vrot.lane.b32.xlu0 %v622, 3
  %v700 = vpop.permute.xlu0 %699
  %701 = vrot.lane.b32.xlu0 %v623, 3
  %v702 = vpop.permute.xlu0 %701
  %703 = vrot.lane.b32.xlu0 %v624, 3
  %v704 = vpop.permute.xlu0 %703
  %705 = vrot.lane.b32.xlu0 %v625, 3
  %v706 = vpop.permute.xlu0 %705
  %707 = vrot.lane.b32.xlu0 %v626, 3
  %v708 = vpop.permute.xlu0 %707
  %709 = vrot.lane.b32.xlu0 %v627, 3
  %v710 = vpop.permute.xlu0 %709
  %711 = vrot.lane.b32.xlu0 %v628, 3
  %v712 = vpop.permute.xlu0 %711
  %713 = vrot.lane.b32.xlu0 %v629, 3
  %v714 = vpop.permute.xlu0 %713
  %715 = vrot.lane.b32.xlu0 %v630, 3
  %v716 = vpop.permute.xlu0 %715
  %717 = vrot.lane.b32.xlu0 %v631, 3
  %v718 = vpop.permute.xlu0 %717
  %719 = vrot.lane.b32.xlu0 %v632, 3
  %v720 = vpop.permute.xlu0 %719
  %721 = vrot.lane.b32.xlu0 %v633, 3
  %v722 = vpop.permute.xlu0 %721
  %723 = vrot.lane.b32.xlu0 %v634, 3
  %v724 = vpop.permute.xlu0 %723
  %725 = vrot.lane.b32.xlu0 %v635, 3
  %v726 = vpop.permute.xlu0 %725
  %727 = vrot.lane.b32.xlu0 %v636, 3
  %v728 = vpop.permute.xlu0 %727
  %729 = vrot.lane.b32.xlu0 %v637, 3
  %v730 = vpop.permute.xlu0 %729
  %731 = vrot.lane.b32.xlu0 %v638, 3
  %v732 = vpop.permute.xlu0 %731
  %733 = vrot.lane.b32.xlu0 %v639, 3
  %v734 = vpop.permute.xlu0 %733
  %735 = vrot.lane.b32.xlu0 %v640, 3
  %v736 = vpop.permute.xlu0 %735
  %vm769 = vcmask 31768
  %770 = vst.msk [vmem:[#allocation3] sm:$0xff] %vm769, %v674
  %771 = vst.msk [vmem:[#allocation3 + $0x8] sm:$0xff] %vm769, %v676
  %772 = vst.msk [vmem:[#allocation3 + $0x10] sm:$0xff] %vm769, %v678
  %773 = vst.msk [vmem:[#allocation3 + $0x18] sm:$0xff] %vm769, %v680
  %774 = vst.msk [vmem:[#allocation3 + $0x20] sm:$0xff] %vm769, %v682
  %775 = vst.msk [vmem:[#allocation3 + $0x28] sm:$0xff] %vm769, %v684
  %776 = vst.msk [vmem:[#allocation3 + $0x30] sm:$0xff] %vm769, %v686
  %777 = vst.msk [vmem:[#allocation3 + $0x38] sm:$0xff] %vm769, %v688
  %778 = vst.msk [vmem:[#allocation3 + $0x40] sm:$0xff] %vm769, %v690
  %779 = vst.msk [vmem:[#allocation3 + $0x48] sm:$0xff] %vm769, %v692
  %780 = vst.msk [vmem:[#allocation3 + $0x50] sm:$0xff] %vm769, %v694
  %781 = vst.msk [vmem:[#allocation3 + $0x58] sm:$0xff] %vm769, %v696
  %782 = vst.msk [vmem:[#allocation3 + $0x60] sm:$0xff] %vm769, %v698
  %783 = vst.msk [vmem:[#allocation3 + $0x68] sm:$0xff] %vm769, %v700
  %784 = vst.msk [vmem:[#allocation3 + $0x70] sm:$0xff] %vm769, %v702
  %785 = vst.msk [vmem:[#allocation3 + $0x78] sm:$0xff] %vm769, %v704
  %786 = vst.msk [vmem:[#allocation3 + $0x80] sm:$0xff] %vm769, %v706
  %787 = vst.msk [vmem:[#allocation3 + $0x88] sm:$0xff] %vm769, %v708
  %788 = vst.msk [vmem:[#allocation3 + $0x90] sm:$0xff] %vm769, %v710
  %789 = vst.msk [vmem:[#allocation3 + $0x98] sm:$0xff] %vm769, %v712
  %790 = vst.msk [vmem:[#allocation3 + $0xa0] sm:$0xff] %vm769, %v714
  %791 = vst.msk [vmem:[#allocation3 + $0xa8] sm:$0xff] %vm769, %v716
  %792 = vst.msk [vmem:[#allocation3 + $0xb0] sm:$0xff] %vm769, %v718
  %793 = vst.msk [vmem:[#allocation3 + $0xb8] sm:$0xff] %vm769, %v720
  %794 = vst.msk [vmem:[#allocation3 + $0xc0] sm:$0xff] %vm769, %v722
  %795 = vst.msk [vmem:[#allocation3 + $0xc8] sm:$0xff] %vm769, %v724
  %796 = vst.msk [vmem:[#allocation3 + $0xd0] sm:$0xff] %vm769, %v726
  %797 = vst.msk [vmem:[#allocation3 + $0xd8] sm:$0xff] %vm769, %v728
  %798 = vst.msk [vmem:[#allocation3 + $0xe0] sm:$0xff] %vm769, %v730
  %799 = vst.msk [vmem:[#allocation3 + $0xe8] sm:$0xff] %vm769, %v732
  %800 = vst.msk [vmem:[#allocation3 + $0xf0] sm:$0xff] %vm769, %v734
  %801 = vst.msk [vmem:[#allocation3 + $0xf8] sm:$0xff] %vm769, %v736
  %v802 = vld [vmem:[%s126 + $0x1] sm:$0xff]
  %v803 = vld [vmem:[%s126 + $0x9] sm:$0xff]
  %v804 = vld [vmem:[%s126 + $0x19] sm:$0xff]
  %v805 = vld [vmem:[%s126 + $0x21] sm:$0xff]
  %v806 = vld [vmem:[%s126 + $0x31] sm:$0xff]
  %v807 = vld [vmem:[%s126 + $0x39] sm:$0xff]
  %v808 = vld [vmem:[%s126 + $0x49] sm:$0xff]
  %v809 = vld [vmem:[%s126 + $0x51] sm:$0xff]
  %v810 = vld [vmem:[%s126 + $0x61] sm:$0xff]
  %v811 = vld [vmem:[%s126 + $0x69] sm:$0xff]
  %v812 = vld [vmem:[%s126 + $0x79] sm:$0xff]
  %v813 = vld [vmem:[%s126 + $0x81] sm:$0xff]
  %v814 = vld [vmem:[%s126 + $0x91] sm:$0xff]
  %v815 = vld [vmem:[%s126 + $0x99] sm:$0xff]
  %v816 = vld [vmem:[%s126 + $0xa9] sm:$0xff]
  %v817 = vld [vmem:[%s126 + $0xb1] sm:$0xff]
  %v818 = vld [vmem:[%s126 + $0xf1] sm:$0xff]
  %v819 = vld [vmem:[%s126 + $0xf9] sm:$0xff]
  %v820 = vld [vmem:[%s126 + $0x109] sm:$0xff]
  %v821 = vld [vmem:[%s126 + $0x111] sm:$0xff]
  %v822 = vld [vmem:[%s126 + $0x121] sm:$0xff]
  %v823 = vld [vmem:[%s126 + $0x129] sm:$0xff]
  %v824 = vld [vmem:[%s126 + $0x139] sm:$0xff]
  %v825 = vld [vmem:[%s126 + $0x141] sm:$0xff]
  %v826 = vld [vmem:[%s126 + $0x151] sm:$0xff]
  %v827 = vld [vmem:[%s126 + $0x159] sm:$0xff]
  %v828 = vld [vmem:[%s126 + $0x169] sm:$0xff]
  %v829 = vld [vmem:[%s126 + $0x171] sm:$0xff]
  %v830 = vld [vmem:[%s126 + $0x181] sm:$0xff]
  %v831 = vld [vmem:[%s126 + $0x189] sm:$0xff]
  %v832 = vld [vmem:[%s126 + $0x199] sm:$0xff]
  %v833 = vld [vmem:[%s126 + $0x1a1] sm:$0xff]
  %866 = vrot.lane.b32.xlu0 %v802, 4
  %v867 = vpop.permute.xlu0 %866
  %868 = vrot.lane.b32.xlu0 %v803, 4
  %v869 = vpop.permute.xlu0 %868
  %870 = vrot.lane.b32.xlu0 %v804, 4
  %v871 = vpop.permute.xlu0 %870
  %872 = vrot.lane.b32.xlu0 %v805, 4
  %v873 = vpop.permute.xlu0 %872
  %874 = vrot.lane.b32.xlu0 %v806, 4
  %v875 = vpop.permute.xlu0 %874
  %876 = vrot.lane.b32.xlu0 %v807, 4
  %v877 = vpop.permute.xlu0 %876
  %878 = vrot.lane.b32.xlu0 %v808, 4
  %v879 = vpop.permute.xlu0 %878
  %880 = vrot.lane.b32.xlu0 %v809, 4
  %v881 = vpop.permute.xlu0 %880
  %882 = vrot.lane.b32.xlu0 %v810, 4
  %v883 = vpop.permute.xlu0 %882
  %884 = vrot.lane.b32.xlu0 %v811, 4
  %v885 = vpop.permute.xlu0 %884
  %886 = vrot.lane.b32.xlu0 %v812, 4
  %v887 = vpop.permute.xlu0 %886
  %888 = vrot.lane.b32.xlu0 %v813, 4
  %v889 = vpop.permute.xlu0 %888
  %890 = vrot.lane.b32.xlu0 %v814, 4
  %v891 = vpop.permute.xlu0 %890
  %892 = vrot.lane.b32.xlu0 %v815, 4
  %v893 = vpop.permute.xlu0 %892
  %894 = vrot.lane.b32.xlu0 %v816, 4
  %v895 = vpop.permute.xlu0 %894
  %896 = vrot.lane.b32.xlu0 %v817, 4
  %v897 = vpop.permute.xlu0 %896
  %898 = vrot.lane.b32.xlu0 %v818, 4
  %v899 = vpop.permute.xlu0 %898
  %900 = vrot.lane.b32.xlu0 %v819, 4
  %v901 = vpop.permute.xlu0 %900
  %902 = vrot.lane.b32.xlu0 %v820, 4
  %v903 = vpop.permute.xlu0 %902
  %904 = vrot.lane.b32.xlu0 %v821, 4
  %v905 = vpop.permute.xlu0 %904
  %906 = vrot.lane.b32.xlu0 %v822, 4
  %v907 = vpop.permute.xlu0 %906
  %908 = vrot.lane.b32.xlu0 %v823, 4
  %v909 = vpop.permute.xlu0 %908
  %910 = vrot.lane.b32.xlu0 %v824, 4
  %v911 = vpop.permute.xlu0 %910
  %912 = vrot.lane.b32.xlu0 %v825, 4
  %v913 = vpop.permute.xlu0 %912
  %914 = vrot.lane.b32.xlu0 %v826, 4
  %v915 = vpop.permute.xlu0 %914
  %916 = vrot.lane.b32.xlu0 %v827, 4
  %v917 = vpop.permute.xlu0 %916
  %918 = vrot.lane.b32.xlu0 %v828, 4
  %v919 = vpop.permute.xlu0 %918
  %920 = vrot.lane.b32.xlu0 %v829, 4
  %v921 = vpop.permute.xlu0 %920
  %922 = vrot.lane.b32.xlu0 %v830, 4
  %v923 = vpop.permute.xlu0 %922
  %924 = vrot.lane.b32.xlu0 %v831, 4
  %v925 = vpop.permute.xlu0 %924
  %926 = vrot.lane.b32.xlu0 %v832, 4
  %v927 = vpop.permute.xlu0 %926
  %928 = vrot.lane.b32.xlu0 %v833, 4
  %v929 = vpop.permute.xlu0 %928
  %vm962 = vcmask 39968
  %963 = vst.msk [vmem:[#allocation3] sm:$0xff] %vm962, %v867
  %964 = vst.msk [vmem:[#allocation3 + $0x8] sm:$0xff] %vm962, %v869
  %965 = vst.msk [vmem:[#allocation3 + $0x10] sm:$0xff] %vm962, %v871
  %966 = vst.msk [vmem:[#allocation3 + $0x18] sm:$0xff] %vm962, %v873
  %967 = vst.msk [vmem:[#allocation3 + $0x20] sm:$0xff] %vm962, %v875
  %968 = vst.msk [vmem:[#allocation3 + $0x28] sm:$0xff] %vm962, %v877
  %969 = vst.msk [vmem:[#allocation3 + $0x30] sm:$0xff] %vm962, %v879
  %970 = vst.msk [vmem:[#allocation3 + $0x38] sm:$0xff] %vm962, %v881
  %971 = vst.msk [vmem:[#allocation3 + $0x40] sm:$0xff] %vm962, %v883
  %972 = vst.msk [vmem:[#allocation3 + $0x48] sm:$0xff] %vm962, %v885
  %973 = vst.msk [vmem:[#allocation3 + $0x50] sm:$0xff] %vm962, %v887
  %974 = vst.msk [vmem:[#allocation3 + $0x58] sm:$0xff] %vm962, %v889
  %975 = vst.msk [vmem:[#allocation3 + $0x60] sm:$0xff] %vm962, %v891
  %976 = vst.msk [vmem:[#allocation3 + $0x68] sm:$0xff] %vm962, %v893
  %977 = vst.msk [vmem:[#allocation3 + $0x70] sm:$0xff] %vm962, %v895
  %978 = vst.msk [vmem:[#allocation3 + $0x78] sm:$0xff] %vm962, %v897
  %979 = vst.msk [vmem:[#allocation3 + $0x80] sm:$0xff] %vm962, %v899
  %980 = vst.msk [vmem:[#allocation3 + $0x88] sm:$0xff] %vm962, %v901
  %981 = vst.msk [vmem:[#allocation3 + $0x90] sm:$0xff] %vm962, %v903
  %982 = vst.msk [vmem:[#allocation3 + $0x98] sm:$0xff] %vm962, %v905
  %983 = vst.msk [vmem:[#allocation3 + $0xa0] sm:$0xff] %vm962, %v907
  %984 = vst.msk [vmem:[#allocation3 + $0xa8] sm:$0xff] %vm962, %v909
  %985 = vst.msk [vmem:[#allocation3 + $0xb0] sm:$0xff] %vm962, %v911
  %986 = vst.msk [vmem:[#allocation3 + $0xb8] sm:$0xff] %vm962, %v913
  %987 = vst.msk [vmem:[#allocation3 + $0xc0] sm:$0xff] %vm962, %v915
  %988 = vst.msk [vmem:[#allocation3 + $0xc8] sm:$0xff] %vm962, %v917
  %989 = vst.msk [vmem:[#allocation3 + $0xd0] sm:$0xff] %vm962, %v919
  %990 = vst.msk [vmem:[#allocation3 + $0xd8] sm:$0xff] %vm962, %v921
  %991 = vst.msk [vmem:[#allocation3 + $0xe0] sm:$0xff] %vm962, %v923
  %992 = vst.msk [vmem:[#allocation3 + $0xe8] sm:$0xff] %vm962, %v925
  %993 = vst.msk [vmem:[#allocation3 + $0xf0] sm:$0xff] %vm962, %v927
  %994 = vst.msk [vmem:[#allocation3 + $0xf8] sm:$0xff] %vm962, %v929
  %v995 = vld [vmem:[%s126 + $0x2] sm:$0xff]
  %v996 = vld [vmem:[%s126 + $0xa] sm:$0xff]
  %v997 = vld [vmem:[%s126 + $0x1a] sm:$0xff]
  %v998 = vld [vmem:[%s126 + $0x22] sm:$0xff]
  %v999 = vld [vmem:[%s126 + $0x32] sm:$0xff]
  %v1000 = vld [vmem:[%s126 + $0x3a] sm:$0xff]
  %v1001 = vld [vmem:[%s126 + $0x4a] sm:$0xff]
  %v1002 = vld [vmem:[%s126 + $0x52] sm:$0xff]
  %v1003 = vld [vmem:[%s126 + $0x62] sm:$0xff]
  %v1004 = vld [vmem:[%s126 + $0x6a] sm:$0xff]
  %v1005 = vld [vmem:[%s126 + $0x7a] sm:$0xff]
  %v1006 = vld [vmem:[%s126 + $0x82] sm:$0xff]
  %v1007 = vld [vmem:[%s126 + $0x92] sm:$0xff]
  %v1008 = vld [vmem:[%s126 + $0x9a] sm:$0xff]
  %v1009 = vld [vmem:[%s126 + $0xaa] sm:$0xff]
  %v1010 = vld [vmem:[%s126 + $0xb2] sm:$0xff]
  %v1011 = vld [vmem:[%s126 + $0xf2] sm:$0xff]
  %v1012 = vld [vmem:[%s126 + $0xfa] sm:$0xff]
  %v1013 = vld [vmem:[%s126 + $0x10a] sm:$0xff]
  %v1014 = vld [vmem:[%s126 + $0x112] sm:$0xff]
  %v1015 = vld [vmem:[%s126 + $0x122] sm:$0xff]
  %v1016 = vld [vmem:[%s126 + $0x12a] sm:$0xff]
  %v1017 = vld [vmem:[%s126 + $0x13a] sm:$0xff]
  %v1018 = vld [vmem:[%s126 + $0x142] sm:$0xff]
  %v1019 = vld [vmem:[%s126 + $0x152] sm:$0xff]
  %v1020 = vld [vmem:[%s126 + $0x15a] sm:$0xff]
  %v1021 = vld [vmem:[%s126 + $0x16a] sm:$0xff]
  %v1022 = vld [vmem:[%s126 + $0x172] sm:$0xff]
  %v1023 = vld [vmem:[%s126 + $0x182] sm:$0xff]
  %v1024 = vld [vmem:[%s126 + $0x18a] sm:$0xff]
  %v1025 = vld [vmem:[%s126 + $0x19a] sm:$0xff]
  %v1026 = vld [vmem:[%s126 + $0x1a2] sm:$0xff]
  %1059 = vrot.lane.b32.xlu0 %v995, 5
  %v1060 = vpop.permute.xlu0 %1059
  %1061 = vrot.lane.b32.xlu0 %v996, 5
  %v1062 = vpop.permute.xlu0 %1061
  %1063 = vrot.lane.b32.xlu0 %v997, 5
  %v1064 = vpop.permute.xlu0 %1063
  %1065 = vrot.lane.b32.xlu0 %v998, 5
  %v1066 = vpop.permute.xlu0 %1065
  %1067 = vrot.lane.b32.xlu0 %v999, 5
  %v1068 = vpop.permute.xlu0 %1067
  %1069 = vrot.lane.b32.xlu0 %v1000, 5
  %v1070 = vpop.permute.xlu0 %1069
  %1071 = vrot.lane.b32.xlu0 %v1001, 5
  %v1072 = vpop.permute.xlu0 %1071
  %1073 = vrot.lane.b32.xlu0 %v1002, 5
  %v1074 = vpop.permute.xlu0 %1073
  %1075 = vrot.lane.b32.xlu0 %v1003, 5
  %v1076 = vpop.permute.xlu0 %1075
  %1077 = vrot.lane.b32.xlu0 %v1004, 5
  %v1078 = vpop.permute.xlu0 %1077
  %1079 = vrot.lane.b32.xlu0 %v1005, 5
  %v1080 = vpop.permute.xlu0 %1079
  %1081 = vrot.lane.b32.xlu0 %v1006, 5
  %v1082 = vpop.permute.xlu0 %1081
  %1083 = vrot.lane.b32.xlu0 %v1007, 5
  %v1084 = vpop.permute.xlu0 %1083
  %1085 = vrot.lane.b32.xlu0 %v1008, 5
  %v1086 = vpop.permute.xlu0 %1085
  %1087 = vrot.lane.b32.xlu0 %v1009, 5
  %v1088 = vpop.permute.xlu0 %1087
  %1089 = vrot.lane.b32.xlu0 %v1010, 5
  %v1090 = vpop.permute.xlu0 %1089
  %1091 = vrot.lane.b32.xlu0 %v1011, 5
  %v1092 = vpop.permute.xlu0 %1091
  %1093 = vrot.lane.b32.xlu0 %v1012, 5
  %v1094 = vpop.permute.xlu0 %1093
  %1095 = vrot.lane.b32.xlu0 %v1013, 5
  %v1096 = vpop.permute.xlu0 %1095
  %1097 = vrot.lane.b32.xlu0 %v1014, 5
  %v1098 = vpop.permute.xlu0 %1097
  %1099 = vrot.lane.b32.xlu0 %v1015, 5
  %v1100 = vpop.permute.xlu0 %1099
  %1101 = vrot.lane.b32.xlu0 %v1016, 5
  %v1102 = vpop.permute.xlu0 %1101
  %1103 = vrot.lane.b32.xlu0 %v1017, 5
  %v1104 = vpop.permute.xlu0 %1103
  %1105 = vrot.lane.b32.xlu0 %v1018, 5
  %v1106 = vpop.permute.xlu0 %1105
  %1107 = vrot.lane.b32.xlu0 %v1019, 5
  %v1108 = vpop.permute.xlu0 %1107
  %1109 = vrot.lane.b32.xlu0 %v1020, 5
  %v1110 = vpop.permute.xlu0 %1109
  %1111 = vrot.lane.b32.xlu0 %v1021, 5
  %v1112 = vpop.permute.xlu0 %1111
  %1113 = vrot.lane.b32.xlu0 %v1022, 5
  %v1114 = vpop.permute.xlu0 %1113
  %1115 = vrot.lane.b32.xlu0 %v1023, 5
  %v1116 = vpop.permute.xlu0 %1115
  %1117 = vrot.lane.b32.xlu0 %v1024, 5
  %v1118 = vpop.permute.xlu0 %1117
  %1119 = vrot.lane.b32.xlu0 %v1025, 5
  %v1120 = vpop.permute.xlu0 %1119
  %1121 = vrot.lane.b32.xlu0 %v1026, 5
  %v1122 = vpop.permute.xlu0 %1121
  %vm1155 = vcmask 48168
  %1156 = vst.msk [vmem:[#allocation3] sm:$0xff] %vm1155, %v1060
  %1157 = vst.msk [vmem:[#allocation3 + $0x8] sm:$0xff] %vm1155, %v1062
  %1158 = vst.msk [vmem:[#allocation3 + $0x10] sm:$0xff] %vm1155, %v1064
  %1159 = vst.msk [vmem:[#allocation3 + $0x18] sm:$0xff] %vm1155, %v1066
  %1160 = vst.msk [vmem:[#allocation3 + $0x20] sm:$0xff] %vm1155, %v1068
  %1161 = vst.msk [vmem:[#allocation3 + $0x28] sm:$0xff] %vm1155, %v1070
  %1162 = vst.msk [vmem:[#allocation3 + $0x30] sm:$0xff] %vm1155, %v1072
  %1163 = vst.msk [vmem:[#allocation3 + $0x38] sm:$0xff] %vm1155, %v1074
  %1164 = vst.msk [vmem:[#allocation3 + $0x40] sm:$0xff] %vm1155, %v1076
  %1165 = vst.msk [vmem:[#allocation3 + $0x48] sm:$0xff] %vm1155, %v1078
  %1166 = vst.msk [vmem:[#allocation3 + $0x50] sm:$0xff] %vm1155, %v1080
  %1167 = vst.msk [vmem:[#allocation3 + $0x58] sm:$0xff] %vm1155, %v1082
  %1168 = vst.msk [vmem:[#allocation3 + $0x60] sm:$0xff] %vm1155, %v1084
  %1169 = vst.msk [vmem:[#allocation3 + $0x68] sm:$0xff] %vm1155, %v1086
  %1170 = vst.msk [vmem:[#allocation3 + $0x70] sm:$0xff] %vm1155, %v1088
  %1171 = vst.msk [vmem:[#allocation3 + $0x78] sm:$0xff] %vm1155, %v1090
  %1172 = vst.msk [vmem:[#allocation3 + $0x80] sm:$0xff] %vm1155, %v1092
  %1173 = vst.msk [vmem:[#allocation3 + $0x88] sm:$0xff] %vm1155, %v1094
  %1174 = vst.msk [vmem:[#allocation3 + $0x90] sm:$0xff] %vm1155, %v1096
  %1175 = vst.msk [vmem:[#allocation3 + $0x98] sm:$0xff] %vm1155, %v1098
  %1176 = vst.msk [vmem:[#allocation3 + $0xa0] sm:$0xff] %vm1155, %v1100
  %1177 = vst.msk [vmem:[#allocation3 + $0xa8] sm:$0xff] %vm1155, %v1102
  %1178 = vst.msk [vmem:[#allocation3 + $0xb0] sm:$0xff] %vm1155, %v1104
  %1179 = vst.msk [vmem:[#allocation3 + $0xb8] sm:$0xff] %vm1155, %v1106
  %1180 = vst.msk [vmem:[#allocation3 + $0xc0] sm:$0xff] %vm1155, %v1108
  %1181 = vst.msk [vmem:[#allocation3 + $0xc8] sm:$0xff] %vm1155, %v1110
  %1182 = vst.msk [vmem:[#allocation3 + $0xd0] sm:$0xff] %vm1155, %v1112
  %1183 = vst.msk [vmem:[#allocation3 + $0xd8] sm:$0xff] %vm1155, %v1114
  %1184 = vst.msk [vmem:[#allocation3 + $0xe0] sm:$0xff] %vm1155, %v1116
  %1185 = vst.msk [vmem:[#allocation3 + $0xe8] sm:$0xff] %vm1155, %v1118
  %1186 = vst.msk [vmem:[#allocation3 + $0xf0] sm:$0xff] %vm1155, %v1120
  %1187 = vst.msk [vmem:[#allocation3 + $0xf8] sm:$0xff] %vm1155, %v1122
  %s1188 = scalar_lea.vmem [#allocation2], 48
  %v1189 = vld [vmem:[%s1188] sm:$0xff]
  %v1190 = vld [vmem:[%s1188 + $0x8] sm:$0xff]
  %v1191 = vld [vmem:[%s1188 + $0x18] sm:$0xff]
  %v1192 = vld [vmem:[%s1188 + $0x20] sm:$0xff]
  %v1193 = vld [vmem:[%s1188 + $0x30] sm:$0xff]
  %v1194 = vld [vmem:[%s1188 + $0x38] sm:$0xff]
  %v1195 = vld [vmem:[%s1188 + $0x48] sm:$0xff]
  %v1196 = vld [vmem:[%s1188 + $0x50] sm:$0xff]
  %v1197 = vld [vmem:[%s1188 + $0x60] sm:$0xff]
  %v1198 = vld [vmem:[%s1188 + $0x68] sm:$0xff]
  %v1199 = vld [vmem:[%s1188 + $0x78] sm:$0xff]
  %v1200 = vld [vmem:[%s1188 + $0x80] sm:$0xff]
  %v1201 = vld [vmem:[%s1188 + $0x90] sm:$0xff]
  %v1202 = vld [vmem:[%s1188 + $0x98] sm:$0xff]
  %v1203 = vld [vmem:[%s1188 + $0xa8] sm:$0xff]
  %v1204 = vld [vmem:[%s1188 + $0xb0] sm:$0xff]
  %v1205 = vld [vmem:[%s1188 + $0xf0] sm:$0xff]
  %v1206 = vld [vmem:[%s1188 + $0xf8] sm:$0xff]
  %v1207 = vld [vmem:[%s1188 + $0x108] sm:$0xff]
  %v1208 = vld [vmem:[%s1188 + $0x110] sm:$0xff]
  %v1209 = vld [vmem:[%s1188 + $0x120] sm:$0xff]
  %v1210 = vld [vmem:[%s1188 + $0x128] sm:$0xff]
  %v1211 = vld [vmem:[%s1188 + $0x138] sm:$0xff]
  %v1212 = vld [vmem:[%s1188 + $0x140] sm:$0xff]
  %v1213 = vld [vmem:[%s1188 + $0x150] sm:$0xff]
  %v1214 = vld [vmem:[%s1188 + $0x158] sm:$0xff]
  %v1215 = vld [vmem:[%s1188 + $0x168] sm:$0xff]
  %v1216 = vld [vmem:[%s1188 + $0x170] sm:$0xff]
  %v1217 = vld [vmem:[%s1188 + $0x180] sm:$0xff]
  %v1218 = vld [vmem:[%s1188 + $0x188] sm:$0xff]
  %v1219 = vld [vmem:[%s1188 + $0x198] sm:$0xff]
  %v1220 = vld [vmem:[%s1188 + $0x1a0] sm:$0xff]
  %1253 = vrot.lane.b32.xlu0 %v1189, 6
  %v1254 = vpop.permute.xlu0 %1253
  %1255 = vrot.lane.b32.xlu0 %v1190, 6
  %v1256 = vpop.permute.xlu0 %1255
  %1257 = vrot.lane.b32.xlu0 %v1191, 6
  %v1258 = vpop.permute.xlu0 %1257
  %1259 = vrot.lane.b32.xlu0 %v1192, 6
  %v1260 = vpop.permute.xlu0 %1259
  %1261 = vrot.lane.b32.xlu0 %v1193, 6
  %v1262 = vpop.permute.xlu0 %1261
  %1263 = vrot.lane.b32.xlu0 %v1194, 6
  %v1264 = vpop.permute.xlu0 %1263
  %1265 = vrot.lane.b32.xlu0 %v1195, 6
  %v1266 = vpop.permute.xlu0 %1265
  %1267 = vrot.lane.b32.xlu0 %v1196, 6
  %v1268 = vpop.permute.xlu0 %1267
  %1269 = vrot.lane.b32.xlu0 %v1197, 6
  %v1270 = vpop.permute.xlu0 %1269
  %1271 = vrot.lane.b32.xlu0 %v1198, 6
  %v1272 = vpop.permute.xlu0 %1271
  %1273 = vrot.lane.b32.xlu0 %v1199, 6
  %v1274 = vpop.permute.xlu0 %1273
  %1275 = vrot.lane.b32.xlu0 %v1200, 6
  %v1276 = vpop.permute.xlu0 %1275
  %1277 = vrot.lane.b32.xlu0 %v1201, 6
  %v1278 = vpop.permute.xlu0 %1277
  %1279 = vrot.lane.b32.xlu0 %v1202, 6
  %v1280 = vpop.permute.xlu0 %1279
  %1281 = vrot.lane.b32.xlu0 %v1203, 6
  %v1282 = vpop.permute.xlu0 %1281
  %1283 = vrot.lane.b32.xlu0 %v1204, 6
  %v1284 = vpop.permute.xlu0 %1283
  %1285 = vrot.lane.b32.xlu0 %v1205, 6
  %v1286 = vpop.permute.xlu0 %1285
  %1287 = vrot.lane.b32.xlu0 %v1206, 6
  %v1288 = vpop.permute.xlu0 %1287
  %1289 = vrot.lane.b32.xlu0 %v1207, 6
  %v1290 = vpop.permute.xlu0 %1289
  %1291 = vrot.lane.b32.xlu0 %v1208, 6
  %v1292 = vpop.permute.xlu0 %1291
  %1293 = vrot.lane.b32.xlu0 %v1209, 6
  %v1294 = vpop.permute.xlu0 %1293
  %1295 = vrot.lane.b32.xlu0 %v1210, 6
  %v1296 = vpop.permute.xlu0 %1295
  %1297 = vrot.lane.b32.xlu0 %v1211, 6
  %v1298 = vpop.permute.xlu0 %1297
  %1299 = vrot.lane.b32.xlu0 %v1212, 6
  %v1300 = vpop.permute.xlu0 %1299
  %1301 = vrot.lane.b32.xlu0 %v1213, 6
  %v1302 = vpop.permute.xlu0 %1301
  %1303 = vrot.lane.b32.xlu0 %v1214, 6
  %v1304 = vpop.permute.xlu0 %1303
  %1305 = vrot.lane.b32.xlu0 %v1215, 6
  %v1306 = vpop.permute.xlu0 %1305
  %1307 = vrot.lane.b32.xlu0 %v1216, 6
  %v1308 = vpop.permute.xlu0 %1307
  %1309 = vrot.lane.b32.xlu0 %v1217, 6
  %v1310 = vpop.permute.xlu0 %1309
  %1311 = vrot.lane.b32.xlu0 %v1218, 6
  %v1312 = vpop.permute.xlu0 %1311
  %1313 = vrot.lane.b32.xlu0 %v1219, 6
  %v1314 = vpop.permute.xlu0 %1313
  %1315 = vrot.lane.b32.xlu0 %v1220, 6
  %v1316 = vpop.permute.xlu0 %1315
  %vm1349 = vcmask 56368
  %1350 = vst.msk [vmem:[#allocation3] sm:$0xff] %vm1349, %v1254
  %1351 = vst.msk [vmem:[#allocation3 + $0x8] sm:$0xff] %vm1349, %v1256
  %1352 = vst.msk [vmem:[#allocation3 + $0x10] sm:$0xff] %vm1349, %v1258
  %1353 = vst.msk [vmem:[#allocation3 + $0x18] sm:$0xff] %vm1349, %v1260
  %1354 = vst.msk [vmem:[#allocation3 + $0x20] sm:$0xff] %vm1349, %v1262
  %1355 = vst.msk [vmem:[#allocation3 + $0x28] sm:$0xff] %vm1349, %v1264
  %1356 = vst.msk [vmem:[#allocation3 + $0x30] sm:$0xff] %vm1349, %v1266
  %1357 = vst.msk [vmem:[#allocation3 + $0x38] sm:$0xff] %vm1349, %v1268
  %1358 = vst.msk [vmem:[#allocation3 + $0x40] sm:$0xff] %vm1349, %v1270
  %1359 = vst.msk [vmem:[#allocation3 + $0x48] sm:$0xff] %vm1349, %v1272
  %1360 = vst.msk [vmem:[#allocation3 + $0x50] sm:$0xff] %vm1349, %v1274
  %1361 = vst.msk [vmem:[#allocation3 + $0x58] sm:$0xff] %vm1349, %v1276
  %1362 = vst.msk [vmem:[#allocation3 + $0x60] sm:$0xff] %vm1349, %v1278
  %1363 = vst.msk [vmem:[#allocation3 + $0x68] sm:$0xff] %vm1349, %v1280
  %1364 = vst.msk [vmem:[#allocation3 + $0x70] sm:$0xff] %vm1349, %v1282
  %1365 = vst.msk [vmem:[#allocation3 + $0x78] sm:$0xff] %vm1349, %v1284
  %1366 = vst.msk [vmem:[#allocation3 + $0x80] sm:$0xff] %vm1349, %v1286
  %1367 = vst.msk [vmem:[#allocation3 + $0x88] sm:$0xff] %vm1349, %v1288
  %1368 = vst.msk [vmem:[#allocation3 + $0x90] sm:$0xff] %vm1349, %v1290
  %1369 = vst.msk [vmem:[#allocation3 + $0x98] sm:$0xff] %vm1349, %v1292
  %1370 = vst.msk [vmem:[#allocation3 + $0xa0] sm:$0xff] %vm1349, %v1294
  %1371 = vst.msk [vmem:[#allocation3 + $0xa8] sm:$0xff] %vm1349, %v1296
  %1372 = vst.msk [vmem:[#allocation3 + $0xb0] sm:$0xff] %vm1349, %v1298
  %1373 = vst.msk [vmem:[#allocation3 + $0xb8] sm:$0xff] %vm1349, %v1300
  %1374 = vst.msk [vmem:[#allocation3 + $0xc0] sm:$0xff] %vm1349, %v1302
  %1375 = vst.msk [vmem:[#allocation3 + $0xc8] sm:$0xff] %vm1349, %v1304
  %1376 = vst.msk [vmem:[#allocation3 + $0xd0] sm:$0xff] %vm1349, %v1306
  %1377 = vst.msk [vmem:[#allocation3 + $0xd8] sm:$0xff] %vm1349, %v1308
  %1378 = vst.msk [vmem:[#allocation3 + $0xe0] sm:$0xff] %vm1349, %v1310
  %1379 = vst.msk [vmem:[#allocation3 + $0xe8] sm:$0xff] %vm1349, %v1312
  %1380 = vst.msk [vmem:[#allocation3 + $0xf0] sm:$0xff] %vm1349, %v1314
  %1381 = vst.msk [vmem:[#allocation3 + $0xf8] sm:$0xff] %vm1349, %v1316
  %v1382 = vld [vmem:[%s1188 + $0x1] sm:$0xff]
  %v1383 = vld [vmem:[%s1188 + $0x9] sm:$0xff]
  %v1384 = vld [vmem:[%s1188 + $0x19] sm:$0xff]
  %v1385 = vld [vmem:[%s1188 + $0x21] sm:$0xff]
  %v1386 = vld [vmem:[%s1188 + $0x31] sm:$0xff]
  %v1387 = vld [vmem:[%s1188 + $0x39] sm:$0xff]
  %v1388 = vld [vmem:[%s1188 + $0x49] sm:$0xff]
  %v1389 = vld [vmem:[%s1188 + $0x51] sm:$0xff]
  %v1390 = vld [vmem:[%s1188 + $0x61] sm:$0xff]
  %v1391 = vld [vmem:[%s1188 + $0x69] sm:$0xff]
  %v1392 = vld [vmem:[%s1188 + $0x79] sm:$0xff]
  %v1393 = vld [vmem:[%s1188 + $0x81] sm:$0xff]
  %v1394 = vld [vmem:[%s1188 + $0x91] sm:$0xff]
  %v1395 = vld [vmem:[%s1188 + $0x99] sm:$0xff]
  %v1396 = vld [vmem:[%s1188 + $0xa9] sm:$0xff]
  %v1397 = vld [vmem:[%s1188 + $0xb1] sm:$0xff]
  %v1398 = vld [vmem:[%s1188 + $0xf1] sm:$0xff]
  %v1399 = vld [vmem:[%s1188 + $0xf9] sm:$0xff]
  %v1400 = vld [vmem:[%s1188 + $0x109] sm:$0xff]
  %v1401 = vld [vmem:[%s1188 + $0x111] sm:$0xff]
  %v1402 = vld [vmem:[%s1188 + $0x121] sm:$0xff]
  %v1403 = vld [vmem:[%s1188 + $0x129] sm:$0xff]
  %v1404 = vld [vmem:[%s1188 + $0x139] sm:$0xff]
  %v1405 = vld [vmem:[%s1188 + $0x141] sm:$0xff]
  %v1406 = vld [vmem:[%s1188 + $0x151] sm:$0xff]
  %v1407 = vld [vmem:[%s1188 + $0x159] sm:$0xff]
  %v1408 = vld [vmem:[%s1188 + $0x169] sm:$0xff]
  %v1409 = vld [vmem:[%s1188 + $0x171] sm:$0xff]
  %v1410 = vld [vmem:[%s1188 + $0x181] sm:$0xff]
  %v1411 = vld [vmem:[%s1188 + $0x189] sm:$0xff]
  %v1412 = vld [vmem:[%s1188 + $0x199] sm:$0xff]
  %v1413 = vld [vmem:[%s1188 + $0x1a1] sm:$0xff]
  %1446 = vrot.lane.b32.xlu0 %v1382, 7
  %v1447 = vpop.permute.xlu0 %1446
  %1448 = vrot.lane.b32.xlu0 %v1383, 7
  %v1449 = vpop.permute.xlu0 %1448
  %1450 = vrot.lane.b32.xlu0 %v1384, 7
  %v1451 = vpop.permute.xlu0 %1450
  %1452 = vrot.lane.b32.xlu0 %v1385, 7
  %v1453 = vpop.permute.xlu0 %1452
  %1454 = vrot.lane.b32.xlu0 %v1386, 7
  %v1455 = vpop.permute.xlu0 %1454
  %1456 = vrot.lane.b32.xlu0 %v1387, 7
  %v1457 = vpop.permute.xlu0 %1456
  %1458 = vrot.lane.b32.xlu0 %v1388, 7
  %v1459 = vpop.permute.xlu0 %1458
  %1460 = vrot.lane.b32.xlu0 %v1389, 7
  %v1461 = vpop.permute.xlu0 %1460
  %1462 = vrot.lane.b32.xlu0 %v1390, 7
  %v1463 = vpop.permute.xlu0 %1462
  %1464 = vrot.lane.b32.xlu0 %v1391, 7
  %v1465 = vpop.permute.xlu0 %1464
  %1466 = vrot.lane.b32.xlu0 %v1392, 7
  %v1467 = vpop.permute.xlu0 %1466
  %1468 = vrot.lane.b32.xlu0 %v1393, 7
  %v1469 = vpop.permute.xlu0 %1468
  %1470 = vrot.lane.b32.xlu0 %v1394, 7
  %v1471 = vpop.permute.xlu0 %1470
  %1472 = vrot.lane.b32.xlu0 %v1395, 7
  %v1473 = vpop.permute.xlu0 %1472
  %1474 = vrot.lane.b32.xlu0 %v1396, 7
  %v1475 = vpop.permute.xlu0 %1474
  %1476 = vrot.lane.b32.xlu0 %v1397, 7
  %v1477 = vpop.permute.xlu0 %1476
  %1478 = vrot.lane.b32.xlu0 %v1398, 7
  %v1479 = vpop.permute.xlu0 %1478
  %1480 = vrot.lane.b32.xlu0 %v1399, 7
  %v1481 = vpop.permute.xlu0 %1480
  %1482 = vrot.lane.b32.xlu0 %v1400, 7
  %v1483 = vpop.permute.xlu0 %1482
  %1484 = vrot.lane.b32.xlu0 %v1401, 7
  %v1485 = vpop.permute.xlu0 %1484
  %1486 = vrot.lane.b32.xlu0 %v1402, 7
  %v1487 = vpop.permute.xlu0 %1486
  %1488 = vrot.lane.b32.xlu0 %v1403, 7
  %v1489 = vpop.permute.xlu0 %1488
  %1490 = vrot.lane.b32.xlu0 %v1404, 7
  %v1491 = vpop.permute.xlu0 %1490
  %1492 = vrot.lane.b32.xlu0 %v1405, 7
  %v1493 = vpop.permute.xlu0 %1492
  %1494 = vrot.lane.b32.xlu0 %v1406, 7
  %v1495 = vpop.permute.xlu0 %1494
  %1496 = vrot.lane.b32.xlu0 %v1407, 7
  %v1497 = vpop.permute.xlu0 %1496
  %1498 = vrot.lane.b32.xlu0 %v1408, 7
  %v1499 = vpop.permute.xlu0 %1498
  %1500 = vrot.lane.b32.xlu0 %v1409, 7
  %v1501 = vpop.permute.xlu0 %1500
  %1502 = vrot.lane.b32.xlu0 %v1410, 7
  %v1503 = vpop.permute.xlu0 %1502
  %1504 = vrot.lane.b32.xlu0 %v1411, 7
  %v1505 = vpop.permute.xlu0 %1504
  %1506 = vrot.lane.b32.xlu0 %v1412, 7
  %v1507 = vpop.permute.xlu0 %1506
  %1508 = vrot.lane.b32.xlu0 %v1413, 7
  %v1509 = vpop.permute.xlu0 %1508
  %vm1542 = vcmask 64568
  %1543 = vst.msk [vmem:[#allocation3] sm:$0xff] %vm1542, %v1447
  %1544 = vst.msk [vmem:[#allocation3 + $0x8] sm:$0xff] %vm1542, %v1449
  %1545 = vst.msk [vmem:[#allocation3 + $0x10] sm:$0xff] %vm1542, %v1451
  %1546 = vst.msk [vmem:[#allocation3 + $0x18] sm:$0xff] %vm1542, %v1453
  %1547 = vst.msk [vmem:[#allocation3 + $0x20] sm:$0xff] %vm1542, %v1455
  %1548 = vst.msk [vmem:[#allocation3 + $0x28] sm:$0xff] %vm1542, %v1457
  %1549 = vst.msk [vmem:[#allocation3 + $0x30] sm:$0xff] %vm1542, %v1459
  %1550 = vst.msk [vmem:[#allocation3 + $0x38] sm:$0xff] %vm1542, %v1461
  %1551 = vst.msk [vmem:[#allocation3 + $0x40] sm:$0xff] %vm1542, %v1463
  %1552 = vst.msk [vmem:[#allocation3 + $0x48] sm:$0xff] %vm1542, %v1465
  %1553 = vst.msk [vmem:[#allocation3 + $0x50] sm:$0xff] %vm1542, %v1467
  %1554 = vst.msk [vmem:[#allocation3 + $0x58] sm:$0xff] %vm1542, %v1469
  %1555 = vst.msk [vmem:[#allocation3 + $0x60] sm:$0xff] %vm1542, %v1471
  %1556 = vst.msk [vmem:[#allocation3 + $0x68] sm:$0xff] %vm1542, %v1473
  %1557 = vst.msk [vmem:[#allocation3 + $0x70] sm:$0xff] %vm1542, %v1475
  %1558 = vst.msk [vmem:[#allocation3 + $0x78] sm:$0xff] %vm1542, %v1477
  %1559 = vst.msk [vmem:[#allocation3 + $0x80] sm:$0xff] %vm1542, %v1479
  %1560 = vst.msk [vmem:[#allocation3 + $0x88] sm:$0xff] %vm1542, %v1481
  %1561 = vst.msk [vmem:[#allocation3 + $0x90] sm:$0xff] %vm1542, %v1483
  %1562 = vst.msk [vmem:[#allocation3 + $0x98] sm:$0xff] %vm1542, %v1485
  %1563 = vst.msk [vmem:[#allocation3 + $0xa0] sm:$0xff] %vm1542, %v1487
  %1564 = vst.msk [vmem:[#allocation3 + $0xa8] sm:$0xff] %vm1542, %v1489
  %1565 = vst.msk [vmem:[#allocation3 + $0xb0] sm:$0xff] %vm1542, %v1491
  %1566 = vst.msk [vmem:[#allocation3 + $0xb8] sm:$0xff] %vm1542, %v1493
  %1567 = vst.msk [vmem:[#allocation3 + $0xc0] sm:$0xff] %vm1542, %v1495
  %1568 = vst.msk [vmem:[#allocation3 + $0xc8] sm:$0xff] %vm1542, %v1497
  %1569 = vst.msk [vmem:[#allocation3 + $0xd0] sm:$0xff] %vm1542, %v1499
  %1570 = vst.msk [vmem:[#allocation3 + $0xd8] sm:$0xff] %vm1542, %v1501
  %1571 = vst.msk [vmem:[#allocation3 + $0xe0] sm:$0xff] %vm1542, %v1503
  %1572 = vst.msk [vmem:[#allocation3 + $0xe8] sm:$0xff] %vm1542, %v1505
  %1573 = vst.msk [vmem:[#allocation3 + $0xf0] sm:$0xff] %vm1542, %v1507
  %1574 = vst.msk [vmem:[#allocation3 + $0xf8] sm:$0xff] %vm1542, %v1509
  %v1575 = vld [vmem:[%s1188 + $0x2] sm:$0xff]
  %v1576 = vld [vmem:[%s1188 + $0xa] sm:$0xff]
  %v1577 = vld [vmem:[%s1188 + $0x1a] sm:$0xff]
  %v1578 = vld [vmem:[%s1188 + $0x22] sm:$0xff]
  %v1579 = vld [vmem:[%s1188 + $0x32] sm:$0xff]
  %v1580 = vld [vmem:[%s1188 + $0x3a] sm:$0xff]
  %v1581 = vld [vmem:[%s1188 + $0x4a] sm:$0xff]
  %v1582 = vld [vmem:[%s1188 + $0x52] sm:$0xff]
  %v1583 = vld [vmem:[%s1188 + $0x62] sm:$0xff]
  %v1584 = vld [vmem:[%s1188 + $0x6a] sm:$0xff]
  %v1585 = vld [vmem:[%s1188 + $0x7a] sm:$0xff]
  %v1586 = vld [vmem:[%s1188 + $0x82] sm:$0xff]
  %v1587 = vld [vmem:[%s1188 + $0x92] sm:$0xff]
  %v1588 = vld [vmem:[%s1188 + $0x9a] sm:$0xff]
  %v1589 = vld [vmem:[%s1188 + $0xaa] sm:$0xff]
  %v1590 = vld [vmem:[%s1188 + $0xb2] sm:$0xff]
  %v1591 = vld [vmem:[%s1188 + $0xf2] sm:$0xff]
  %v1592 = vld [vmem:[%s1188 + $0xfa] sm:$0xff]
  %v1593 = vld [vmem:[%s1188 + $0x10a] sm:$0xff]
  %v1594 = vld [vmem:[%s1188 + $0x112] sm:$0xff]
  %v1595 = vld [vmem:[%s1188 + $0x122] sm:$0xff]
  %v1596 = vld [vmem:[%s1188 + $0x12a] sm:$0xff]
  %v1597 = vld [vmem:[%s1188 + $0x13a] sm:$0xff]
  %v1598 = vld [vmem:[%s1188 + $0x142] sm:$0xff]
  %v1599 = vld [vmem:[%s1188 + $0x152] sm:$0xff]
  %v1600 = vld [vmem:[%s1188 + $0x15a] sm:$0xff]
  %v1601 = vld [vmem:[%s1188 + $0x16a] sm:$0xff]
  %v1602 = vld [vmem:[%s1188 + $0x172] sm:$0xff]
  %v1603 = vld [vmem:[%s1188 + $0x182] sm:$0xff]
  %v1604 = vld [vmem:[%s1188 + $0x18a] sm:$0xff]
  %v1605 = vld [vmem:[%s1188 + $0x19a] sm:$0xff]
  %v1606 = vld [vmem:[%s1188 + $0x1a2] sm:$0xff]
  %1639 = vrot.lane.b32.xlu0 %v1575, 8
  %v1640 = vpop.permute.xlu0 %1639
  %1641 = vrot.lane.b32.xlu0 %v1576, 8
  %v1642 = vpop.permute.xlu0 %1641
  %1643 = vrot.lane.b32.xlu0 %v1577, 8
  %v1644 = vpop.permute.xlu0 %1643
  %1645 = vrot.lane.b32.xlu0 %v1578, 8
  %v1646 = vpop.permute.xlu0 %1645
  %1647 = vrot.lane.b32.xlu0 %v1579, 8
  %v1648 = vpop.permute.xlu0 %1647
  %1649 = vrot.lane.b32.xlu0 %v1580, 8
  %v1650 = vpop.permute.xlu0 %1649
  %1651 = vrot.lane.b32.xlu0 %v1581, 8
  %v1652 = vpop.permute.xlu0 %1651
  %1653 = vrot.lane.b32.xlu0 %v1582, 8
  %v1654 = vpop.permute.xlu0 %1653
  %1655 = vrot.lane.b32.xlu0 %v1583, 8
  %v1656 = vpop.permute.xlu0 %1655
  %1657 = vrot.lane.b32.xlu0 %v1584, 8
  %v1658 = vpop.permute.xlu0 %1657
  %1659 = vrot.lane.b32.xlu0 %v1585, 8
  %v1660 = vpop.permute.xlu0 %1659
  %1661 = vrot.lane.b32.xlu0 %v1586, 8
  %v1662 = vpop.permute.xlu0 %1661
  %1663 = vrot.lane.b32.xlu0 %v1587, 8
  %v1664 = vpop.permute.xlu0 %1663
  %1665 = vrot.lane.b32.xlu0 %v1588, 8
  %v1666 = vpop.permute.xlu0 %1665
  %1667 = vrot.lane.b32.xlu0 %v1589, 8
  %v1668 = vpop.permute.xlu0 %1667
  %1669 = vrot.lane.b32.xlu0 %v1590, 8
  %v1670 = vpop.permute.xlu0 %1669
  %1671 = vrot.lane.b32.xlu0 %v1591, 8
  %v1672 = vpop.permute.xlu0 %1671
  %1673 = vrot.lane.b32.xlu0 %v1592, 8
  %v1674 = vpop.permute.xlu0 %1673
  %1675 = vrot.lane.b32.xlu0 %v1593, 8
  %v1676 = vpop.permute.xlu0 %1675
  %1677 = vrot.lane.b32.xlu0 %v1594, 8
  %v1678 = vpop.permute.xlu0 %1677
  %1679 = vrot.lane.b32.xlu0 %v1595, 8
  %v1680 = vpop.permute.xlu0 %1679
  %1681 = vrot.lane.b32.xlu0 %v1596, 8
  %v1682 = vpop.permute.xlu0 %1681
  %1683 = vrot.lane.b32.xlu0 %v1597, 8
  %v1684 = vpop.permute.xlu0 %1683
  %1685 = vrot.lane.b32.xlu0 %v1598, 8
  %v1686 = vpop.permute.xlu0 %1685
  %1687 = vrot.lane.b32.xlu0 %v1599, 8
  %v1688 = vpop.permute.xlu0 %1687
  %1689 = vrot.lane.b32.xlu0 %v1600, 8
  %v1690 = vpop.permute.xlu0 %1689
  %1691 = vrot.lane.b32.xlu0 %v1601, 8
  %v1692 = vpop.permute.xlu0 %1691
  %1693 = vrot.lane.b32.xlu0 %v1602, 8
  %v1694 = vpop.permute.xlu0 %1693
  %1695 = vrot.lane.b32.xlu0 %v1603, 8
  %v1696 = vpop.permute.xlu0 %1695
  %1697 = vrot.lane.b32.xlu0 %v1604, 8
  %v1698 = vpop.permute.xlu0 %1697
  %1699 = vrot.lane.b32.xlu0 %v1605, 8
  %v1700 = vpop.permute.xlu0 %1699
  %1701 = vrot.lane.b32.xlu0 %v1606, 8
  %v1702 = vpop.permute.xlu0 %1701
  %vm1735 = vcmask 72768
  %1736 = vst.msk [vmem:[#allocation3] sm:$0xff] %vm1735, %v1640
  %1737 = vst.msk [vmem:[#allocation3 + $0x8] sm:$0xff] %vm1735, %v1642
  %1738 = vst.msk [vmem:[#allocation3 + $0x10] sm:$0xff] %vm1735, %v1644
  %1739 = vst.msk [vmem:[#allocation3 + $0x18] sm:$0xff] %vm1735, %v1646
  %1740 = vst.msk [vmem:[#allocation3 + $0x20] sm:$0xff] %vm1735, %v1648
  %1741 = vst.msk [vmem:[#allocation3 + $0x28] sm:$0xff] %vm1735, %v1650
  %1742 = vst.msk [vmem:[#allocation3 + $0x30] sm:$0xff] %vm1735, %v1652
  %1743 = vst.msk [vmem:[#allocation3 + $0x38] sm:$0xff] %vm1735, %v1654
  %1744 = vst.msk [vmem:[#allocation3 + $0x40] sm:$0xff] %vm1735, %v1656
  %1745 = vst.msk [vmem:[#allocation3 + $0x48] sm:$0xff] %vm1735, %v1658
  %1746 = vst.msk [vmem:[#allocation3 + $0x50] sm:$0xff] %vm1735, %v1660
  %1747 = vst.msk [vmem:[#allocation3 + $0x58] sm:$0xff] %vm1735, %v1662
  %1748 = vst.msk [vmem:[#allocation3 + $0x60] sm:$0xff] %vm1735, %v1664
  %1749 = vst.msk [vmem:[#allocation3 + $0x68] sm:$0xff] %vm1735, %v1666
  %1750 = vst.msk [vmem:[#allocation3 + $0x70] sm:$0xff] %vm1735, %v1668
  %1751 = vst.msk [vmem:[#allocation3 + $0x78] sm:$0xff] %vm1735, %v1670
  %1752 = vst.msk [vmem:[#allocation3 + $0x80] sm:$0xff] %vm1735, %v1672
  %1753 = vst.msk [vmem:[#allocation3 + $0x88] sm:$0xff] %vm1735, %v1674
  %1754 = vst.msk [vmem:[#allocation3 + $0x90] sm:$0xff] %vm1735, %v1676
  %1755 = vst.msk [vmem:[#allocation3 + $0x98] sm:$0xff] %vm1735, %v1678
  %1756 = vst.msk [vmem:[#allocation3 + $0xa0] sm:$0xff] %vm1735, %v1680
  %1757 = vst.msk [vmem:[#allocation3 + $0xa8] sm:$0xff] %vm1735, %v1682
  %1758 = vst.msk [vmem:[#allocation3 + $0xb0] sm:$0xff] %vm1735, %v1684
  %1759 = vst.msk [vmem:[#allocation3 + $0xb8] sm:$0xff] %vm1735, %v1686
  %1760 = vst.msk [vmem:[#allocation3 + $0xc0] sm:$0xff] %vm1735, %v1688
  %1761 = vst.msk [vmem:[#allocation3 + $0xc8] sm:$0xff] %vm1735, %v1690
  %1762 = vst.msk [vmem:[#allocation3 + $0xd0] sm:$0xff] %vm1735, %v1692
  %1763 = vst.msk [vmem:[#allocation3 + $0xd8] sm:$0xff] %vm1735, %v1694
  %1764 = vst.msk [vmem:[#allocation3 + $0xe0] sm:$0xff] %vm1735, %v1696
  %1765 = vst.msk [vmem:[#allocation3 + $0xe8] sm:$0xff] %vm1735, %v1698
  %1766 = vst.msk [vmem:[#allocation3 + $0xf0] sm:$0xff] %vm1735, %v1700
  %1767 = vst.msk [vmem:[#allocation3 + $0xf8] sm:$0xff] %vm1735, %v1702
  %v1768 = vld [vmem:[#allocation3] sm:$0xff]
  %v1769 = vld [vmem:[#allocation3 + $0x8] sm:$0xff]
  %v1770 = vld [vmem:[#allocation3 + $0x10] sm:$0xff]
  %v1771 = vld [vmem:[#allocation3 + $0x18] sm:$0xff]
  %v1772 = vld [vmem:[#allocation3 + $0x20] sm:$0xff]
  %v1773 = vld [vmem:[#allocation3 + $0x28] sm:$0xff]
  %v1774 = vld [vmem:[#allocation3 + $0x30] sm:$0xff]
  %v1775 = vld [vmem:[#allocation3 + $0x38] sm:$0xff]
  %v1776 = vld [vmem:[#allocation3 + $0x40] sm:$0xff]
  %v1777 = vld [vmem:[#allocation3 + $0x48] sm:$0xff]
  %v1778 = vld [vmem:[#allocation3 + $0x50] sm:$0xff]
  %v1779 = vld [vmem:[#allocation3 + $0x58] sm:$0xff]
  %v1780 = vld [vmem:[#allocation3 + $0x60] sm:$0xff]
  %v1781 = vld [vmem:[#allocation3 + $0x68] sm:$0xff]
  %v1782 = vld [vmem:[#allocation3 + $0x70] sm:$0xff]
  %v1783 = vld [vmem:[#allocation3 + $0x78] sm:$0xff]
  %v1784 = vld [vmem:[#allocation3 + $0x80] sm:$0xff]
  %v1785 = vld [vmem:[#allocation3 + $0x88] sm:$0xff]
  %v1786 = vld [vmem:[#allocation3 + $0x90] sm:$0xff]
  %v1787 = vld [vmem:[#allocation3 + $0x98] sm:$0xff]
  %v1788 = vld [vmem:[#allocation3 + $0xa0] sm:$0xff]
  %v1789 = vld [vmem:[#allocation3 + $0xa8] sm:$0xff]
  %v1790 = vld [vmem:[#allocation3 + $0xb0] sm:$0xff]
  %v1791 = vld [vmem:[#allocation3 + $0xb8] sm:$0xff]
  %v1792 = vld [vmem:[#allocation3 + $0xc0] sm:$0xff]
  %v1793 = vld [vmem:[#allocation3 + $0xc8] sm:$0xff]
  %v1794 = vld [vmem:[#allocation3 + $0xd0] sm:$0xff]
  %v1795 = vld [vmem:[#allocation3 + $0xd8] sm:$0xff]
  %v1796 = vld [vmem:[#allocation3 + $0xe0] sm:$0xff]
  %v1797 = vld [vmem:[#allocation3 + $0xe8] sm:$0xff]
  %v1798 = vld [vmem:[#allocation3 + $0xf0] sm:$0xff]
  %v1799 = vld [vmem:[#allocation3 + $0xf8] sm:$0xff]
  %v1800 = vld [vmem:[%s1] sm:$0xff]
  %v1801 = vld [vmem:[%s1 + $0x8] sm:$0x1]
  %v1802 = vld [vmem:[%s2] sm:$0x1]
  %v1804 = vperm.slane %v1802, 0
  %vm1806 = vcmask 72704
  %v1808 = vsel %vm1806, %v1768, 0
  %v1811 = vsel %vm1806, %v1769, 0
  %v1814 = vsel %vm1806, %v1770, 0
  %v1817 = vsel %vm1806, %v1771, 0
  %v1820 = vsel %vm1806, %v1772, 0
  %v1823 = vsel %vm1806, %v1773, 0
  %v1826 = vsel %vm1806, %v1774, 0
  %v1829 = vsel %vm1806, %v1775, 0
  %v1832 = vsel %vm1806, %v1776, 0
  %v1835 = vsel %vm1806, %v1777, 0
  %v1838 = vsel %vm1806, %v1778, 0
  %v1841 = vsel %vm1806, %v1779, 0
  %v1844 = vsel %vm1806, %v1780, 0
  %v1847 = vsel %vm1806, %v1781, 0
  %v1850 = vsel %vm1806, %v1782, 0
  %v1853 = vsel %vm1806, %v1783, 0
  %v1856 = vsel %vm1806, %v1784, 0
  %v1859 = vsel %vm1806, %v1785, 0
  %v1862 = vsel %vm1806, %v1786, 0
  %v1865 = vsel %vm1806, %v1787, 0
  %v1868 = vsel %vm1806, %v1788, 0
  %v1871 = vsel %vm1806, %v1789, 0
  %v1874 = vsel %vm1806, %v1790, 0
  %v1877 = vsel %vm1806, %v1791, 0
  %v1880 = vsel %vm1806, %v1792, 0
  %v1883 = vsel %vm1806, %v1793, 0
  %v1886 = vsel %vm1806, %v1794, 0
  %v1889 = vsel %vm1806, %v1795, 0
  %v1892 = vsel %vm1806, %v1796, 0
  %v1895 = vsel %vm1806, %v1797, 0
  %v1898 = vsel %vm1806, %v1798, 0
  %v1901 = vsel %vm1806, %v1799, 0
  %vm1903 = vcmask 1040384
  %v1905 = vsel %vm1903, %v1801, 0
  %1907 = vmatpush.msra.mxu0 0.0
  %1908 = vmatpush.msra.mxu0 0.0
  %1909 = vmatpush.msra.mxu0 0.0
  %1910 = vmatpush.msra.mxu0 0.0
  %1911 = vmatpush.msra.mxu0 0.0
  %1912 = vmatpush.msra.mxu0 0.0
  %1913 = vmatpush.msra.mxu0 0.0
  %1914 = vmatpush.msra.mxu0 0.0
  %1915 = vmatpush.msra.mxu0 0.0
  %1916 = vmatpush.msra.mxu0 0.0
  %1917 = vmatpush.msra.mxu0 0.0
  %1918 = vmatpush.msra.mxu0 0.0
  %1919 = vmatpush.msra.mxu0 0.0
  %1920 = vmatpush.msra.mxu0 0.0
  %1921 = vmatpush.msra.mxu0 %v1905
  %1922 = vmatpush.msra.mxu0 %v1800
  %1923 = vmatmul.f32.gmra.mxu0 %v1808
  %v1924 = vpop.f32.mrf.mxu0
  %v1925 = vadd.f32 %v1804, %v1924
  %1926 = vmatmul.f32.gmra.mxu0 %v1811
  %v1927 = vpop.f32.mrf.mxu0
  %v1928 = vadd.f32 %v1804, %v1927
  %1929 = vmatmul.f32.gmra.mxu0 %v1814
  %v1930 = vpop.f32.mrf.mxu0
  %v1931 = vadd.f32 %v1804, %v1930
  %1932 = vmatmul.f32.gmra.mxu0 %v1817
  %v1933 = vpop.f32.mrf.mxu0
  %v1934 = vadd.f32 %v1804, %v1933
  %1935 = vmatmul.f32.gmra.mxu0 %v1820
  %v1936 = vpop.f32.mrf.mxu0
  %v1937 = vadd.f32 %v1804, %v1936
  %1938 = vmatmul.f32.gmra.mxu0 %v1823
  %v1939 = vpop.f32.mrf.mxu0
  %v1940 = vadd.f32 %v1804, %v1939
  %1941 = vmatmul.f32.gmra.mxu0 %v1826
  %v1942 = vpop.f32.mrf.mxu0
  %v1943 = vadd.f32 %v1804, %v1942
  %1944 = vmatmul.f32.gmra.mxu0 %v1829
  %v1945 = vpop.f32.mrf.mxu0
  %v1946 = vadd.f32 %v1804, %v1945
  %1947 = vmatmul.f32.gmra.mxu0 %v1832
  %v1948 = vpop.f32.mrf.mxu0
  %v1949 = vadd.f32 %v1804, %v1948
  %1950 = vmatmul.f32.gmra.mxu0 %v1835
  %v1951 = vpop.f32.mrf.mxu0
  %v1952 = vadd.f32 %v1804, %v1951
  %1953 = vmatmul.f32.gmra.mxu0 %v1838
  %v1954 = vpop.f32.mrf.mxu0
  %v1955 = vadd.f32 %v1804, %v1954
  %1956 = vmatmul.f32.gmra.mxu0 %v1841
  %v1957 = vpop.f32.mrf.mxu0
  %v1958 = vadd.f32 %v1804, %v1957
  %1959 = vmatmul.f32.gmra.mxu0 %v1844
  %v1960 = vpop.f32.mrf.mxu0
  %v1961 = vadd.f32 %v1804, %v1960
  %1962 = vmatmul.f32.gmra.mxu0 %v1847
  %v1963 = vpop.f32.mrf.mxu0
  %v1964 = vadd.f32 %v1804, %v1963
  %1965 = vmatmul.f32.gmra.mxu0 %v1850
  %v1966 = vpop.f32.mrf.mxu0
  %v1967 = vadd.f32 %v1804, %v1966
  %1968 = vmatmul.f32.gmra.mxu0 %v1853
  %v1969 = vpop.f32.mrf.mxu0
  %v1970 = vadd.f32 %v1804, %v1969
  %1971 = vmatmul.f32.gmra.mxu0 %v1856
  %v1972 = vpop.f32.mrf.mxu0
  %v1973 = vadd.f32 %v1804, %v1972
  %1974 = vmatmul.f32.gmra.mxu0 %v1859
  %v1975 = vpop.f32.mrf.mxu0
  %v1976 = vadd.f32 %v1804, %v1975
  %1977 = vmatmul.f32.gmra.mxu0 %v1862
  %v1978 = vpop.f32.mrf.mxu0
  %v1979 = vadd.f32 %v1804, %v1978
  %1980 = vmatmul.f32.gmra.mxu0 %v1865
  %v1981 = vpop.f32.mrf.mxu0
  %v1982 = vadd.f32 %v1804, %v1981
  %1983 = vmatmul.f32.gmra.mxu0 %v1868
  %v1984 = vpop.f32.mrf.mxu0
  %v1985 = vadd.f32 %v1804, %v1984
  %1986 = vmatmul.f32.gmra.mxu0 %v1871
  %v1987 = vpop.f32.mrf.mxu0
  %v1988 = vadd.f32 %v1804, %v1987
  %1989 = vmatmul.f32.gmra.mxu0 %v1874
  %v1990 = vpop.f32.mrf.mxu0
  %v1991 = vadd.f32 %v1804, %v1990
  %1992 = vmatmul.f32.gmra.mxu0 %v1877
  %v1993 = vpop.f32.mrf.mxu0
  %v1994 = vadd.f32 %v1804, %v1993
  %1995 = vmatmul.f32.gmra.mxu0 %v1880
  %v1996 = vpop.f32.mrf.mxu0
  %v1997 = vadd.f32 %v1804, %v1996
  %1998 = vmatmul.f32.gmra.mxu0 %v1883
  %v1999 = vpop.f32.mrf.mxu0
  %v2000 = vadd.f32 %v1804, %v1999
  %2001 = vmatmul.f32.gmra.mxu0 %v1886
  %v2002 = vpop.f32.mrf.mxu0
  %v2003 = vadd.f32 %v1804, %v2002
  %2004 = vmatmul.f32.gmra.mxu0 %v1889
  %v2005 = vpop.f32.mrf.mxu0
  %v2006 = vadd.f32 %v1804, %v2005
  %2007 = vmatmul.f32.gmra.mxu0 %v1892
  %v2008 = vpop.f32.mrf.mxu0
  %v2009 = vadd.f32 %v1804, %v2008
  %2010 = vmatmul.f32.gmra.mxu0 %v1895
  %v2011 = vpop.f32.mrf.mxu0
  %v2012 = vadd.f32 %v1804, %v2011
  %2013 = vmatmul.f32.gmra.mxu0 %v1898
  %v2014 = vpop.f32.mrf.mxu0
  %v2015 = vadd.f32 %v1804, %v2014
  %2016 = vmatmul.f32.gmra.mxu0 %v1901
  %v2017 = vpop.f32.mrf.mxu0
  %v2018 = vadd.f32 %v1804, %v2017
  %2019 = vdwg.mxu0
  %v2020 = vmax.f32 %v1925, 0.0
  %v2021 = vmax.f32 %v1928, 0.0
  %v2022 = vmax.f32 %v1931, 0.0
  %v2023 = vmax.f32 %v1934, 0.0
  %v2024 = vmax.f32 %v1937, 0.0
  %v2025 = vmax.f32 %v1940, 0.0
  %v2026 = vmax.f32 %v1943, 0.0
  %v2027 = vmax.f32 %v1946, 0.0
  %v2028 = vmax.f32 %v1949, 0.0
  %v2029 = vmax.f32 %v1952, 0.0
  %v2030 = vmax.f32 %v1955, 0.0
  %v2031 = vmax.f32 %v1958, 0.0
  %v2032 = vmax.f32 %v1961, 0.0
  %v2033 = vmax.f32 %v1964, 0.0
  %v2034 = vmax.f32 %v1967, 0.0
  %v2035 = vmax.f32 %v1970, 0.0
  %v2036 = vmax.f32 %v1973, 0.0
  %v2037 = vmax.f32 %v1976, 0.0
  %v2038 = vmax.f32 %v1979, 0.0
  %v2039 = vmax.f32 %v1982, 0.0
  %v2040 = vmax.f32 %v1985, 0.0
  %v2041 = vmax.f32 %v1988, 0.0
  %v2042 = vmax.f32 %v1991, 0.0
  %v2043 = vmax.f32 %v1994, 0.0
  %v2044 = vmax.f32 %v1997, 0.0
  %v2045 = vmax.f32 %v2000, 0.0
  %v2046 = vmax.f32 %v2003, 0.0
  %v2047 = vmax.f32 %v2006, 0.0
  %v2048 = vmax.f32 %v2009, 0.0
  %v2049 = vmax.f32 %v2012, 0.0
  %v2050 = vmax.f32 %v2015, 0.0
  %v2051 = vmax.f32 %v2018, 0.0
  %vm2052 = vcmask 523264
  %2053 = vst.msk [vmem:[#allocation4] sm:$0xff] %vm2052, 0.0
  %2054 = vst.msk [vmem:[#allocation4 + $0x8] sm:$0xff] %vm2052, 0.0
  %vm2055 = vcmask 517120
  %2056 = vst.msk [vmem:[#allocation4 + $0x10] sm:$0x3] %vm2055, 0.0
  %2057 = vst.msk [vmem:[#allocation4 + $0x18] sm:$0xff] %vm2052, 0.0
  %2058 = vst.msk [vmem:[#allocation4 + $0x20] sm:$0xff] %vm2052, 0.0
  %2059 = vst.msk [vmem:[#allocation4 + $0x28] sm:$0x3] %vm2055, 0.0
  %2060 = vst.msk [vmem:[#allocation4 + $0x30] sm:$0xff] %vm2052, 0.0
  %2061 = vst.msk [vmem:[#allocation4 + $0x38] sm:$0xff] %vm2052, 0.0
  %2062 = vst.msk [vmem:[#allocation4 + $0x40] sm:$0x3] %vm2055, 0.0
  %2063 = vst.msk [vmem:[#allocation4 + $0x48] sm:$0xff] %vm2052, 0.0
  %2064 = vst.msk [vmem:[#allocation4 + $0x50] sm:$0xff] %vm2052, 0.0
  %2065 = vst.msk [vmem:[#allocation4 + $0x58] sm:$0x3] %vm2055, 0.0
  %2066 = vst.msk [vmem:[#allocation4 + $0x60] sm:$0xff] %vm2052, 0.0
  %2067 = vst.msk [vmem:[#allocation4 + $0x68] sm:$0xff] %vm2052, 0.0
  %2068 = vst.msk [vmem:[#allocation4 + $0x70] sm:$0x3] %vm2055, 0.0
  %2069 = vst.msk [vmem:[#allocation4 + $0x78] sm:$0xff] %vm2052, 0.0
  %2070 = vst.msk [vmem:[#allocation4 + $0x80] sm:$0xff] %vm2052, 0.0
  %2071 = vst.msk [vmem:[#allocation4 + $0x88] sm:$0x3] %vm2055, 0.0
  %2072 = vst.msk [vmem:[#allocation4 + $0x90] sm:$0xff] %vm2052, 0.0
  %2073 = vst.msk [vmem:[#allocation4 + $0x98] sm:$0xff] %vm2052, 0.0
  %2074 = vst.msk [vmem:[#allocation4 + $0xa0] sm:$0x3] %vm2055, 0.0
  %2075 = vst.msk [vmem:[#allocation4 + $0xa8] sm:$0xff] %vm2052, 0.0
  %2076 = vst.msk [vmem:[#allocation4 + $0xb0] sm:$0xff] %vm2052, 0.0
  %2077 = vst.msk [vmem:[#allocation4 + $0xb8] sm:$0x3] %vm2055, 0.0
  %2078 = vst.msk [vmem:[#allocation4 + $0xc0] sm:$0xff] %vm2052, 0.0
  %2079 = vst.msk [vmem:[#allocation4 + $0xc8] sm:$0xff] %vm2052, 0.0
  %2080 = vst.msk [vmem:[#allocation4 + $0xd0] sm:$0x3] %vm2055, 0.0
  %2081 = vst.msk [vmem:[#allocation4 + $0xd8] sm:$0xff] %vm2052, 0.0
  %2082 = vst.msk [vmem:[#allocation4 + $0xe0] sm:$0xff] %vm2052, 0.0
  %2083 = vst.msk [vmem:[#allocation4 + $0xe8] sm:$0x3] %vm2055, 0.0
  %2084 = vst.msk [vmem:[#allocation4 + $0xf0] sm:$0xff] %vm2052, 0.0
  %2085 = vst.msk [vmem:[#allocation4 + $0xf8] sm:$0xff] %vm2052, 0.0
  %2086 = vst.msk [vmem:[#allocation4 + $0x100] sm:$0x3] %vm2055, 0.0
  %2087 = vst.msk [vmem:[#allocation4 + $0x108] sm:$0xff] %vm2052, 0.0
  %2088 = vst.msk [vmem:[#allocation4 + $0x110] sm:$0xff] %vm2052, 0.0
  %2089 = vst.msk [vmem:[#allocation4 + $0x118] sm:$0x3] %vm2055, 0.0
  %2090 = vst.msk [vmem:[#allocation4 + $0x120] sm:$0xff] %vm2052, 0.0
  %2091 = vst.msk [vmem:[#allocation4 + $0x128] sm:$0xff] %vm2052, 0.0
  %2092 = vst.msk [vmem:[#allocation4 + $0x130] sm:$0x3] %vm2055, 0.0
  %2093 = vst.msk [vmem:[#allocation4 + $0x138] sm:$0xff] %vm2052, 0.0
  %2094 = vst.msk [vmem:[#allocation4 + $0x140] sm:$0xff] %vm2052, 0.0
  %2095 = vst.msk [vmem:[#allocation4 + $0x148] sm:$0x3] %vm2055, 0.0
  %2096 = vst.msk [vmem:[#allocation4 + $0x150] sm:$0xff] %vm2052, 0.0
  %2097 = vst.msk [vmem:[#allocation4 + $0x158] sm:$0xff] %vm2052, 0.0
  %2098 = vst.msk [vmem:[#allocation4 + $0x160] sm:$0x3] %vm2055, 0.0
  %2099 = vst.msk [vmem:[#allocation4 + $0x168] sm:$0xff] %vm2052, 0.0
  %2100 = vst.msk [vmem:[#allocation4 + $0x170] sm:$0xff] %vm2052, 0.0
  %2101 = vst.msk [vmem:[#allocation4 + $0x178] sm:$0x3] %vm2055, 0.0
  %2102 = vst.msk [vmem:[#allocation4 + $0x180] sm:$0xff] %vm2052, 0.0
  %2103 = vst.msk [vmem:[#allocation4 + $0x188] sm:$0xff] %vm2052, 0.0
  %2104 = vst.msk [vmem:[#allocation4 + $0x190] sm:$0x3] %vm2055, 0.0
  %2105 = vst.msk [vmem:[#allocation4 + $0x198] sm:$0xff] %vm2052, 0.0
  %2106 = vst.msk [vmem:[#allocation4 + $0x1a0] sm:$0xff] %vm2052, 0.0
  %2107 = vst.msk [vmem:[#allocation4 + $0x1a8] sm:$0x3] %vm2055, 0.0
  %2108 = vst.msk [vmem:[#allocation4 + $0x1b0] sm:$0xff] %vm2052, 0.0
  %2109 = vst.msk [vmem:[#allocation4 + $0x1b8] sm:$0xff] %vm2052, 0.0
  %2110 = vst.msk [vmem:[#allocation4 + $0x1c0] sm:$0x3] %vm2055, 0.0
  %2111 = vst.msk [vmem:[#allocation4 + $0x1c8] sm:$0xff] %vm2052, 0.0
  %2112 = vst.msk [vmem:[#allocation4 + $0x1d0] sm:$0xff] %vm2052, 0.0
  %2113 = vst.msk [vmem:[#allocation4 + $0x1d8] sm:$0x3] %vm2055, 0.0
  %s2114 = scalar_lea.vmem [#allocation4], 24
  %2115 = vst.msk [vmem:[%s2114 + $0x1] sm:$0xff] %vm2052, %v2020
  %2116 = vst.msk [vmem:[%s2114 + $0x9] sm:$0xff] %vm2052, %v2021
  %2117 = vst.msk [vmem:[%s2114 + $0x19] sm:$0xff] %vm2052, %v2022
  %2118 = vst.msk [vmem:[%s2114 + $0x21] sm:$0xff] %vm2052, %v2023
  %2119 = vst.msk [vmem:[%s2114 + $0x31] sm:$0xff] %vm2052, %v2024
  %2120 = vst.msk [vmem:[%s2114 + $0x39] sm:$0xff] %vm2052, %v2025
  %2121 = vst.msk [vmem:[%s2114 + $0x49] sm:$0xff] %vm2052, %v2026
  %2122 = vst.msk [vmem:[%s2114 + $0x51] sm:$0xff] %vm2052, %v2027
  %2123 = vst.msk [vmem:[%s2114 + $0x61] sm:$0xff] %vm2052, %v2028
  %2124 = vst.msk [vmem:[%s2114 + $0x69] sm:$0xff] %vm2052, %v2029
  %2125 = vst.msk [vmem:[%s2114 + $0x79] sm:$0xff] %vm2052, %v2030
  %2126 = vst.msk [vmem:[%s2114 + $0x81] sm:$0xff] %vm2052, %v2031
  %2127 = vst.msk [vmem:[%s2114 + $0x91] sm:$0xff] %vm2052, %v2032
  %2128 = vst.msk [vmem:[%s2114 + $0x99] sm:$0xff] %vm2052, %v2033
  %2129 = vst.msk [vmem:[%s2114 + $0xa9] sm:$0xff] %vm2052, %v2034
  %2130 = vst.msk [vmem:[%s2114 + $0xb1] sm:$0xff] %vm2052, %v2035
  %2131 = vst.msk [vmem:[%s2114 + $0xf1] sm:$0xff] %vm2052, %v2036
  %2132 = vst.msk [vmem:[%s2114 + $0xf9] sm:$0xff] %vm2052, %v2037
  %2133 = vst.msk [vmem:[%s2114 + $0x109] sm:$0xff] %vm2052, %v2038
  %2134 = vst.msk [vmem:[%s2114 + $0x111] sm:$0xff] %vm2052, %v2039
  %2135 = vst.msk [vmem:[%s2114 + $0x121] sm:$0xff] %vm2052, %v2040
  %2136 = vst.msk [vmem:[%s2114 + $0x129] sm:$0xff] %vm2052, %v2041
  %2137 = vst.msk [vmem:[%s2114 + $0x139] sm:$0xff] %vm2052, %v2042
  %2138 = vst.msk [vmem:[%s2114 + $0x141] sm:$0xff] %vm2052, %v2043
  %2139 = vst.msk [vmem:[%s2114 + $0x151] sm:$0xff] %vm2052, %v2044
  %2140 = vst.msk [vmem:[%s2114 + $0x159] sm:$0xff] %vm2052, %v2045
  %2141 = vst.msk [vmem:[%s2114 + $0x169] sm:$0xff] %vm2052, %v2046
  %2142 = vst.msk [vmem:[%s2114 + $0x171] sm:$0xff] %vm2052, %v2047
  %2143 = vst.msk [vmem:[%s2114 + $0x181] sm:$0xff] %vm2052, %v2048
  %2144 = vst.msk [vmem:[%s2114 + $0x189] sm:$0xff] %vm2052, %v2049
  %2145 = vst.msk [vmem:[%s2114 + $0x199] sm:$0xff] %vm2052, %v2050
  %2146 = vst.msk [vmem:[%s2114 + $0x1a1] sm:$0xff] %vm2052, %v2051
  %v2147 = vld [vmem:[#allocation4] sm:$0xff]
  %v2148 = vld [vmem:[#allocation4 + $0x8] sm:$0xff]
  %v2149 = vld [vmem:[#allocation4 + $0x18] sm:$0xff]
  %v2150 = vld [vmem:[#allocation4 + $0x20] sm:$0xff]
  %v2151 = vld [vmem:[#allocation4 + $0x30] sm:$0xff]
  %v2152 = vld [vmem:[#allocation4 + $0x38] sm:$0xff]
  %v2153 = vld [vmem:[#allocation4 + $0x48] sm:$0xff]
  %v2154 = vld [vmem:[#allocation4 + $0x50] sm:$0xff]
  %v2155 = vld [vmem:[#allocation4 + $0x60] sm:$0xff]
  %v2156 = vld [vmem:[#allocation4 + $0x68] sm:$0xff]
  %v2157 = vld [vmem:[#allocation4 + $0x78] sm:$0xff]
  %v2158 = vld [vmem:[#allocation4 + $0x80] sm:$0xff]
  %v2159 = vld [vmem:[#allocation4 + $0x90] sm:$0xff]
  %v2160 = vld [vmem:[#allocation4 + $0x98] sm:$0xff]
  %v2161 = vld [vmem:[#allocation4 + $0xa8] sm:$0xff]
  %v2162 = vld [vmem:[#allocation4 + $0xb0] sm:$0xff]
  %v2163 = vld [vmem:[#allocation4 + $0xf0] sm:$0xff]
  %v2164 = vld [vmem:[#allocation4 + $0xf8] sm:$0xff]
  %v2165 = vld [vmem:[#allocation4 + $0x108] sm:$0xff]
  %v2166 = vld [vmem:[#allocation4 + $0x110] sm:$0xff]
  %v2167 = vld [vmem:[#allocation4 + $0x120] sm:$0xff]
  %v2168 = vld [vmem:[#allocation4 + $0x128] sm:$0xff]
  %v2169 = vld [vmem:[#allocation4 + $0x138] sm:$0xff]
  %v2170 = vld [vmem:[#allocation4 + $0x140] sm:$0xff]
  %v2171 = vld [vmem:[#allocation4 + $0x150] sm:$0xff]
  %v2172 = vld [vmem:[#allocation4 + $0x158] sm:$0xff]
  %v2173 = vld [vmem:[#allocation4 + $0x168] sm:$0xff]
  %v2174 = vld [vmem:[#allocation4 + $0x170] sm:$0xff]
  %v2175 = vld [vmem:[#allocation4 + $0x180] sm:$0xff]
  %v2176 = vld [vmem:[#allocation4 + $0x188] sm:$0xff]
  %v2177 = vld [vmem:[#allocation4 + $0x198] sm:$0xff]
  %v2178 = vld [vmem:[#allocation4 + $0x1a0] sm:$0xff]
  %2179 = vst.msk [vmem:[#allocation5] sm:$0xff] %vm2052, %v2147
  %2180 = vst.msk [vmem:[#allocation5 + $0x28] sm:$0xff] %vm2052, %v2148
  %2181 = vst.msk [vmem:[#allocation5 + $0x50] sm:$0xff] %vm2052, %v2149
  %2182 = vst.msk [vmem:[#allocation5 + $0x78] sm:$0xff] %vm2052, %v2150
  %2183 = vst.msk [vmem:[#allocation5 + $0xa0] sm:$0xff] %vm2052, %v2151
  %2184 = vst.msk [vmem:[#allocation5 + $0xc8] sm:$0xff] %vm2052, %v2152
  %2185 = vst.msk [vmem:[#allocation5 + $0xf0] sm:$0xff] %vm2052, %v2153
  %2186 = vst.msk [vmem:[#allocation5 + $0x118] sm:$0xff] %vm2052, %v2154
  %2187 = vst.msk [vmem:[#allocation5 + $0x140] sm:$0xff] %vm2052, %v2155
  %2188 = vst.msk [vmem:[#allocation5 + $0x168] sm:$0xff] %vm2052, %v2156
  %2189 = vst.msk [vmem:[#allocation5 + $0x190] sm:$0xff] %vm2052, %v2157
  %2190 = vst.msk [vmem:[#allocation5 + $0x1b8] sm:$0xff] %vm2052, %v2158
  %2191 = vst.msk [vmem:[#allocation5 + $0x1e0] sm:$0xff] %vm2052, %v2159
  %2192 = vst.msk [vmem:[#allocation5 + $0x208] sm:$0xff] %vm2052, %v2160
  %2193 = vst.msk [vmem:[#allocation5 + $0x230] sm:$0xff] %vm2052, %v2161
  %2194 = vst.msk [vmem:[#allocation5 + $0x258] sm:$0xff] %vm2052, %v2162
  %2195 = vst.msk [vmem:[#allocation5 + $0x280] sm:$0xff] %vm2052, %v2163
  %2196 = vst.msk [vmem:[#allocation5 + $0x2a8] sm:$0xff] %vm2052, %v2164
  %2197 = vst.msk [vmem:[#allocation5 + $0x2d0] sm:$0xff] %vm2052, %v2165
  %2198 = vst.msk [vmem:[#allocation5 + $0x2f8] sm:$0xff] %vm2052, %v2166
  %2199 = vst.msk [vmem:[#allocation5 + $0x320] sm:$0xff] %vm2052, %v2167
  %2200 = vst.msk [vmem:[#allocation5 + $0x348] sm:$0xff] %vm2052, %v2168
  %2201 = vst.msk [vmem:[#allocation5 + $0x370] sm:$0xff] %vm2052, %v2169
  %2202 = vst.msk [vmem:[#allocation5 + $0x398] sm:$0xff] %vm2052, %v2170
  %2203 = vst.msk [vmem:[#allocation5 + $0x3c0] sm:$0xff] %vm2052, %v2171
  %2204 = vst.msk [vmem:[#allocation5 + $0x3e8] sm:$0xff] %vm2052, %v2172
  %2205 = vst.msk [vmem:[#allocation5 + $0x410] sm:$0xff] %vm2052, %v2173
  %2206 = vst.msk [vmem:[#allocation5 + $0x438] sm:$0xff] %vm2052, %v2174
  %2207 = vst.msk [vmem:[#allocation5 + $0x460] sm:$0xff] %vm2052, %v2175
  %2208 = vst.msk [vmem:[#allocation5 + $0x488] sm:$0xff] %vm2052, %v2176
  %2209 = vst.msk [vmem:[#allocation5 + $0x4b0] sm:$0xff] %vm2052, %v2177
  %2210 = vst.msk [vmem:[#allocation5 + $0x4d8] sm:$0xff] %vm2052, %v2178
  %v2211 = vld [vmem:[#allocation4 + $0x1] sm:$0xff]
  %v2212 = vld [vmem:[#allocation4 + $0x9] sm:$0xff]
  %v2213 = vld [vmem:[#allocation4 + $0x19] sm:$0xff]
  %v2214 = vld [vmem:[#allocation4 + $0x21] sm:$0xff]
  %v2215 = vld [vmem:[#allocation4 + $0x31] sm:$0xff]
  %v2216 = vld [vmem:[#allocation4 + $0x39] sm:$0xff]
  %v2217 = vld [vmem:[#allocation4 + $0x49] sm:$0xff]
  %v2218 = vld [vmem:[#allocation4 + $0x51] sm:$0xff]
  %v2219 = vld [vmem:[#allocation4 + $0x61] sm:$0xff]
  %v2220 = vld [vmem:[#allocation4 + $0x69] sm:$0xff]
  %v2221 = vld [vmem:[#allocation4 + $0x79] sm:$0xff]
  %v2222 = vld [vmem:[#allocation4 + $0x81] sm:$0xff]
  %v2223 = vld [vmem:[#allocation4 + $0x91] sm:$0xff]
  %v2224 = vld [vmem:[#allocation4 + $0x99] sm:$0xff]
  %v2225 = vld [vmem:[#allocation4 + $0xa9] sm:$0xff]
  %v2226 = vld [vmem:[#allocation4 + $0xb1] sm:$0xff]
  %v2227 = vld [vmem:[#allocation4 + $0xf1] sm:$0xff]
  %v2228 = vld [vmem:[#allocation4 + $0xf9] sm:$0xff]
  %v2229 = vld [vmem:[#allocation4 + $0x109] sm:$0xff]
  %v2230 = vld [vmem:[#allocation4 + $0x111] sm:$0xff]
  %v2231 = vld [vmem:[#allocation4 + $0x121] sm:$0xff]
  %v2232 = vld [vmem:[#allocation4 + $0x129] sm:$0xff]
  %v2233 = vld [vmem:[#allocation4 + $0x139] sm:$0xff]
  %v2234 = vld [vmem:[#allocation4 + $0x141] sm:$0xff]
  %v2235 = vld [vmem:[#allocation4 + $0x151] sm:$0xff]
  %v2236 = vld [vmem:[#allocation4 + $0x159] sm:$0xff]
  %v2237 = vld [vmem:[#allocation4 + $0x169] sm:$0xff]
  %v2238 = vld [vmem:[#allocation4 + $0x171] sm:$0xff]
  %v2239 = vld [vmem:[#allocation4 + $0x181] sm:$0xff]
  %v2240 = vld [vmem:[#allocation4 + $0x189] sm:$0xff]
  %v2241 = vld [vmem:[#allocation4 + $0x199] sm:$0xff]
  %v2242 = vld [vmem:[#allocation4 + $0x1a1] sm:$0xff]
  %2275 = vrot.lane.b32.xlu0 %v2211, 64
  %v2276 = vpop.permute.xlu0 %2275
  %2277 = vrot.lane.b32.xlu0 %v2212, 64
  %v2278 = vpop.permute.xlu0 %2277
  %2279 = vrot.lane.b32.xlu0 %v2213, 64
  %v2280 = vpop.permute.xlu0 %2279
  %2281 = vrot.lane.b32.xlu0 %v2214, 64
  %v2282 = vpop.permute.xlu0 %2281
  %2283 = vrot.lane.b32.xlu0 %v2215, 64
  %v2284 = vpop.permute.xlu0 %2283
  %2285 = vrot.lane.b32.xlu0 %v2216, 64
  %v2286 = vpop.permute.xlu0 %2285
  %2287 = vrot.lane.b32.xlu0 %v2217, 64
  %v2288 = vpop.permute.xlu0 %2287
  %2289 = vrot.lane.b32.xlu0 %v2218, 64
  %v2290 = vpop.permute.xlu0 %2289
  %2291 = vrot.lane.b32.xlu0 %v2219, 64
  %v2292 = vpop.permute.xlu0 %2291
  %2293 = vrot.lane.b32.xlu0 %v2220, 64
  %v2294 = vpop.permute.xlu0 %2293
  %2295 = vrot.lane.b32.xlu0 %v2221, 64
  %v2296 = vpop.permute.xlu0 %2295
  %2297 = vrot.lane.b32.xlu0 %v2222, 64
  %v2298 = vpop.permute.xlu0 %2297
  %2299 = vrot.lane.b32.xlu0 %v2223, 64
  %v2300 = vpop.permute.xlu0 %2299
  %2301 = vrot.lane.b32.xlu0 %v2224, 64
  %v2302 = vpop.permute.xlu0 %2301
  %2303 = vrot.lane.b32.xlu0 %v2225, 64
  %v2304 = vpop.permute.xlu0 %2303
  %2305 = vrot.lane.b32.xlu0 %v2226, 64
  %v2306 = vpop.permute.xlu0 %2305
  %2307 = vrot.lane.b32.xlu0 %v2227, 64
  %v2308 = vpop.permute.xlu0 %2307
  %2309 = vrot.lane.b32.xlu0 %v2228, 64
  %v2310 = vpop.permute.xlu0 %2309
  %2311 = vrot.lane.b32.xlu0 %v2229, 64
  %v2312 = vpop.permute.xlu0 %2311
  %2313 = vrot.lane.b32.xlu0 %v2230, 64
  %v2314 = vpop.permute.xlu0 %2313
  %2315 = vrot.lane.b32.xlu0 %v2231, 64
  %v2316 = vpop.permute.xlu0 %2315
  %2317 = vrot.lane.b32.xlu0 %v2232, 64
  %v2318 = vpop.permute.xlu0 %2317
  %2319 = vrot.lane.b32.xlu0 %v2233, 64
  %v2320 = vpop.permute.xlu0 %2319
  %2321 = vrot.lane.b32.xlu0 %v2234, 64
  %v2322 = vpop.permute.xlu0 %2321
  %2323 = vrot.lane.b32.xlu0 %v2235, 64
  %v2324 = vpop.permute.xlu0 %2323
  %2325 = vrot.lane.b32.xlu0 %v2236, 64
  %v2326 = vpop.permute.xlu0 %2325
  %2327 = vrot.lane.b32.xlu0 %v2237, 64
  %v2328 = vpop.permute.xlu0 %2327
  %2329 = vrot.lane.b32.xlu0 %v2238, 64
  %v2330 = vpop.permute.xlu0 %2329
  %2331 = vrot.lane.b32.xlu0 %v2239, 64
  %v2332 = vpop.permute.xlu0 %2331
  %2333 = vrot.lane.b32.xlu0 %v2240, 64
  %v2334 = vpop.permute.xlu0 %2333
  %2335 = vrot.lane.b32.xlu0 %v2241, 64
  %v2336 = vpop.permute.xlu0 %2335
  %2337 = vrot.lane.b32.xlu0 %v2242, 64
  %v2338 = vpop.permute.xlu0 %2337
  %vm2371 = vcmask 1048064
  %2372 = vst.msk [vmem:[#allocation5] sm:$0xff] %vm2371, %v2276
  %2373 = vst.msk [vmem:[#allocation5 + $0x28] sm:$0xff] %vm2371, %v2278
  %2374 = vst.msk [vmem:[#allocation5 + $0x50] sm:$0xff] %vm2371, %v2280
  %2375 = vst.msk [vmem:[#allocation5 + $0x78] sm:$0xff] %vm2371, %v2282
  %2376 = vst.msk [vmem:[#allocation5 + $0xa0] sm:$0xff] %vm2371, %v2284
  %2377 = vst.msk [vmem:[#allocation5 + $0xc8] sm:$0xff] %vm2371, %v2286
  %2378 = vst.msk [vmem:[#allocation5 + $0xf0] sm:$0xff] %vm2371, %v2288
  %2379 = vst.msk [vmem:[#allocation5 + $0x118] sm:$0xff] %vm2371, %v2290
  %2380 = vst.msk [vmem:[#allocation5 + $0x140] sm:$0xff] %vm2371, %v2292
  %2381 = vst.msk [vmem:[#allocation5 + $0x168] sm:$0xff] %vm2371, %v2294
  %2382 = vst.msk [vmem:[#allocation5 + $0x190] sm:$0xff] %vm2371, %v2296
  %2383 = vst.msk [vmem:[#allocation5 + $0x1b8] sm:$0xff] %vm2371, %v2298
  %2384 = vst.msk [vmem:[#allocation5 + $0x1e0] sm:$0xff] %vm2371, %v2300
  %2385 = vst.msk [vmem:[#allocation5 + $0x208] sm:$0xff] %vm2371, %v2302
  %2386 = vst.msk [vmem:[#allocation5 + $0x230] sm:$0xff] %vm2371, %v2304
  %2387 = vst.msk [vmem:[#allocation5 + $0x258] sm:$0xff] %vm2371, %v2306
  %2388 = vst.msk [vmem:[#allocation5 + $0x280] sm:$0xff] %vm2371, %v2308
  %2389 = vst.msk [vmem:[#allocation5 + $0x2a8] sm:$0xff] %vm2371, %v2310
  %2390 = vst.msk [vmem:[#allocation5 + $0x2d0] sm:$0xff] %vm2371, %v2312
  %2391 = vst.msk [vmem:[#allocation5 + $0x2f8] sm:$0xff] %vm2371, %v2314
  %2392 = vst.msk [vmem:[#allocation5 + $0x320] sm:$0xff] %vm2371, %v2316
  %2393 = vst.msk [vmem:[#allocation5 + $0x348] sm:$0xff] %vm2371, %v2318
  %2394 = vst.msk [vmem:[#allocation5 + $0x370] sm:$0xff] %vm2371, %v2320
  %2395 = vst.msk [vmem:[#allocation5 + $0x398] sm:$0xff] %vm2371, %v2322
  %2396 = vst.msk [vmem:[#allocation5 + $0x3c0] sm:$0xff] %vm2371, %v2324
  %2397 = vst.msk [vmem:[#allocation5 + $0x3e8] sm:$0xff] %vm2371, %v2326
  %2398 = vst.msk [vmem:[#allocation5 + $0x410] sm:$0xff] %vm2371, %v2328
  %2399 = vst.msk [vmem:[#allocation5 + $0x438] sm:$0xff] %vm2371, %v2330
  %2400 = vst.msk [vmem:[#allocation5 + $0x460] sm:$0xff] %vm2371, %v2332
  %2401 = vst.msk [vmem:[#allocation5 + $0x488] sm:$0xff] %vm2371, %v2334
  %2402 = vst.msk [vmem:[#allocation5 + $0x4b0] sm:$0xff] %vm2371, %v2336
  %2403 = vst.msk [vmem:[#allocation5 + $0x4d8] sm:$0xff] %vm2371, %v2338
  %v2404 = vld [vmem:[#allocation4 + $0x2] sm:$0xff]
  %v2405 = vld [vmem:[#allocation4 + $0xa] sm:$0xff]
  %v2406 = vld [vmem:[#allocation4 + $0x1a] sm:$0xff]
  %v2407 = vld [vmem:[#allocation4 + $0x22] sm:$0xff]
  %v2408 = vld [vmem:[#allocation4 + $0x32] sm:$0xff]
  %v2409 = vld [vmem:[#allocation4 + $0x3a] sm:$0xff]
  %v2410 = vld [vmem:[#allocation4 + $0x4a] sm:$0xff]
  %v2411 = vld [vmem:[#allocation4 + $0x52] sm:$0xff]
  %v2412 = vld [vmem:[#allocation4 + $0x62] sm:$0xff]
  %v2413 = vld [vmem:[#allocation4 + $0x6a] sm:$0xff]
  %v2414 = vld [vmem:[#allocation4 + $0x7a] sm:$0xff]
  %v2415 = vld [vmem:[#allocation4 + $0x82] sm:$0xff]
  %v2416 = vld [vmem:[#allocation4 + $0x92] sm:$0xff]
  %v2417 = vld [vmem:[#allocation4 + $0x9a] sm:$0xff]
  %v2418 = vld [vmem:[#allocation4 + $0xaa] sm:$0xff]
  %v2419 = vld [vmem:[#allocation4 + $0xb2] sm:$0xff]
  %v2420 = vld [vmem:[#allocation4 + $0xf2] sm:$0xff]
  %v2421 = vld [vmem:[#allocation4 + $0xfa] sm:$0xff]
  %v2422 = vld [vmem:[#allocation4 + $0x10a] sm:$0xff]
  %v2423 = vld [vmem:[#allocation4 + $0x112] sm:$0xff]
  %v2424 = vld [vmem:[#allocation4 + $0x122] sm:$0xff]
  %v2425 = vld [vmem:[#allocation4 + $0x12a] sm:$0xff]
  %v2426 = vld [vmem:[#allocation4 + $0x13a] sm:$0xff]
  %v2427 = vld [vmem:[#allocation4 + $0x142] sm:$0xff]
  %v2428 = vld [vmem:[#allocation4 + $0x152] sm:$0xff]
  %v2429 = vld [vmem:[#allocation4 + $0x15a] sm:$0xff]
  %v2430 = vld [vmem:[#allocation4 + $0x16a] sm:$0xff]
  %v2431 = vld [vmem:[#allocation4 + $0x172] sm:$0xff]
  %v2432 = vld [vmem:[#allocation4 + $0x182] sm:$0xff]
  %v2433 = vld [vmem:[#allocation4 + $0x18a] sm:$0xff]
  %v2434 = vld [vmem:[#allocation4 + $0x19a] sm:$0xff]
  %v2435 = vld [vmem:[#allocation4 + $0x1a2] sm:$0xff]
  %2436 = vst.msk [vmem:[#allocation5 + $0x8] sm:$0xff] %vm2052, %v2404
  %2437 = vst.msk [vmem:[#allocation5 + $0x30] sm:$0xff] %vm2052, %v2405
  %2438 = vst.msk [vmem:[#allocation5 + $0x58] sm:$0xff] %vm2052, %v2406
  %2439 = vst.msk [vmem:[#allocation5 + $0x80] sm:$0xff] %vm2052, %v2407
  %2440 = vst.msk [vmem:[#allocation5 + $0xa8] sm:$0xff] %vm2052, %v2408
  %2441 = vst.msk [vmem:[#allocation5 + $0xd0] sm:$0xff] %vm2052, %v2409
  %2442 = vst.msk [vmem:[#allocation5 + $0xf8] sm:$0xff] %vm2052, %v2410
  %2443 = vst.msk [vmem:[#allocation5 + $0x120] sm:$0xff] %vm2052, %v2411
  %2444 = vst.msk [vmem:[#allocation5 + $0x148] sm:$0xff] %vm2052, %v2412
  %2445 = vst.msk [vmem:[#allocation5 + $0x170] sm:$0xff] %vm2052, %v2413
  %2446 = vst.msk [vmem:[#allocation5 + $0x198] sm:$0xff] %vm2052, %v2414
  %2447 = vst.msk [vmem:[#allocation5 + $0x1c0] sm:$0xff] %vm2052, %v2415
  %2448 = vst.msk [vmem:[#allocation5 + $0x1e8] sm:$0xff] %vm2052, %v2416
  %2449 = vst.msk [vmem:[#allocation5 + $0x210] sm:$0xff] %vm2052, %v2417
  %2450 = vst.msk [vmem:[#allocation5 + $0x238] sm:$0xff] %vm2052, %v2418
  %2451 = vst.msk [vmem:[#allocation5 + $0x260] sm:$0xff] %vm2052, %v2419
  %2452 = vst.msk [vmem:[#allocation5 + $0x288] sm:$0xff] %vm2052, %v2420
  %2453 = vst.msk [vmem:[#allocation5 + $0x2b0] sm:$0xff] %vm2052, %v2421
  %2454 = vst.msk [vmem:[#allocation5 + $0x2d8] sm:$0xff] %vm2052, %v2422
  %2455 = vst.msk [vmem:[#allocation5 + $0x300] sm:$0xff] %vm2052, %v2423
  %2456 = vst.msk [vmem:[#allocation5 + $0x328] sm:$0xff] %vm2052, %v2424
  %2457 = vst.msk [vmem:[#allocation5 + $0x350] sm:$0xff] %vm2052, %v2425
  %2458 = vst.msk [vmem:[#allocation5 + $0x378] sm:$0xff] %vm2052, %v2426
  %2459 = vst.msk [vmem:[#allocation5 + $0x3a0] sm:$0xff] %vm2052, %v2427
  %2460 = vst.msk [vmem:[#allocation5 + $0x3c8] sm:$0xff] %vm2052, %v2428
  %2461 = vst.msk [vmem:[#allocation5 + $0x3f0] sm:$0xff] %vm2052, %v2429
  %2462 = vst.msk [vmem:[#allocation5 + $0x418] sm:$0xff] %vm2052, %v2430
  %2463 = vst.msk [vmem:[#allocation5 + $0x440] sm:$0xff] %vm2052, %v2431
  %2464 = vst.msk [vmem:[#allocation5 + $0x468] sm:$0xff] %vm2052, %v2432
  %2465 = vst.msk [vmem:[#allocation5 + $0x490] sm:$0xff] %vm2052, %v2433
  %2466 = vst.msk [vmem:[#allocation5 + $0x4b8] sm:$0xff] %vm2052, %v2434
  %2467 = vst.msk [vmem:[#allocation5 + $0x4e0] sm:$0xff] %vm2052, %v2435
  %v2468 = vld [vmem:[%s2114] sm:$0xff]
  %v2469 = vld [vmem:[%s2114 + $0x8] sm:$0xff]
  %v2470 = vld [vmem:[%s2114 + $0x18] sm:$0xff]
  %v2471 = vld [vmem:[%s2114 + $0x20] sm:$0xff]
  %v2472 = vld [vmem:[%s2114 + $0x30] sm:$0xff]
  %v2473 = vld [vmem:[%s2114 + $0x38] sm:$0xff]
  %v2474 = vld [vmem:[%s2114 + $0x48] sm:$0xff]
  %v2475 = vld [vmem:[%s2114 + $0x50] sm:$0xff]
  %v2476 = vld [vmem:[%s2114 + $0x60] sm:$0xff]
  %v2477 = vld [vmem:[%s2114 + $0x68] sm:$0xff]
  %v2478 = vld [vmem:[%s2114 + $0x78] sm:$0xff]
  %v2479 = vld [vmem:[%s2114 + $0x80] sm:$0xff]
  %v2480 = vld [vmem:[%s2114 + $0x90] sm:$0xff]
  %v2481 = vld [vmem:[%s2114 + $0x98] sm:$0xff]
  %v2482 = vld [vmem:[%s2114 + $0xa8] sm:$0xff]
  %v2483 = vld [vmem:[%s2114 + $0xb0] sm:$0xff]
  %v2484 = vld [vmem:[%s2114 + $0xf0] sm:$0xff]
  %v2485 = vld [vmem:[%s2114 + $0xf8] sm:$0xff]
  %v2486 = vld [vmem:[%s2114 + $0x108] sm:$0xff]
  %v2487 = vld [vmem:[%s2114 + $0x110] sm:$0xff]
  %v2488 = vld [vmem:[%s2114 + $0x120] sm:$0xff]
  %v2489 = vld [vmem:[%s2114 + $0x128] sm:$0xff]
  %v2490 = vld [vmem:[%s2114 + $0x138] sm:$0xff]
  %v2491 = vld [vmem:[%s2114 + $0x140] sm:$0xff]
  %v2492 = vld [vmem:[%s2114 + $0x150] sm:$0xff]
  %v2493 = vld [vmem:[%s2114 + $0x158] sm:$0xff]
  %v2494 = vld [vmem:[%s2114 + $0x168] sm:$0xff]
  %v2495 = vld [vmem:[%s2114 + $0x170] sm:$0xff]
  %v2496 = vld [vmem:[%s2114 + $0x180] sm:$0xff]
  %v2497 = vld [vmem:[%s2114 + $0x188] sm:$0xff]
  %v2498 = vld [vmem:[%s2114 + $0x198] sm:$0xff]
  %v2499 = vld [vmem:[%s2114 + $0x1a0] sm:$0xff]
  %2532 = vrot.lane.b32.xlu0 %v2468, 64
  %v2533 = vpop.permute.xlu0 %2532
  %2534 = vrot.lane.b32.xlu0 %v2469, 64
  %v2535 = vpop.permute.xlu0 %2534
  %2536 = vrot.lane.b32.xlu0 %v2470, 64
  %v2537 = vpop.permute.xlu0 %2536
  %2538 = vrot.lane.b32.xlu0 %v2471, 64
  %v2539 = vpop.permute.xlu0 %2538
  %2540 = vrot.lane.b32.xlu0 %v2472, 64
  %v2541 = vpop.permute.xlu0 %2540
  %2542 = vrot.lane.b32.xlu0 %v2473, 64
  %v2543 = vpop.permute.xlu0 %2542
  %2544 = vrot.lane.b32.xlu0 %v2474, 64
  %v2545 = vpop.permute.xlu0 %2544
  %2546 = vrot.lane.b32.xlu0 %v2475, 64
  %v2547 = vpop.permute.xlu0 %2546
  %2548 = vrot.lane.b32.xlu0 %v2476, 64
  %v2549 = vpop.permute.xlu0 %2548
  %2550 = vrot.lane.b32.xlu0 %v2477, 64
  %v2551 = vpop.permute.xlu0 %2550
  %2552 = vrot.lane.b32.xlu0 %v2478, 64
  %v2553 = vpop.permute.xlu0 %2552
  %2554 = vrot.lane.b32.xlu0 %v2479, 64
  %v2555 = vpop.permute.xlu0 %2554
  %2556 = vrot.lane.b32.xlu0 %v2480, 64
  %v2557 = vpop.permute.xlu0 %2556
  %2558 = vrot.lane.b32.xlu0 %v2481, 64
  %v2559 = vpop.permute.xlu0 %2558
  %2560 = vrot.lane.b32.xlu0 %v2482, 64
  %v2561 = vpop.permute.xlu0 %2560
  %2562 = vrot.lane.b32.xlu0 %v2483, 64
  %v2563 = vpop.permute.xlu0 %2562
  %2564 = vrot.lane.b32.xlu0 %v2484, 64
  %v2565 = vpop.permute.xlu0 %2564
  %2566 = vrot.lane.b32.xlu0 %v2485, 64
  %v2567 = vpop.permute.xlu0 %2566
  %2568 = vrot.lane.b32.xlu0 %v2486, 64
  %v2569 = vpop.permute.xlu0 %2568
  %2570 = vrot.lane.b32.xlu0 %v2487, 64
  %v2571 = vpop.permute.xlu0 %2570
  %2572 = vrot.lane.b32.xlu0 %v2488, 64
  %v2573 = vpop.permute.xlu0 %2572
  %2574 = vrot.lane.b32.xlu0 %v2489, 64
  %v2575 = vpop.permute.xlu0 %2574
  %2576 = vrot.lane.b32.xlu0 %v2490, 64
  %v2577 = vpop.permute.xlu0 %2576
  %2578 = vrot.lane.b32.xlu0 %v2491, 64
  %v2579 = vpop.permute.xlu0 %2578
  %2580 = vrot.lane.b32.xlu0 %v2492, 64
  %v2581 = vpop.permute.xlu0 %2580
  %2582 = vrot.lane.b32.xlu0 %v2493, 64
  %v2583 = vpop.permute.xlu0 %2582
  %2584 = vrot.lane.b32.xlu0 %v2494, 64
  %v2585 = vpop.permute.xlu0 %2584
  %2586 = vrot.lane.b32.xlu0 %v2495, 64
  %v2587 = vpop.permute.xlu0 %2586
  %2588 = vrot.lane.b32.xlu0 %v2496, 64
  %v2589 = vpop.permute.xlu0 %2588
  %2590 = vrot.lane.b32.xlu0 %v2497, 64
  %v2591 = vpop.permute.xlu0 %2590
  %2592 = vrot.lane.b32.xlu0 %v2498, 64
  %v2593 = vpop.permute.xlu0 %2592
  %2594 = vrot.lane.b32.xlu0 %v2499, 64
  %v2595 = vpop.permute.xlu0 %2594
  %2628 = vst.msk [vmem:[#allocation5 + $0x8] sm:$0xff] %vm2371, %v2533
  %2629 = vst.msk [vmem:[#allocation5 + $0x30] sm:$0xff] %vm2371, %v2535
  %2630 = vst.msk [vmem:[#allocation5 + $0x58] sm:$0xff] %vm2371, %v2537
  %2631 = vst.msk [vmem:[#allocation5 + $0x80] sm:$0xff] %vm2371, %v2539
  %2632 = vst.msk [vmem:[#allocation5 + $0xa8] sm:$0xff] %vm2371, %v2541
  %2633 = vst.msk [vmem:[#allocation5 + $0xd0] sm:$0xff] %vm2371, %v2543
  %2634 = vst.msk [vmem:[#allocation5 + $0xf8] sm:$0xff] %vm2371, %v2545
  %2635 = vst.msk [vmem:[#allocation5 + $0x120] sm:$0xff] %vm2371, %v2547
  %2636 = vst.msk [vmem:[#allocation5 + $0x148] sm:$0xff] %vm2371, %v2549
  %2637 = vst.msk [vmem:[#allocation5 + $0x170] sm:$0xff] %vm2371, %v2551
  %2638 = vst.msk [vmem:[#allocation5 + $0x198] sm:$0xff] %vm2371, %v2553
  %2639 = vst.msk [vmem:[#allocation5 + $0x1c0] sm:$0xff] %vm2371, %v2555
  %2640 = vst.msk [vmem:[#allocation5 + $0x1e8] sm:$0xff] %vm2371, %v2557
  %2641 = vst.msk [vmem:[#allocation5 + $0x210] sm:$0xff] %vm2371, %v2559
  %2642 = vst.msk [vmem:[#allocation5 + $0x238] sm:$0xff] %vm2371, %v2561
  %2643 = vst.msk [vmem:[#allocation5 + $0x260] sm:$0xff] %vm2371, %v2563
  %2644 = vst.msk [vmem:[#allocation5 + $0x288] sm:$0xff] %vm2371, %v2565
  %2645 = vst.msk [vmem:[#allocation5 + $0x2b0] sm:$0xff] %vm2371, %v2567
  %2646 = vst.msk [vmem:[#allocation5 + $0x2d8] sm:$0xff] %vm2371, %v2569
  %2647 = vst.msk [vmem:[#allocation5 + $0x300] sm:$0xff] %vm2371, %v2571
  %2648 = vst.msk [vmem:[#allocation5 + $0x328] sm:$0xff] %vm2371, %v2573
  %2649 = vst.msk [vmem:[#allocation5 + $0x350] sm:$0xff] %vm2371, %v2575
  %2650 = vst.msk [vmem:[#allocation5 + $0x378] sm:$0xff] %vm2371, %v2577
  %2651 = vst.msk [vmem:[#allocation5 + $0x3a0] sm:$0xff] %vm2371, %v2579
  %2652 = vst.msk [vmem:[#allocation5 + $0x3c8] sm:$0xff] %vm2371, %v2581
  %2653 = vst.msk [vmem:[#allocation5 + $0x3f0] sm:$0xff] %vm2371, %v2583
  %2654 = vst.msk [vmem:[#allocation5 + $0x418] sm:$0xff] %vm2371, %v2585
  %2655 = vst.msk [vmem:[#allocation5 + $0x440] sm:$0xff] %vm2371, %v2587
  %2656 = vst.msk [vmem:[#allocation5 + $0x468] sm:$0xff] %vm2371, %v2589
  %2657 = vst.msk [vmem:[#allocation5 + $0x490] sm:$0xff] %vm2371, %v2591
  %2658 = vst.msk [vmem:[#allocation5 + $0x4b8] sm:$0xff] %vm2371, %v2593
  %2659 = vst.msk [vmem:[#allocation5 + $0x4e0] sm:$0xff] %vm2371, %v2595
  %v2660 = vld [vmem:[%s2114 + $0x1] sm:$0xff]
  %v2661 = vld [vmem:[%s2114 + $0x9] sm:$0xff]
  %v2662 = vld [vmem:[%s2114 + $0x19] sm:$0xff]
  %v2663 = vld [vmem:[%s2114 + $0x21] sm:$0xff]
  %v2664 = vld [vmem:[%s2114 + $0x31] sm:$0xff]
  %v2665 = vld [vmem:[%s2114 + $0x39] sm:$0xff]
  %v2666 = vld [vmem:[%s2114 + $0x49] sm:$0xff]
  %v2667 = vld [vmem:[%s2114 + $0x51] sm:$0xff]
  %v2668 = vld [vmem:[%s2114 + $0x61] sm:$0xff]
  %v2669 = vld [vmem:[%s2114 + $0x69] sm:$0xff]
  %v2670 = vld [vmem:[%s2114 + $0x79] sm:$0xff]
  %v2671 = vld [vmem:[%s2114 + $0x81] sm:$0xff]
  %v2672 = vld [vmem:[%s2114 + $0x91] sm:$0xff]
  %v2673 = vld [vmem:[%s2114 + $0x99] sm:$0xff]
  %v2674 = vld [vmem:[%s2114 + $0xa9] sm:$0xff]
  %v2675 = vld [vmem:[%s2114 + $0xb1] sm:$0xff]
  %v2676 = vld [vmem:[%s2114 + $0xf1] sm:$0xff]
  %v2677 = vld [vmem:[%s2114 + $0xf9] sm:$0xff]
  %v2678 = vld [vmem:[%s2114 + $0x109] sm:$0xff]
  %v2679 = vld [vmem:[%s2114 + $0x111] sm:$0xff]
  %v2680 = vld [vmem:[%s2114 + $0x121] sm:$0xff]
  %v2681 = vld [vmem:[%s2114 + $0x129] sm:$0xff]
  %v2682 = vld [vmem:[%s2114 + $0x139] sm:$0xff]
  %v2683 = vld [vmem:[%s2114 + $0x141] sm:$0xff]
  %v2684 = vld [vmem:[%s2114 + $0x151] sm:$0xff]
  %v2685 = vld [vmem:[%s2114 + $0x159] sm:$0xff]
  %v2686 = vld [vmem:[%s2114 + $0x169] sm:$0xff]
  %v2687 = vld [vmem:[%s2114 + $0x171] sm:$0xff]
  %v2688 = vld [vmem:[%s2114 + $0x181] sm:$0xff]
  %v2689 = vld [vmem:[%s2114 + $0x189] sm:$0xff]
  %v2690 = vld [vmem:[%s2114 + $0x199] sm:$0xff]
  %v2691 = vld [vmem:[%s2114 + $0x1a1] sm:$0xff]
  %2692 = vst.msk [vmem:[#allocation5 + $0x10] sm:$0xff] %vm2052, %v2660
  %2693 = vst.msk [vmem:[#allocation5 + $0x38] sm:$0xff] %vm2052, %v2661
  %2694 = vst.msk [vmem:[#allocation5 + $0x60] sm:$0xff] %vm2052, %v2662
  %2695 = vst.msk [vmem:[#allocation5 + $0x88] sm:$0xff] %vm2052, %v2663
  %2696 = vst.msk [vmem:[#allocation5 + $0xb0] sm:$0xff] %vm2052, %v2664
  %2697 = vst.msk [vmem:[#allocation5 + $0xd8] sm:$0xff] %vm2052, %v2665
  %2698 = vst.msk [vmem:[#allocation5 + $0x100] sm:$0xff] %vm2052, %v2666
  %2699 = vst.msk [vmem:[#allocation5 + $0x128] sm:$0xff] %vm2052, %v2667
  %2700 = vst.msk [vmem:[#allocation5 + $0x150] sm:$0xff] %vm2052, %v2668
  %2701 = vst.msk [vmem:[#allocation5 + $0x178] sm:$0xff] %vm2052, %v2669
  %2702 = vst.msk [vmem:[#allocation5 + $0x1a0] sm:$0xff] %vm2052, %v2670
  %2703 = vst.msk [vmem:[#allocation5 + $0x1c8] sm:$0xff] %vm2052, %v2671
  %2704 = vst.msk [vmem:[#allocation5 + $0x1f0] sm:$0xff] %vm2052, %v2672
  %2705 = vst.msk [vmem:[#allocation5 + $0x218] sm:$0xff] %vm2052, %v2673
  %2706 = vst.msk [vmem:[#allocation5 + $0x240] sm:$0xff] %vm2052, %v2674
  %2707 = vst.msk [vmem:[#allocation5 + $0x268] sm:$0xff] %vm2052, %v2675
  %2708 = vst.msk [vmem:[#allocation5 + $0x290] sm:$0xff] %vm2052, %v2676
  %2709 = vst.msk [vmem:[#allocation5 + $0x2b8] sm:$0xff] %vm2052, %v2677
  %2710 = vst.msk [vmem:[#allocation5 + $0x2e0] sm:$0xff] %vm2052, %v2678
  %2711 = vst.msk [vmem:[#allocation5 + $0x308] sm:$0xff] %vm2052, %v2679
  %2712 = vst.msk [vmem:[#allocation5 + $0x330] sm:$0xff] %vm2052, %v2680
  %2713 = vst.msk [vmem:[#allocation5 + $0x358] sm:$0xff] %vm2052, %v2681
  %2714 = vst.msk [vmem:[#allocation5 + $0x380] sm:$0xff] %vm2052, %v2682
  %2715 = vst.msk [vmem:[#allocation5 + $0x3a8] sm:$0xff] %vm2052, %v2683
  %2716 = vst.msk [vmem:[#allocation5 + $0x3d0] sm:$0xff] %vm2052, %v2684
  %2717 = vst.msk [vmem:[#allocation5 + $0x3f8] sm:$0xff] %vm2052, %v2685
  %2718 = vst.msk [vmem:[#allocation5 + $0x420] sm:$0xff] %vm2052, %v2686
  %2719 = vst.msk [vmem:[#allocation5 + $0x448] sm:$0xff] %vm2052, %v2687
  %2720 = vst.msk [vmem:[#allocation5 + $0x470] sm:$0xff] %vm2052, %v2688
  %2721 = vst.msk [vmem:[#allocation5 + $0x498] sm:$0xff] %vm2052, %v2689
  %2722 = vst.msk [vmem:[#allocation5 + $0x4c0] sm:$0xff] %vm2052, %v2690
  %2723 = vst.msk [vmem:[#allocation5 + $0x4e8] sm:$0xff] %vm2052, %v2691
  %v2724 = vld [vmem:[%s2114 + $0x2] sm:$0xff]
  %v2725 = vld [vmem:[%s2114 + $0xa] sm:$0xff]
  %v2726 = vld [vmem:[%s2114 + $0x1a] sm:$0xff]
  %v2727 = vld [vmem:[%s2114 + $0x22] sm:$0xff]
  %v2728 = vld [vmem:[%s2114 + $0x32] sm:$0xff]
  %v2729 = vld [vmem:[%s2114 + $0x3a] sm:$0xff]
  %v2730 = vld [vmem:[%s2114 + $0x4a] sm:$0xff]
  %v2731 = vld [vmem:[%s2114 + $0x52] sm:$0xff]
  %v2732 = vld [vmem:[%s2114 + $0x62] sm:$0xff]
  %v2733 = vld [vmem:[%s2114 + $0x6a] sm:$0xff]
  %v2734 = vld [vmem:[%s2114 + $0x7a] sm:$0xff]
  %v2735 = vld [vmem:[%s2114 + $0x82] sm:$0xff]
  %v2736 = vld [vmem:[%s2114 + $0x92] sm:$0xff]
  %v2737 = vld [vmem:[%s2114 + $0x9a] sm:$0xff]
  %v2738 = vld [vmem:[%s2114 + $0xaa] sm:$0xff]
  %v2739 = vld [vmem:[%s2114 + $0xb2] sm:$0xff]
  %v2740 = vld [vmem:[%s2114 + $0xf2] sm:$0xff]
  %v2741 = vld [vmem:[%s2114 + $0xfa] sm:$0xff]
  %v2742 = vld [vmem:[%s2114 + $0x10a] sm:$0xff]
  %v2743 = vld [vmem:[%s2114 + $0x112] sm:$0xff]
  %v2744 = vld [vmem:[%s2114 + $0x122] sm:$0xff]
  %v2745 = vld [vmem:[%s2114 + $0x12a] sm:$0xff]
  %v2746 = vld [vmem:[%s2114 + $0x13a] sm:$0xff]
  %v2747 = vld [vmem:[%s2114 + $0x142] sm:$0xff]
  %v2748 = vld [vmem:[%s2114 + $0x152] sm:$0xff]
  %v2749 = vld [vmem:[%s2114 + $0x15a] sm:$0xff]
  %v2750 = vld [vmem:[%s2114 + $0x16a] sm:$0xff]
  %v2751 = vld [vmem:[%s2114 + $0x172] sm:$0xff]
  %v2752 = vld [vmem:[%s2114 + $0x182] sm:$0xff]
  %v2753 = vld [vmem:[%s2114 + $0x18a] sm:$0xff]
  %v2754 = vld [vmem:[%s2114 + $0x19a] sm:$0xff]
  %v2755 = vld [vmem:[%s2114 + $0x1a2] sm:$0xff]
  %2788 = vrot.lane.b32.xlu0 %v2724, 64
  %v2789 = vpop.permute.xlu0 %2788
  %2790 = vrot.lane.b32.xlu0 %v2725, 64
  %v2791 = vpop.permute.xlu0 %2790
  %2792 = vrot.lane.b32.xlu0 %v2726, 64
  %v2793 = vpop.permute.xlu0 %2792
  %2794 = vrot.lane.b32.xlu0 %v2727, 64
  %v2795 = vpop.permute.xlu0 %2794
  %2796 = vrot.lane.b32.xlu0 %v2728, 64
  %v2797 = vpop.permute.xlu0 %2796
  %2798 = vrot.lane.b32.xlu0 %v2729, 64
  %v2799 = vpop.permute.xlu0 %2798
  %2800 = vrot.lane.b32.xlu0 %v2730, 64
  %v2801 = vpop.permute.xlu0 %2800
  %2802 = vrot.lane.b32.xlu0 %v2731, 64
  %v2803 = vpop.permute.xlu0 %2802
  %2804 = vrot.lane.b32.xlu0 %v2732, 64
  %v2805 = vpop.permute.xlu0 %2804
  %2806 = vrot.lane.b32.xlu0 %v2733, 64
  %v2807 = vpop.permute.xlu0 %2806
  %2808 = vrot.lane.b32.xlu0 %v2734, 64
  %v2809 = vpop.permute.xlu0 %2808
  %2810 = vrot.lane.b32.xlu0 %v2735, 64
  %v2811 = vpop.permute.xlu0 %2810
  %2812 = vrot.lane.b32.xlu0 %v2736, 64
  %v2813 = vpop.permute.xlu0 %2812
  %2814 = vrot.lane.b32.xlu0 %v2737, 64
  %v2815 = vpop.permute.xlu0 %2814
  %2816 = vrot.lane.b32.xlu0 %v2738, 64
  %v2817 = vpop.permute.xlu0 %2816
  %2818 = vrot.lane.b32.xlu0 %v2739, 64
  %v2819 = vpop.permute.xlu0 %2818
  %2820 = vrot.lane.b32.xlu0 %v2740, 64
  %v2821 = vpop.permute.xlu0 %2820
  %2822 = vrot.lane.b32.xlu0 %v2741, 64
  %v2823 = vpop.permute.xlu0 %2822
  %2824 = vrot.lane.b32.xlu0 %v2742, 64
  %v2825 = vpop.permute.xlu0 %2824
  %2826 = vrot.lane.b32.xlu0 %v2743, 64
  %v2827 = vpop.permute.xlu0 %2826
  %2828 = vrot.lane.b32.xlu0 %v2744, 64
  %v2829 = vpop.permute.xlu0 %2828
  %2830 = vrot.lane.b32.xlu0 %v2745, 64
  %v2831 = vpop.permute.xlu0 %2830
  %2832 = vrot.lane.b32.xlu0 %v2746, 64
  %v2833 = vpop.permute.xlu0 %2832
  %2834 = vrot.lane.b32.xlu0 %v2747, 64
  %v2835 = vpop.permute.xlu0 %2834
  %2836 = vrot.lane.b32.xlu0 %v2748, 64
  %v2837 = vpop.permute.xlu0 %2836
  %2838 = vrot.lane.b32.xlu0 %v2749, 64
  %v2839 = vpop.permute.xlu0 %2838
  %2840 = vrot.lane.b32.xlu0 %v2750, 64
  %v2841 = vpop.permute.xlu0 %2840
  %2842 = vrot.lane.b32.xlu0 %v2751, 64
  %v2843 = vpop.permute.xlu0 %2842
  %2844 = vrot.lane.b32.xlu0 %v2752, 64
  %v2845 = vpop.permute.xlu0 %2844
  %2846 = vrot.lane.b32.xlu0 %v2753, 64
  %v2847 = vpop.permute.xlu0 %2846
  %2848 = vrot.lane.b32.xlu0 %v2754, 64
  %v2849 = vpop.permute.xlu0 %2848
  %2850 = vrot.lane.b32.xlu0 %v2755, 64
  %v2851 = vpop.permute.xlu0 %2850
  %2884 = vst.msk [vmem:[#allocation5 + $0x10] sm:$0xff] %vm2371, %v2789
  %2885 = vst.msk [vmem:[#allocation5 + $0x38] sm:$0xff] %vm2371, %v2791
  %2886 = vst.msk [vmem:[#allocation5 + $0x60] sm:$0xff] %vm2371, %v2793
  %2887 = vst.msk [vmem:[#allocation5 + $0x88] sm:$0xff] %vm2371, %v2795
  %2888 = vst.msk [vmem:[#allocation5 + $0xb0] sm:$0xff] %vm2371, %v2797
  %2889 = vst.msk [vmem:[#allocation5 + $0xd8] sm:$0xff] %vm2371, %v2799
  %2890 = vst.msk [vmem:[#allocation5 + $0x100] sm:$0xff] %vm2371, %v2801
  %2891 = vst.msk [vmem:[#allocation5 + $0x128] sm:$0xff] %vm2371, %v2803
  %2892 = vst.msk [vmem:[#allocation5 + $0x150] sm:$0xff] %vm2371, %v2805
  %2893 = vst.msk [vmem:[#allocation5 + $0x178] sm:$0xff] %vm2371, %v2807
  %2894 = vst.msk [vmem:[#allocation5 + $0x1a0] sm:$0xff] %vm2371, %v2809
  %2895 = vst.msk [vmem:[#allocation5 + $0x1c8] sm:$0xff] %vm2371, %v2811
  %2896 = vst.msk [vmem:[#allocation5 + $0x1f0] sm:$0xff] %vm2371, %v2813
  %2897 = vst.msk [vmem:[#allocation5 + $0x218] sm:$0xff] %vm2371, %v2815
  %2898 = vst.msk [vmem:[#allocation5 + $0x240] sm:$0xff] %vm2371, %v2817
  %2899 = vst.msk [vmem:[#allocation5 + $0x268] sm:$0xff] %vm2371, %v2819
  %2900 = vst.msk [vmem:[#allocation5 + $0x290] sm:$0xff] %vm2371, %v2821
  %2901 = vst.msk [vmem:[#allocation5 + $0x2b8] sm:$0xff] %vm2371, %v2823
  %2902 = vst.msk [vmem:[#allocation5 + $0x2e0] sm:$0xff] %vm2371, %v2825
  %2903 = vst.msk [vmem:[#allocation5 + $0x308] sm:$0xff] %vm2371, %v2827
  %2904 = vst.msk [vmem:[#allocation5 + $0x330] sm:$0xff] %vm2371, %v2829
  %2905 = vst.msk [vmem:[#allocation5 + $0x358] sm:$0xff] %vm2371, %v2831
  %2906 = vst.msk [vmem:[#allocation5 + $0x380] sm:$0xff] %vm2371, %v2833
  %2907 = vst.msk [vmem:[#allocation5 + $0x3a8] sm:$0xff] %vm2371, %v2835
  %2908 = vst.msk [vmem:[#allocation5 + $0x3d0] sm:$0xff] %vm2371, %v2837
  %2909 = vst.msk [vmem:[#allocation5 + $0x3f8] sm:$0xff] %vm2371, %v2839
  %2910 = vst.msk [vmem:[#allocation5 + $0x420] sm:$0xff] %vm2371, %v2841
  %2911 = vst.msk [vmem:[#allocation5 + $0x448] sm:$0xff] %vm2371, %v2843
  %2912 = vst.msk [vmem:[#allocation5 + $0x470] sm:$0xff] %vm2371, %v2845
  %2913 = vst.msk [vmem:[#allocation5 + $0x498] sm:$0xff] %vm2371, %v2847
  %2914 = vst.msk [vmem:[#allocation5 + $0x4c0] sm:$0xff] %vm2371, %v2849
  %2915 = vst.msk [vmem:[#allocation5 + $0x4e8] sm:$0xff] %vm2371, %v2851
  %s2916 = scalar_lea.vmem [#allocation4], 48
  %v2917 = vld [vmem:[%s2916] sm:$0xff]
  %v2918 = vld [vmem:[%s2916 + $0x8] sm:$0xff]
  %v2919 = vld [vmem:[%s2916 + $0x18] sm:$0xff]
  %v2920 = vld [vmem:[%s2916 + $0x20] sm:$0xff]
  %v2921 = vld [vmem:[%s2916 + $0x30] sm:$0xff]
  %v2922 = vld [vmem:[%s2916 + $0x38] sm:$0xff]
  %v2923 = vld [vmem:[%s2916 + $0x48] sm:$0xff]
  %v2924 = vld [vmem:[%s2916 + $0x50] sm:$0xff]
  %v2925 = vld [vmem:[%s2916 + $0x60] sm:$0xff]
  %v2926 = vld [vmem:[%s2916 + $0x68] sm:$0xff]
  %v2927 = vld [vmem:[%s2916 + $0x78] sm:$0xff]
  %v2928 = vld [vmem:[%s2916 + $0x80] sm:$0xff]
  %v2929 = vld [vmem:[%s2916 + $0x90] sm:$0xff]
  %v2930 = vld [vmem:[%s2916 + $0x98] sm:$0xff]
  %v2931 = vld [vmem:[%s2916 + $0xa8] sm:$0xff]
  %v2932 = vld [vmem:[%s2916 + $0xb0] sm:$0xff]
  %v2933 = vld [vmem:[%s2916 + $0xf0] sm:$0xff]
  %v2934 = vld [vmem:[%s2916 + $0xf8] sm:$0xff]
  %v2935 = vld [vmem:[%s2916 + $0x108] sm:$0xff]
  %v2936 = vld [vmem:[%s2916 + $0x110] sm:$0xff]
  %v2937 = vld [vmem:[%s2916 + $0x120] sm:$0xff]
  %v2938 = vld [vmem:[%s2916 + $0x128] sm:$0xff]
  %v2939 = vld [vmem:[%s2916 + $0x138] sm:$0xff]
  %v2940 = vld [vmem:[%s2916 + $0x140] sm:$0xff]
  %v2941 = vld [vmem:[%s2916 + $0x150] sm:$0xff]
  %v2942 = vld [vmem:[%s2916 + $0x158] sm:$0xff]
  %v2943 = vld [vmem:[%s2916 + $0x168] sm:$0xff]
  %v2944 = vld [vmem:[%s2916 + $0x170] sm:$0xff]
  %v2945 = vld [vmem:[%s2916 + $0x180] sm:$0xff]
  %v2946 = vld [vmem:[%s2916 + $0x188] sm:$0xff]
  %v2947 = vld [vmem:[%s2916 + $0x198] sm:$0xff]
  %v2948 = vld [vmem:[%s2916 + $0x1a0] sm:$0xff]
  %2949 = vst.msk [vmem:[#allocation5 + $0x18] sm:$0xff] %vm2052, %v2917
  %2950 = vst.msk [vmem:[#allocation5 + $0x40] sm:$0xff] %vm2052, %v2918
  %2951 = vst.msk [vmem:[#allocation5 + $0x68] sm:$0xff] %vm2052, %v2919
  %2952 = vst.msk [vmem:[#allocation5 + $0x90] sm:$0xff] %vm2052, %v2920
  %2953 = vst.msk [vmem:[#allocation5 + $0xb8] sm:$0xff] %vm2052, %v2921
  %2954 = vst.msk [vmem:[#allocation5 + $0xe0] sm:$0xff] %vm2052, %v2922
  %2955 = vst.msk [vmem:[#allocation5 + $0x108] sm:$0xff] %vm2052, %v2923
  %2956 = vst.msk [vmem:[#allocation5 + $0x130] sm:$0xff] %vm2052, %v2924
  %2957 = vst.msk [vmem:[#allocation5 + $0x158] sm:$0xff] %vm2052, %v2925
  %2958 = vst.msk [vmem:[#allocation5 + $0x180] sm:$0xff] %vm2052, %v2926
  %2959 = vst.msk [vmem:[#allocation5 + $0x1a8] sm:$0xff] %vm2052, %v2927
  %2960 = vst.msk [vmem:[#allocation5 + $0x1d0] sm:$0xff] %vm2052, %v2928
  %2961 = vst.msk [vmem:[#allocation5 + $0x1f8] sm:$0xff] %vm2052, %v2929
  %2962 = vst.msk [vmem:[#allocation5 + $0x220] sm:$0xff] %vm2052, %v2930
  %2963 = vst.msk [vmem:[#allocation5 + $0x248] sm:$0xff] %vm2052, %v2931
  %2964 = vst.msk [vmem:[#allocation5 + $0x270] sm:$0xff] %vm2052, %v2932
  %2965 = vst.msk [vmem:[#allocation5 + $0x298] sm:$0xff] %vm2052, %v2933
  %2966 = vst.msk [vmem:[#allocation5 + $0x2c0] sm:$0xff] %vm2052, %v2934
  %2967 = vst.msk [vmem:[#allocation5 + $0x2e8] sm:$0xff] %vm2052, %v2935
  %2968 = vst.msk [vmem:[#allocation5 + $0x310] sm:$0xff] %vm2052, %v2936
  %2969 = vst.msk [vmem:[#allocation5 + $0x338] sm:$0xff] %vm2052, %v2937
  %2970 = vst.msk [vmem:[#allocation5 + $0x360] sm:$0xff] %vm2052, %v2938
  %2971 = vst.msk [vmem:[#allocation5 + $0x388] sm:$0xff] %vm2052, %v2939
  %2972 = vst.msk [vmem:[#allocation5 + $0x3b0] sm:$0xff] %vm2052, %v2940
  %2973 = vst.msk [vmem:[#allocation5 + $0x3d8] sm:$0xff] %vm2052, %v2941
  %2974 = vst.msk [vmem:[#allocation5 + $0x400] sm:$0xff] %vm2052, %v2942
  %2975 = vst.msk [vmem:[#allocation5 + $0x428] sm:$0xff] %vm2052, %v2943
  %2976 = vst.msk [vmem:[#allocation5 + $0x450] sm:$0xff] %vm2052, %v2944
  %2977 = vst.msk [vmem:[#allocation5 + $0x478] sm:$0xff] %vm2052, %v2945
  %2978 = vst.msk [vmem:[#allocation5 + $0x4a0] sm:$0xff] %vm2052, %v2946
  %2979 = vst.msk [vmem:[#allocation5 + $0x4c8] sm:$0xff] %vm2052, %v2947
  %2980 = vst.msk [vmem:[#allocation5 + $0x4f0] sm:$0xff] %vm2052, %v2948
  %v2981 = vld [vmem:[%s2916 + $0x1] sm:$0xff]
  %v2982 = vld [vmem:[%s2916 + $0x9] sm:$0xff]
  %v2983 = vld [vmem:[%s2916 + $0x19] sm:$0xff]
  %v2984 = vld [vmem:[%s2916 + $0x21] sm:$0xff]
  %v2985 = vld [vmem:[%s2916 + $0x31] sm:$0xff]
  %v2986 = vld [vmem:[%s2916 + $0x39] sm:$0xff]
  %v2987 = vld [vmem:[%s2916 + $0x49] sm:$0xff]
  %v2988 = vld [vmem:[%s2916 + $0x51] sm:$0xff]
  %v2989 = vld [vmem:[%s2916 + $0x61] sm:$0xff]
  %v2990 = vld [vmem:[%s2916 + $0x69] sm:$0xff]
  %v2991 = vld [vmem:[%s2916 + $0x79] sm:$0xff]
  %v2992 = vld [vmem:[%s2916 + $0x81] sm:$0xff]
  %v2993 = vld [vmem:[%s2916 + $0x91] sm:$0xff]
  %v2994 = vld [vmem:[%s2916 + $0x99] sm:$0xff]
  %v2995 = vld [vmem:[%s2916 + $0xa9] sm:$0xff]
  %v2996 = vld [vmem:[%s2916 + $0xb1] sm:$0xff]
  %v2997 = vld [vmem:[%s2916 + $0xf1] sm:$0xff]
  %v2998 = vld [vmem:[%s2916 + $0xf9] sm:$0xff]
  %v2999 = vld [vmem:[%s2916 + $0x109] sm:$0xff]
  %v3000 = vld [vmem:[%s2916 + $0x111] sm:$0xff]
  %v3001 = vld [vmem:[%s2916 + $0x121] sm:$0xff]
  %v3002 = vld [vmem:[%s2916 + $0x129] sm:$0xff]
  %v3003 = vld [vmem:[%s2916 + $0x139] sm:$0xff]
  %v3004 = vld [vmem:[%s2916 + $0x141] sm:$0xff]
  %v3005 = vld [vmem:[%s2916 + $0x151] sm:$0xff]
  %v3006 = vld [vmem:[%s2916 + $0x159] sm:$0xff]
  %v3007 = vld [vmem:[%s2916 + $0x169] sm:$0xff]
  %v3008 = vld [vmem:[%s2916 + $0x171] sm:$0xff]
  %v3009 = vld [vmem:[%s2916 + $0x181] sm:$0xff]
  %v3010 = vld [vmem:[%s2916 + $0x189] sm:$0xff]
  %v3011 = vld [vmem:[%s2916 + $0x199] sm:$0xff]
  %v3012 = vld [vmem:[%s2916 + $0x1a1] sm:$0xff]
  %3045 = vrot.lane.b32.xlu0 %v2981, 64
  %v3046 = vpop.permute.xlu0 %3045
  %3047 = vrot.lane.b32.xlu0 %v2982, 64
  %v3048 = vpop.permute.xlu0 %3047
  %3049 = vrot.lane.b32.xlu0 %v2983, 64
  %v3050 = vpop.permute.xlu0 %3049
  %3051 = vrot.lane.b32.xlu0 %v2984, 64
  %v3052 = vpop.permute.xlu0 %3051
  %3053 = vrot.lane.b32.xlu0 %v2985, 64
  %v3054 = vpop.permute.xlu0 %3053
  %3055 = vrot.lane.b32.xlu0 %v2986, 64
  %v3056 = vpop.permute.xlu0 %3055
  %3057 = vrot.lane.b32.xlu0 %v2987, 64
  %v3058 = vpop.permute.xlu0 %3057
  %3059 = vrot.lane.b32.xlu0 %v2988, 64
  %v3060 = vpop.permute.xlu0 %3059
  %3061 = vrot.lane.b32.xlu0 %v2989, 64
  %v3062 = vpop.permute.xlu0 %3061
  %3063 = vrot.lane.b32.xlu0 %v2990, 64
  %v3064 = vpop.permute.xlu0 %3063
  %3065 = vrot.lane.b32.xlu0 %v2991, 64
  %v3066 = vpop.permute.xlu0 %3065
  %3067 = vrot.lane.b32.xlu0 %v2992, 64
  %v3068 = vpop.permute.xlu0 %3067
  %3069 = vrot.lane.b32.xlu0 %v2993, 64
  %v3070 = vpop.permute.xlu0 %3069
  %3071 = vrot.lane.b32.xlu0 %v2994, 64
  %v3072 = vpop.permute.xlu0 %3071
  %3073 = vrot.lane.b32.xlu0 %v2995, 64
  %v3074 = vpop.permute.xlu0 %3073
  %3075 = vrot.lane.b32.xlu0 %v2996, 64
  %v3076 = vpop.permute.xlu0 %3075
  %3077 = vrot.lane.b32.xlu0 %v2997, 64
  %v3078 = vpop.permute.xlu0 %3077
  %3079 = vrot.lane.b32.xlu0 %v2998, 64
  %v3080 = vpop.permute.xlu0 %3079
  %3081 = vrot.lane.b32.xlu0 %v2999, 64
  %v3082 = vpop.permute.xlu0 %3081
  %3083 = vrot.lane.b32.xlu0 %v3000, 64
  %v3084 = vpop.permute.xlu0 %3083
  %3085 = vrot.lane.b32.xlu0 %v3001, 64
  %v3086 = vpop.permute.xlu0 %3085
  %3087 = vrot.lane.b32.xlu0 %v3002, 64
  %v3088 = vpop.permute.xlu0 %3087
  %3089 = vrot.lane.b32.xlu0 %v3003, 64
  %v3090 = vpop.permute.xlu0 %3089
  %3091 = vrot.lane.b32.xlu0 %v3004, 64
  %v3092 = vpop.permute.xlu0 %3091
  %3093 = vrot.lane.b32.xlu0 %v3005, 64
  %v3094 = vpop.permute.xlu0 %3093
  %3095 = vrot.lane.b32.xlu0 %v3006, 64
  %v3096 = vpop.permute.xlu0 %3095
  %3097 = vrot.lane.b32.xlu0 %v3007, 64
  %v3098 = vpop.permute.xlu0 %3097
  %3099 = vrot.lane.b32.xlu0 %v3008, 64
  %v3100 = vpop.permute.xlu0 %3099
  %3101 = vrot.lane.b32.xlu0 %v3009, 64
  %v3102 = vpop.permute.xlu0 %3101
  %3103 = vrot.lane.b32.xlu0 %v3010, 64
  %v3104 = vpop.permute.xlu0 %3103
  %3105 = vrot.lane.b32.xlu0 %v3011, 64
  %v3106 = vpop.permute.xlu0 %3105
  %3107 = vrot.lane.b32.xlu0 %v3012, 64
  %v3108 = vpop.permute.xlu0 %3107
  %3141 = vst.msk [vmem:[#allocation5 + $0x18] sm:$0xff] %vm2371, %v3046
  %3142 = vst.msk [vmem:[#allocation5 + $0x40] sm:$0xff] %vm2371, %v3048
  %3143 = vst.msk [vmem:[#allocation5 + $0x68] sm:$0xff] %vm2371, %v3050
  %3144 = vst.msk [vmem:[#allocation5 + $0x90] sm:$0xff] %vm2371, %v3052
  %3145 = vst.msk [vmem:[#allocation5 + $0xb8] sm:$0xff] %vm2371, %v3054
  %3146 = vst.msk [vmem:[#allocation5 + $0xe0] sm:$0xff] %vm2371, %v3056
  %3147 = vst.msk [vmem:[#allocation5 + $0x108] sm:$0xff] %vm2371, %v3058
  %3148 = vst.msk [vmem:[#allocation5 + $0x130] sm:$0xff] %vm2371, %v3060
  %3149 = vst.msk [vmem:[#allocation5 + $0x158] sm:$0xff] %vm2371, %v3062
  %3150 = vst.msk [vmem:[#allocation5 + $0x180] sm:$0xff] %vm2371, %v3064
  %3151 = vst.msk [vmem:[#allocation5 + $0x1a8] sm:$0xff] %vm2371, %v3066
  %3152 = vst.msk [vmem:[#allocation5 + $0x1d0] sm:$0xff] %vm2371, %v3068
  %3153 = vst.msk [vmem:[#allocation5 + $0x1f8] sm:$0xff] %vm2371, %v3070
  %3154 = vst.msk [vmem:[#allocation5 + $0x220] sm:$0xff] %vm2371, %v3072
  %3155 = vst.msk [vmem:[#allocation5 + $0x248] sm:$0xff] %vm2371, %v3074
  %3156 = vst.msk [vmem:[#allocation5 + $0x270] sm:$0xff] %vm2371, %v3076
  %3157 = vst.msk [vmem:[#allocation5 + $0x298] sm:$0xff] %vm2371, %v3078
  %3158 = vst.msk [vmem:[#allocation5 + $0x2c0] sm:$0xff] %vm2371, %v3080
  %3159 = vst.msk [vmem:[#allocation5 + $0x2e8] sm:$0xff] %vm2371, %v3082
  %3160 = vst.msk [vmem:[#allocation5 + $0x310] sm:$0xff] %vm2371, %v3084
  %3161 = vst.msk [vmem:[#allocation5 + $0x338] sm:$0xff] %vm2371, %v3086
  %3162 = vst.msk [vmem:[#allocation5 + $0x360] sm:$0xff] %vm2371, %v3088
  %3163 = vst.msk [vmem:[#allocation5 + $0x388] sm:$0xff] %vm2371, %v3090
  %3164 = vst.msk [vmem:[#allocation5 + $0x3b0] sm:$0xff] %vm2371, %v3092
  %3165 = vst.msk [vmem:[#allocation5 + $0x3d8] sm:$0xff] %vm2371, %v3094
  %3166 = vst.msk [vmem:[#allocation5 + $0x400] sm:$0xff] %vm2371, %v3096
  %3167 = vst.msk [vmem:[#allocation5 + $0x428] sm:$0xff] %vm2371, %v3098
  %3168 = vst.msk [vmem:[#allocation5 + $0x450] sm:$0xff] %vm2371, %v3100
  %3169 = vst.msk [vmem:[#allocation5 + $0x478] sm:$0xff] %vm2371, %v3102
  %3170 = vst.msk [vmem:[#allocation5 + $0x4a0] sm:$0xff] %vm2371, %v3104
  %3171 = vst.msk [vmem:[#allocation5 + $0x4c8] sm:$0xff] %vm2371, %v3106
  %3172 = vst.msk [vmem:[#allocation5 + $0x4f0] sm:$0xff] %vm2371, %v3108
  %v3173 = vld [vmem:[%s2916 + $0x2] sm:$0xff]
  %v3174 = vld [vmem:[%s2916 + $0xa] sm:$0xff]
  %v3175 = vld [vmem:[%s2916 + $0x1a] sm:$0xff]
  %v3176 = vld [vmem:[%s2916 + $0x22] sm:$0xff]
  %v3177 = vld [vmem:[%s2916 + $0x32] sm:$0xff]
  %v3178 = vld [vmem:[%s2916 + $0x3a] sm:$0xff]
  %v3179 = vld [vmem:[%s2916 + $0x4a] sm:$0xff]
  %v3180 = vld [vmem:[%s2916 + $0x52] sm:$0xff]
  %v3181 = vld [vmem:[%s2916 + $0x62] sm:$0xff]
  %v3182 = vld [vmem:[%s2916 + $0x6a] sm:$0xff]
  %v3183 = vld [vmem:[%s2916 + $0x7a] sm:$0xff]
  %v3184 = vld [vmem:[%s2916 + $0x82] sm:$0xff]
  %v3185 = vld [vmem:[%s2916 + $0x92] sm:$0xff]
  %v3186 = vld [vmem:[%s2916 + $0x9a] sm:$0xff]
  %v3187 = vld [vmem:[%s2916 + $0xaa] sm:$0xff]
  %v3188 = vld [vmem:[%s2916 + $0xb2] sm:$0xff]
  %v3189 = vld [vmem:[%s2916 + $0xf2] sm:$0xff]
  %v3190 = vld [vmem:[%s2916 + $0xfa] sm:$0xff]
  %v3191 = vld [vmem:[%s2916 + $0x10a] sm:$0xff]
  %v3192 = vld [vmem:[%s2916 + $0x112] sm:$0xff]
  %v3193 = vld [vmem:[%s2916 + $0x122] sm:$0xff]
  %v3194 = vld [vmem:[%s2916 + $0x12a] sm:$0xff]
  %v3195 = vld [vmem:[%s2916 + $0x13a] sm:$0xff]
  %v3196 = vld [vmem:[%s2916 + $0x142] sm:$0xff]
  %v3197 = vld [vmem:[%s2916 + $0x152] sm:$0xff]
  %v3198 = vld [vmem:[%s2916 + $0x15a] sm:$0xff]
  %v3199 = vld [vmem:[%s2916 + $0x16a] sm:$0xff]
  %v3200 = vld [vmem:[%s2916 + $0x172] sm:$0xff]
  %v3201 = vld [vmem:[%s2916 + $0x182] sm:$0xff]
  %v3202 = vld [vmem:[%s2916 + $0x18a] sm:$0xff]
  %v3203 = vld [vmem:[%s2916 + $0x19a] sm:$0xff]
  %v3204 = vld [vmem:[%s2916 + $0x1a2] sm:$0xff]
  %3205 = vst.msk [vmem:[#allocation5 + $0x20] sm:$0xff] %vm2052, %v3173
  %3206 = vst.msk [vmem:[#allocation5 + $0x48] sm:$0xff] %vm2052, %v3174
  %3207 = vst.msk [vmem:[#allocation5 + $0x70] sm:$0xff] %vm2052, %v3175
  %3208 = vst.msk [vmem:[#allocation5 + $0x98] sm:$0xff] %vm2052, %v3176
  %3209 = vst.msk [vmem:[#allocation5 + $0xc0] sm:$0xff] %vm2052, %v3177
  %3210 = vst.msk [vmem:[#allocation5 + $0xe8] sm:$0xff] %vm2052, %v3178
  %3211 = vst.msk [vmem:[#allocation5 + $0x110] sm:$0xff] %vm2052, %v3179
  %3212 = vst.msk [vmem:[#allocation5 + $0x138] sm:$0xff] %vm2052, %v3180
  %3213 = vst.msk [vmem:[#allocation5 + $0x160] sm:$0xff] %vm2052, %v3181
  %3214 = vst.msk [vmem:[#allocation5 + $0x188] sm:$0xff] %vm2052, %v3182
  %3215 = vst.msk [vmem:[#allocation5 + $0x1b0] sm:$0xff] %vm2052, %v3183
  %3216 = vst.msk [vmem:[#allocation5 + $0x1d8] sm:$0xff] %vm2052, %v3184
  %3217 = vst.msk [vmem:[#allocation5 + $0x200] sm:$0xff] %vm2052, %v3185
  %3218 = vst.msk [vmem:[#allocation5 + $0x228] sm:$0xff] %vm2052, %v3186
  %3219 = vst.msk [vmem:[#allocation5 + $0x250] sm:$0xff] %vm2052, %v3187
  %3220 = vst.msk [vmem:[#allocation5 + $0x278] sm:$0xff] %vm2052, %v3188
  %3221 = vst.msk [vmem:[#allocation5 + $0x2a0] sm:$0xff] %vm2052, %v3189
  %3222 = vst.msk [vmem:[#allocation5 + $0x2c8] sm:$0xff] %vm2052, %v3190
  %3223 = vst.msk [vmem:[#allocation5 + $0x2f0] sm:$0xff] %vm2052, %v3191
  %3224 = vst.msk [vmem:[#allocation5 + $0x318] sm:$0xff] %vm2052, %v3192
  %3225 = vst.msk [vmem:[#allocation5 + $0x340] sm:$0xff] %vm2052, %v3193
  %3226 = vst.msk [vmem:[#allocation5 + $0x368] sm:$0xff] %vm2052, %v3194
  %3227 = vst.msk [vmem:[#allocation5 + $0x390] sm:$0xff] %vm2052, %v3195
  %3228 = vst.msk [vmem:[#allocation5 + $0x3b8] sm:$0xff] %vm2052, %v3196
  %3229 = vst.msk [vmem:[#allocation5 + $0x3e0] sm:$0xff] %vm2052, %v3197
  %3230 = vst.msk [vmem:[#allocation5 + $0x408] sm:$0xff] %vm2052, %v3198
  %3231 = vst.msk [vmem:[#allocation5 + $0x430] sm:$0xff] %vm2052, %v3199
  %3232 = vst.msk [vmem:[#allocation5 + $0x458] sm:$0xff] %vm2052, %v3200
  %3233 = vst.msk [vmem:[#allocation5 + $0x480] sm:$0xff] %vm2052, %v3201
  %3234 = vst.msk [vmem:[#allocation5 + $0x4a8] sm:$0xff] %vm2052, %v3202
  %3235 = vst.msk [vmem:[#allocation5 + $0x4d0] sm:$0xff] %vm2052, %v3203
  %3236 = vst.msk [vmem:[#allocation5 + $0x4f8] sm:$0xff] %vm2052, %v3204
  %v3237 = vld [vmem:[#allocation5] sm:$0xff]
  %v3238 = vld [vmem:[#allocation5 + $0x8] sm:$0xff]
  %v3239 = vld [vmem:[#allocation5 + $0x10] sm:$0xff]
  %v3240 = vld [vmem:[#allocation5 + $0x18] sm:$0xff]
  %v3241 = vld [vmem:[#allocation5 + $0x20] sm:$0xff]
  %v3242 = vld [vmem:[#allocation5 + $0x28] sm:$0xff]
  %v3243 = vld [vmem:[#allocation5 + $0x30] sm:$0xff]
  %v3244 = vld [vmem:[#allocation5 + $0x38] sm:$0xff]
  %v3245 = vld [vmem:[#allocation5 + $0x40] sm:$0xff]
  %v3246 = vld [vmem:[#allocation5 + $0x48] sm:$0xff]
  %v3247 = vld [vmem:[#allocation5 + $0x50] sm:$0xff]
  %v3248 = vld [vmem:[#allocation5 + $0x58] sm:$0xff]
  %v3249 = vld [vmem:[#allocation5 + $0x60] sm:$0xff]
  %v3250 = vld [vmem:[#allocation5 + $0x68] sm:$0xff]
  %v3251 = vld [vmem:[#allocation5 + $0x70] sm:$0xff]
  %v3252 = vld [vmem:[#allocation5 + $0x78] sm:$0xff]
  %v3253 = vld [vmem:[#allocation5 + $0x80] sm:$0xff]
  %v3254 = vld [vmem:[#allocation5 + $0x88] sm:$0xff]
  %v3255 = vld [vmem:[#allocation5 + $0x90] sm:$0xff]
  %v3256 = vld [vmem:[#allocation5 + $0x98] sm:$0xff]
  %v3257 = vld [vmem:[#allocation5 + $0xa0] sm:$0xff]
  %v3258 = vld [vmem:[#allocation5 + $0xa8] sm:$0xff]
  %v3259 = vld [vmem:[#allocation5 + $0xb0] sm:$0xff]
  %v3260 = vld [vmem:[#allocation5 + $0xb8] sm:$0xff]
  %v3261 = vld [vmem:[#allocation5 + $0xc0] sm:$0xff]
  %v3262 = vld [vmem:[#allocation5 + $0xc8] sm:$0xff]
  %v3263 = vld [vmem:[#allocation5 + $0xd0] sm:$0xff]
  %v3264 = vld [vmem:[#allocation5 + $0xd8] sm:$0xff]
  %v3265 = vld [vmem:[#allocation5 + $0xe0] sm:$0xff]
  %v3266 = vld [vmem:[#allocation5 + $0xe8] sm:$0xff]
  %v3267 = vld [vmem:[#allocation5 + $0xf0] sm:$0xff]
  %v3268 = vld [vmem:[#allocation5 + $0xf8] sm:$0xff]
  %v3269 = vld [vmem:[#allocation5 + $0x100] sm:$0xff]
  %v3270 = vld [vmem:[#allocation5 + $0x108] sm:$0xff]
  %v3271 = vld [vmem:[#allocation5 + $0x110] sm:$0xff]
  %v3272 = vld [vmem:[#allocation5 + $0x118] sm:$0xff]
  %v3273 = vld [vmem:[#allocation5 + $0x120] sm:$0xff]
  %v3274 = vld [vmem:[#allocation5 + $0x128] sm:$0xff]
  %v3275 = vld [vmem:[#allocation5 + $0x130] sm:$0xff]
  %v3276 = vld [vmem:[#allocation5 + $0x138] sm:$0xff]
  %v3277 = vld [vmem:[#allocation5 + $0x140] sm:$0xff]
  %v3278 = vld [vmem:[#allocation5 + $0x148] sm:$0xff]
  %v3279 = vld [vmem:[#allocation5 + $0x150] sm:$0xff]
  %v3280 = vld [vmem:[#allocation5 + $0x158] sm:$0xff]
  %v3281 = vld [vmem:[#allocation5 + $0x160] sm:$0xff]
  %v3282 = vld [vmem:[#allocation5 + $0x168] sm:$0xff]
  %v3283 = vld [vmem:[#allocation5 + $0x170] sm:$0xff]
  %v3284 = vld [vmem:[#allocation5 + $0x178] sm:$0xff]
  %v3285 = vld [vmem:[#allocation5 + $0x180] sm:$0xff]
  %v3286 = vld [vmem:[#allocation5 + $0x188] sm:$0xff]
  %v3287 = vld [vmem:[#allocation5 + $0x190] sm:$0xff]
  %v3288 = vld [vmem:[#allocation5 + $0x198] sm:$0xff]
  %v3289 = vld [vmem:[#allocation5 + $0x1a0] sm:$0xff]
  %v3290 = vld [vmem:[#allocation5 + $0x1a8] sm:$0xff]
  %v3291 = vld [vmem:[#allocation5 + $0x1b0] sm:$0xff]
  %v3292 = vld [vmem:[#allocation5 + $0x1b8] sm:$0xff]
  %v3293 = vld [vmem:[#allocation5 + $0x1c0] sm:$0xff]
  %v3294 = vld [vmem:[#allocation5 + $0x1c8] sm:$0xff]
  %v3295 = vld [vmem:[#allocation5 + $0x1d0] sm:$0xff]
  %v3296 = vld [vmem:[#allocation5 + $0x1d8] sm:$0xff]
  %v3297 = vld [vmem:[#allocation5 + $0x1e0] sm:$0xff]
  %v3298 = vld [vmem:[#allocation5 + $0x1e8] sm:$0xff]
  %v3299 = vld [vmem:[#allocation5 + $0x1f0] sm:$0xff]
  %v3300 = vld [vmem:[#allocation5 + $0x1f8] sm:$0xff]
  %v3301 = vld [vmem:[#allocation5 + $0x200] sm:$0xff]
  %v3302 = vld [vmem:[#allocation5 + $0x208] sm:$0xff]
  %v3303 = vld [vmem:[#allocation5 + $0x210] sm:$0xff]
  %v3304 = vld [vmem:[#allocation5 + $0x218] sm:$0xff]
  %v3305 = vld [vmem:[#allocation5 + $0x220] sm:$0xff]
  %v3306 = vld [vmem:[#allocation5 + $0x228] sm:$0xff]
  %v3307 = vld [vmem:[#allocation5 + $0x230] sm:$0xff]
  %v3308 = vld [vmem:[#allocation5 + $0x238] sm:$0xff]
  %v3309 = vld [vmem:[#allocation5 + $0x240] sm:$0xff]
  %v3310 = vld [vmem:[#allocation5 + $0x248] sm:$0xff]
  %v3311 = vld [vmem:[#allocation5 + $0x250] sm:$0xff]
  %v3312 = vld [vmem:[#allocation5 + $0x258] sm:$0xff]
  %v3313 = vld [vmem:[#allocation5 + $0x260] sm:$0xff]
  %v3314 = vld [vmem:[#allocation5 + $0x268] sm:$0xff]
  %v3315 = vld [vmem:[#allocation5 + $0x270] sm:$0xff]
  %v3316 = vld [vmem:[#allocation5 + $0x278] sm:$0xff]
  %v3317 = vld [vmem:[#allocation5 + $0x280] sm:$0xff]
  %v3318 = vld [vmem:[#allocation5 + $0x288] sm:$0xff]
  %v3319 = vld [vmem:[#allocation5 + $0x290] sm:$0xff]
  %v3320 = vld [vmem:[#allocation5 + $0x298] sm:$0xff]
  %v3321 = vld [vmem:[#allocation5 + $0x2a0] sm:$0xff]
  %v3322 = vld [vmem:[#allocation5 + $0x2a8] sm:$0xff]
  %v3323 = vld [vmem:[#allocation5 + $0x2b0] sm:$0xff]
  %v3324 = vld [vmem:[#allocation5 + $0x2b8] sm:$0xff]
  %v3325 = vld [vmem:[#allocation5 + $0x2c0] sm:$0xff]
  %v3326 = vld [vmem:[#allocation5 + $0x2c8] sm:$0xff]
  %v3327 = vld [vmem:[#allocation5 + $0x2d0] sm:$0xff]
  %v3328 = vld [vmem:[#allocation5 + $0x2d8] sm:$0xff]
  %v3329 = vld [vmem:[#allocation5 + $0x2e0] sm:$0xff]
  %v3330 = vld [vmem:[#allocation5 + $0x2e8] sm:$0xff]
  %v3331 = vld [vmem:[#allocation5 + $0x2f0] sm:$0xff]
  %v3332 = vld [vmem:[#allocation5 + $0x2f8] sm:$0xff]
  %v3333 = vld [vmem:[#allocation5 + $0x300] sm:$0xff]
  %v3334 = vld [vmem:[#allocation5 + $0x308] sm:$0xff]
  %v3335 = vld [vmem:[#allocation5 + $0x310] sm:$0xff]
  %v3336 = vld [vmem:[#allocation5 + $0x318] sm:$0xff]
  %v3337 = vld [vmem:[#allocation5 + $0x320] sm:$0xff]
  %v3338 = vld [vmem:[#allocation5 + $0x328] sm:$0xff]
  %v3339 = vld [vmem:[#allocation5 + $0x330] sm:$0xff]
  %v3340 = vld [vmem:[#allocation5 + $0x338] sm:$0xff]
  %v3341 = vld [vmem:[#allocation5 + $0x340] sm:$0xff]
  %v3342 = vld [vmem:[#allocation5 + $0x348] sm:$0xff]
  %v3343 = vld [vmem:[#allocation5 + $0x350] sm:$0xff]
  %v3344 = vld [vmem:[#allocation5 + $0x358] sm:$0xff]
  %v3345 = vld [vmem:[#allocation5 + $0x360] sm:$0xff]
  %v3346 = vld [vmem:[#allocation5 + $0x368] sm:$0xff]
  %v3347 = vld [vmem:[#allocation5 + $0x370] sm:$0xff]
  %v3348 = vld [vmem:[#allocation5 + $0x378] sm:$0xff]
  %v3349 = vld [vmem:[#allocation5 + $0x380] sm:$0xff]
  %v3350 = vld [vmem:[#allocation5 + $0x388] sm:$0xff]
  %v3351 = vld [vmem:[#allocation5 + $0x390] sm:$0xff]
  %v3352 = vld [vmem:[#allocation5 + $0x398] sm:$0xff]
  %v3353 = vld [vmem:[#allocation5 + $0x3a0] sm:$0xff]
  %v3354 = vld [vmem:[#allocation5 + $0x3a8] sm:$0xff]
  %v3355 = vld [vmem:[#allocation5 + $0x3b0] sm:$0xff]
  %v3356 = vld [vmem:[#allocation5 + $0x3b8] sm:$0xff]
  %v3357 = vld [vmem:[#allocation5 + $0x3c0] sm:$0xff]
  %v3358 = vld [vmem:[#allocation5 + $0x3c8] sm:$0xff]
  %v3359 = vld [vmem:[#allocation5 + $0x3d0] sm:$0xff]
  %v3360 = vld [vmem:[#allocation5 + $0x3d8] sm:$0xff]
  %v3361 = vld [vmem:[#allocation5 + $0x3e0] sm:$0xff]
  %v3362 = vld [vmem:[#allocation5 + $0x3e8] sm:$0xff]
  %v3363 = vld [vmem:[#allocation5 + $0x3f0] sm:$0xff]
  %v3364 = vld [vmem:[#allocation5 + $0x3f8] sm:$0xff]
  %v3365 = vld [vmem:[#allocation5 + $0x400] sm:$0xff]
  %v3366 = vld [vmem:[#allocation5 + $0x408] sm:$0xff]
  %v3367 = vld [vmem:[#allocation5 + $0x410] sm:$0xff]
  %v3368 = vld [vmem:[#allocation5 + $0x418] sm:$0xff]
  %v3369 = vld [vmem:[#allocation5 + $0x420] sm:$0xff]
  %v3370 = vld [vmem:[#allocation5 + $0x428] sm:$0xff]
  %v3371 = vld [vmem:[#allocation5 + $0x430] sm:$0xff]
  %v3372 = vld [vmem:[#allocation5 + $0x438] sm:$0xff]
  %v3373 = vld [vmem:[#allocation5 + $0x440] sm:$0xff]
  %v3374 = vld [vmem:[#allocation5 + $0x448] sm:$0xff]
  %v3375 = vld [vmem:[#allocation5 + $0x450] sm:$0xff]
  %v3376 = vld [vmem:[#allocation5 + $0x458] sm:$0xff]
  %v3377 = vld [vmem:[#allocation5 + $0x460] sm:$0xff]
  %v3378 = vld [vmem:[#allocation5 + $0x468] sm:$0xff]
  %v3379 = vld [vmem:[#allocation5 + $0x470] sm:$0xff]
  %v3380 = vld [vmem:[#allocation5 + $0x478] sm:$0xff]
  %v3381 = vld [vmem:[#allocation5 + $0x480] sm:$0xff]
  %v3382 = vld [vmem:[#allocation5 + $0x488] sm:$0xff]
  %v3383 = vld [vmem:[#allocation5 + $0x490] sm:$0xff]
  %v3384 = vld [vmem:[#allocation5 + $0x498] sm:$0xff]
  %v3385 = vld [vmem:[#allocation5 + $0x4a0] sm:$0xff]
  %v3386 = vld [vmem:[#allocation5 + $0x4a8] sm:$0xff]
  %v3387 = vld [vmem:[#allocation5 + $0x4b0] sm:$0xff]
  %v3388 = vld [vmem:[#allocation5 + $0x4b8] sm:$0xff]
  %v3389 = vld [vmem:[#allocation5 + $0x4c0] sm:$0xff]
  %v3390 = vld [vmem:[#allocation5 + $0x4c8] sm:$0xff]
  %v3391 = vld [vmem:[#allocation5 + $0x4d0] sm:$0xff]
  %v3392 = vld [vmem:[#allocation5 + $0x4d8] sm:$0xff]
  %v3393 = vld [vmem:[#allocation5 + $0x4e0] sm:$0xff]
  %v3394 = vld [vmem:[#allocation5 + $0x4e8] sm:$0xff]
  %v3395 = vld [vmem:[#allocation5 + $0x4f0] sm:$0xff]
  %v3396 = vld [vmem:[#allocation5 + $0x4f8] sm:$0xff]
  %v3397 = vld [vmem:[%s3] sm:$0xff]
  %v3398 = vld [vmem:[%s3 + $0x8] sm:$0xff]
  %v3399 = vld [vmem:[%s3 + $0x10] sm:$0xff]
  %v3400 = vld [vmem:[%s3 + $0x18] sm:$0xff]
  %v3401 = vld [vmem:[%s3 + $0x20] sm:$0xff]
  %v3402 = vld [vmem:[%s3 + $0x28] sm:$0xff]
  %v3403 = vld [vmem:[%s3 + $0x30] sm:$0xff]
  %v3404 = vld [vmem:[%s3 + $0x38] sm:$0xff]
  %v3405 = vld [vmem:[%s3 + $0x40] sm:$0xff]
  %v3406 = vld [vmem:[%s3 + $0x48] sm:$0xff]
  %v3407 = vld [vmem:[%s3 + $0x50] sm:$0xff]
  %v3408 = vld [vmem:[%s3 + $0x58] sm:$0xff]
  %v3409 = vld [vmem:[%s3 + $0x60] sm:$0xff]
  %v3410 = vld [vmem:[%s3 + $0x68] sm:$0xff]
  %v3411 = vld [vmem:[%s3 + $0x70] sm:$0xff]
  %v3412 = vld [vmem:[%s3 + $0x78] sm:$0xff]
  %v3413 = vld [vmem:[%s3 + $0x80] sm:$0xff]
  %v3414 = vld [vmem:[%s3 + $0x88] sm:$0xff]
  %v3415 = vld [vmem:[%s3 + $0x90] sm:$0xff]
  %v3416 = vld [vmem:[%s3 + $0x98] sm:$0xff]
  %v3417 = vld [vmem:[%s3 + $0xa0] sm:$0xff]
  %v3418 = vld [vmem:[%s3 + $0xa8] sm:$0xff]
  %v3419 = vld [vmem:[%s3 + $0xb0] sm:$0xff]
  %v3420 = vld [vmem:[%s3 + $0xb8] sm:$0xff]
  %v3421 = vld [vmem:[%s3 + $0xc0] sm:$0xff]
  %v3422 = vld [vmem:[%s3 + $0xc8] sm:$0xff]
  %v3423 = vld [vmem:[%s3 + $0xd0] sm:$0xff]
  %v3424 = vld [vmem:[%s3 + $0xd8] sm:$0xff]
  %v3425 = vld [vmem:[%s3 + $0xe0] sm:$0xff]
  %v3426 = vld [vmem:[%s3 + $0xe8] sm:$0xff]
  %v3427 = vld [vmem:[%s3 + $0xf0] sm:$0xff]
  %v3428 = vld [vmem:[%s3 + $0xf8] sm:$0xff]
  %v3429 = vld [vmem:[%s3 + $0x100] sm:$0xff]
  %v3430 = vld [vmem:[%s3 + $0x108] sm:$0xff]
  %v3431 = vld [vmem:[%s3 + $0x110] sm:$0xff]
  %v3432 = vld [vmem:[%s3 + $0x118] sm:$0xff]
  %v3433 = vld [vmem:[%s3 + $0x120] sm:$0xff]
  %v3434 = vld [vmem:[%s3 + $0x128] sm:$0xff]
  %v3435 = vld [vmem:[%s3 + $0x130] sm:$0xff]
  %v3436 = vld [vmem:[%s3 + $0x138] sm:$0xff]
  %v3437 = vld [vmem:[%s3 + $0x140] sm:$0xff]
  %v3438 = vld [vmem:[%s3 + $0x148] sm:$0xff]
  %v3439 = vld [vmem:[%s3 + $0x150] sm:$0xff]
  %v3440 = vld [vmem:[%s3 + $0x158] sm:$0xff]
  %v3441 = vld [vmem:[%s3 + $0x160] sm:$0xff]
  %v3442 = vld [vmem:[%s3 + $0x168] sm:$0xff]
  %v3443 = vld [vmem:[%s3 + $0x170] sm:$0xff]
  %v3444 = vld [vmem:[%s3 + $0x178] sm:$0xff]
  %v3445 = vld [vmem:[%s3 + $0x180] sm:$0xff]
  %v3446 = vld [vmem:[%s3 + $0x188] sm:$0xff]
  %v3447 = vld [vmem:[%s3 + $0x190] sm:$0xff]
  %v3448 = vld [vmem:[%s3 + $0x198] sm:$0xff]
  %v3449 = vld [vmem:[%s3 + $0x1a0] sm:$0xff]
  %v3450 = vld [vmem:[%s3 + $0x1a8] sm:$0xff]
  %v3451 = vld [vmem:[%s3 + $0x1b0] sm:$0xff]
  %v3452 = vld [vmem:[%s3 + $0x1b8] sm:$0xff]
  %v3453 = vld [vmem:[%s3 + $0x1c0] sm:$0xff]
  %v3454 = vld [vmem:[%s3 + $0x1c8] sm:$0xff]
  %v3455 = vld [vmem:[%s3 + $0x1d0] sm:$0xff]
  %v3456 = vld [vmem:[%s3 + $0x1d8] sm:$0xff]
  %v3457 = vld [vmem:[%s3 + $0x1e0] sm:$0xff]
  %v3458 = vld [vmem:[%s3 + $0x1e8] sm:$0xff]
  %v3459 = vld [vmem:[%s3 + $0x1f0] sm:$0xff]
  %v3460 = vld [vmem:[%s3 + $0x1f8] sm:$0xff]
  %v3461 = vld [vmem:[%s3 + $0x200] sm:$0xff]
  %v3462 = vld [vmem:[%s3 + $0x208] sm:$0xff]
  %v3463 = vld [vmem:[%s3 + $0x210] sm:$0xff]
  %v3464 = vld [vmem:[%s3 + $0x218] sm:$0xff]
  %v3465 = vld [vmem:[%s3 + $0x220] sm:$0xff]
  %v3466 = vld [vmem:[%s3 + $0x228] sm:$0xff]
  %v3467 = vld [vmem:[%s3 + $0x230] sm:$0xff]
  %v3468 = vld [vmem:[%s3 + $0x238] sm:$0xff]
  %v3469 = vld [vmem:[%s4] sm:$0x1]
  %v3471 = vperm.slane %v3469, 0
  %v3474 = vsel %vm2052, %v3241, 0
  %v3477 = vsel %vm2052, %v3246, 0
  %v3480 = vsel %vm2052, %v3251, 0
  %v3483 = vsel %vm2052, %v3256, 0
  %v3486 = vsel %vm2052, %v3261, 0
  %v3489 = vsel %vm2052, %v3266, 0
  %v3492 = vsel %vm2052, %v3271, 0
  %v3495 = vsel %vm2052, %v3276, 0
  %v3498 = vsel %vm2052, %v3281, 0
  %v3501 = vsel %vm2052, %v3286, 0
  %v3504 = vsel %vm2052, %v3291, 0
  %v3507 = vsel %vm2052, %v3296, 0
  %v3510 = vsel %vm2052, %v3301, 0
  %v3513 = vsel %vm2052, %v3306, 0
  %v3516 = vsel %vm2052, %v3311, 0
  %v3519 = vsel %vm2052, %v3316, 0
  %v3522 = vsel %vm2052, %v3321, 0
  %v3525 = vsel %vm2052, %v3326, 0
  %v3528 = vsel %vm2052, %v3331, 0
  %v3531 = vsel %vm2052, %v3336, 0
  %v3534 = vsel %vm2052, %v3341, 0
  %v3537 = vsel %vm2052, %v3346, 0
  %v3540 = vsel %vm2052, %v3351, 0
  %v3543 = vsel %vm2052, %v3356, 0
  %v3546 = vsel %vm2052, %v3361, 0
  %v3549 = vsel %vm2052, %v3366, 0
  %v3552 = vsel %vm2052, %v3371, 0
  %v3555 = vsel %vm2052, %v3376, 0
  %v3558 = vsel %vm2052, %v3381, 0
  %v3561 = vsel %vm2052, %v3386, 0
  %v3564 = vsel %vm2052, %v3391, 0
  %v3567 = vsel %vm2052, %v3396, 0
  %3569 = vmatpush.msra.mxu0 %v3412
  %3570 = vmatpush.msra.mxu0 %v3411
  %3571 = vmatpush.msra.mxu0 %v3410
  %3572 = vmatpush.msra.mxu0 %v3409
  %3573 = vmatpush.msra.mxu0 %v3408
  %3574 = vmatpush.msra.mxu0 %v3407
  %3575 = vmatpush.msra.mxu0 %v3406
  %3576 = vmatpush.msra.mxu0 %v3405
  %3577 = vmatpush.msra.mxu0 %v3404
  %3578 = vmatpush.msra.mxu0 %v3403
  %3579 = vmatpush.msra.mxu0 %v3402
  %3580 = vmatpush.msra.mxu0 %v3401
  %3581 = vmatpush.msra.mxu0 %v3400
  %3582 = vmatpush.msra.mxu0 %v3399
  %3583 = vmatpush.msra.mxu0 %v3398
  %3584 = vmatpush.msra.mxu0 %v3397
  %3585 = vmatmul.f32.gmra.mxu0 %v3237
  %v3586 = vpop.f32.mrf.mxu0
  %v3587 = vadd.f32 %v3471, %v3586
  %3588 = vmatmul.f32.gmra.mxu0 %v3242
  %v3589 = vpop.f32.mrf.mxu0
  %v3590 = vadd.f32 %v3471, %v3589
  %3591 = vmatmul.f32.gmra.mxu0 %v3247
  %v3592 = vpop.f32.mrf.mxu0
  %v3593 = vadd.f32 %v3471, %v3592
  %3594 = vmatmul.f32.gmra.mxu0 %v3252
  %v3595 = vpop.f32.mrf.mxu0
  %v3596 = vadd.f32 %v3471, %v3595
  %3597 = vmatmul.f32.gmra.mxu0 %v3257
  %v3598 = vpop.f32.mrf.mxu0
  %v3599 = vadd.f32 %v3471, %v3598
  %3600 = vmatmul.f32.gmra.mxu0 %v3262
  %v3601 = vpop.f32.mrf.mxu0
  %v3602 = vadd.f32 %v3471, %v3601
  %3603 = vmatmul.f32.gmra.mxu0 %v3267
  %v3604 = vpop.f32.mrf.mxu0
  %v3605 = vadd.f32 %v3471, %v3604
  %3606 = vmatmul.f32.gmra.mxu0 %v3272
  %v3607 = vpop.f32.mrf.mxu0
  %v3608 = vadd.f32 %v3471, %v3607
  %3609 = vmatmul.f32.gmra.mxu0 %v3277
  %v3610 = vpop.f32.mrf.mxu0
  %v3611 = vadd.f32 %v3471, %v3610
  %3612 = vmatmul.f32.gmra.mxu0 %v3282
  %v3613 = vpop.f32.mrf.mxu0
  %v3614 = vadd.f32 %v3471, %v3613
  %3615 = vmatmul.f32.gmra.mxu0 %v3287
  %v3616 = vpop.f32.mrf.mxu0
  %v3617 = vadd.f32 %v3471, %v3616
  %3618 = vmatmul.f32.gmra.mxu0 %v3292
  %v3619 = vpop.f32.mrf.mxu0
  %v3620 = vadd.f32 %v3471, %v3619
  %3621 = vmatmul.f32.gmra.mxu0 %v3297
  %v3622 = vpop.f32.mrf.mxu0
  %v3623 = vadd.f32 %v3471, %v3622
  %3624 = vmatmul.f32.gmra.mxu0 %v3302
  %v3625 = vpop.f32.mrf.mxu0
  %v3626 = vadd.f32 %v3471, %v3625
  %3627 = vmatmul.f32.gmra.mxu0 %v3307
  %v3628 = vpop.f32.mrf.mxu0
  %v3629 = vadd.f32 %v3471, %v3628
  %3630 = vmatmul.f32.gmra.mxu0 %v3312
  %v3631 = vpop.f32.mrf.mxu0
  %v3632 = vadd.f32 %v3471, %v3631
  %3633 = vmatmul.f32.gmra.mxu0 %v3317
  %v3634 = vpop.f32.mrf.mxu0
  %v3635 = vadd.f32 %v3471, %v3634
  %3636 = vmatmul.f32.gmra.mxu0 %v3322
  %v3637 = vpop.f32.mrf.mxu0
  %v3638 = vadd.f32 %v3471, %v3637
  %3639 = vmatmul.f32.gmra.mxu0 %v3327
  %v3640 = vpop.f32.mrf.mxu0
  %v3641 = vadd.f32 %v3471, %v3640
  %3642 = vmatmul.f32.gmra.mxu0 %v3332
  %v3643 = vpop.f32.mrf.mxu0
  %v3644 = vadd.f32 %v3471, %v3643
  %3645 = vmatmul.f32.gmra.mxu0 %v3337
  %v3646 = vpop.f32.mrf.mxu0
  %v3647 = vadd.f32 %v3471, %v3646
  %3648 = vmatmul.f32.gmra.mxu0 %v3342
  %v3649 = vpop.f32.mrf.mxu0
  %v3650 = vadd.f32 %v3471, %v3649
  %3651 = vmatmul.f32.gmra.mxu0 %v3347
  %v3652 = vpop.f32.mrf.mxu0
  %v3653 = vadd.f32 %v3471, %v3652
  %3654 = vmatmul.f32.gmra.mxu0 %v3352
  %v3655 = vpop.f32.mrf.mxu0
  %v3656 = vadd.f32 %v3471, %v3655
  %3657 = vmatmul.f32.gmra.mxu0 %v3357
  %v3658 = vpop.f32.mrf.mxu0
  %v3659 = vadd.f32 %v3471, %v3658
  %3660 = vmatmul.f32.gmra.mxu0 %v3362
  %v3661 = vpop.f32.mrf.mxu0
  %v3662 = vadd.f32 %v3471, %v3661
  %3663 = vmatmul.f32.gmra.mxu0 %v3367
  %v3664 = vpop.f32.mrf.mxu0
  %v3665 = vadd.f32 %v3471, %v3664
  %3666 = vmatmul.f32.gmra.mxu0 %v3372
  %v3667 = vpop.f32.mrf.mxu0
  %v3668 = vadd.f32 %v3471, %v3667
  %3669 = vmatmul.f32.gmra.mxu0 %v3377
  %v3670 = vpop.f32.mrf.mxu0
  %v3671 = vadd.f32 %v3471, %v3670
  %3672 = vmatmul.f32.gmra.mxu0 %v3382
  %v3673 = vpop.f32.mrf.mxu0
  %v3674 = vadd.f32 %v3471, %v3673
  %3675 = vmatmul.f32.gmra.mxu0 %v3387
  %v3676 = vpop.f32.mrf.mxu0
  %v3677 = vadd.f32 %v3471, %v3676
  %3678 = vmatmul.f32.gmra.mxu0 %v3392
  %v3679 = vpop.f32.mrf.mxu0
  %v3680 = vadd.f32 %v3471, %v3679
  %3681 = vdwg.mxu0
  %3682 = vmatpush.msra.mxu0 %v3428
  %3683 = vmatpush.msra.mxu0 %v3427
  %3684 = vmatpush.msra.mxu0 %v3426
  %3685 = vmatpush.msra.mxu0 %v3425
  %3686 = vmatpush.msra.mxu0 %v3424
  %3687 = vmatpush.msra.mxu0 %v3423
  %3688 = vmatpush.msra.mxu0 %v3422
  %3689 = vmatpush.msra.mxu0 %v3421
  %3690 = vmatpush.msra.mxu0 %v3420
  %3691 = vmatpush.msra.mxu0 %v3419
  %3692 = vmatpush.msra.mxu0 %v3418
  %3693 = vmatpush.msra.mxu0 %v3417
  %3694 = vmatpush.msra.mxu0 %v3416
  %3695 = vmatpush.msra.mxu0 %v3415
  %3696 = vmatpush.msra.mxu0 %v3414
  %3697 = vmatpush.msra.mxu0 %v3413
  %3698 = vmatmul.f32.gmra.mxu0 %v3238
  %v3699 = vpop.f32.mrf.mxu0
  %v3700 = vadd.f32 %v3587, %v3699
  %3701 = vmatmul.f32.gmra.mxu0 %v3243
  %v3702 = vpop.f32.mrf.mxu0
  %v3703 = vadd.f32 %v3590, %v3702
  %3704 = vmatmul.f32.gmra.mxu0 %v3248
  %v3705 = vpop.f32.mrf.mxu0
  %v3706 = vadd.f32 %v3593, %v3705
  %3707 = vmatmul.f32.gmra.mxu0 %v3253
  %v3708 = vpop.f32.mrf.mxu0
  %v3709 = vadd.f32 %v3596, %v3708
  %3710 = vmatmul.f32.gmra.mxu0 %v3258
  %v3711 = vpop.f32.mrf.mxu0
  %v3712 = vadd.f32 %v3599, %v3711
  %3713 = vmatmul.f32.gmra.mxu0 %v3263
  %v3714 = vpop.f32.mrf.mxu0
  %v3715 = vadd.f32 %v3602, %v3714
  %3716 = vmatmul.f32.gmra.mxu0 %v3268
  %v3717 = vpop.f32.mrf.mxu0
  %v3718 = vadd.f32 %v3605, %v3717
  %3719 = vmatmul.f32.gmra.mxu0 %v3273
  %v3720 = vpop.f32.mrf.mxu0
  %v3721 = vadd.f32 %v3608, %v3720
  %3722 = vmatmul.f32.gmra.mxu0 %v3278
  %v3723 = vpop.f32.mrf.mxu0
  %v3724 = vadd.f32 %v3611, %v3723
  %3725 = vmatmul.f32.gmra.mxu0 %v3283
  %v3726 = vpop.f32.mrf.mxu0
  %v3727 = vadd.f32 %v3614, %v3726
  %3728 = vmatmul.f32.gmra.mxu0 %v3288
  %v3729 = vpop.f32.mrf.mxu0
  %v3730 = vadd.f32 %v3617, %v3729
  %3731 = vmatmul.f32.gmra.mxu0 %v3293
  %v3732 = vpop.f32.mrf.mxu0
  %v3733 = vadd.f32 %v3620, %v3732
  %3734 = vmatmul.f32.gmra.mxu0 %v3298
  %v3735 = vpop.f32.mrf.mxu0
  %v3736 = vadd.f32 %v3623, %v3735
  %3737 = vmatmul.f32.gmra.mxu0 %v3303
  %v3738 = vpop.f32.mrf.mxu0
  %v3739 = vadd.f32 %v3626, %v3738
  %3740 = vmatmul.f32.gmra.mxu0 %v3308
  %v3741 = vpop.f32.mrf.mxu0
  %v3742 = vadd.f32 %v3629, %v3741
  %3743 = vmatmul.f32.gmra.mxu0 %v3313
  %v3744 = vpop.f32.mrf.mxu0
  %v3745 = vadd.f32 %v3632, %v3744
  %3746 = vmatmul.f32.gmra.mxu0 %v3318
  %v3747 = vpop.f32.mrf.mxu0
  %v3748 = vadd.f32 %v3635, %v3747
  %3749 = vmatmul.f32.gmra.mxu0 %v3323
  %v3750 = vpop.f32.mrf.mxu0
  %v3751 = vadd.f32 %v3638, %v3750
  %3752 = vmatmul.f32.gmra.mxu0 %v3328
  %v3753 = vpop.f32.mrf.mxu0
  %v3754 = vadd.f32 %v3641, %v3753
  %3755 = vmatmul.f32.gmra.mxu0 %v3333
  %v3756 = vpop.f32.mrf.mxu0
  %v3757 = vadd.f32 %v3644, %v3756
  %3758 = vmatmul.f32.gmra.mxu0 %v3338
  %v3759 = vpop.f32.mrf.mxu0
  %v3760 = vadd.f32 %v3647, %v3759
  %3761 = vmatmul.f32.gmra.mxu0 %v3343
  %v3762 = vpop.f32.mrf.mxu0
  %v3763 = vadd.f32 %v3650, %v3762
  %3764 = vmatmul.f32.gmra.mxu0 %v3348
  %v3765 = vpop.f32.mrf.mxu0
  %v3766 = vadd.f32 %v3653, %v3765
  %3767 = vmatmul.f32.gmra.mxu0 %v3353
  %v3768 = vpop.f32.mrf.mxu0
  %v3769 = vadd.f32 %v3656, %v3768
  %3770 = vmatmul.f32.gmra.mxu0 %v3358
  %v3771 = vpop.f32.mrf.mxu0
  %v3772 = vadd.f32 %v3659, %v3771
  %3773 = vmatmul.f32.gmra.mxu0 %v3363
  %v3774 = vpop.f32.mrf.mxu0
  %v3775 = vadd.f32 %v3662, %v3774
  %3776 = vmatmul.f32.gmra.mxu0 %v3368
  %v3777 = vpop.f32.mrf.mxu0
  %v3778 = vadd.f32 %v3665, %v3777
  %3779 = vmatmul.f32.gmra.mxu0 %v3373
  %v3780 = vpop.f32.mrf.mxu0
  %v3781 = vadd.f32 %v3668, %v3780
  %3782 = vmatmul.f32.gmra.mxu0 %v3378
  %v3783 = vpop.f32.mrf.mxu0
  %v3784 = vadd.f32 %v3671, %v3783
  %3785 = vmatmul.f32.gmra.mxu0 %v3383
  %v3786 = vpop.f32.mrf.mxu0
  %v3787 = vadd.f32 %v3674, %v3786
  %3788 = vmatmul.f32.gmra.mxu0 %v3388
  %v3789 = vpop.f32.mrf.mxu0
  %v3790 = vadd.f32 %v3677, %v3789
  %3791 = vmatmul.f32.gmra.mxu0 %v3393
  %v3792 = vpop.f32.mrf.mxu0
  %v3793 = vadd.f32 %v3680, %v3792
  %3794 = vdwg.mxu0
  %3795 = vmatpush.msra.mxu0 %v3444
  %3796 = vmatpush.msra.mxu0 %v3443
  %3797 = vmatpush.msra.mxu0 %v3442
  %3798 = vmatpush.msra.mxu0 %v3441
  %3799 = vmatpush.msra.mxu0 %v3440
  %3800 = vmatpush.msra.mxu0 %v3439
  %3801 = vmatpush.msra.mxu0 %v3438
  %3802 = vmatpush.msra.mxu0 %v3437
  %3803 = vmatpush.msra.mxu0 %v3436
  %3804 = vmatpush.msra.mxu0 %v3435
  %3805 = vmatpush.msra.mxu0 %v3434
  %3806 = vmatpush.msra.mxu0 %v3433
  %3807 = vmatpush.msra.mxu0 %v3432
  %3808 = vmatpush.msra.mxu0 %v3431
  %3809 = vmatpush.msra.mxu0 %v3430
  %3810 = vmatpush.msra.mxu0 %v3429
  %3811 = vmatmul.f32.gmra.mxu0 %v3239
  %v3812 = vpop.f32.mrf.mxu0
  %v3813 = vadd.f32 %v3700, %v3812
  %3814 = vmatmul.f32.gmra.mxu0 %v3244
  %v3815 = vpop.f32.mrf.mxu0
  %v3816 = vadd.f32 %v3703, %v3815
  %3817 = vmatmul.f32.gmra.mxu0 %v3249
  %v3818 = vpop.f32.mrf.mxu0
  %v3819 = vadd.f32 %v3706, %v3818
  %3820 = vmatmul.f32.gmra.mxu0 %v3254
  %v3821 = vpop.f32.mrf.mxu0
  %v3822 = vadd.f32 %v3709, %v3821
  %3823 = vmatmul.f32.gmra.mxu0 %v3259
  %v3824 = vpop.f32.mrf.mxu0
  %v3825 = vadd.f32 %v3712, %v3824
  %3826 = vmatmul.f32.gmra.mxu0 %v3264
  %v3827 = vpop.f32.mrf.mxu0
  %v3828 = vadd.f32 %v3715, %v3827
  %3829 = vmatmul.f32.gmra.mxu0 %v3269
  %v3830 = vpop.f32.mrf.mxu0
  %v3831 = vadd.f32 %v3718, %v3830
  %3832 = vmatmul.f32.gmra.mxu0 %v3274
  %v3833 = vpop.f32.mrf.mxu0
  %v3834 = vadd.f32 %v3721, %v3833
  %3835 = vmatmul.f32.gmra.mxu0 %v3279
  %v3836 = vpop.f32.mrf.mxu0
  %v3837 = vadd.f32 %v3724, %v3836
  %3838 = vmatmul.f32.gmra.mxu0 %v3284
  %v3839 = vpop.f32.mrf.mxu0
  %v3840 = vadd.f32 %v3727, %v3839
  %3841 = vmatmul.f32.gmra.mxu0 %v3289
  %v3842 = vpop.f32.mrf.mxu0
  %v3843 = vadd.f32 %v3730, %v3842
  %3844 = vmatmul.f32.gmra.mxu0 %v3294
  %v3845 = vpop.f32.mrf.mxu0
  %v3846 = vadd.f32 %v3733, %v3845
  %3847 = vmatmul.f32.gmra.mxu0 %v3299
  %v3848 = vpop.f32.mrf.mxu0
  %v3849 = vadd.f32 %v3736, %v3848
  %3850 = vmatmul.f32.gmra.mxu0 %v3304
  %v3851 = vpop.f32.mrf.mxu0
  %v3852 = vadd.f32 %v3739, %v3851
  %3853 = vmatmul.f32.gmra.mxu0 %v3309
  %v3854 = vpop.f32.mrf.mxu0
  %v3855 = vadd.f32 %v3742, %v3854
  %3856 = vmatmul.f32.gmra.mxu0 %v3314
  %v3857 = vpop.f32.mrf.mxu0
  %v3858 = vadd.f32 %v3745, %v3857
  %3859 = vmatmul.f32.gmra.mxu0 %v3319
  %v3860 = vpop.f32.mrf.mxu0
  %v3861 = vadd.f32 %v3748, %v3860
  %3862 = vmatmul.f32.gmra.mxu0 %v3324
  %v3863 = vpop.f32.mrf.mxu0
  %v3864 = vadd.f32 %v3751, %v3863
  %3865 = vmatmul.f32.gmra.mxu0 %v3329
  %v3866 = vpop.f32.mrf.mxu0
  %v3867 = vadd.f32 %v3754, %v3866
  %3868 = vmatmul.f32.gmra.mxu0 %v3334
  %v3869 = vpop.f32.mrf.mxu0
  %v3870 = vadd.f32 %v3757, %v3869
  %3871 = vmatmul.f32.gmra.mxu0 %v3339
  %v3872 = vpop.f32.mrf.mxu0
  %v3873 = vadd.f32 %v3760, %v3872
  %3874 = vmatmul.f32.gmra.mxu0 %v3344
  %v3875 = vpop.f32.mrf.mxu0
  %v3876 = vadd.f32 %v3763, %v3875
  %3877 = vmatmul.f32.gmra.mxu0 %v3349
  %v3878 = vpop.f32.mrf.mxu0
  %v3879 = vadd.f32 %v3766, %v3878
  %3880 = vmatmul.f32.gmra.mxu0 %v3354
  %v3881 = vpop.f32.mrf.mxu0
  %v3882 = vadd.f32 %v3769, %v3881
  %3883 = vmatmul.f32.gmra.mxu0 %v3359
  %v3884 = vpop.f32.mrf.mxu0
  %v3885 = vadd.f32 %v3772, %v3884
  %3886 = vmatmul.f32.gmra.mxu0 %v3364
  %v3887 = vpop.f32.mrf.mxu0
  %v3888 = vadd.f32 %v3775, %v3887
  %3889 = vmatmul.f32.gmra.mxu0 %v3369
  %v3890 = vpop.f32.mrf.mxu0
  %v3891 = vadd.f32 %v3778, %v3890
  %3892 = vmatmul.f32.gmra.mxu0 %v3374
  %v3893 = vpop.f32.mrf.mxu0
  %v3894 = vadd.f32 %v3781, %v3893
  %3895 = vmatmul.f32.gmra.mxu0 %v3379
  %v3896 = vpop.f32.mrf.mxu0
  %v3897 = vadd.f32 %v3784, %v3896
  %3898 = vmatmul.f32.gmra.mxu0 %v3384
  %v3899 = vpop.f32.mrf.mxu0
  %v3900 = vadd.f32 %v3787, %v3899
  %3901 = vmatmul.f32.gmra.mxu0 %v3389
  %v3902 = vpop.f32.mrf.mxu0
  %v3903 = vadd.f32 %v3790, %v3902
  %3904 = vmatmul.f32.gmra.mxu0 %v3394
  %v3905 = vpop.f32.mrf.mxu0
  %v3906 = vadd.f32 %v3793, %v3905
  %3907 = vdwg.mxu0
  %3908 = vmatpush.msra.mxu0 %v3460
  %3909 = vmatpush.msra.mxu0 %v3459
  %3910 = vmatpush.msra.mxu0 %v3458
  %3911 = vmatpush.msra.mxu0 %v3457
  %3912 = vmatpush.msra.mxu0 %v3456
  %3913 = vmatpush.msra.mxu0 %v3455
  %3914 = vmatpush.msra.mxu0 %v3454
  %3915 = vmatpush.msra.mxu0 %v3453
  %3916 = vmatpush.msra.mxu0 %v3452
  %3917 = vmatpush.msra.mxu0 %v3451
  %3918 = vmatpush.msra.mxu0 %v3450
  %3919 = vmatpush.msra.mxu0 %v3449
  %3920 = vmatpush.msra.mxu0 %v3448
  %3921 = vmatpush.msra.mxu0 %v3447
  %3922 = vmatpush.msra.mxu0 %v3446
  %3923 = vmatpush.msra.mxu0 %v3445
  %3924 = vmatmul.f32.gmra.mxu0 %v3240
  %v3925 = vpop.f32.mrf.mxu0
  %v3926 = vadd.f32 %v3813, %v3925
  %3927 = vmatmul.f32.gmra.mxu0 %v3245
  %v3928 = vpop.f32.mrf.mxu0
  %v3929 = vadd.f32 %v3816, %v3928
  %3930 = vmatmul.f32.gmra.mxu0 %v3250
  %v3931 = vpop.f32.mrf.mxu0
  %v3932 = vadd.f32 %v3819, %v3931
  %3933 = vmatmul.f32.gmra.mxu0 %v3255
  %v3934 = vpop.f32.mrf.mxu0
  %v3935 = vadd.f32 %v3822, %v3934
  %3936 = vmatmul.f32.gmra.mxu0 %v3260
  %v3937 = vpop.f32.mrf.mxu0
  %v3938 = vadd.f32 %v3825, %v3937
  %3939 = vmatmul.f32.gmra.mxu0 %v3265
  %v3940 = vpop.f32.mrf.mxu0
  %v3941 = vadd.f32 %v3828, %v3940
  %3942 = vmatmul.f32.gmra.mxu0 %v3270
  %v3943 = vpop.f32.mrf.mxu0
  %v3944 = vadd.f32 %v3831, %v3943
  %3945 = vmatmul.f32.gmra.mxu0 %v3275
  %v3946 = vpop.f32.mrf.mxu0
  %v3947 = vadd.f32 %v3834, %v3946
  %3948 = vmatmul.f32.gmra.mxu0 %v3280
  %v3949 = vpop.f32.mrf.mxu0
  %v3950 = vadd.f32 %v3837, %v3949
  %3951 = vmatmul.f32.gmra.mxu0 %v3285
  %v3952 = vpop.f32.mrf.mxu0
  %v3953 = vadd.f32 %v3840, %v3952
  %3954 = vmatmul.f32.gmra.mxu0 %v3290
  %v3955 = vpop.f32.mrf.mxu0
  %v3956 = vadd.f32 %v3843, %v3955
  %3957 = vmatmul.f32.gmra.mxu0 %v3295
  %v3958 = vpop.f32.mrf.mxu0
  %v3959 = vadd.f32 %v3846, %v3958
  %3960 = vmatmul.f32.gmra.mxu0 %v3300
  %v3961 = vpop.f32.mrf.mxu0
  %v3962 = vadd.f32 %v3849, %v3961
  %3963 = vmatmul.f32.gmra.mxu0 %v3305
  %v3964 = vpop.f32.mrf.mxu0
  %v3965 = vadd.f32 %v3852, %v3964
  %3966 = vmatmul.f32.gmra.mxu0 %v3310
  %v3967 = vpop.f32.mrf.mxu0
  %v3968 = vadd.f32 %v3855, %v3967
  %3969 = vmatmul.f32.gmra.mxu0 %v3315
  %v3970 = vpop.f32.mrf.mxu0
  %v3971 = vadd.f32 %v3858, %v3970
  %3972 = vmatmul.f32.gmra.mxu0 %v3320
  %v3973 = vpop.f32.mrf.mxu0
  %v3974 = vadd.f32 %v3861, %v3973
  %3975 = vmatmul.f32.gmra.mxu0 %v3325
  %v3976 = vpop.f32.mrf.mxu0
  %v3977 = vadd.f32 %v3864, %v3976
  %3978 = vmatmul.f32.gmra.mxu0 %v3330
  %v3979 = vpop.f32.mrf.mxu0
  %v3980 = vadd.f32 %v3867, %v3979
  %3981 = vmatmul.f32.gmra.mxu0 %v3335
  %v3982 = vpop.f32.mrf.mxu0
  %v3983 = vadd.f32 %v3870, %v3982
  %3984 = vmatmul.f32.gmra.mxu0 %v3340
  %v3985 = vpop.f32.mrf.mxu0
  %v3986 = vadd.f32 %v3873, %v3985
  %3987 = vmatmul.f32.gmra.mxu0 %v3345
  %v3988 = vpop.f32.mrf.mxu0
  %v3989 = vadd.f32 %v3876, %v3988
  %3990 = vmatmul.f32.gmra.mxu0 %v3350
  %v3991 = vpop.f32.mrf.mxu0
  %v3992 = vadd.f32 %v3879, %v3991
  %3993 = vmatmul.f32.gmra.mxu0 %v3355
  %v3994 = vpop.f32.mrf.mxu0
  %v3995 = vadd.f32 %v3882, %v3994
  %3996 = vmatmul.f32.gmra.mxu0 %v3360
  %v3997 = vpop.f32.mrf.mxu0
  %v3998 = vadd.f32 %v3885, %v3997
  %3999 = vmatmul.f32.gmra.mxu0 %v3365
  %v4000 = vpop.f32.mrf.mxu0
  %v4001 = vadd.f32 %v3888, %v4000
  %4002 = vmatmul.f32.gmra.mxu0 %v3370
  %v4003 = vpop.f32.mrf.mxu0
  %v4004 = vadd.f32 %v3891, %v4003
  %4005 = vmatmul.f32.gmra.mxu0 %v3375
  %v4006 = vpop.f32.mrf.mxu0
  %v4007 = vadd.f32 %v3894, %v4006
  %4008 = vmatmul.f32.gmra.mxu0 %v3380
  %v4009 = vpop.f32.mrf.mxu0
  %v4010 = vadd.f32 %v3897, %v4009
  %4011 = vmatmul.f32.gmra.mxu0 %v3385
  %v4012 = vpop.f32.mrf.mxu0
  %v4013 = vadd.f32 %v3900, %v4012
  %4014 = vmatmul.f32.gmra.mxu0 %v3390
  %v4015 = vpop.f32.mrf.mxu0
  %v4016 = vadd.f32 %v3903, %v4015
  %4017 = vmatmul.f32.gmra.mxu0 %v3395
  %v4018 = vpop.f32.mrf.mxu0
  %v4019 = vadd.f32 %v3906, %v4018
  %4020 = vdwg.mxu0
  %4021 = vmatpush.msra.mxu0 0.0
  %4022 = vmatpush.msra.mxu0 0.0
  %4023 = vmatpush.msra.mxu0 0.0
  %4024 = vmatpush.msra.mxu0 0.0
  %4025 = vmatpush.msra.mxu0 0.0
  %4026 = vmatpush.msra.mxu0 0.0
  %4027 = vmatpush.msra.mxu0 0.0
  %4028 = vmatpush.msra.mxu0 0.0
  %4029 = vmatpush.msra.mxu0 %v3468
  %4030 = vmatpush.msra.mxu0 %v3467
  %4031 = vmatpush.msra.mxu0 %v3466
  %4032 = vmatpush.msra.mxu0 %v3465
  %4033 = vmatpush.msra.mxu0 %v3464
  %4034 = vmatpush.msra.mxu0 %v3463
  %4035 = vmatpush.msra.mxu0 %v3462
  %4036 = vmatpush.msra.mxu0 %v3461
  %4037 = vmatmul.f32.gmra.mxu0 %v3474
  %v4038 = vpop.f32.mrf.mxu0
  %v4039 = vadd.f32 %v3926, %v4038
  %4040 = vmatmul.f32.gmra.mxu0 %v3477
  %v4041 = vpop.f32.mrf.mxu0
  %v4042 = vadd.f32 %v3929, %v4041
  %4043 = vmatmul.f32.gmra.mxu0 %v3480
  %v4044 = vpop.f32.mrf.mxu0
  %v4045 = vadd.f32 %v3932, %v4044
  %4046 = vmatmul.f32.gmra.mxu0 %v3483
  %v4047 = vpop.f32.mrf.mxu0
  %v4048 = vadd.f32 %v3935, %v4047
  %4049 = vmatmul.f32.gmra.mxu0 %v3486
  %v4050 = vpop.f32.mrf.mxu0
  %v4051 = vadd.f32 %v3938, %v4050
  %4052 = vmatmul.f32.gmra.mxu0 %v3489
  %v4053 = vpop.f32.mrf.mxu0
  %v4054 = vadd.f32 %v3941, %v4053
  %4055 = vmatmul.f32.gmra.mxu0 %v3492
  %v4056 = vpop.f32.mrf.mxu0
  %v4057 = vadd.f32 %v3944, %v4056
  %4058 = vmatmul.f32.gmra.mxu0 %v3495
  %v4059 = vpop.f32.mrf.mxu0
  %v4060 = vadd.f32 %v3947, %v4059
  %4061 = vmatmul.f32.gmra.mxu0 %v3498
  %v4062 = vpop.f32.mrf.mxu0
  %v4063 = vadd.f32 %v3950, %v4062
  %4064 = vmatmul.f32.gmra.mxu0 %v3501
  %v4065 = vpop.f32.mrf.mxu0
  %v4066 = vadd.f32 %v3953, %v4065
  %4067 = vmatmul.f32.gmra.mxu0 %v3504
  %v4068 = vpop.f32.mrf.mxu0
  %v4069 = vadd.f32 %v3956, %v4068
  %4070 = vmatmul.f32.gmra.mxu0 %v3507
  %v4071 = vpop.f32.mrf.mxu0
  %v4072 = vadd.f32 %v3959, %v4071
  %4073 = vmatmul.f32.gmra.mxu0 %v3510
  %v4074 = vpop.f32.mrf.mxu0
  %v4075 = vadd.f32 %v3962, %v4074
  %4076 = vmatmul.f32.gmra.mxu0 %v3513
  %v4077 = vpop.f32.mrf.mxu0
  %v4078 = vadd.f32 %v3965, %v4077
  %4079 = vmatmul.f32.gmra.mxu0 %v3516
  %v4080 = vpop.f32.mrf.mxu0
  %v4081 = vadd.f32 %v3968, %v4080
  %4082 = vmatmul.f32.gmra.mxu0 %v3519
  %v4083 = vpop.f32.mrf.mxu0
  %v4084 = vadd.f32 %v3971, %v4083
  %4085 = vmatmul.f32.gmra.mxu0 %v3522
  %v4086 = vpop.f32.mrf.mxu0
  %v4087 = vadd.f32 %v3974, %v4086
  %4088 = vmatmul.f32.gmra.mxu0 %v3525
  %v4089 = vpop.f32.mrf.mxu0
  %v4090 = vadd.f32 %v3977, %v4089
  %4091 = vmatmul.f32.gmra.mxu0 %v3528
  %v4092 = vpop.f32.mrf.mxu0
  %v4093 = vadd.f32 %v3980, %v4092
  %4094 = vmatmul.f32.gmra.mxu0 %v3531
  %v4095 = vpop.f32.mrf.mxu0
  %v4096 = vadd.f32 %v3983, %v4095
  %4097 = vmatmul.f32.gmra.mxu0 %v3534
  %v4098 = vpop.f32.mrf.mxu0
  %v4099 = vadd.f32 %v3986, %v4098
  %4100 = vmatmul.f32.gmra.mxu0 %v3537
  %v4101 = vpop.f32.mrf.mxu0
  %v4102 = vadd.f32 %v3989, %v4101
  %4103 = vmatmul.f32.gmra.mxu0 %v3540
  %v4104 = vpop.f32.mrf.mxu0
  %v4105 = vadd.f32 %v3992, %v4104
  %4106 = vmatmul.f32.gmra.mxu0 %v3543
  %v4107 = vpop.f32.mrf.mxu0
  %v4108 = vadd.f32 %v3995, %v4107
  %4109 = vmatmul.f32.gmra.mxu0 %v3546
  %v4110 = vpop.f32.mrf.mxu0
  %v4111 = vadd.f32 %v3998, %v4110
  %4112 = vmatmul.f32.gmra.mxu0 %v3549
  %v4113 = vpop.f32.mrf.mxu0
  %v4114 = vadd.f32 %v4001, %v4113
  %4115 = vmatmul.f32.gmra.mxu0 %v3552
  %v4116 = vpop.f32.mrf.mxu0
  %v4117 = vadd.f32 %v4004, %v4116
  %4118 = vmatmul.f32.gmra.mxu0 %v3555
  %v4119 = vpop.f32.mrf.mxu0
  %v4120 = vadd.f32 %v4007, %v4119
  %4121 = vmatmul.f32.gmra.mxu0 %v3558
  %v4122 = vpop.f32.mrf.mxu0
  %v4123 = vadd.f32 %v4010, %v4122
  %4124 = vmatmul.f32.gmra.mxu0 %v3561
  %v4125 = vpop.f32.mrf.mxu0
  %v4126 = vadd.f32 %v4013, %v4125
  %4127 = vmatmul.f32.gmra.mxu0 %v3564
  %v4128 = vpop.f32.mrf.mxu0
  %v4129 = vadd.f32 %v4016, %v4128
  %4130 = vmatmul.f32.gmra.mxu0 %v3567
  %v4131 = vpop.f32.mrf.mxu0
  %v4132 = vadd.f32 %v4019, %v4131
  %4133 = vdwg.mxu0
  %v4134 = vmax.f32 %v4039, 0.0
  %v4135 = vmax.f32 %v4042, 0.0
  %v4136 = vmax.f32 %v4045, 0.0
  %v4137 = vmax.f32 %v4048, 0.0
  %v4138 = vmax.f32 %v4051, 0.0
  %v4139 = vmax.f32 %v4054, 0.0
  %v4140 = vmax.f32 %v4057, 0.0
  %v4141 = vmax.f32 %v4060, 0.0
  %v4142 = vmax.f32 %v4063, 0.0
  %v4143 = vmax.f32 %v4066, 0.0
  %v4144 = vmax.f32 %v4069, 0.0
  %v4145 = vmax.f32 %v4072, 0.0
  %v4146 = vmax.f32 %v4075, 0.0
  %v4147 = vmax.f32 %v4078, 0.0
  %v4148 = vmax.f32 %v4081, 0.0
  %v4149 = vmax.f32 %v4084, 0.0
  %v4150 = vmax.f32 %v4087, 0.0
  %v4151 = vmax.f32 %v4090, 0.0
  %v4152 = vmax.f32 %v4093, 0.0
  %v4153 = vmax.f32 %v4096, 0.0
  %v4154 = vmax.f32 %v4099, 0.0
  %v4155 = vmax.f32 %v4102, 0.0
  %v4156 = vmax.f32 %v4105, 0.0
  %v4157 = vmax.f32 %v4108, 0.0
  %v4158 = vmax.f32 %v4111, 0.0
  %v4159 = vmax.f32 %v4114, 0.0
  %v4160 = vmax.f32 %v4117, 0.0
  %v4161 = vmax.f32 %v4120, 0.0
  %v4162 = vmax.f32 %v4123, 0.0
  %v4163 = vmax.f32 %v4126, 0.0
  %v4164 = vmax.f32 %v4129, 0.0
  %v4165 = vmax.f32 %v4132, 0.0
  %v4198 = vrot.slane %v4134, 2
  %v4199 = vrot.slane %v4134, 4
  %v4200 = vrot.slane %v4134, 6
  %v4201 = vrot.slane %v4135, 2
  %v4202 = vrot.slane %v4135, 4
  %v4203 = vrot.slane %v4135, 6
  %v4204 = vrot.slane %v4136, 2
  %v4205 = vrot.slane %v4136, 4
  %v4206 = vrot.slane %v4136, 6
  %v4207 = vrot.slane %v4137, 2
  %v4208 = vrot.slane %v4137, 4
  %v4209 = vrot.slane %v4137, 6
  %v4210 = vrot.slane %v4138, 2
  %v4211 = vrot.slane %v4138, 4
  %v4212 = vrot.slane %v4138, 6
  %v4213 = vrot.slane %v4139, 2
  %v4214 = vrot.slane %v4139, 4
  %v4215 = vrot.slane %v4139, 6
  %v4216 = vrot.slane %v4140, 2
  %v4217 = vrot.slane %v4140, 4
  %v4218 = vrot.slane %v4140, 6
  %v4219 = vrot.slane %v4141, 2
  %v4220 = vrot.slane %v4141, 4
  %v4221 = vrot.slane %v4141, 6
  %v4222 = vrot.slane %v4142, 2
  %v4223 = vrot.slane %v4142, 4
  %v4224 = vrot.slane %v4142, 6
  %v4225 = vrot.slane %v4143, 2
  %v4226 = vrot.slane %v4143, 4
  %v4227 = vrot.slane %v4143, 6
  %v4228 = vrot.slane %v4144, 2
  %v4229 = vrot.slane %v4144, 4
  %v4230 = vrot.slane %v4144, 6
  %v4231 = vrot.slane %v4145, 2
  %v4232 = vrot.slane %v4145, 4
  %v4233 = vrot.slane %v4145, 6
  %v4234 = vrot.slane %v4146, 2
  %v4235 = vrot.slane %v4146, 4
  %v4236 = vrot.slane %v4146, 6
  %v4237 = vrot.slane %v4147, 2
  %v4238 = vrot.slane %v4147, 4
  %v4239 = vrot.slane %v4147, 6
  %v4240 = vrot.slane %v4148, 2
  %v4241 = vrot.slane %v4148, 4
  %v4242 = vrot.slane %v4148, 6
  %v4243 = vrot.slane %v4149, 2
  %v4244 = vrot.slane %v4149, 4
  %v4245 = vrot.slane %v4149, 6
  %v4246 = vrot.slane %v4150, 2
  %v4247 = vrot.slane %v4150, 4
  %v4248 = vrot.slane %v4150, 6
  %v4249 = vrot.slane %v4151, 2
  %v4250 = vrot.slane %v4151, 4
  %v4251 = vrot.slane %v4151, 6
  %v4252 = vrot.slane %v4152, 2
  %v4253 = vrot.slane %v4152, 4
  %v4254 = vrot.slane %v4152, 6
  %v4255 = vrot.slane %v4153, 2
  %v4256 = vrot.slane %v4153, 4
  %v4257 = vrot.slane %v4153, 6
  %v4258 = vrot.slane %v4154, 2
  %v4259 = vrot.slane %v4154, 4
  %v4260 = vrot.slane %v4154, 6
  %v4261 = vrot.slane %v4155, 2
  %v4262 = vrot.slane %v4155, 4
  %v4263 = vrot.slane %v4155, 6
  %v4264 = vrot.slane %v4156, 2
  %v4265 = vrot.slane %v4156, 4
  %v4266 = vrot.slane %v4156, 6
  %v4267 = vrot.slane %v4157, 2
  %v4268 = vrot.slane %v4157, 4
  %v4269 = vrot.slane %v4157, 6
  %v4270 = vrot.slane %v4158, 2
  %v4271 = vrot.slane %v4158, 4
  %v4272 = vrot.slane %v4158, 6
  %v4273 = vrot.slane %v4159, 2
  %v4274 = vrot.slane %v4159, 4
  %v4275 = vrot.slane %v4159, 6
  %v4276 = vrot.slane %v4160, 2
  %v4277 = vrot.slane %v4160, 4
  %v4278 = vrot.slane %v4160, 6
  %v4279 = vrot.slane %v4161, 2
  %v4280 = vrot.slane %v4161, 4
  %v4281 = vrot.slane %v4161, 6
  %v4282 = vrot.slane %v4162, 2
  %v4283 = vrot.slane %v4162, 4
  %v4284 = vrot.slane %v4162, 6
  %v4285 = vrot.slane %v4163, 2
  %v4286 = vrot.slane %v4163, 4
  %v4287 = vrot.slane %v4163, 6
  %v4288 = vrot.slane %v4164, 2
  %v4289 = vrot.slane %v4164, 4
  %v4290 = vrot.slane %v4164, 6
  %v4291 = vrot.slane %v4165, 2
  %v4292 = vrot.slane %v4165, 4
  %v4293 = vrot.slane %v4165, 6
  %v4390 = vsel %vm2055, %v4134, -inf
  %v4391 = vrot.slane %v4390, 4
  %v4392 = vmax.f32 %v4390, %v4391
  %v4393 = vrot.slane %v4392, 2
  %v4394 = vmax.f32 %v4392, %v4393
  %v4395 = vrot.slane %v4394, 1
  %v4396 = vmax.f32 %v4394, %v4395
  %v4397 = vsel %vm2055, %v4198, -inf
  %v4398 = vrot.slane %v4397, 4
  %v4399 = vmax.f32 %v4397, %v4398
  %v4400 = vrot.slane %v4399, 2
  %v4401 = vmax.f32 %v4399, %v4400
  %v4402 = vrot.slane %v4401, 1
  %v4403 = vmax.f32 %v4401, %v4402
  %v4404 = vsel %vm2055, %v4199, -inf
  %v4405 = vrot.slane %v4404, 4
  %v4406 = vmax.f32 %v4404, %v4405
  %v4407 = vrot.slane %v4406, 2
  %v4408 = vmax.f32 %v4406, %v4407
  %v4409 = vrot.slane %v4408, 1
  %v4410 = vmax.f32 %v4408, %v4409
  %v4411 = vsel %vm2055, %v4200, -inf
  %v4412 = vrot.slane %v4411, 4
  %v4413 = vmax.f32 %v4411, %v4412
  %v4414 = vrot.slane %v4413, 2
  %v4415 = vmax.f32 %v4413, %v4414
  %v4416 = vrot.slane %v4415, 1
  %v4417 = vmax.f32 %v4415, %v4416
  %v4418 = vsel %vm2055, %v4135, -inf
  %v4419 = vrot.slane %v4418, 4
  %v4420 = vmax.f32 %v4418, %v4419
  %v4421 = vrot.slane %v4420, 2
  %v4422 = vmax.f32 %v4420, %v4421
  %v4423 = vrot.slane %v4422, 1
  %v4424 = vmax.f32 %v4422, %v4423
  %v4425 = vsel %vm2055, %v4201, -inf
  %v4426 = vrot.slane %v4425, 4
  %v4427 = vmax.f32 %v4425, %v4426
  %v4428 = vrot.slane %v4427, 2
  %v4429 = vmax.f32 %v4427, %v4428
  %v4430 = vrot.slane %v4429, 1
  %v4431 = vmax.f32 %v4429, %v4430
  %v4432 = vsel %vm2055, %v4202, -inf
  %v4433 = vrot.slane %v4432, 4
  %v4434 = vmax.f32 %v4432, %v4433
  %v4435 = vrot.slane %v4434, 2
  %v4436 = vmax.f32 %v4434, %v4435
  %v4437 = vrot.slane %v4436, 1
  %v4438 = vmax.f32 %v4436, %v4437
  %v4439 = vsel %vm2055, %v4203, -inf
  %v4440 = vrot.slane %v4439, 4
  %v4441 = vmax.f32 %v4439, %v4440
  %v4442 = vrot.slane %v4441, 2
  %v4443 = vmax.f32 %v4441, %v4442
  %v4444 = vrot.slane %v4443, 1
  %v4445 = vmax.f32 %v4443, %v4444
  %v4446 = vsel %vm2055, %v4136, -inf
  %v4447 = vrot.slane %v4446, 4
  %v4448 = vmax.f32 %v4446, %v4447
  %v4449 = vrot.slane %v4448, 2
  %v4450 = vmax.f32 %v4448, %v4449
  %v4451 = vrot.slane %v4450, 1
  %v4452 = vmax.f32 %v4450, %v4451
  %v4453 = vsel %vm2055, %v4204, -inf
  %v4454 = vrot.slane %v4453, 4
  %v4455 = vmax.f32 %v4453, %v4454
  %v4456 = vrot.slane %v4455, 2
  %v4457 = vmax.f32 %v4455, %v4456
  %v4458 = vrot.slane %v4457, 1
  %v4459 = vmax.f32 %v4457, %v4458
  %v4460 = vsel %vm2055, %v4205, -inf
  %v4461 = vrot.slane %v4460, 4
  %v4462 = vmax.f32 %v4460, %v4461
  %v4463 = vrot.slane %v4462, 2
  %v4464 = vmax.f32 %v4462, %v4463
  %v4465 = vrot.slane %v4464, 1
  %v4466 = vmax.f32 %v4464, %v4465
  %v4467 = vsel %vm2055, %v4206, -inf
  %v4468 = vrot.slane %v4467, 4
  %v4469 = vmax.f32 %v4467, %v4468
  %v4470 = vrot.slane %v4469, 2
  %v4471 = vmax.f32 %v4469, %v4470
  %v4472 = vrot.slane %v4471, 1
  %v4473 = vmax.f32 %v4471, %v4472
  %v4474 = vsel %vm2055, %v4137, -inf
  %v4475 = vrot.slane %v4474, 4
  %v4476 = vmax.f32 %v4474, %v4475
  %v4477 = vrot.slane %v4476, 2
  %v4478 = vmax.f32 %v4476, %v4477
  %v4479 = vrot.slane %v4478, 1
  %v4480 = vmax.f32 %v4478, %v4479
  %v4481 = vsel %vm2055, %v4207, -inf
  %v4482 = vrot.slane %v4481, 4
  %v4483 = vmax.f32 %v4481, %v4482
  %v4484 = vrot.slane %v4483, 2
  %v4485 = vmax.f32 %v4483, %v4484
  %v4486 = vrot.slane %v4485, 1
  %v4487 = vmax.f32 %v4485, %v4486
  %v4488 = vsel %vm2055, %v4208, -inf
  %v4489 = vrot.slane %v4488, 4
  %v4490 = vmax.f32 %v4488, %v4489
  %v4491 = vrot.slane %v4490, 2
  %v4492 = vmax.f32 %v4490, %v4491
  %v4493 = vrot.slane %v4492, 1
  %v4494 = vmax.f32 %v4492, %v4493
  %v4495 = vsel %vm2055, %v4209, -inf
  %v4496 = vrot.slane %v4495, 4
  %v4497 = vmax.f32 %v4495, %v4496
  %v4498 = vrot.slane %v4497, 2
  %v4499 = vmax.f32 %v4497, %v4498
  %v4500 = vrot.slane %v4499, 1
  %v4501 = vmax.f32 %v4499, %v4500
  %v4502 = vsel %vm2055, %v4138, -inf
  %v4503 = vrot.slane %v4502, 4
  %v4504 = vmax.f32 %v4502, %v4503
  %v4505 = vrot.slane %v4504, 2
  %v4506 = vmax.f32 %v4504, %v4505
  %v4507 = vrot.slane %v4506, 1
  %v4508 = vmax.f32 %v4506, %v4507
  %v4509 = vsel %vm2055, %v4210, -inf
  %v4510 = vrot.slane %v4509, 4
  %v4511 = vmax.f32 %v4509, %v4510
  %v4512 = vrot.slane %v4511, 2
  %v4513 = vmax.f32 %v4511, %v4512
  %v4514 = vrot.slane %v4513, 1
  %v4515 = vmax.f32 %v4513, %v4514
  %v4516 = vsel %vm2055, %v4211, -inf
  %v4517 = vrot.slane %v4516, 4
  %v4518 = vmax.f32 %v4516, %v4517
  %v4519 = vrot.slane %v4518, 2
  %v4520 = vmax.f32 %v4518, %v4519
  %v4521 = vrot.slane %v4520, 1
  %v4522 = vmax.f32 %v4520, %v4521
  %v4523 = vsel %vm2055, %v4212, -inf
  %v4524 = vrot.slane %v4523, 4
  %v4525 = vmax.f32 %v4523, %v4524
  %v4526 = vrot.slane %v4525, 2
  %v4527 = vmax.f32 %v4525, %v4526
  %v4528 = vrot.slane %v4527, 1
  %v4529 = vmax.f32 %v4527, %v4528
  %v4530 = vsel %vm2055, %v4139, -inf
  %v4531 = vrot.slane %v4530, 4
  %v4532 = vmax.f32 %v4530, %v4531
  %v4533 = vrot.slane %v4532, 2
  %v4534 = vmax.f32 %v4532, %v4533
  %v4535 = vrot.slane %v4534, 1
  %v4536 = vmax.f32 %v4534, %v4535
  %v4537 = vsel %vm2055, %v4213, -inf
  %v4538 = vrot.slane %v4537, 4
  %v4539 = vmax.f32 %v4537, %v4538
  %v4540 = vrot.slane %v4539, 2
  %v4541 = vmax.f32 %v4539, %v4540
  %v4542 = vrot.slane %v4541, 1
  %v4543 = vmax.f32 %v4541, %v4542
  %v4544 = vsel %vm2055, %v4214, -inf
  %v4545 = vrot.slane %v4544, 4
  %v4546 = vmax.f32 %v4544, %v4545
  %v4547 = vrot.slane %v4546, 2
  %v4548 = vmax.f32 %v4546, %v4547
  %v4549 = vrot.slane %v4548, 1
  %v4550 = vmax.f32 %v4548, %v4549
  %v4551 = vsel %vm2055, %v4215, -inf
  %v4552 = vrot.slane %v4551, 4
  %v4553 = vmax.f32 %v4551, %v4552
  %v4554 = vrot.slane %v4553, 2
  %v4555 = vmax.f32 %v4553, %v4554
  %v4556 = vrot.slane %v4555, 1
  %v4557 = vmax.f32 %v4555, %v4556
  %v4558 = vsel %vm2055, %v4140, -inf
  %v4559 = vrot.slane %v4558, 4
  %v4560 = vmax.f32 %v4558, %v4559
  %v4561 = vrot.slane %v4560, 2
  %v4562 = vmax.f32 %v4560, %v4561
  %v4563 = vrot.slane %v4562, 1
  %v4564 = vmax.f32 %v4562, %v4563
  %v4565 = vsel %vm2055, %v4216, -inf
  %v4566 = vrot.slane %v4565, 4
  %v4567 = vmax.f32 %v4565, %v4566
  %v4568 = vrot.slane %v4567, 2
  %v4569 = vmax.f32 %v4567, %v4568
  %v4570 = vrot.slane %v4569, 1
  %v4571 = vmax.f32 %v4569, %v4570
  %v4572 = vsel %vm2055, %v4217, -inf
  %v4573 = vrot.slane %v4572, 4
  %v4574 = vmax.f32 %v4572, %v4573
  %v4575 = vrot.slane %v4574, 2
  %v4576 = vmax.f32 %v4574, %v4575
  %v4577 = vrot.slane %v4576, 1
  %v4578 = vmax.f32 %v4576, %v4577
  %v4579 = vsel %vm2055, %v4218, -inf
  %v4580 = vrot.slane %v4579, 4
  %v4581 = vmax.f32 %v4579, %v4580
  %v4582 = vrot.slane %v4581, 2
  %v4583 = vmax.f32 %v4581, %v4582
  %v4584 = vrot.slane %v4583, 1
  %v4585 = vmax.f32 %v4583, %v4584
  %v4586 = vsel %vm2055, %v4141, -inf
  %v4587 = vrot.slane %v4586, 4
  %v4588 = vmax.f32 %v4586, %v4587
  %v4589 = vrot.slane %v4588, 2
  %v4590 = vmax.f32 %v4588, %v4589
  %v4591 = vrot.slane %v4590, 1
  %v4592 = vmax.f32 %v4590, %v4591
  %v4593 = vsel %vm2055, %v4219, -inf
  %v4594 = vrot.slane %v4593, 4
  %v4595 = vmax.f32 %v4593, %v4594
  %v4596 = vrot.slane %v4595, 2
  %v4597 = vmax.f32 %v4595, %v4596
  %v4598 = vrot.slane %v4597, 1
  %v4599 = vmax.f32 %v4597, %v4598
  %v4600 = vsel %vm2055, %v4220, -inf
  %v4601 = vrot.slane %v4600, 4
  %v4602 = vmax.f32 %v4600, %v4601
  %v4603 = vrot.slane %v4602, 2
  %v4604 = vmax.f32 %v4602, %v4603
  %v4605 = vrot.slane %v4604, 1
  %v4606 = vmax.f32 %v4604, %v4605
  %v4607 = vsel %vm2055, %v4221, -inf
  %v4608 = vrot.slane %v4607, 4
  %v4609 = vmax.f32 %v4607, %v4608
  %v4610 = vrot.slane %v4609, 2
  %v4611 = vmax.f32 %v4609, %v4610
  %v4612 = vrot.slane %v4611, 1
  %v4613 = vmax.f32 %v4611, %v4612
  %v4614 = vsel %vm2055, %v4142, -inf
  %v4615 = vrot.slane %v4614, 4
  %v4616 = vmax.f32 %v4614, %v4615
  %v4617 = vrot.slane %v4616, 2
  %v4618 = vmax.f32 %v4616, %v4617
  %v4619 = vrot.slane %v4618, 1
  %v4620 = vmax.f32 %v4618, %v4619
  %v4621 = vsel %vm2055, %v4222, -inf
  %v4622 = vrot.slane %v4621, 4
  %v4623 = vmax.f32 %v4621, %v4622
  %v4624 = vrot.slane %v4623, 2
  %v4625 = vmax.f32 %v4623, %v4624
  %v4626 = vrot.slane %v4625, 1
  %v4627 = vmax.f32 %v4625, %v4626
  %v4628 = vsel %vm2055, %v4223, -inf
  %v4629 = vrot.slane %v4628, 4
  %v4630 = vmax.f32 %v4628, %v4629
  %v4631 = vrot.slane %v4630, 2
  %v4632 = vmax.f32 %v4630, %v4631
  %v4633 = vrot.slane %v4632, 1
  %v4634 = vmax.f32 %v4632, %v4633
  %v4635 = vsel %vm2055, %v4224, -inf
  %v4636 = vrot.slane %v4635, 4
  %v4637 = vmax.f32 %v4635, %v4636
  %v4638 = vrot.slane %v4637, 2
  %v4639 = vmax.f32 %v4637, %v4638
  %v4640 = vrot.slane %v4639, 1
  %v4641 = vmax.f32 %v4639, %v4640
  %v4642 = vsel %vm2055, %v4143, -inf
  %v4643 = vrot.slane %v4642, 4
  %v4644 = vmax.f32 %v4642, %v4643
  %v4645 = vrot.slane %v4644, 2
  %v4646 = vmax.f32 %v4644, %v4645
  %v4647 = vrot.slane %v4646, 1
  %v4648 = vmax.f32 %v4646, %v4647
  %v4649 = vsel %vm2055, %v4225, -inf
  %v4650 = vrot.slane %v4649, 4
  %v4651 = vmax.f32 %v4649, %v4650
  %v4652 = vrot.slane %v4651, 2
  %v4653 = vmax.f32 %v4651, %v4652
  %v4654 = vrot.slane %v4653, 1
  %v4655 = vmax.f32 %v4653, %v4654
  %v4656 = vsel %vm2055, %v4226, -inf
  %v4657 = vrot.slane %v4656, 4
  %v4658 = vmax.f32 %v4656, %v4657
  %v4659 = vrot.slane %v4658, 2
  %v4660 = vmax.f32 %v4658, %v4659
  %v4661 = vrot.slane %v4660, 1
  %v4662 = vmax.f32 %v4660, %v4661
  %v4663 = vsel %vm2055, %v4227, -inf
  %v4664 = vrot.slane %v4663, 4
  %v4665 = vmax.f32 %v4663, %v4664
  %v4666 = vrot.slane %v4665, 2
  %v4667 = vmax.f32 %v4665, %v4666
  %v4668 = vrot.slane %v4667, 1
  %v4669 = vmax.f32 %v4667, %v4668
  %v4670 = vsel %vm2055, %v4144, -inf
  %v4671 = vrot.slane %v4670, 4
  %v4672 = vmax.f32 %v4670, %v4671
  %v4673 = vrot.slane %v4672, 2
  %v4674 = vmax.f32 %v4672, %v4673
  %v4675 = vrot.slane %v4674, 1
  %v4676 = vmax.f32 %v4674, %v4675
  %v4677 = vsel %vm2055, %v4228, -inf
  %v4678 = vrot.slane %v4677, 4
  %v4679 = vmax.f32 %v4677, %v4678
  %v4680 = vrot.slane %v4679, 2
  %v4681 = vmax.f32 %v4679, %v4680
  %v4682 = vrot.slane %v4681, 1
  %v4683 = vmax.f32 %v4681, %v4682
  %v4684 = vsel %vm2055, %v4229, -inf
  %v4685 = vrot.slane %v4684, 4
  %v4686 = vmax.f32 %v4684, %v4685
  %v4687 = vrot.slane %v4686, 2
  %v4688 = vmax.f32 %v4686, %v4687
  %v4689 = vrot.slane %v4688, 1
  %v4690 = vmax.f32 %v4688, %v4689
  %v4691 = vsel %vm2055, %v4230, -inf
  %v4692 = vrot.slane %v4691, 4
  %v4693 = vmax.f32 %v4691, %v4692
  %v4694 = vrot.slane %v4693, 2
  %v4695 = vmax.f32 %v4693, %v4694
  %v4696 = vrot.slane %v4695, 1
  %v4697 = vmax.f32 %v4695, %v4696
  %v4698 = vsel %vm2055, %v4145, -inf
  %v4699 = vrot.slane %v4698, 4
  %v4700 = vmax.f32 %v4698, %v4699
  %v4701 = vrot.slane %v4700, 2
  %v4702 = vmax.f32 %v4700, %v4701
  %v4703 = vrot.slane %v4702, 1
  %v4704 = vmax.f32 %v4702, %v4703
  %v4705 = vsel %vm2055, %v4231, -inf
  %v4706 = vrot.slane %v4705, 4
  %v4707 = vmax.f32 %v4705, %v4706
  %v4708 = vrot.slane %v4707, 2
  %v4709 = vmax.f32 %v4707, %v4708
  %v4710 = vrot.slane %v4709, 1
  %v4711 = vmax.f32 %v4709, %v4710
  %v4712 = vsel %vm2055, %v4232, -inf
  %v4713 = vrot.slane %v4712, 4
  %v4714 = vmax.f32 %v4712, %v4713
  %v4715 = vrot.slane %v4714, 2
  %v4716 = vmax.f32 %v4714, %v4715
  %v4717 = vrot.slane %v4716, 1
  %v4718 = vmax.f32 %v4716, %v4717
  %v4719 = vsel %vm2055, %v4233, -inf
  %v4720 = vrot.slane %v4719, 4
  %v4721 = vmax.f32 %v4719, %v4720
  %v4722 = vrot.slane %v4721, 2
  %v4723 = vmax.f32 %v4721, %v4722
  %v4724 = vrot.slane %v4723, 1
  %v4725 = vmax.f32 %v4723, %v4724
  %v4726 = vsel %vm2055, %v4146, -inf
  %v4727 = vrot.slane %v4726, 4
  %v4728 = vmax.f32 %v4726, %v4727
  %v4729 = vrot.slane %v4728, 2
  %v4730 = vmax.f32 %v4728, %v4729
  %v4731 = vrot.slane %v4730, 1
  %v4732 = vmax.f32 %v4730, %v4731
  %v4733 = vsel %vm2055, %v4234, -inf
  %v4734 = vrot.slane %v4733, 4
  %v4735 = vmax.f32 %v4733, %v4734
  %v4736 = vrot.slane %v4735, 2
  %v4737 = vmax.f32 %v4735, %v4736
  %v4738 = vrot.slane %v4737, 1
  %v4739 = vmax.f32 %v4737, %v4738
  %v4740 = vsel %vm2055, %v4235, -inf
  %v4741 = vrot.slane %v4740, 4
  %v4742 = vmax.f32 %v4740, %v4741
  %v4743 = vrot.slane %v4742, 2
  %v4744 = vmax.f32 %v4742, %v4743
  %v4745 = vrot.slane %v4744, 1
  %v4746 = vmax.f32 %v4744, %v4745
  %v4747 = vsel %vm2055, %v4236, -inf
  %v4748 = vrot.slane %v4747, 4
  %v4749 = vmax.f32 %v4747, %v4748
  %v4750 = vrot.slane %v4749, 2
  %v4751 = vmax.f32 %v4749, %v4750
  %v4752 = vrot.slane %v4751, 1
  %v4753 = vmax.f32 %v4751, %v4752
  %v4754 = vsel %vm2055, %v4147, -inf
  %v4755 = vrot.slane %v4754, 4
  %v4756 = vmax.f32 %v4754, %v4755
  %v4757 = vrot.slane %v4756, 2
  %v4758 = vmax.f32 %v4756, %v4757
  %v4759 = vrot.slane %v4758, 1
  %v4760 = vmax.f32 %v4758, %v4759
  %v4761 = vsel %vm2055, %v4237, -inf
  %v4762 = vrot.slane %v4761, 4
  %v4763 = vmax.f32 %v4761, %v4762
  %v4764 = vrot.slane %v4763, 2
  %v4765 = vmax.f32 %v4763, %v4764
  %v4766 = vrot.slane %v4765, 1
  %v4767 = vmax.f32 %v4765, %v4766
  %v4768 = vsel %vm2055, %v4238, -inf
  %v4769 = vrot.slane %v4768, 4
  %v4770 = vmax.f32 %v4768, %v4769
  %v4771 = vrot.slane %v4770, 2
  %v4772 = vmax.f32 %v4770, %v4771
  %v4773 = vrot.slane %v4772, 1
  %v4774 = vmax.f32 %v4772, %v4773
  %v4775 = vsel %vm2055, %v4239, -inf
  %v4776 = vrot.slane %v4775, 4
  %v4777 = vmax.f32 %v4775, %v4776
  %v4778 = vrot.slane %v4777, 2
  %v4779 = vmax.f32 %v4777, %v4778
  %v4780 = vrot.slane %v4779, 1
  %v4781 = vmax.f32 %v4779, %v4780
  %v4782 = vsel %vm2055, %v4148, -inf
  %v4783 = vrot.slane %v4782, 4
  %v4784 = vmax.f32 %v4782, %v4783
  %v4785 = vrot.slane %v4784, 2
  %v4786 = vmax.f32 %v4784, %v4785
  %v4787 = vrot.slane %v4786, 1
  %v4788 = vmax.f32 %v4786, %v4787
  %v4789 = vsel %vm2055, %v4240, -inf
  %v4790 = vrot.slane %v4789, 4
  %v4791 = vmax.f32 %v4789, %v4790
  %v4792 = vrot.slane %v4791, 2
  %v4793 = vmax.f32 %v4791, %v4792
  %v4794 = vrot.slane %v4793, 1
  %v4795 = vmax.f32 %v4793, %v4794
  %v4796 = vsel %vm2055, %v4241, -inf
  %v4797 = vrot.slane %v4796, 4
  %v4798 = vmax.f32 %v4796, %v4797
  %v4799 = vrot.slane %v4798, 2
  %v4800 = vmax.f32 %v4798, %v4799
  %v4801 = vrot.slane %v4800, 1
  %v4802 = vmax.f32 %v4800, %v4801
  %v4803 = vsel %vm2055, %v4242, -inf
  %v4804 = vrot.slane %v4803, 4
  %v4805 = vmax.f32 %v4803, %v4804
  %v4806 = vrot.slane %v4805, 2
  %v4807 = vmax.f32 %v4805, %v4806
  %v4808 = vrot.slane %v4807, 1
  %v4809 = vmax.f32 %v4807, %v4808
  %v4810 = vsel %vm2055, %v4149, -inf
  %v4811 = vrot.slane %v4810, 4
  %v4812 = vmax.f32 %v4810, %v4811
  %v4813 = vrot.slane %v4812, 2
  %v4814 = vmax.f32 %v4812, %v4813
  %v4815 = vrot.slane %v4814, 1
  %v4816 = vmax.f32 %v4814, %v4815
  %v4817 = vsel %vm2055, %v4243, -inf
  %v4818 = vrot.slane %v4817, 4
  %v4819 = vmax.f32 %v4817, %v4818
  %v4820 = vrot.slane %v4819, 2
  %v4821 = vmax.f32 %v4819, %v4820
  %v4822 = vrot.slane %v4821, 1
  %v4823 = vmax.f32 %v4821, %v4822
  %v4824 = vsel %vm2055, %v4244, -inf
  %v4825 = vrot.slane %v4824, 4
  %v4826 = vmax.f32 %v4824, %v4825
  %v4827 = vrot.slane %v4826, 2
  %v4828 = vmax.f32 %v4826, %v4827
  %v4829 = vrot.slane %v4828, 1
  %v4830 = vmax.f32 %v4828, %v4829
  %v4831 = vsel %vm2055, %v4245, -inf
  %v4832 = vrot.slane %v4831, 4
  %v4833 = vmax.f32 %v4831, %v4832
  %v4834 = vrot.slane %v4833, 2
  %v4835 = vmax.f32 %v4833, %v4834
  %v4836 = vrot.slane %v4835, 1
  %v4837 = vmax.f32 %v4835, %v4836
  %v4838 = vsel %vm2055, %v4150, -inf
  %v4839 = vrot.slane %v4838, 4
  %v4840 = vmax.f32 %v4838, %v4839
  %v4841 = vrot.slane %v4840, 2
  %v4842 = vmax.f32 %v4840, %v4841
  %v4843 = vrot.slane %v4842, 1
  %v4844 = vmax.f32 %v4842, %v4843
  %v4845 = vsel %vm2055, %v4246, -inf
  %v4846 = vrot.slane %v4845, 4
  %v4847 = vmax.f32 %v4845, %v4846
  %v4848 = vrot.slane %v4847, 2
  %v4849 = vmax.f32 %v4847, %v4848
  %v4850 = vrot.slane %v4849, 1
  %v4851 = vmax.f32 %v4849, %v4850
  %v4852 = vsel %vm2055, %v4247, -inf
  %v4853 = vrot.slane %v4852, 4
  %v4854 = vmax.f32 %v4852, %v4853
  %v4855 = vrot.slane %v4854, 2
  %v4856 = vmax.f32 %v4854, %v4855
  %v4857 = vrot.slane %v4856, 1
  %v4858 = vmax.f32 %v4856, %v4857
  %v4859 = vsel %vm2055, %v4248, -inf
  %v4860 = vrot.slane %v4859, 4
  %v4861 = vmax.f32 %v4859, %v4860
  %v4862 = vrot.slane %v4861, 2
  %v4863 = vmax.f32 %v4861, %v4862
  %v4864 = vrot.slane %v4863, 1
  %v4865 = vmax.f32 %v4863, %v4864
  %v4866 = vsel %vm2055, %v4151, -inf
  %v4867 = vrot.slane %v4866, 4
  %v4868 = vmax.f32 %v4866, %v4867
  %v4869 = vrot.slane %v4868, 2
  %v4870 = vmax.f32 %v4868, %v4869
  %v4871 = vrot.slane %v4870, 1
  %v4872 = vmax.f32 %v4870, %v4871
  %v4873 = vsel %vm2055, %v4249, -inf
  %v4874 = vrot.slane %v4873, 4
  %v4875 = vmax.f32 %v4873, %v4874
  %v4876 = vrot.slane %v4875, 2
  %v4877 = vmax.f32 %v4875, %v4876
  %v4878 = vrot.slane %v4877, 1
  %v4879 = vmax.f32 %v4877, %v4878
  %v4880 = vsel %vm2055, %v4250, -inf
  %v4881 = vrot.slane %v4880, 4
  %v4882 = vmax.f32 %v4880, %v4881
  %v4883 = vrot.slane %v4882, 2
  %v4884 = vmax.f32 %v4882, %v4883
  %v4885 = vrot.slane %v4884, 1
  %v4886 = vmax.f32 %v4884, %v4885
  %v4887 = vsel %vm2055, %v4251, -inf
  %v4888 = vrot.slane %v4887, 4
  %v4889 = vmax.f32 %v4887, %v4888
  %v4890 = vrot.slane %v4889, 2
  %v4891 = vmax.f32 %v4889, %v4890
  %v4892 = vrot.slane %v4891, 1
  %v4893 = vmax.f32 %v4891, %v4892
  %v4894 = vsel %vm2055, %v4152, -inf
  %v4895 = vrot.slane %v4894, 4
  %v4896 = vmax.f32 %v4894, %v4895
  %v4897 = vrot.slane %v4896, 2
  %v4898 = vmax.f32 %v4896, %v4897
  %v4899 = vrot.slane %v4898, 1
  %v4900 = vmax.f32 %v4898, %v4899
  %v4901 = vsel %vm2055, %v4252, -inf
  %v4902 = vrot.slane %v4901, 4
  %v4903 = vmax.f32 %v4901, %v4902
  %v4904 = vrot.slane %v4903, 2
  %v4905 = vmax.f32 %v4903, %v4904
  %v4906 = vrot.slane %v4905, 1
  %v4907 = vmax.f32 %v4905, %v4906
  %v4908 = vsel %vm2055, %v4253, -inf
  %v4909 = vrot.slane %v4908, 4
  %v4910 = vmax.f32 %v4908, %v4909
  %v4911 = vrot.slane %v4910, 2
  %v4912 = vmax.f32 %v4910, %v4911
  %v4913 = vrot.slane %v4912, 1
  %v4914 = vmax.f32 %v4912, %v4913
  %v4915 = vsel %vm2055, %v4254, -inf
  %v4916 = vrot.slane %v4915, 4
  %v4917 = vmax.f32 %v4915, %v4916
  %v4918 = vrot.slane %v4917, 2
  %v4919 = vmax.f32 %v4917, %v4918
  %v4920 = vrot.slane %v4919, 1
  %v4921 = vmax.f32 %v4919, %v4920
  %v4922 = vsel %vm2055, %v4153, -inf
  %v4923 = vrot.slane %v4922, 4
  %v4924 = vmax.f32 %v4922, %v4923
  %v4925 = vrot.slane %v4924, 2
  %v4926 = vmax.f32 %v4924, %v4925
  %v4927 = vrot.slane %v4926, 1
  %v4928 = vmax.f32 %v4926, %v4927
  %v4929 = vsel %vm2055, %v4255, -inf
  %v4930 = vrot.slane %v4929, 4
  %v4931 = vmax.f32 %v4929, %v4930
  %v4932 = vrot.slane %v4931, 2
  %v4933 = vmax.f32 %v4931, %v4932
  %v4934 = vrot.slane %v4933, 1
  %v4935 = vmax.f32 %v4933, %v4934
  %v4936 = vsel %vm2055, %v4256, -inf
  %v4937 = vrot.slane %v4936, 4
  %v4938 = vmax.f32 %v4936, %v4937
  %v4939 = vrot.slane %v4938, 2
  %v4940 = vmax.f32 %v4938, %v4939
  %v4941 = vrot.slane %v4940, 1
  %v4942 = vmax.f32 %v4940, %v4941
  %v4943 = vsel %vm2055, %v4257, -inf
  %v4944 = vrot.slane %v4943, 4
  %v4945 = vmax.f32 %v4943, %v4944
  %v4946 = vrot.slane %v4945, 2
  %v4947 = vmax.f32 %v4945, %v4946
  %v4948 = vrot.slane %v4947, 1
  %v4949 = vmax.f32 %v4947, %v4948
  %v4950 = vsel %vm2055, %v4154, -inf
  %v4951 = vrot.slane %v4950, 4
  %v4952 = vmax.f32 %v4950, %v4951
  %v4953 = vrot.slane %v4952, 2
  %v4954 = vmax.f32 %v4952, %v4953
  %v4955 = vrot.slane %v4954, 1
  %v4956 = vmax.f32 %v4954, %v4955
  %v4957 = vsel %vm2055, %v4258, -inf
  %v4958 = vrot.slane %v4957, 4
  %v4959 = vmax.f32 %v4957, %v4958
  %v4960 = vrot.slane %v4959, 2
  %v4961 = vmax.f32 %v4959, %v4960
  %v4962 = vrot.slane %v4961, 1
  %v4963 = vmax.f32 %v4961, %v4962
  %v4964 = vsel %vm2055, %v4259, -inf
  %v4965 = vrot.slane %v4964, 4
  %v4966 = vmax.f32 %v4964, %v4965
  %v4967 = vrot.slane %v4966, 2
  %v4968 = vmax.f32 %v4966, %v4967
  %v4969 = vrot.slane %v4968, 1
  %v4970 = vmax.f32 %v4968, %v4969
  %v4971 = vsel %vm2055, %v4260, -inf
  %v4972 = vrot.slane %v4971, 4
  %v4973 = vmax.f32 %v4971, %v4972
  %v4974 = vrot.slane %v4973, 2
  %v4975 = vmax.f32 %v4973, %v4974
  %v4976 = vrot.slane %v4975, 1
  %v4977 = vmax.f32 %v4975, %v4976
  %v4978 = vsel %vm2055, %v4155, -inf
  %v4979 = vrot.slane %v4978, 4
  %v4980 = vmax.f32 %v4978, %v4979
  %v4981 = vrot.slane %v4980, 2
  %v4982 = vmax.f32 %v4980, %v4981
  %v4983 = vrot.slane %v4982, 1
  %v4984 = vmax.f32 %v4982, %v4983
  %v4985 = vsel %vm2055, %v4261, -inf
  %v4986 = vrot.slane %v4985, 4
  %v4987 = vmax.f32 %v4985, %v4986
  %v4988 = vrot.slane %v4987, 2
  %v4989 = vmax.f32 %v4987, %v4988
  %v4990 = vrot.slane %v4989, 1
  %v4991 = vmax.f32 %v4989, %v4990
  %v4992 = vsel %vm2055, %v4262, -inf
  %v4993 = vrot.slane %v4992, 4
  %v4994 = vmax.f32 %v4992, %v4993
  %v4995 = vrot.slane %v4994, 2
  %v4996 = vmax.f32 %v4994, %v4995
  %v4997 = vrot.slane %v4996, 1
  %v4998 = vmax.f32 %v4996, %v4997
  %v4999 = vsel %vm2055, %v4263, -inf
  %v5000 = vrot.slane %v4999, 4
  %v5001 = vmax.f32 %v4999, %v5000
  %v5002 = vrot.slane %v5001, 2
  %v5003 = vmax.f32 %v5001, %v5002
  %v5004 = vrot.slane %v5003, 1
  %v5005 = vmax.f32 %v5003, %v5004
  %v5006 = vsel %vm2055, %v4156, -inf
  %v5007 = vrot.slane %v5006, 4
  %v5008 = vmax.f32 %v5006, %v5007
  %v5009 = vrot.slane %v5008, 2
  %v5010 = vmax.f32 %v5008, %v5009
  %v5011 = vrot.slane %v5010, 1
  %v5012 = vmax.f32 %v5010, %v5011
  %v5013 = vsel %vm2055, %v4264, -inf
  %v5014 = vrot.slane %v5013, 4
  %v5015 = vmax.f32 %v5013, %v5014
  %v5016 = vrot.slane %v5015, 2
  %v5017 = vmax.f32 %v5015, %v5016
  %v5018 = vrot.slane %v5017, 1
  %v5019 = vmax.f32 %v5017, %v5018
  %v5020 = vsel %vm2055, %v4265, -inf
  %v5021 = vrot.slane %v5020, 4
  %v5022 = vmax.f32 %v5020, %v5021
  %v5023 = vrot.slane %v5022, 2
  %v5024 = vmax.f32 %v5022, %v5023
  %v5025 = vrot.slane %v5024, 1
  %v5026 = vmax.f32 %v5024, %v5025
  %v5027 = vsel %vm2055, %v4266, -inf
  %v5028 = vrot.slane %v5027, 4
  %v5029 = vmax.f32 %v5027, %v5028
  %v5030 = vrot.slane %v5029, 2
  %v5031 = vmax.f32 %v5029, %v5030
  %v5032 = vrot.slane %v5031, 1
  %v5033 = vmax.f32 %v5031, %v5032
  %v5034 = vsel %vm2055, %v4157, -inf
  %v5035 = vrot.slane %v5034, 4
  %v5036 = vmax.f32 %v5034, %v5035
  %v5037 = vrot.slane %v5036, 2
  %v5038 = vmax.f32 %v5036, %v5037
  %v5039 = vrot.slane %v5038, 1
  %v5040 = vmax.f32 %v5038, %v5039
  %v5041 = vsel %vm2055, %v4267, -inf
  %v5042 = vrot.slane %v5041, 4
  %v5043 = vmax.f32 %v5041, %v5042
  %v5044 = vrot.slane %v5043, 2
  %v5045 = vmax.f32 %v5043, %v5044
  %v5046 = vrot.slane %v5045, 1
  %v5047 = vmax.f32 %v5045, %v5046
  %v5048 = vsel %vm2055, %v4268, -inf
  %v5049 = vrot.slane %v5048, 4
  %v5050 = vmax.f32 %v5048, %v5049
  %v5051 = vrot.slane %v5050, 2
  %v5052 = vmax.f32 %v5050, %v5051
  %v5053 = vrot.slane %v5052, 1
  %v5054 = vmax.f32 %v5052, %v5053
  %v5055 = vsel %vm2055, %v4269, -inf
  %v5056 = vrot.slane %v5055, 4
  %v5057 = vmax.f32 %v5055, %v5056
  %v5058 = vrot.slane %v5057, 2
  %v5059 = vmax.f32 %v5057, %v5058
  %v5060 = vrot.slane %v5059, 1
  %v5061 = vmax.f32 %v5059, %v5060
  %v5062 = vsel %vm2055, %v4158, -inf
  %v5063 = vrot.slane %v5062, 4
  %v5064 = vmax.f32 %v5062, %v5063
  %v5065 = vrot.slane %v5064, 2
  %v5066 = vmax.f32 %v5064, %v5065
  %v5067 = vrot.slane %v5066, 1
  %v5068 = vmax.f32 %v5066, %v5067
  %v5069 = vsel %vm2055, %v4270, -inf
  %v5070 = vrot.slane %v5069, 4
  %v5071 = vmax.f32 %v5069, %v5070
  %v5072 = vrot.slane %v5071, 2
  %v5073 = vmax.f32 %v5071, %v5072
  %v5074 = vrot.slane %v5073, 1
  %v5075 = vmax.f32 %v5073, %v5074
  %v5076 = vsel %vm2055, %v4271, -inf
  %v5077 = vrot.slane %v5076, 4
  %v5078 = vmax.f32 %v5076, %v5077
  %v5079 = vrot.slane %v5078, 2
  %v5080 = vmax.f32 %v5078, %v5079
  %v5081 = vrot.slane %v5080, 1
  %v5082 = vmax.f32 %v5080, %v5081
  %v5083 = vsel %vm2055, %v4272, -inf
  %v5084 = vrot.slane %v5083, 4
  %v5085 = vmax.f32 %v5083, %v5084
  %v5086 = vrot.slane %v5085, 2
  %v5087 = vmax.f32 %v5085, %v5086
  %v5088 = vrot.slane %v5087, 1
  %v5089 = vmax.f32 %v5087, %v5088
  %v5090 = vsel %vm2055, %v4159, -inf
  %v5091 = vrot.slane %v5090, 4
  %v5092 = vmax.f32 %v5090, %v5091
  %v5093 = vrot.slane %v5092, 2
  %v5094 = vmax.f32 %v5092, %v5093
  %v5095 = vrot.slane %v5094, 1
  %v5096 = vmax.f32 %v5094, %v5095
  %v5097 = vsel %vm2055, %v4273, -inf
  %v5098 = vrot.slane %v5097, 4
  %v5099 = vmax.f32 %v5097, %v5098
  %v5100 = vrot.slane %v5099, 2
  %v5101 = vmax.f32 %v5099, %v5100
  %v5102 = vrot.slane %v5101, 1
  %v5103 = vmax.f32 %v5101, %v5102
  %v5104 = vsel %vm2055, %v4274, -inf
  %v5105 = vrot.slane %v5104, 4
  %v5106 = vmax.f32 %v5104, %v5105
  %v5107 = vrot.slane %v5106, 2
  %v5108 = vmax.f32 %v5106, %v5107
  %v5109 = vrot.slane %v5108, 1
  %v5110 = vmax.f32 %v5108, %v5109
  %v5111 = vsel %vm2055, %v4275, -inf
  %v5112 = vrot.slane %v5111, 4
  %v5113 = vmax.f32 %v5111, %v5112
  %v5114 = vrot.slane %v5113, 2
  %v5115 = vmax.f32 %v5113, %v5114
  %v5116 = vrot.slane %v5115, 1
  %v5117 = vmax.f32 %v5115, %v5116
  %v5118 = vsel %vm2055, %v4160, -inf
  %v5119 = vrot.slane %v5118, 4
  %v5120 = vmax.f32 %v5118, %v5119
  %v5121 = vrot.slane %v5120, 2
  %v5122 = vmax.f32 %v5120, %v5121
  %v5123 = vrot.slane %v5122, 1
  %v5124 = vmax.f32 %v5122, %v5123
  %v5125 = vsel %vm2055, %v4276, -inf
  %v5126 = vrot.slane %v5125, 4
  %v5127 = vmax.f32 %v5125, %v5126
  %v5128 = vrot.slane %v5127, 2
  %v5129 = vmax.f32 %v5127, %v5128
  %v5130 = vrot.slane %v5129, 1
  %v5131 = vmax.f32 %v5129, %v5130
  %v5132 = vsel %vm2055, %v4277, -inf
  %v5133 = vrot.slane %v5132, 4
  %v5134 = vmax.f32 %v5132, %v5133
  %v5135 = vrot.slane %v5134, 2
  %v5136 = vmax.f32 %v5134, %v5135
  %v5137 = vrot.slane %v5136, 1
  %v5138 = vmax.f32 %v5136, %v5137
  %v5139 = vsel %vm2055, %v4278, -inf
  %v5140 = vrot.slane %v5139, 4
  %v5141 = vmax.f32 %v5139, %v5140
  %v5142 = vrot.slane %v5141, 2
  %v5143 = vmax.f32 %v5141, %v5142
  %v5144 = vrot.slane %v5143, 1
  %v5145 = vmax.f32 %v5143, %v5144
  %v5146 = vsel %vm2055, %v4161, -inf
  %v5147 = vrot.slane %v5146, 4
  %v5148 = vmax.f32 %v5146, %v5147
  %v5149 = vrot.slane %v5148, 2
  %v5150 = vmax.f32 %v5148, %v5149
  %v5151 = vrot.slane %v5150, 1
  %v5152 = vmax.f32 %v5150, %v5151
  %v5153 = vsel %vm2055, %v4279, -inf
  %v5154 = vrot.slane %v5153, 4
  %v5155 = vmax.f32 %v5153, %v5154
  %v5156 = vrot.slane %v5155, 2
  %v5157 = vmax.f32 %v5155, %v5156
  %v5158 = vrot.slane %v5157, 1
  %v5159 = vmax.f32 %v5157, %v5158
  %v5160 = vsel %vm2055, %v4280, -inf
  %v5161 = vrot.slane %v5160, 4
  %v5162 = vmax.f32 %v5160, %v5161
  %v5163 = vrot.slane %v5162, 2
  %v5164 = vmax.f32 %v5162, %v5163
  %v5165 = vrot.slane %v5164, 1
  %v5166 = vmax.f32 %v5164, %v5165
  %v5167 = vsel %vm2055, %v4281, -inf
  %v5168 = vrot.slane %v5167, 4
  %v5169 = vmax.f32 %v5167, %v5168
  %v5170 = vrot.slane %v5169, 2
  %v5171 = vmax.f32 %v5169, %v5170
  %v5172 = vrot.slane %v5171, 1
  %v5173 = vmax.f32 %v5171, %v5172
  %v5174 = vsel %vm2055, %v4162, -inf
  %v5175 = vrot.slane %v5174, 4
  %v5176 = vmax.f32 %v5174, %v5175
  %v5177 = vrot.slane %v5176, 2
  %v5178 = vmax.f32 %v5176, %v5177
  %v5179 = vrot.slane %v5178, 1
  %v5180 = vmax.f32 %v5178, %v5179
  %v5181 = vsel %vm2055, %v4282, -inf
  %v5182 = vrot.slane %v5181, 4
  %v5183 = vmax.f32 %v5181, %v5182
  %v5184 = vrot.slane %v5183, 2
  %v5185 = vmax.f32 %v5183, %v5184
  %v5186 = vrot.slane %v5185, 1
  %v5187 = vmax.f32 %v5185, %v5186
  %v5188 = vsel %vm2055, %v4283, -inf
  %v5189 = vrot.slane %v5188, 4
  %v5190 = vmax.f32 %v5188, %v5189
  %v5191 = vrot.slane %v5190, 2
  %v5192 = vmax.f32 %v5190, %v5191
  %v5193 = vrot.slane %v5192, 1
  %v5194 = vmax.f32 %v5192, %v5193
  %v5195 = vsel %vm2055, %v4284, -inf
  %v5196 = vrot.slane %v5195, 4
  %v5197 = vmax.f32 %v5195, %v5196
  %v5198 = vrot.slane %v5197, 2
  %v5199 = vmax.f32 %v5197, %v5198
  %v5200 = vrot.slane %v5199, 1
  %v5201 = vmax.f32 %v5199, %v5200
  %v5202 = vsel %vm2055, %v4163, -inf
  %v5203 = vrot.slane %v5202, 4
  %v5204 = vmax.f32 %v5202, %v5203
  %v5205 = vrot.slane %v5204, 2
  %v5206 = vmax.f32 %v5204, %v5205
  %v5207 = vrot.slane %v5206, 1
  %v5208 = vmax.f32 %v5206, %v5207
  %v5209 = vsel %vm2055, %v4285, -inf
  %v5210 = vrot.slane %v5209, 4
  %v5211 = vmax.f32 %v5209, %v5210
  %v5212 = vrot.slane %v5211, 2
  %v5213 = vmax.f32 %v5211, %v5212
  %v5214 = vrot.slane %v5213, 1
  %v5215 = vmax.f32 %v5213, %v5214
  %v5216 = vsel %vm2055, %v4286, -inf
  %v5217 = vrot.slane %v5216, 4
  %v5218 = vmax.f32 %v5216, %v5217
  %v5219 = vrot.slane %v5218, 2
  %v5220 = vmax.f32 %v5218, %v5219
  %v5221 = vrot.slane %v5220, 1
  %v5222 = vmax.f32 %v5220, %v5221
  %v5223 = vsel %vm2055, %v4287, -inf
  %v5224 = vrot.slane %v5223, 4
  %v5225 = vmax.f32 %v5223, %v5224
  %v5226 = vrot.slane %v5225, 2
  %v5227 = vmax.f32 %v5225, %v5226
  %v5228 = vrot.slane %v5227, 1
  %v5229 = vmax.f32 %v5227, %v5228
  %v5230 = vsel %vm2055, %v4164, -inf
  %v5231 = vrot.slane %v5230, 4
  %v5232 = vmax.f32 %v5230, %v5231
  %v5233 = vrot.slane %v5232, 2
  %v5234 = vmax.f32 %v5232, %v5233
  %v5235 = vrot.slane %v5234, 1
  %v5236 = vmax.f32 %v5234, %v5235
  %v5237 = vsel %vm2055, %v4288, -inf
  %v5238 = vrot.slane %v5237, 4
  %v5239 = vmax.f32 %v5237, %v5238
  %v5240 = vrot.slane %v5239, 2
  %v5241 = vmax.f32 %v5239, %v5240
  %v5242 = vrot.slane %v5241, 1
  %v5243 = vmax.f32 %v5241, %v5242
  %v5244 = vsel %vm2055, %v4289, -inf
  %v5245 = vrot.slane %v5244, 4
  %v5246 = vmax.f32 %v5244, %v5245
  %v5247 = vrot.slane %v5246, 2
  %v5248 = vmax.f32 %v5246, %v5247
  %v5249 = vrot.slane %v5248, 1
  %v5250 = vmax.f32 %v5248, %v5249
  %v5251 = vsel %vm2055, %v4290, -inf
  %v5252 = vrot.slane %v5251, 4
  %v5253 = vmax.f32 %v5251, %v5252
  %v5254 = vrot.slane %v5253, 2
  %v5255 = vmax.f32 %v5253, %v5254
  %v5256 = vrot.slane %v5255, 1
  %v5257 = vmax.f32 %v5255, %v5256
  %v5258 = vsel %vm2055, %v4165, -inf
  %v5259 = vrot.slane %v5258, 4
  %v5260 = vmax.f32 %v5258, %v5259
  %v5261 = vrot.slane %v5260, 2
  %v5262 = vmax.f32 %v5260, %v5261
  %v5263 = vrot.slane %v5262, 1
  %v5264 = vmax.f32 %v5262, %v5263
  %v5265 = vsel %vm2055, %v4291, -inf
  %v5266 = vrot.slane %v5265, 4
  %v5267 = vmax.f32 %v5265, %v5266
  %v5268 = vrot.slane %v5267, 2
  %v5269 = vmax.f32 %v5267, %v5268
  %v5270 = vrot.slane %v5269, 1
  %v5271 = vmax.f32 %v5269, %v5270
  %v5272 = vsel %vm2055, %v4292, -inf
  %v5273 = vrot.slane %v5272, 4
  %v5274 = vmax.f32 %v5272, %v5273
  %v5275 = vrot.slane %v5274, 2
  %v5276 = vmax.f32 %v5274, %v5275
  %v5277 = vrot.slane %v5276, 1
  %v5278 = vmax.f32 %v5276, %v5277
  %v5279 = vsel %vm2055, %v4293, -inf
  %v5280 = vrot.slane %v5279, 4
  %v5281 = vmax.f32 %v5279, %v5280
  %v5282 = vrot.slane %v5281, 2
  %v5283 = vmax.f32 %v5281, %v5282
  %v5284 = vrot.slane %v5283, 1
  %v5285 = vmax.f32 %v5283, %v5284
  %v5286 = vsel %vm2052, %v4396, -inf
  %v5287 = vsel %vm2052, %v4452, -inf
  %v5288 = vmax.f32 %v5286, %v5287
  %v5289 = vsel %vm2052, %v4403, -inf
  %v5290 = vsel %vm2052, %v4459, -inf
  %v5291 = vmax.f32 %v5289, %v5290
  %v5292 = vsel %vm2052, %v4410, -inf
  %v5293 = vsel %vm2052, %v4466, -inf
  %v5294 = vmax.f32 %v5292, %v5293
  %v5295 = vsel %vm2052, %v4417, -inf
  %v5296 = vsel %vm2052, %v4473, -inf
  %v5297 = vmax.f32 %v5295, %v5296
  %v5298 = vsel %vm2052, %v4424, -inf
  %v5299 = vsel %vm2052, %v4480, -inf
  %v5300 = vmax.f32 %v5298, %v5299
  %v5301 = vsel %vm2052, %v4431, -inf
  %v5302 = vsel %vm2052, %v4487, -inf
  %v5303 = vmax.f32 %v5301, %v5302
  %v5304 = vsel %vm2052, %v4438, -inf
  %v5305 = vsel %vm2052, %v4494, -inf
  %v5306 = vmax.f32 %v5304, %v5305
  %v5307 = vsel %vm2052, %v4445, -inf
  %v5308 = vsel %vm2052, %v4501, -inf
  %v5309 = vmax.f32 %v5307, %v5308
  %v5310 = vsel %vm2052, %v4508, -inf
  %v5311 = vsel %vm2052, %v4564, -inf
  %v5312 = vmax.f32 %v5310, %v5311
  %v5313 = vsel %vm2052, %v4515, -inf
  %v5314 = vsel %vm2052, %v4571, -inf
  %v5315 = vmax.f32 %v5313, %v5314
  %v5316 = vsel %vm2052, %v4522, -inf
  %v5317 = vsel %vm2052, %v4578, -inf
  %v5318 = vmax.f32 %v5316, %v5317
  %v5319 = vsel %vm2052, %v4529, -inf
  %v5320 = vsel %vm2052, %v4585, -inf
  %v5321 = vmax.f32 %v5319, %v5320
  %v5322 = vsel %vm2052, %v4536, -inf
  %v5323 = vsel %vm2052, %v4592, -inf
  %v5324 = vmax.f32 %v5322, %v5323
  %v5325 = vsel %vm2052, %v4543, -inf
  %v5326 = vsel %vm2052, %v4599, -inf
  %v5327 = vmax.f32 %v5325, %v5326
  %v5328 = vsel %vm2052, %v4550, -inf
  %v5329 = vsel %vm2052, %v4606, -inf
  %v5330 = vmax.f32 %v5328, %v5329
  %v5331 = vsel %vm2052, %v4557, -inf
  %v5332 = vsel %vm2052, %v4613, -inf
  %v5333 = vmax.f32 %v5331, %v5332
  %v5334 = vsel %vm2052, %v4620, -inf
  %v5335 = vsel %vm2052, %v4676, -inf
  %v5336 = vmax.f32 %v5334, %v5335
  %v5337 = vsel %vm2052, %v4627, -inf
  %v5338 = vsel %vm2052, %v4683, -inf
  %v5339 = vmax.f32 %v5337, %v5338
  %v5340 = vsel %vm2052, %v4634, -inf
  %v5341 = vsel %vm2052, %v4690, -inf
  %v5342 = vmax.f32 %v5340, %v5341
  %v5343 = vsel %vm2052, %v4641, -inf
  %v5344 = vsel %vm2052, %v4697, -inf
  %v5345 = vmax.f32 %v5343, %v5344
  %v5346 = vsel %vm2052, %v4648, -inf
  %v5347 = vsel %vm2052, %v4704, -inf
  %v5348 = vmax.f32 %v5346, %v5347
  %v5349 = vsel %vm2052, %v4655, -inf
  %v5350 = vsel %vm2052, %v4711, -inf
  %v5351 = vmax.f32 %v5349, %v5350
  %v5352 = vsel %vm2052, %v4662, -inf
  %v5353 = vsel %vm2052, %v4718, -inf
  %v5354 = vmax.f32 %v5352, %v5353
  %v5355 = vsel %vm2052, %v4669, -inf
  %v5356 = vsel %vm2052, %v4725, -inf
  %v5357 = vmax.f32 %v5355, %v5356
  %v5358 = vsel %vm2052, %v4732, -inf
  %v5359 = vsel %vm2052, %v4788, -inf
  %v5360 = vmax.f32 %v5358, %v5359
  %v5361 = vsel %vm2052, %v4739, -inf
  %v5362 = vsel %vm2052, %v4795, -inf
  %v5363 = vmax.f32 %v5361, %v5362
  %v5364 = vsel %vm2052, %v4746, -inf
  %v5365 = vsel %vm2052, %v4802, -inf
  %v5366 = vmax.f32 %v5364, %v5365
  %v5367 = vsel %vm2052, %v4753, -inf
  %v5368 = vsel %vm2052, %v4809, -inf
  %v5369 = vmax.f32 %v5367, %v5368
  %v5370 = vsel %vm2052, %v4760, -inf
  %v5371 = vsel %vm2052, %v4816, -inf
  %v5372 = vmax.f32 %v5370, %v5371
  %v5373 = vsel %vm2052, %v4767, -inf
  %v5374 = vsel %vm2052, %v4823, -inf
  %v5375 = vmax.f32 %v5373, %v5374
  %v5376 = vsel %vm2052, %v4774, -inf
  %v5377 = vsel %vm2052, %v4830, -inf
  %v5378 = vmax.f32 %v5376, %v5377
  %v5379 = vsel %vm2052, %v4781, -inf
  %v5380 = vsel %vm2052, %v4837, -inf
  %v5381 = vmax.f32 %v5379, %v5380
  %v5382 = vsel %vm2052, %v4844, -inf
  %v5383 = vsel %vm2052, %v4900, -inf
  %v5384 = vmax.f32 %v5382, %v5383
  %v5385 = vsel %vm2052, %v4851, -inf
  %v5386 = vsel %vm2052, %v4907, -inf
  %v5387 = vmax.f32 %v5385, %v5386
  %v5388 = vsel %vm2052, %v4858, -inf
  %v5389 = vsel %vm2052, %v4914, -inf
  %v5390 = vmax.f32 %v5388, %v5389
  %v5391 = vsel %vm2052, %v4865, -inf
  %v5392 = vsel %vm2052, %v4921, -inf
  %v5393 = vmax.f32 %v5391, %v5392
  %v5394 = vsel %vm2052, %v4872, -inf
  %v5395 = vsel %vm2052, %v4928, -inf
  %v5396 = vmax.f32 %v5394, %v5395
  %v5397 = vsel %vm2052, %v4879, -inf
  %v5398 = vsel %vm2052, %v4935, -inf
  %v5399 = vmax.f32 %v5397, %v5398
  %v5400 = vsel %vm2052, %v4886, -inf
  %v5401 = vsel %vm2052, %v4942, -inf
  %v5402 = vmax.f32 %v5400, %v5401
  %v5403 = vsel %vm2052, %v4893, -inf
  %v5404 = vsel %vm2052, %v4949, -inf
  %v5405 = vmax.f32 %v5403, %v5404
  %v5406 = vsel %vm2052, %v4956, -inf
  %v5407 = vsel %vm2052, %v5012, -inf
  %v5408 = vmax.f32 %v5406, %v5407
  %v5409 = vsel %vm2052, %v4963, -inf
  %v5410 = vsel %vm2052, %v5019, -inf
  %v5411 = vmax.f32 %v5409, %v5410
  %v5412 = vsel %vm2052, %v4970, -inf
  %v5413 = vsel %vm2052, %v5026, -inf
  %v5414 = vmax.f32 %v5412, %v5413
  %v5415 = vsel %vm2052, %v4977, -inf
  %v5416 = vsel %vm2052, %v5033, -inf
  %v5417 = vmax.f32 %v5415, %v5416
  %v5418 = vsel %vm2052, %v4984, -inf
  %v5419 = vsel %vm2052, %v5040, -inf
  %v5420 = vmax.f32 %v5418, %v5419
  %v5421 = vsel %vm2052, %v4991, -inf
  %v5422 = vsel %vm2052, %v5047, -inf
  %v5423 = vmax.f32 %v5421, %v5422
  %v5424 = vsel %vm2052, %v4998, -inf
  %v5425 = vsel %vm2052, %v5054, -inf
  %v5426 = vmax.f32 %v5424, %v5425
  %v5427 = vsel %vm2052, %v5005, -inf
  %v5428 = vsel %vm2052, %v5061, -inf
  %v5429 = vmax.f32 %v5427, %v5428
  %v5430 = vsel %vm2052, %v5068, -inf
  %v5431 = vsel %vm2052, %v5124, -inf
  %v5432 = vmax.f32 %v5430, %v5431
  %v5433 = vsel %vm2052, %v5075, -inf
  %v5434 = vsel %vm2052, %v5131, -inf
  %v5435 = vmax.f32 %v5433, %v5434
  %v5436 = vsel %vm2052, %v5082, -inf
  %v5437 = vsel %vm2052, %v5138, -inf
  %v5438 = vmax.f32 %v5436, %v5437
  %v5439 = vsel %vm2052, %v5089, -inf
  %v5440 = vsel %vm2052, %v5145, -inf
  %v5441 = vmax.f32 %v5439, %v5440
  %v5442 = vsel %vm2052, %v5096, -inf
  %v5443 = vsel %vm2052, %v5152, -inf
  %v5444 = vmax.f32 %v5442, %v5443
  %v5445 = vsel %vm2052, %v5103, -inf
  %v5446 = vsel %vm2052, %v5159, -inf
  %v5447 = vmax.f32 %v5445, %v5446
  %v5448 = vsel %vm2052, %v5110, -inf
  %v5449 = vsel %vm2052, %v5166, -inf
  %v5450 = vmax.f32 %v5448, %v5449
  %v5451 = vsel %vm2052, %v5117, -inf
  %v5452 = vsel %vm2052, %v5173, -inf
  %v5453 = vmax.f32 %v5451, %v5452
  %v5454 = vsel %vm2052, %v5180, -inf
  %v5455 = vsel %vm2052, %v5236, -inf
  %v5456 = vmax.f32 %v5454, %v5455
  %v5457 = vsel %vm2052, %v5187, -inf
  %v5458 = vsel %vm2052, %v5243, -inf
  %v5459 = vmax.f32 %v5457, %v5458
  %v5460 = vsel %vm2052, %v5194, -inf
  %v5461 = vsel %vm2052, %v5250, -inf
  %v5462 = vmax.f32 %v5460, %v5461
  %v5463 = vsel %vm2052, %v5201, -inf
  %v5464 = vsel %vm2052, %v5257, -inf
  %v5465 = vmax.f32 %v5463, %v5464
  %v5466 = vsel %vm2052, %v5208, -inf
  %v5467 = vsel %vm2052, %v5264, -inf
  %v5468 = vmax.f32 %v5466, %v5467
  %v5469 = vsel %vm2052, %v5215, -inf
  %v5470 = vsel %vm2052, %v5271, -inf
  %v5471 = vmax.f32 %v5469, %v5470
  %v5472 = vsel %vm2052, %v5222, -inf
  %v5473 = vsel %vm2052, %v5278, -inf
  %v5474 = vmax.f32 %v5472, %v5473
  %v5475 = vsel %vm2052, %v5229, -inf
  %v5476 = vsel %vm2052, %v5285, -inf
  %v5477 = vmax.f32 %v5475, %v5476
  %5478 = vst.msk [vmem:[#allocation6] sm:$0xff] %vm2052, 0.0
  %5479 = vst.msk [vmem:[#allocation6 + $0x8] sm:$0x3] %vm2055, 0.0
  %5480 = vst.msk [vmem:[#allocation6 + $0x10] sm:$0xff] %vm2052, 0.0
  %5481 = vst.msk [vmem:[#allocation6 + $0x18] sm:$0x3] %vm2055, 0.0
  %5482 = vst.msk [vmem:[#allocation6 + $0x20] sm:$0xff] %vm2052, 0.0
  %5483 = vst.msk [vmem:[#allocation6 + $0x28] sm:$0x3] %vm2055, 0.0
  %5484 = vst.msk [vmem:[#allocation6 + $0x30] sm:$0xff] %vm2052, 0.0
  %5485 = vst.msk [vmem:[#allocation6 + $0x38] sm:$0x3] %vm2055, 0.0
  %5486 = vst.msk [vmem:[#allocation6 + $0x40] sm:$0xff] %vm2052, 0.0
  %5487 = vst.msk [vmem:[#allocation6 + $0x48] sm:$0x3] %vm2055, 0.0
  %5488 = vst.msk [vmem:[#allocation6 + $0x50] sm:$0xff] %vm2052, 0.0
  %5489 = vst.msk [vmem:[#allocation6 + $0x58] sm:$0x3] %vm2055, 0.0
  %5490 = vst.msk [vmem:[#allocation6 + $0x60] sm:$0xff] %vm2052, 0.0
  %5491 = vst.msk [vmem:[#allocation6 + $0x68] sm:$0x3] %vm2055, 0.0
  %5492 = vst.msk [vmem:[#allocation6 + $0x70] sm:$0xff] %vm2052, 0.0
  %5493 = vst.msk [vmem:[#allocation6 + $0x78] sm:$0x3] %vm2055, 0.0
  %5494 = vst.msk [vmem:[#allocation6 + $0x80] sm:$0xff] %vm2052, 0.0
  %5495 = vst.msk [vmem:[#allocation6 + $0x88] sm:$0x3] %vm2055, 0.0
  %5496 = vst.msk [vmem:[#allocation6 + $0x90] sm:$0xff] %vm2052, 0.0
  %5497 = vst.msk [vmem:[#allocation6 + $0x98] sm:$0x3] %vm2055, 0.0
  %5498 = vst.msk [vmem:[#allocation6 + $0xa0] sm:$0xff] %vm2052, 0.0
  %5499 = vst.msk [vmem:[#allocation6 + $0xa8] sm:$0x3] %vm2055, 0.0
  %5500 = vst.msk [vmem:[#allocation6 + $0xb0] sm:$0xff] %vm2052, 0.0
  %5501 = vst.msk [vmem:[#allocation6 + $0xb8] sm:$0x3] %vm2055, 0.0
  %vm5566 = vcmask 1041409
  %v5567 = vsel %vm5566, %v5291, %v5288
  %vm5568 = vcmask 1042434
  %v5569 = vsel %vm5568, %v5294, %v5567
  %vm5570 = vcmask 1043459
  %v5571 = vsel %vm5570, %v5297, %v5569
  %vm5572 = vcmask 1044484
  %v5573 = vsel %vm5572, %v5300, %v5571
  %vm5574 = vcmask 1045509
  %v5575 = vsel %vm5574, %v5303, %v5573
  %vm5576 = vcmask 1046534
  %v5577 = vsel %vm5576, %v5306, %v5575
  %vm5578 = vcmask 1047559
  %v5579 = vsel %vm5578, %v5309, %v5577
  %v5580 = vsel %vm5566, %v5315, %v5312
  %v5581 = vsel %vm5568, %v5318, %v5580
  %v5582 = vsel %vm5570, %v5321, %v5581
  %v5583 = vsel %vm5572, %v5324, %v5582
  %v5584 = vsel %vm5574, %v5327, %v5583
  %v5585 = vsel %vm5576, %v5330, %v5584
  %v5586 = vsel %vm5578, %v5333, %v5585
  %v5587 = vsel %vm5566, %v5339, %v5336
  %v5588 = vsel %vm5568, %v5342, %v5587
  %v5589 = vsel %vm5570, %v5345, %v5588
  %v5590 = vsel %vm5572, %v5348, %v5589
  %v5591 = vsel %vm5574, %v5351, %v5590
  %v5592 = vsel %vm5576, %v5354, %v5591
  %v5593 = vsel %vm5578, %v5357, %v5592
  %v5594 = vsel %vm5566, %v5363, %v5360
  %v5595 = vsel %vm5568, %v5366, %v5594
  %v5596 = vsel %vm5570, %v5369, %v5595
  %v5597 = vsel %vm5572, %v5372, %v5596
  %v5598 = vsel %vm5574, %v5375, %v5597
  %v5599 = vsel %vm5576, %v5378, %v5598
  %v5600 = vsel %vm5578, %v5381, %v5599
  %v5601 = vsel %vm5566, %v5387, %v5384
  %v5602 = vsel %vm5568, %v5390, %v5601
  %v5603 = vsel %vm5570, %v5393, %v5602
  %v5604 = vsel %vm5572, %v5396, %v5603
  %v5605 = vsel %vm5574, %v5399, %v5604
  %v5606 = vsel %vm5576, %v5402, %v5605
  %v5607 = vsel %vm5578, %v5405, %v5606
  %v5608 = vsel %vm5566, %v5411, %v5408
  %v5609 = vsel %vm5568, %v5414, %v5608
  %v5610 = vsel %vm5570, %v5417, %v5609
  %v5611 = vsel %vm5572, %v5420, %v5610
  %v5612 = vsel %vm5574, %v5423, %v5611
  %v5613 = vsel %vm5576, %v5426, %v5612
  %v5614 = vsel %vm5578, %v5429, %v5613
  %v5615 = vsel %vm5566, %v5435, %v5432
  %v5616 = vsel %vm5568, %v5438, %v5615
  %v5617 = vsel %vm5570, %v5441, %v5616
  %v5618 = vsel %vm5572, %v5444, %v5617
  %v5619 = vsel %vm5574, %v5447, %v5618
  %v5620 = vsel %vm5576, %v5450, %v5619
  %v5621 = vsel %vm5578, %v5453, %v5620
  %v5622 = vsel %vm5566, %v5459, %v5456
  %v5623 = vsel %vm5568, %v5462, %v5622
  %v5624 = vsel %vm5570, %v5465, %v5623
  %v5625 = vsel %vm5572, %v5468, %v5624
  %v5626 = vsel %vm5574, %v5471, %v5625
  %v5627 = vsel %vm5576, %v5474, %v5626
  %v5628 = vsel %vm5578, %v5477, %v5627
  %s5637 = scalar_lea.vmem [#allocation6], 16
  %5638 = vst.msk [vmem:[%s5637 + $0x1] sm:$0xff] %vm2052, %v5579
  %5639 = vst.msk [vmem:[%s5637 + $0x11] sm:$0xff] %vm2052, %v5586
  %5640 = vst.msk [vmem:[%s5637 + $0x21] sm:$0xff] %vm2052, %v5593
  %5641 = vst.msk [vmem:[%s5637 + $0x31] sm:$0xff] %vm2052, %v5600
  %5642 = vst.msk [vmem:[%s5637 + $0x61] sm:$0xff] %vm2052, %v5607
  %5643 = vst.msk [vmem:[%s5637 + $0x71] sm:$0xff] %vm2052, %v5614
  %5644 = vst.msk [vmem:[%s5637 + $0x81] sm:$0xff] %vm2052, %v5621
  %5645 = vst.msk [vmem:[%s5637 + $0x91] sm:$0xff] %vm2052, %v5628
  %v5646 = vld [vmem:[#allocation6] sm:$0xff]
  %v5647 = vld [vmem:[#allocation6 + $0x10] sm:$0xff]
  %v5648 = vld [vmem:[#allocation6 + $0x20] sm:$0xff]
  %v5649 = vld [vmem:[#allocation6 + $0x30] sm:$0xff]
  %v5650 = vld [vmem:[#allocation6 + $0x60] sm:$0xff]
  %v5651 = vld [vmem:[#allocation6 + $0x70] sm:$0xff]
  %v5652 = vld [vmem:[#allocation6 + $0x80] sm:$0xff]
  %v5653 = vld [vmem:[#allocation6 + $0x90] sm:$0xff]
  %5654 = vst.msk [vmem:[#allocation7] sm:$0xff] %vm2052, %v5646
  %5655 = vst.msk [vmem:[#allocation7 + $0x28] sm:$0xff] %vm2052, %v5647
  %5656 = vst.msk [vmem:[#allocation7 + $0x50] sm:$0xff] %vm2052, %v5648
  %5657 = vst.msk [vmem:[#allocation7 + $0x78] sm:$0xff] %vm2052, %v5649
  %5658 = vst.msk [vmem:[#allocation7 + $0xa0] sm:$0xff] %vm2052, %v5650
  %5659 = vst.msk [vmem:[#allocation7 + $0xc8] sm:$0xff] %vm2052, %v5651
  %5660 = vst.msk [vmem:[#allocation7 + $0xf0] sm:$0xff] %vm2052, %v5652
  %5661 = vst.msk [vmem:[#allocation7 + $0x118] sm:$0xff] %vm2052, %v5653
  %v5662 = vld [vmem:[#allocation6 + $0x1] sm:$0xff]
  %v5663 = vld [vmem:[#allocation6 + $0x11] sm:$0xff]
  %v5664 = vld [vmem:[#allocation6 + $0x21] sm:$0xff]
  %v5665 = vld [vmem:[#allocation6 + $0x31] sm:$0xff]
  %v5666 = vld [vmem:[#allocation6 + $0x61] sm:$0xff]
  %v5667 = vld [vmem:[#allocation6 + $0x71] sm:$0xff]
  %v5668 = vld [vmem:[#allocation6 + $0x81] sm:$0xff]
  %v5669 = vld [vmem:[#allocation6 + $0x91] sm:$0xff]
  %5678 = vrot.lane.b32.xlu0 %v5662, 64
  %v5679 = vpop.permute.xlu0 %5678
  %5680 = vrot.lane.b32.xlu0 %v5663, 64
  %v5681 = vpop.permute.xlu0 %5680
  %5682 = vrot.lane.b32.xlu0 %v5664, 64
  %v5683 = vpop.permute.xlu0 %5682
  %5684 = vrot.lane.b32.xlu0 %v5665, 64
  %v5685 = vpop.permute.xlu0 %5684
  %5686 = vrot.lane.b32.xlu0 %v5666, 64
  %v5687 = vpop.permute.xlu0 %5686
  %5688 = vrot.lane.b32.xlu0 %v5667, 64
  %v5689 = vpop.permute.xlu0 %5688
  %5690 = vrot.lane.b32.xlu0 %v5668, 64
  %v5691 = vpop.permute.xlu0 %5690
  %5692 = vrot.lane.b32.xlu0 %v5669, 64
  %v5693 = vpop.permute.xlu0 %5692
  %5702 = vst.msk [vmem:[#allocation7] sm:$0xff] %vm2371, %v5679
  %5703 = vst.msk [vmem:[#allocation7 + $0x28] sm:$0xff] %vm2371, %v5681
  %5704 = vst.msk [vmem:[#allocation7 + $0x50] sm:$0xff] %vm2371, %v5683
  %5705 = vst.msk [vmem:[#allocation7 + $0x78] sm:$0xff] %vm2371, %v5685
  %5706 = vst.msk [vmem:[#allocation7 + $0xa0] sm:$0xff] %vm2371, %v5687
  %5707 = vst.msk [vmem:[#allocation7 + $0xc8] sm:$0xff] %vm2371, %v5689
  %5708 = vst.msk [vmem:[#allocation7 + $0xf0] sm:$0xff] %vm2371, %v5691
  %5709 = vst.msk [vmem:[#allocation7 + $0x118] sm:$0xff] %vm2371, %v5693
  %v5710 = vld [vmem:[#allocation6 + $0x2] sm:$0xff]
  %v5711 = vld [vmem:[#allocation6 + $0x12] sm:$0xff]
  %v5712 = vld [vmem:[#allocation6 + $0x22] sm:$0xff]
  %v5713 = vld [vmem:[#allocation6 + $0x32] sm:$0xff]
  %v5714 = vld [vmem:[#allocation6 + $0x62] sm:$0xff]
  %v5715 = vld [vmem:[#allocation6 + $0x72] sm:$0xff]
  %v5716 = vld [vmem:[#allocation6 + $0x82] sm:$0xff]
  %v5717 = vld [vmem:[#allocation6 + $0x92] sm:$0xff]
  %5718 = vst.msk [vmem:[#allocation7 + $0x8] sm:$0xff] %vm2052, %v5710
  %5719 = vst.msk [vmem:[#allocation7 + $0x30] sm:$0xff] %vm2052, %v5711
  %5720 = vst.msk [vmem:[#allocation7 + $0x58] sm:$0xff] %vm2052, %v5712
  %5721 = vst.msk [vmem:[#allocation7 + $0x80] sm:$0xff] %vm2052, %v5713
  %5722 = vst.msk [vmem:[#allocation7 + $0xa8] sm:$0xff] %vm2052, %v5714
  %5723 = vst.msk [vmem:[#allocation7 + $0xd0] sm:$0xff] %vm2052, %v5715
  %5724 = vst.msk [vmem:[#allocation7 + $0xf8] sm:$0xff] %vm2052, %v5716
  %5725 = vst.msk [vmem:[#allocation7 + $0x120] sm:$0xff] %vm2052, %v5717
  %v5726 = vld [vmem:[%s5637] sm:$0xff]
  %v5727 = vld [vmem:[%s5637 + $0x10] sm:$0xff]
  %v5728 = vld [vmem:[%s5637 + $0x20] sm:$0xff]
  %v5729 = vld [vmem:[%s5637 + $0x30] sm:$0xff]
  %v5730 = vld [vmem:[%s5637 + $0x60] sm:$0xff]
  %v5731 = vld [vmem:[%s5637 + $0x70] sm:$0xff]
  %v5732 = vld [vmem:[%s5637 + $0x80] sm:$0xff]
  %v5733 = vld [vmem:[%s5637 + $0x90] sm:$0xff]
  %5742 = vrot.lane.b32.xlu0 %v5726, 64
  %v5743 = vpop.permute.xlu0 %5742
  %5744 = vrot.lane.b32.xlu0 %v5727, 64
  %v5745 = vpop.permute.xlu0 %5744
  %5746 = vrot.lane.b32.xlu0 %v5728, 64
  %v5747 = vpop.permute.xlu0 %5746
  %5748 = vrot.lane.b32.xlu0 %v5729, 64
  %v5749 = vpop.permute.xlu0 %5748
  %5750 = vrot.lane.b32.xlu0 %v5730, 64
  %v5751 = vpop.permute.xlu0 %5750
  %5752 = vrot.lane.b32.xlu0 %v5731, 64
  %v5753 = vpop.permute.xlu0 %5752
  %5754 = vrot.lane.b32.xlu0 %v5732, 64
  %v5755 = vpop.permute.xlu0 %5754
  %5756 = vrot.lane.b32.xlu0 %v5733, 64
  %v5757 = vpop.permute.xlu0 %5756
  %5766 = vst.msk [vmem:[#allocation7 + $0x8] sm:$0xff] %vm2371, %v5743
  %5767 = vst.msk [vmem:[#allocation7 + $0x30] sm:$0xff] %vm2371, %v5745
  %5768 = vst.msk [vmem:[#allocation7 + $0x58] sm:$0xff] %vm2371, %v5747
  %5769 = vst.msk [vmem:[#allocation7 + $0x80] sm:$0xff] %vm2371, %v5749
  %5770 = vst.msk [vmem:[#allocation7 + $0xa8] sm:$0xff] %vm2371, %v5751
  %5771 = vst.msk [vmem:[#allocation7 + $0xd0] sm:$0xff] %vm2371, %v5753
  %5772 = vst.msk [vmem:[#allocation7 + $0xf8] sm:$0xff] %vm2371, %v5755
  %5773 = vst.msk [vmem:[#allocation7 + $0x120] sm:$0xff] %vm2371, %v5757
  %v5774 = vld [vmem:[%s5637 + $0x1] sm:$0xff]
  %v5775 = vld [vmem:[%s5637 + $0x11] sm:$0xff]
  %v5776 = vld [vmem:[%s5637 + $0x21] sm:$0xff]
  %v5777 = vld [vmem:[%s5637 + $0x31] sm:$0xff]
  %v5778 = vld [vmem:[%s5637 + $0x61] sm:$0xff]
  %v5779 = vld [vmem:[%s5637 + $0x71] sm:$0xff]
  %v5780 = vld [vmem:[%s5637 + $0x81] sm:$0xff]
  %v5781 = vld [vmem:[%s5637 + $0x91] sm:$0xff]
  %5782 = vst.msk [vmem:[#allocation7 + $0x10] sm:$0xff] %vm2052, %v5774
  %5783 = vst.msk [vmem:[#allocation7 + $0x38] sm:$0xff] %vm2052, %v5775
  %5784 = vst.msk [vmem:[#allocation7 + $0x60] sm:$0xff] %vm2052, %v5776
  %5785 = vst.msk [vmem:[#allocation7 + $0x88] sm:$0xff] %vm2052, %v5777
  %5786 = vst.msk [vmem:[#allocation7 + $0xb0] sm:$0xff] %vm2052, %v5778
  %5787 = vst.msk [vmem:[#allocation7 + $0xd8] sm:$0xff] %vm2052, %v5779
  %5788 = vst.msk [vmem:[#allocation7 + $0x100] sm:$0xff] %vm2052, %v5780
  %5789 = vst.msk [vmem:[#allocation7 + $0x128] sm:$0xff] %vm2052, %v5781
  %v5790 = vld [vmem:[%s5637 + $0x2] sm:$0xff]
  %v5791 = vld [vmem:[%s5637 + $0x12] sm:$0xff]
  %v5792 = vld [vmem:[%s5637 + $0x22] sm:$0xff]
  %v5793 = vld [vmem:[%s5637 + $0x32] sm:$0xff]
  %v5794 = vld [vmem:[%s5637 + $0x62] sm:$0xff]
  %v5795 = vld [vmem:[%s5637 + $0x72] sm:$0xff]
  %v5796 = vld [vmem:[%s5637 + $0x82] sm:$0xff]
  %v5797 = vld [vmem:[%s5637 + $0x92] sm:$0xff]
  %5806 = vrot.lane.b32.xlu0 %v5790, 64
  %v5807 = vpop.permute.xlu0 %5806
  %5808 = vrot.lane.b32.xlu0 %v5791, 64
  %v5809 = vpop.permute.xlu0 %5808
  %5810 = vrot.lane.b32.xlu0 %v5792, 64
  %v5811 = vpop.permute.xlu0 %5810
  %5812 = vrot.lane.b32.xlu0 %v5793, 64
  %v5813 = vpop.permute.xlu0 %5812
  %5814 = vrot.lane.b32.xlu0 %v5794, 64
  %v5815 = vpop.permute.xlu0 %5814
  %5816 = vrot.lane.b32.xlu0 %v5795, 64
  %v5817 = vpop.permute.xlu0 %5816
  %5818 = vrot.lane.b32.xlu0 %v5796, 64
  %v5819 = vpop.permute.xlu0 %5818
  %5820 = vrot.lane.b32.xlu0 %v5797, 64
  %v5821 = vpop.permute.xlu0 %5820
  %5830 = vst.msk [vmem:[#allocation7 + $0x10] sm:$0xff] %vm2371, %v5807
  %5831 = vst.msk [vmem:[#allocation7 + $0x38] sm:$0xff] %vm2371, %v5809
  %5832 = vst.msk [vmem:[#allocation7 + $0x60] sm:$0xff] %vm2371, %v5811
  %5833 = vst.msk [vmem:[#allocation7 + $0x88] sm:$0xff] %vm2371, %v5813
  %5834 = vst.msk [vmem:[#allocation7 + $0xb0] sm:$0xff] %vm2371, %v5815
  %5835 = vst.msk [vmem:[#allocation7 + $0xd8] sm:$0xff] %vm2371, %v5817
  %5836 = vst.msk [vmem:[#allocation7 + $0x100] sm:$0xff] %vm2371, %v5819
  %5837 = vst.msk [vmem:[#allocation7 + $0x128] sm:$0xff] %vm2371, %v5821
  %s5838 = scalar_lea.vmem [#allocation6], 32
  %v5839 = vld [vmem:[%s5838] sm:$0xff]
  %v5840 = vld [vmem:[%s5838 + $0x10] sm:$0xff]
  %v5841 = vld [vmem:[%s5838 + $0x20] sm:$0xff]
  %v5842 = vld [vmem:[%s5838 + $0x30] sm:$0xff]
  %v5843 = vld [vmem:[%s5838 + $0x60] sm:$0xff]
  %v5844 = vld [vmem:[%s5838 + $0x70] sm:$0xff]
  %v5845 = vld [vmem:[%s5838 + $0x80] sm:$0xff]
  %v5846 = vld [vmem:[%s5838 + $0x90] sm:$0xff]
  %5847 = vst.msk [vmem:[#allocation7 + $0x18] sm:$0xff] %vm2052, %v5839
  %5848 = vst.msk [vmem:[#allocation7 + $0x40] sm:$0xff] %vm2052, %v5840
  %5849 = vst.msk [vmem:[#allocation7 + $0x68] sm:$0xff] %vm2052, %v5841
  %5850 = vst.msk [vmem:[#allocation7 + $0x90] sm:$0xff] %vm2052, %v5842
  %5851 = vst.msk [vmem:[#allocation7 + $0xb8] sm:$0xff] %vm2052, %v5843
  %5852 = vst.msk [vmem:[#allocation7 + $0xe0] sm:$0xff] %vm2052, %v5844
  %5853 = vst.msk [vmem:[#allocation7 + $0x108] sm:$0xff] %vm2052, %v5845
  %5854 = vst.msk [vmem:[#allocation7 + $0x130] sm:$0xff] %vm2052, %v5846
  %v5855 = vld [vmem:[%s5838 + $0x1] sm:$0xff]
  %v5856 = vld [vmem:[%s5838 + $0x11] sm:$0xff]
  %v5857 = vld [vmem:[%s5838 + $0x21] sm:$0xff]
  %v5858 = vld [vmem:[%s5838 + $0x31] sm:$0xff]
  %v5859 = vld [vmem:[%s5838 + $0x61] sm:$0xff]
  %v5860 = vld [vmem:[%s5838 + $0x71] sm:$0xff]
  %v5861 = vld [vmem:[%s5838 + $0x81] sm:$0xff]
  %v5862 = vld [vmem:[%s5838 + $0x91] sm:$0xff]
  %5871 = vrot.lane.b32.xlu0 %v5855, 64
  %v5872 = vpop.permute.xlu0 %5871
  %5873 = vrot.lane.b32.xlu0 %v5856, 64
  %v5874 = vpop.permute.xlu0 %5873
  %5875 = vrot.lane.b32.xlu0 %v5857, 64
  %v5876 = vpop.permute.xlu0 %5875
  %5877 = vrot.lane.b32.xlu0 %v5858, 64
  %v5878 = vpop.permute.xlu0 %5877
  %5879 = vrot.lane.b32.xlu0 %v5859, 64
  %v5880 = vpop.permute.xlu0 %5879
  %5881 = vrot.lane.b32.xlu0 %v5860, 64
  %v5882 = vpop.permute.xlu0 %5881
  %5883 = vrot.lane.b32.xlu0 %v5861, 64
  %v5884 = vpop.permute.xlu0 %5883
  %5885 = vrot.lane.b32.xlu0 %v5862, 64
  %v5886 = vpop.permute.xlu0 %5885
  %5895 = vst.msk [vmem:[#allocation7 + $0x18] sm:$0xff] %vm2371, %v5872
  %5896 = vst.msk [vmem:[#allocation7 + $0x40] sm:$0xff] %vm2371, %v5874
  %5897 = vst.msk [vmem:[#allocation7 + $0x68] sm:$0xff] %vm2371, %v5876
  %5898 = vst.msk [vmem:[#allocation7 + $0x90] sm:$0xff] %vm2371, %v5878
  %5899 = vst.msk [vmem:[#allocation7 + $0xb8] sm:$0xff] %vm2371, %v5880
  %5900 = vst.msk [vmem:[#allocation7 + $0xe0] sm:$0xff] %vm2371, %v5882
  %5901 = vst.msk [vmem:[#allocation7 + $0x108] sm:$0xff] %vm2371, %v5884
  %5902 = vst.msk [vmem:[#allocation7 + $0x130] sm:$0xff] %vm2371, %v5886
  %v5903 = vld [vmem:[%s5838 + $0x2] sm:$0xff]
  %v5904 = vld [vmem:[%s5838 + $0x12] sm:$0xff]
  %v5905 = vld [vmem:[%s5838 + $0x22] sm:$0xff]
  %v5906 = vld [vmem:[%s5838 + $0x32] sm:$0xff]
  %v5907 = vld [vmem:[%s5838 + $0x62] sm:$0xff]
  %v5908 = vld [vmem:[%s5838 + $0x72] sm:$0xff]
  %v5909 = vld [vmem:[%s5838 + $0x82] sm:$0xff]
  %v5910 = vld [vmem:[%s5838 + $0x92] sm:$0xff]
  %5911 = vst.msk [vmem:[#allocation7 + $0x20] sm:$0xff] %vm2052, %v5903
  %5912 = vst.msk [vmem:[#allocation7 + $0x48] sm:$0xff] %vm2052, %v5904
  %5913 = vst.msk [vmem:[#allocation7 + $0x70] sm:$0xff] %vm2052, %v5905
  %5914 = vst.msk [vmem:[#allocation7 + $0x98] sm:$0xff] %vm2052, %v5906
  %5915 = vst.msk [vmem:[#allocation7 + $0xc0] sm:$0xff] %vm2052, %v5907
  %5916 = vst.msk [vmem:[#allocation7 + $0xe8] sm:$0xff] %vm2052, %v5908
  %5917 = vst.msk [vmem:[#allocation7 + $0x110] sm:$0xff] %vm2052, %v5909
  %5918 = vst.msk [vmem:[#allocation7 + $0x138] sm:$0xff] %vm2052, %v5910
  %v5919 = vld [vmem:[#allocation7] sm:$0xff]
  %v5920 = vld [vmem:[#allocation7 + $0x8] sm:$0xff]
  %v5921 = vld [vmem:[#allocation7 + $0x10] sm:$0xff]
  %v5922 = vld [vmem:[#allocation7 + $0x18] sm:$0xff]
  %v5923 = vld [vmem:[#allocation7 + $0x20] sm:$0xff]
  %v5924 = vld [vmem:[#allocation7 + $0x28] sm:$0xff]
  %v5925 = vld [vmem:[#allocation7 + $0x30] sm:$0xff]
  %v5926 = vld [vmem:[#allocation7 + $0x38] sm:$0xff]
  %v5927 = vld [vmem:[#allocation7 + $0x40] sm:$0xff]
  %v5928 = vld [vmem:[#allocation7 + $0x48] sm:$0xff]
  %v5929 = vld [vmem:[#allocation7 + $0x50] sm:$0xff]
  %v5930 = vld [vmem:[#allocation7 + $0x58] sm:$0xff]
  %v5931 = vld [vmem:[#allocation7 + $0x60] sm:$0xff]
  %v5932 = vld [vmem:[#allocation7 + $0x68] sm:$0xff]
  %v5933 = vld [vmem:[#allocation7 + $0x70] sm:$0xff]
  %v5934 = vld [vmem:[#allocation7 + $0x78] sm:$0xff]
  %v5935 = vld [vmem:[#allocation7 + $0x80] sm:$0xff]
  %v5936 = vld [vmem:[#allocation7 + $0x88] sm:$0xff]
  %v5937 = vld [vmem:[#allocation7 + $0x90] sm:$0xff]
  %v5938 = vld [vmem:[#allocation7 + $0x98] sm:$0xff]
  %v5939 = vld [vmem:[#allocation7 + $0xa0] sm:$0xff]
  %v5940 = vld [vmem:[#allocation7 + $0xa8] sm:$0xff]
  %v5941 = vld [vmem:[#allocation7 + $0xb0] sm:$0xff]
  %v5942 = vld [vmem:[#allocation7 + $0xb8] sm:$0xff]
  %v5943 = vld [vmem:[#allocation7 + $0xc0] sm:$0xff]
  %v5944 = vld [vmem:[#allocation7 + $0xc8] sm:$0xff]
  %v5945 = vld [vmem:[#allocation7 + $0xd0] sm:$0xff]
  %v5946 = vld [vmem:[#allocation7 + $0xd8] sm:$0xff]
  %v5947 = vld [vmem:[#allocation7 + $0xe0] sm:$0xff]
  %v5948 = vld [vmem:[#allocation7 + $0xe8] sm:$0xff]
  %v5949 = vld [vmem:[#allocation7 + $0xf0] sm:$0xff]
  %v5950 = vld [vmem:[#allocation7 + $0xf8] sm:$0xff]
  %v5951 = vld [vmem:[#allocation7 + $0x100] sm:$0xff]
  %v5952 = vld [vmem:[#allocation7 + $0x108] sm:$0xff]
  %v5953 = vld [vmem:[#allocation7 + $0x110] sm:$0xff]
  %v5954 = vld [vmem:[#allocation7 + $0x118] sm:$0xff]
  %v5955 = vld [vmem:[#allocation7 + $0x120] sm:$0xff]
  %v5956 = vld [vmem:[#allocation7 + $0x128] sm:$0xff]
  %v5957 = vld [vmem:[#allocation7 + $0x130] sm:$0xff]
  %v5958 = vld [vmem:[#allocation7 + $0x138] sm:$0xff]
  %v5959 = vld [vmem:[%s5] sm:$0xff]
  %v5960 = vld [vmem:[%s5 + $0x8] sm:$0xff]
  %v5961 = vld [vmem:[%s5 + $0x10] sm:$0xff]
  %v5962 = vld [vmem:[%s5 + $0x18] sm:$0xff]
  %v5963 = vld [vmem:[%s5 + $0x20] sm:$0xff]
  %v5964 = vld [vmem:[%s5 + $0x28] sm:$0xff]
  %v5965 = vld [vmem:[%s5 + $0x30] sm:$0xff]
  %v5966 = vld [vmem:[%s5 + $0x38] sm:$0xff]
  %v5967 = vld [vmem:[%s5 + $0x40] sm:$0xff]
  %v5968 = vld [vmem:[%s5 + $0x48] sm:$0xff]
  %v5969 = vld [vmem:[%s5 + $0x50] sm:$0xff]
  %v5970 = vld [vmem:[%s5 + $0x58] sm:$0xff]
  %v5971 = vld [vmem:[%s5 + $0x60] sm:$0xff]
  %v5972 = vld [vmem:[%s5 + $0x68] sm:$0xff]
  %v5973 = vld [vmem:[%s5 + $0x70] sm:$0xff]
  %v5974 = vld [vmem:[%s5 + $0x78] sm:$0xff]
  %v5975 = vld [vmem:[%s5 + $0x80] sm:$0xff]
  %v5976 = vld [vmem:[%s5 + $0x88] sm:$0xff]
  %v5977 = vld [vmem:[%s5 + $0x90] sm:$0xff]
  %v5978 = vld [vmem:[%s5 + $0x98] sm:$0xff]
  %v5979 = vld [vmem:[%s5 + $0xa0] sm:$0xff]
  %v5980 = vld [vmem:[%s5 + $0xa8] sm:$0xff]
  %v5981 = vld [vmem:[%s5 + $0xb0] sm:$0xff]
  %v5982 = vld [vmem:[%s5 + $0xb8] sm:$0xff]
  %v5983 = vld [vmem:[%s5 + $0xc0] sm:$0xff]
  %v5984 = vld [vmem:[%s5 + $0xc8] sm:$0xff]
  %v5985 = vld [vmem:[%s5 + $0xd0] sm:$0xff]
  %v5986 = vld [vmem:[%s5 + $0xd8] sm:$0xff]
  %v5987 = vld [vmem:[%s5 + $0xe0] sm:$0xff]
  %v5988 = vld [vmem:[%s5 + $0xe8] sm:$0xff]
  %v5989 = vld [vmem:[%s5 + $0xf0] sm:$0xff]
  %v5990 = vld [vmem:[%s5 + $0xf8] sm:$0xff]
  %v5991 = vld [vmem:[%s5 + $0x100] sm:$0xff]
  %v5992 = vld [vmem:[%s5 + $0x108] sm:$0xff]
  %v5993 = vld [vmem:[%s5 + $0x110] sm:$0xff]
  %v5994 = vld [vmem:[%s5 + $0x118] sm:$0xff]
  %v5995 = vld [vmem:[%s5 + $0x120] sm:$0xff]
  %v5996 = vld [vmem:[%s5 + $0x128] sm:$0xff]
  %v5997 = vld [vmem:[%s5 + $0x130] sm:$0xff]
  %v5998 = vld [vmem:[%s5 + $0x138] sm:$0xff]
  %v5999 = vld [vmem:[%s5 + $0x140] sm:$0xff]
  %v6000 = vld [vmem:[%s5 + $0x148] sm:$0xff]
  %v6001 = vld [vmem:[%s5 + $0x150] sm:$0xff]
  %v6002 = vld [vmem:[%s5 + $0x158] sm:$0xff]
  %v6003 = vld [vmem:[%s5 + $0x160] sm:$0xff]
  %v6004 = vld [vmem:[%s5 + $0x168] sm:$0xff]
  %v6005 = vld [vmem:[%s5 + $0x170] sm:$0xff]
  %v6006 = vld [vmem:[%s5 + $0x178] sm:$0xff]
  %v6007 = vld [vmem:[%s5 + $0x180] sm:$0xff]
  %v6008 = vld [vmem:[%s5 + $0x188] sm:$0xff]
  %v6009 = vld [vmem:[%s5 + $0x190] sm:$0xff]
  %v6010 = vld [vmem:[%s5 + $0x198] sm:$0xff]
  %v6011 = vld [vmem:[%s5 + $0x1a0] sm:$0xff]
  %v6012 = vld [vmem:[%s5 + $0x1a8] sm:$0xff]
  %v6013 = vld [vmem:[%s5 + $0x1b0] sm:$0xff]
  %v6014 = vld [vmem:[%s5 + $0x1b8] sm:$0xff]
  %v6015 = vld [vmem:[%s5 + $0x1c0] sm:$0xff]
  %v6016 = vld [vmem:[%s5 + $0x1c8] sm:$0xff]
  %v6017 = vld [vmem:[%s5 + $0x1d0] sm:$0xff]
  %v6018 = vld [vmem:[%s5 + $0x1d8] sm:$0xff]
  %v6019 = vld [vmem:[%s5 + $0x1e0] sm:$0xff]
  %v6020 = vld [vmem:[%s5 + $0x1e8] sm:$0xff]
  %v6021 = vld [vmem:[%s5 + $0x1f0] sm:$0xff]
  %v6022 = vld [vmem:[%s5 + $0x1f8] sm:$0xff]
  %v6023 = vld [vmem:[%s5 + $0x200] sm:$0xff]
  %v6024 = vld [vmem:[%s5 + $0x208] sm:$0xff]
  %v6025 = vld [vmem:[%s5 + $0x210] sm:$0xff]
  %v6026 = vld [vmem:[%s5 + $0x218] sm:$0xff]
  %v6027 = vld [vmem:[%s5 + $0x220] sm:$0xff]
  %v6028 = vld [vmem:[%s5 + $0x228] sm:$0xff]
  %v6029 = vld [vmem:[%s5 + $0x230] sm:$0xff]
  %v6030 = vld [vmem:[%s5 + $0x238] sm:$0xff]
  %v6031 = vld [vmem:[%s6] sm:$0x1]
  %v6033 = vperm.slane %v6031, 0
  %v6036 = vsel %vm2052, %v5923, 0
  %v6039 = vsel %vm2052, %v5928, 0
  %v6042 = vsel %vm2052, %v5933, 0
  %v6045 = vsel %vm2052, %v5938, 0
  %v6048 = vsel %vm2052, %v5943, 0
  %v6051 = vsel %vm2052, %v5948, 0
  %v6054 = vsel %vm2052, %v5953, 0
  %v6057 = vsel %vm2052, %v5958, 0
  %6059 = vmatpush.msra.mxu0 %v5974
  %6060 = vmatpush.msra.mxu0 %v5973
  %6061 = vmatpush.msra.mxu0 %v5972
  %6062 = vmatpush.msra.mxu0 %v5971
  %6063 = vmatpush.msra.mxu0 %v5970
  %6064 = vmatpush.msra.mxu0 %v5969
  %6065 = vmatpush.msra.mxu0 %v5968
  %6066 = vmatpush.msra.mxu0 %v5967
  %6067 = vmatpush.msra.mxu0 %v5966
  %6068 = vmatpush.msra.mxu0 %v5965
  %6069 = vmatpush.msra.mxu0 %v5964
  %6070 = vmatpush.msra.mxu0 %v5963
  %6071 = vmatpush.msra.mxu0 %v5962
  %6072 = vmatpush.msra.mxu0 %v5961
  %6073 = vmatpush.msra.mxu0 %v5960
  %6074 = vmatpush.msra.mxu0 %v5959
  %6075 = vmatmul.f32.gmra.mxu0 %v5919
  %v6076 = vpop.f32.mrf.mxu0
  %v6077 = vadd.f32 %v6033, %v6076
  %6078 = vmatmul.f32.gmra.mxu0 %v5924
  %v6079 = vpop.f32.mrf.mxu0
  %v6080 = vadd.f32 %v6033, %v6079
  %6081 = vmatmul.f32.gmra.mxu0 %v5929
  %v6082 = vpop.f32.mrf.mxu0
  %v6083 = vadd.f32 %v6033, %v6082
  %6084 = vmatmul.f32.gmra.mxu0 %v5934
  %v6085 = vpop.f32.mrf.mxu0
  %v6086 = vadd.f32 %v6033, %v6085
  %6087 = vmatmul.f32.gmra.mxu0 %v5939
  %v6088 = vpop.f32.mrf.mxu0
  %v6089 = vadd.f32 %v6033, %v6088
  %6090 = vmatmul.f32.gmra.mxu0 %v5944
  %v6091 = vpop.f32.mrf.mxu0
  %v6092 = vadd.f32 %v6033, %v6091
  %6093 = vmatmul.f32.gmra.mxu0 %v5949
  %v6094 = vpop.f32.mrf.mxu0
  %v6095 = vadd.f32 %v6033, %v6094
  %6096 = vmatmul.f32.gmra.mxu0 %v5954
  %v6097 = vpop.f32.mrf.mxu0
  %v6098 = vadd.f32 %v6033, %v6097
  %6099 = vdwg.mxu0
  %6100 = vmatpush.msra.mxu0 %v5990
  %6101 = vmatpush.msra.mxu0 %v5989
  %6102 = vmatpush.msra.mxu0 %v5988
  %6103 = vmatpush.msra.mxu0 %v5987
  %6104 = vmatpush.msra.mxu0 %v5986
  %6105 = vmatpush.msra.mxu0 %v5985
  %6106 = vmatpush.msra.mxu0 %v5984
  %6107 = vmatpush.msra.mxu0 %v5983
  %6108 = vmatpush.msra.mxu0 %v5982
  %6109 = vmatpush.msra.mxu0 %v5981
  %6110 = vmatpush.msra.mxu0 %v5980
  %6111 = vmatpush.msra.mxu0 %v5979
  %6112 = vmatpush.msra.mxu0 %v5978
  %6113 = vmatpush.msra.mxu0 %v5977
  %6114 = vmatpush.msra.mxu0 %v5976
  %6115 = vmatpush.msra.mxu0 %v5975
  %6116 = vmatmul.f32.gmra.mxu0 %v5920
  %v6117 = vpop.f32.mrf.mxu0
  %v6118 = vadd.f32 %v6077, %v6117
  %6119 = vmatmul.f32.gmra.mxu0 %v5925
  %v6120 = vpop.f32.mrf.mxu0
  %v6121 = vadd.f32 %v6080, %v6120
  %6122 = vmatmul.f32.gmra.mxu0 %v5930
  %v6123 = vpop.f32.mrf.mxu0
  %v6124 = vadd.f32 %v6083, %v6123
  %6125 = vmatmul.f32.gmra.mxu0 %v5935
  %v6126 = vpop.f32.mrf.mxu0
  %v6127 = vadd.f32 %v6086, %v6126
  %6128 = vmatmul.f32.gmra.mxu0 %v5940
  %v6129 = vpop.f32.mrf.mxu0
  %v6130 = vadd.f32 %v6089, %v6129
  %6131 = vmatmul.f32.gmra.mxu0 %v5945
  %v6132 = vpop.f32.mrf.mxu0
  %v6133 = vadd.f32 %v6092, %v6132
  %6134 = vmatmul.f32.gmra.mxu0 %v5950
  %v6135 = vpop.f32.mrf.mxu0
  %v6136 = vadd.f32 %v6095, %v6135
  %6137 = vmatmul.f32.gmra.mxu0 %v5955
  %v6138 = vpop.f32.mrf.mxu0
  %v6139 = vadd.f32 %v6098, %v6138
  %6140 = vdwg.mxu0
  %6141 = vmatpush.msra.mxu0 %v6006
  %6142 = vmatpush.msra.mxu0 %v6005
  %6143 = vmatpush.msra.mxu0 %v6004
  %6144 = vmatpush.msra.mxu0 %v6003
  %6145 = vmatpush.msra.mxu0 %v6002
  %6146 = vmatpush.msra.mxu0 %v6001
  %6147 = vmatpush.msra.mxu0 %v6000
  %6148 = vmatpush.msra.mxu0 %v5999
  %6149 = vmatpush.msra.mxu0 %v5998
  %6150 = vmatpush.msra.mxu0 %v5997
  %6151 = vmatpush.msra.mxu0 %v5996
  %6152 = vmatpush.msra.mxu0 %v5995
  %6153 = vmatpush.msra.mxu0 %v5994
  %6154 = vmatpush.msra.mxu0 %v5993
  %6155 = vmatpush.msra.mxu0 %v5992
  %6156 = vmatpush.msra.mxu0 %v5991
  %6157 = vmatmul.f32.gmra.mxu0 %v5921
  %v6158 = vpop.f32.mrf.mxu0
  %v6159 = vadd.f32 %v6118, %v6158
  %6160 = vmatmul.f32.gmra.mxu0 %v5926
  %v6161 = vpop.f32.mrf.mxu0
  %v6162 = vadd.f32 %v6121, %v6161
  %6163 = vmatmul.f32.gmra.mxu0 %v5931
  %v6164 = vpop.f32.mrf.mxu0
  %v6165 = vadd.f32 %v6124, %v6164
  %6166 = vmatmul.f32.gmra.mxu0 %v5936
  %v6167 = vpop.f32.mrf.mxu0
  %v6168 = vadd.f32 %v6127, %v6167
  %6169 = vmatmul.f32.gmra.mxu0 %v5941
  %v6170 = vpop.f32.mrf.mxu0
  %v6171 = vadd.f32 %v6130, %v6170
  %6172 = vmatmul.f32.gmra.mxu0 %v5946
  %v6173 = vpop.f32.mrf.mxu0
  %v6174 = vadd.f32 %v6133, %v6173
  %6175 = vmatmul.f32.gmra.mxu0 %v5951
  %v6176 = vpop.f32.mrf.mxu0
  %v6177 = vadd.f32 %v6136, %v6176
  %6178 = vmatmul.f32.gmra.mxu0 %v5956
  %v6179 = vpop.f32.mrf.mxu0
  %v6180 = vadd.f32 %v6139, %v6179
  %6181 = vdwg.mxu0
  %6182 = vmatpush.msra.mxu0 %v6022
  %6183 = vmatpush.msra.mxu0 %v6021
  %6184 = vmatpush.msra.mxu0 %v6020
  %6185 = vmatpush.msra.mxu0 %v6019
  %6186 = vmatpush.msra.mxu0 %v6018
  %6187 = vmatpush.msra.mxu0 %v6017
  %6188 = vmatpush.msra.mxu0 %v6016
  %6189 = vmatpush.msra.mxu0 %v6015
  %6190 = vmatpush.msra.mxu0 %v6014
  %6191 = vmatpush.msra.mxu0 %v6013
  %6192 = vmatpush.msra.mxu0 %v6012
  %6193 = vmatpush.msra.mxu0 %v6011
  %6194 = vmatpush.msra.mxu0 %v6010
  %6195 = vmatpush.msra.mxu0 %v6009
  %6196 = vmatpush.msra.mxu0 %v6008
  %6197 = vmatpush.msra.mxu0 %v6007
  %6198 = vmatmul.f32.gmra.mxu0 %v5922
  %v6199 = vpop.f32.mrf.mxu0
  %v6200 = vadd.f32 %v6159, %v6199
  %6201 = vmatmul.f32.gmra.mxu0 %v5927
  %v6202 = vpop.f32.mrf.mxu0
  %v6203 = vadd.f32 %v6162, %v6202
  %6204 = vmatmul.f32.gmra.mxu0 %v5932
  %v6205 = vpop.f32.mrf.mxu0
  %v6206 = vadd.f32 %v6165, %v6205
  %6207 = vmatmul.f32.gmra.mxu0 %v5937
  %v6208 = vpop.f32.mrf.mxu0
  %v6209 = vadd.f32 %v6168, %v6208
  %6210 = vmatmul.f32.gmra.mxu0 %v5942
  %v6211 = vpop.f32.mrf.mxu0
  %v6212 = vadd.f32 %v6171, %v6211
  %6213 = vmatmul.f32.gmra.mxu0 %v5947
  %v6214 = vpop.f32.mrf.mxu0
  %v6215 = vadd.f32 %v6174, %v6214
  %6216 = vmatmul.f32.gmra.mxu0 %v5952
  %v6217 = vpop.f32.mrf.mxu0
  %v6218 = vadd.f32 %v6177, %v6217
  %6219 = vmatmul.f32.gmra.mxu0 %v5957
  %v6220 = vpop.f32.mrf.mxu0
  %v6221 = vadd.f32 %v6180, %v6220
  %6222 = vdwg.mxu0
  %6223 = vmatpush.msra.mxu0 0.0
  %6224 = vmatpush.msra.mxu0 0.0
  %6225 = vmatpush.msra.mxu0 0.0
  %6226 = vmatpush.msra.mxu0 0.0
  %6227 = vmatpush.msra.mxu0 0.0
  %6228 = vmatpush.msra.mxu0 0.0
  %6229 = vmatpush.msra.mxu0 0.0
  %6230 = vmatpush.msra.mxu0 0.0
  %6231 = vmatpush.msra.mxu0 %v6030
  %6232 = vmatpush.msra.mxu0 %v6029
  %6233 = vmatpush.msra.mxu0 %v6028
  %6234 = vmatpush.msra.mxu0 %v6027
  %6235 = vmatpush.msra.mxu0 %v6026
  %6236 = vmatpush.msra.mxu0 %v6025
  %6237 = vmatpush.msra.mxu0 %v6024
  %6238 = vmatpush.msra.mxu0 %v6023
  %6239 = vmatmul.f32.gmra.mxu0 %v6036
  %v6240 = vpop.f32.mrf.mxu0
  %v6241 = vadd.f32 %v6200, %v6240
  %6242 = vmatmul.f32.gmra.mxu0 %v6039
  %v6243 = vpop.f32.mrf.mxu0
  %v6244 = vadd.f32 %v6203, %v6243
  %6245 = vmatmul.f32.gmra.mxu0 %v6042
  %v6246 = vpop.f32.mrf.mxu0
  %v6247 = vadd.f32 %v6206, %v6246
  %6248 = vmatmul.f32.gmra.mxu0 %v6045
  %v6249 = vpop.f32.mrf.mxu0
  %v6250 = vadd.f32 %v6209, %v6249
  %6251 = vmatmul.f32.gmra.mxu0 %v6048
  %v6252 = vpop.f32.mrf.mxu0
  %v6253 = vadd.f32 %v6212, %v6252
  %6254 = vmatmul.f32.gmra.mxu0 %v6051
  %v6255 = vpop.f32.mrf.mxu0
  %v6256 = vadd.f32 %v6215, %v6255
  %6257 = vmatmul.f32.gmra.mxu0 %v6054
  %v6258 = vpop.f32.mrf.mxu0
  %v6259 = vadd.f32 %v6218, %v6258
  %6260 = vmatmul.f32.gmra.mxu0 %v6057
  %v6261 = vpop.f32.mrf.mxu0
  %v6262 = vadd.f32 %v6221, %v6261
  %6263 = vdwg.mxu0
  %v6264 = vmax.f32 %v6241, 0.0
  %v6265 = vmax.f32 %v6244, 0.0
  %v6266 = vmax.f32 %v6247, 0.0
  %v6267 = vmax.f32 %v6250, 0.0
  %v6268 = vmax.f32 %v6253, 0.0
  %v6269 = vmax.f32 %v6256, 0.0
  %v6270 = vmax.f32 %v6259, 0.0
  %v6271 = vmax.f32 %v6262, 0.0
  %6272 = vst [vmem:[#allocation8] sm:$0xff] 0.0
  %6273 = vst [vmem:[#allocation8 + $0x8] sm:$0x3] 0.0
  %6274 = vst [vmem:[#allocation8 + $0x10] sm:$0xff] 0.0
  %6275 = vst [vmem:[#allocation8 + $0x18] sm:$0x3] 0.0
  %6276 = vst [vmem:[#allocation8 + $0x20] sm:$0xff] 0.0
  %6277 = vst [vmem:[#allocation8 + $0x28] sm:$0x3] 0.0
  %6278 = vst [vmem:[#allocation8 + $0x30] sm:$0xff] 0.0
  %6279 = vst [vmem:[#allocation8 + $0x38] sm:$0x3] 0.0
  %6280 = vst [vmem:[#allocation8 + $0x40] sm:$0xff] 0.0
  %6281 = vst [vmem:[#allocation8 + $0x48] sm:$0x3] 0.0
  %6282 = vst [vmem:[#allocation8 + $0x50] sm:$0xff] 0.0
  %6283 = vst [vmem:[#allocation8 + $0x58] sm:$0x3] 0.0
  %6284 = vst [vmem:[#allocation8 + $0x60] sm:$0xff] 0.0
  %6285 = vst [vmem:[#allocation8 + $0x68] sm:$0x3] 0.0
  %6286 = vst [vmem:[#allocation8 + $0x70] sm:$0xff] 0.0
  %6287 = vst [vmem:[#allocation8 + $0x78] sm:$0x3] 0.0
  %6288 = vst [vmem:[#allocation8 + $0x80] sm:$0xff] 0.0
  %6289 = vst [vmem:[#allocation8 + $0x88] sm:$0x3] 0.0
  %6290 = vst [vmem:[#allocation8 + $0x90] sm:$0xff] 0.0
  %6291 = vst [vmem:[#allocation8 + $0x98] sm:$0x3] 0.0
  %6292 = vst [vmem:[#allocation8 + $0xa0] sm:$0xff] 0.0
  %6293 = vst [vmem:[#allocation8 + $0xa8] sm:$0x3] 0.0
  %6294 = vst [vmem:[#allocation8 + $0xb0] sm:$0xff] 0.0
  %6295 = vst [vmem:[#allocation8 + $0xb8] sm:$0x3] 0.0
  %s6296 = scalar_lea.vmem [#allocation8], 16
  %6297 = vst [vmem:[%s6296 + $0x1] sm:$0xff] %v6264
  %6298 = vst [vmem:[%s6296 + $0x11] sm:$0xff] %v6265
  %6299 = vst [vmem:[%s6296 + $0x21] sm:$0xff] %v6266
  %6300 = vst [vmem:[%s6296 + $0x31] sm:$0xff] %v6267
  %6301 = vst [vmem:[%s6296 + $0x61] sm:$0xff] %v6268
  %6302 = vst [vmem:[%s6296 + $0x71] sm:$0xff] %v6269
  %6303 = vst [vmem:[%s6296 + $0x81] sm:$0xff] %v6270
  %6304 = vst [vmem:[%s6296 + $0x91] sm:$0xff] %v6271
  %v6305 = vld [vmem:[#allocation8] sm:$0xff]
  %v6306 = vld [vmem:[#allocation8 + $0x10] sm:$0xff]
  %v6307 = vld [vmem:[#allocation8 + $0x20] sm:$0xff]
  %v6308 = vld [vmem:[#allocation8 + $0x30] sm:$0xff]
  %v6309 = vld [vmem:[#allocation8 + $0x60] sm:$0xff]
  %v6310 = vld [vmem:[#allocation8 + $0x70] sm:$0xff]
  %v6311 = vld [vmem:[#allocation8 + $0x80] sm:$0xff]
  %v6312 = vld [vmem:[#allocation8 + $0x90] sm:$0xff]
  %6313 = vst [vmem:[#allocation9] sm:$0xff] %v6305
  %6314 = vst [vmem:[#allocation9 + $0x48] sm:$0xff] %v6306
  %6315 = vst [vmem:[#allocation9 + $0x90] sm:$0xff] %v6307
  %6316 = vst [vmem:[#allocation9 + $0xd8] sm:$0xff] %v6308
  %6317 = vst [vmem:[#allocation9 + $0x120] sm:$0xff] %v6309
  %6318 = vst [vmem:[#allocation9 + $0x168] sm:$0xff] %v6310
  %6319 = vst [vmem:[#allocation9 + $0x1b0] sm:$0xff] %v6311
  %6320 = vst [vmem:[#allocation9 + $0x1f8] sm:$0xff] %v6312
  %v6321 = vld [vmem:[#allocation8 + $0x1] sm:$0xff]
  %v6322 = vld [vmem:[#allocation8 + $0x11] sm:$0xff]
  %v6323 = vld [vmem:[#allocation8 + $0x21] sm:$0xff]
  %v6324 = vld [vmem:[#allocation8 + $0x31] sm:$0xff]
  %v6325 = vld [vmem:[#allocation8 + $0x61] sm:$0xff]
  %v6326 = vld [vmem:[#allocation8 + $0x71] sm:$0xff]
  %v6327 = vld [vmem:[#allocation8 + $0x81] sm:$0xff]
  %v6328 = vld [vmem:[#allocation8 + $0x91] sm:$0xff]
  %6329 = vst [vmem:[#allocation9 + $0x8] sm:$0xff] %v6321
  %6330 = vst [vmem:[#allocation9 + $0x50] sm:$0xff] %v6322
  %6331 = vst [vmem:[#allocation9 + $0x98] sm:$0xff] %v6323
  %6332 = vst [vmem:[#allocation9 + $0xe0] sm:$0xff] %v6324
  %6333 = vst [vmem:[#allocation9 + $0x128] sm:$0xff] %v6325
  %6334 = vst [vmem:[#allocation9 + $0x170] sm:$0xff] %v6326
  %6335 = vst [vmem:[#allocation9 + $0x1b8] sm:$0xff] %v6327
  %6336 = vst [vmem:[#allocation9 + $0x200] sm:$0xff] %v6328
  %v6337 = vld [vmem:[#allocation8 + $0x2] sm:$0xff]
  %v6338 = vld [vmem:[#allocation8 + $0x12] sm:$0xff]
  %v6339 = vld [vmem:[#allocation8 + $0x22] sm:$0xff]
  %v6340 = vld [vmem:[#allocation8 + $0x32] sm:$0xff]
  %v6341 = vld [vmem:[#allocation8 + $0x62] sm:$0xff]
  %v6342 = vld [vmem:[#allocation8 + $0x72] sm:$0xff]
  %v6343 = vld [vmem:[#allocation8 + $0x82] sm:$0xff]
  %v6344 = vld [vmem:[#allocation8 + $0x92] sm:$0xff]
  %6345 = vst [vmem:[#allocation9 + $0x10] sm:$0xff] %v6337
  %6346 = vst [vmem:[#allocation9 + $0x58] sm:$0xff] %v6338
  %6347 = vst [vmem:[#allocation9 + $0xa0] sm:$0xff] %v6339
  %6348 = vst [vmem:[#allocation9 + $0xe8] sm:$0xff] %v6340
  %6349 = vst [vmem:[#allocation9 + $0x130] sm:$0xff] %v6341
  %6350 = vst [vmem:[#allocation9 + $0x178] sm:$0xff] %v6342
  %6351 = vst [vmem:[#allocation9 + $0x1c0] sm:$0xff] %v6343
  %6352 = vst [vmem:[#allocation9 + $0x208] sm:$0xff] %v6344
  %v6353 = vld [vmem:[%s6296] sm:$0xff]
  %v6354 = vld [vmem:[%s6296 + $0x10] sm:$0xff]
  %v6355 = vld [vmem:[%s6296 + $0x20] sm:$0xff]
  %v6356 = vld [vmem:[%s6296 + $0x30] sm:$0xff]
  %v6357 = vld [vmem:[%s6296 + $0x60] sm:$0xff]
  %v6358 = vld [vmem:[%s6296 + $0x70] sm:$0xff]
  %v6359 = vld [vmem:[%s6296 + $0x80] sm:$0xff]
  %v6360 = vld [vmem:[%s6296 + $0x90] sm:$0xff]
  %6361 = vst [vmem:[#allocation9 + $0x18] sm:$0xff] %v6353
  %6362 = vst [vmem:[#allocation9 + $0x60] sm:$0xff] %v6354
  %6363 = vst [vmem:[#allocation9 + $0xa8] sm:$0xff] %v6355
  %6364 = vst [vmem:[#allocation9 + $0xf0] sm:$0xff] %v6356
  %6365 = vst [vmem:[#allocation9 + $0x138] sm:$0xff] %v6357
  %6366 = vst [vmem:[#allocation9 + $0x180] sm:$0xff] %v6358
  %6367 = vst [vmem:[#allocation9 + $0x1c8] sm:$0xff] %v6359
  %6368 = vst [vmem:[#allocation9 + $0x210] sm:$0xff] %v6360
  %v6369 = vld [vmem:[%s6296 + $0x1] sm:$0xff]
  %v6370 = vld [vmem:[%s6296 + $0x11] sm:$0xff]
  %v6371 = vld [vmem:[%s6296 + $0x21] sm:$0xff]
  %v6372 = vld [vmem:[%s6296 + $0x31] sm:$0xff]
  %v6373 = vld [vmem:[%s6296 + $0x61] sm:$0xff]
  %v6374 = vld [vmem:[%s6296 + $0x71] sm:$0xff]
  %v6375 = vld [vmem:[%s6296 + $0x81] sm:$0xff]
  %v6376 = vld [vmem:[%s6296 + $0x91] sm:$0xff]
  %6377 = vst [vmem:[#allocation9 + $0x20] sm:$0xff] %v6369
  %6378 = vst [vmem:[#allocation9 + $0x68] sm:$0xff] %v6370
  %6379 = vst [vmem:[#allocation9 + $0xb0] sm:$0xff] %v6371
  %6380 = vst [vmem:[#allocation9 + $0xf8] sm:$0xff] %v6372
  %6381 = vst [vmem:[#allocation9 + $0x140] sm:$0xff] %v6373
  %6382 = vst [vmem:[#allocation9 + $0x188] sm:$0xff] %v6374
  %6383 = vst [vmem:[#allocation9 + $0x1d0] sm:$0xff] %v6375
  %6384 = vst [vmem:[#allocation9 + $0x218] sm:$0xff] %v6376
  %v6385 = vld [vmem:[%s6296 + $0x2] sm:$0xff]
  %v6386 = vld [vmem:[%s6296 + $0x12] sm:$0xff]
  %v6387 = vld [vmem:[%s6296 + $0x22] sm:$0xff]
  %v6388 = vld [vmem:[%s6296 + $0x32] sm:$0xff]
  %v6389 = vld [vmem:[%s6296 + $0x62] sm:$0xff]
  %v6390 = vld [vmem:[%s6296 + $0x72] sm:$0xff]
  %v6391 = vld [vmem:[%s6296 + $0x82] sm:$0xff]
  %v6392 = vld [vmem:[%s6296 + $0x92] sm:$0xff]
  %6393 = vst [vmem:[#allocation9 + $0x28] sm:$0xff] %v6385
  %6394 = vst [vmem:[#allocation9 + $0x70] sm:$0xff] %v6386
  %6395 = vst [vmem:[#allocation9 + $0xb8] sm:$0xff] %v6387
  %6396 = vst [vmem:[#allocation9 + $0x100] sm:$0xff] %v6388
  %6397 = vst [vmem:[#allocation9 + $0x148] sm:$0xff] %v6389
  %6398 = vst [vmem:[#allocation9 + $0x190] sm:$0xff] %v6390
  %6399 = vst [vmem:[#allocation9 + $0x1d8] sm:$0xff] %v6391
  %6400 = vst [vmem:[#allocation9 + $0x220] sm:$0xff] %v6392
  %s6401 = scalar_lea.vmem [#allocation8], 32
  %v6402 = vld [vmem:[%s6401] sm:$0xff]
  %v6403 = vld [vmem:[%s6401 + $0x10] sm:$0xff]
  %v6404 = vld [vmem:[%s6401 + $0x20] sm:$0xff]
  %v6405 = vld [vmem:[%s6401 + $0x30] sm:$0xff]
  %v6406 = vld [vmem:[%s6401 + $0x60] sm:$0xff]
  %v6407 = vld [vmem:[%s6401 + $0x70] sm:$0xff]
  %v6408 = vld [vmem:[%s6401 + $0x80] sm:$0xff]
  %v6409 = vld [vmem:[%s6401 + $0x90] sm:$0xff]
  %6410 = vst [vmem:[#allocation9 + $0x30] sm:$0xff] %v6402
  %6411 = vst [vmem:[#allocation9 + $0x78] sm:$0xff] %v6403
  %6412 = vst [vmem:[#allocation9 + $0xc0] sm:$0xff] %v6404
  %6413 = vst [vmem:[#allocation9 + $0x108] sm:$0xff] %v6405
  %6414 = vst [vmem:[#allocation9 + $0x150] sm:$0xff] %v6406
  %6415 = vst [vmem:[#allocation9 + $0x198] sm:$0xff] %v6407
  %6416 = vst [vmem:[#allocation9 + $0x1e0] sm:$0xff] %v6408
  %6417 = vst [vmem:[#allocation9 + $0x228] sm:$0xff] %v6409
  %v6418 = vld [vmem:[%s6401 + $0x1] sm:$0xff]
  %v6419 = vld [vmem:[%s6401 + $0x11] sm:$0xff]
  %v6420 = vld [vmem:[%s6401 + $0x21] sm:$0xff]
  %v6421 = vld [vmem:[%s6401 + $0x31] sm:$0xff]
  %v6422 = vld [vmem:[%s6401 + $0x61] sm:$0xff]
  %v6423 = vld [vmem:[%s6401 + $0x71] sm:$0xff]
  %v6424 = vld [vmem:[%s6401 + $0x81] sm:$0xff]
  %v6425 = vld [vmem:[%s6401 + $0x91] sm:$0xff]
  %6426 = vst [vmem:[#allocation9 + $0x38] sm:$0xff] %v6418
  %6427 = vst [vmem:[#allocation9 + $0x80] sm:$0xff] %v6419
  %6428 = vst [vmem:[#allocation9 + $0xc8] sm:$0xff] %v6420
  %6429 = vst [vmem:[#allocation9 + $0x110] sm:$0xff] %v6421
  %6430 = vst [vmem:[#allocation9 + $0x158] sm:$0xff] %v6422
  %6431 = vst [vmem:[#allocation9 + $0x1a0] sm:$0xff] %v6423
  %6432 = vst [vmem:[#allocation9 + $0x1e8] sm:$0xff] %v6424
  %6433 = vst [vmem:[#allocation9 + $0x230] sm:$0xff] %v6425
  %v6434 = vld [vmem:[%s6401 + $0x2] sm:$0xff]
  %v6435 = vld [vmem:[%s6401 + $0x12] sm:$0xff]
  %v6436 = vld [vmem:[%s6401 + $0x22] sm:$0xff]
  %v6437 = vld [vmem:[%s6401 + $0x32] sm:$0xff]
  %v6438 = vld [vmem:[%s6401 + $0x62] sm:$0xff]
  %v6439 = vld [vmem:[%s6401 + $0x72] sm:$0xff]
  %v6440 = vld [vmem:[%s6401 + $0x82] sm:$0xff]
  %v6441 = vld [vmem:[%s6401 + $0x92] sm:$0xff]
  %6442 = vst [vmem:[#allocation9 + $0x40] sm:$0xff] %v6434
  %6443 = vst [vmem:[#allocation9 + $0x88] sm:$0xff] %v6435
  %6444 = vst [vmem:[#allocation9 + $0xd0] sm:$0xff] %v6436
  %6445 = vst [vmem:[#allocation9 + $0x118] sm:$0xff] %v6437
  %6446 = vst [vmem:[#allocation9 + $0x160] sm:$0xff] %v6438
  %6447 = vst [vmem:[#allocation9 + $0x1a8] sm:$0xff] %v6439
  %6448 = vst [vmem:[#allocation9 + $0x1f0] sm:$0xff] %v6440
  %6449 = vst [vmem:[#allocation9 + $0x238] sm:$0xff] %v6441
  %v6450 = vld [vmem:[#allocation9] sm:$0xff]
  %v6451 = vld [vmem:[#allocation9 + $0x8] sm:$0xff]
  %v6452 = vld [vmem:[#allocation9 + $0x10] sm:$0xff]
  %v6453 = vld [vmem:[#allocation9 + $0x18] sm:$0xff]
  %v6454 = vld [vmem:[#allocation9 + $0x20] sm:$0xff]
  %v6455 = vld [vmem:[#allocation9 + $0x28] sm:$0xff]
  %v6456 = vld [vmem:[#allocation9 + $0x30] sm:$0xff]
  %v6457 = vld [vmem:[#allocation9 + $0x38] sm:$0xff]
  %v6458 = vld [vmem:[#allocation9 + $0x40] sm:$0xff]
  %v6459 = vld [vmem:[#allocation9 + $0x48] sm:$0xff]
  %v6460 = vld [vmem:[#allocation9 + $0x50] sm:$0xff]
  %v6461 = vld [vmem:[#allocation9 + $0x58] sm:$0xff]
  %v6462 = vld [vmem:[#allocation9 + $0x60] sm:$0xff]
  %v6463 = vld [vmem:[#allocation9 + $0x68] sm:$0xff]
  %v6464 = vld [vmem:[#allocation9 + $0x70] sm:$0xff]
  %v6465 = vld [vmem:[#allocation9 + $0x78] sm:$0xff]
  %v6466 = vld [vmem:[#allocation9 + $0x80] sm:$0xff]
  %v6467 = vld [vmem:[#allocation9 + $0x88] sm:$0xff]
  %v6468 = vld [vmem:[#allocation9 + $0x90] sm:$0xff]
  %v6469 = vld [vmem:[#allocation9 + $0x98] sm:$0xff]
  %v6470 = vld [vmem:[#allocation9 + $0xa0] sm:$0xff]
  %v6471 = vld [vmem:[#allocation9 + $0xa8] sm:$0xff]
  %v6472 = vld [vmem:[#allocation9 + $0xb0] sm:$0xff]
  %v6473 = vld [vmem:[#allocation9 + $0xb8] sm:$0xff]
  %v6474 = vld [vmem:[#allocation9 + $0xc0] sm:$0xff]
  %v6475 = vld [vmem:[#allocation9 + $0xc8] sm:$0xff]
  %v6476 = vld [vmem:[#allocation9 + $0xd0] sm:$0xff]
  %v6477 = vld [vmem:[#allocation9 + $0xd8] sm:$0xff]
  %v6478 = vld [vmem:[#allocation9 + $0xe0] sm:$0xff]
  %v6479 = vld [vmem:[#allocation9 + $0xe8] sm:$0xff]
  %v6480 = vld [vmem:[#allocation9 + $0xf0] sm:$0xff]
  %v6481 = vld [vmem:[#allocation9 + $0xf8] sm:$0xff]
  %v6482 = vld [vmem:[#allocation9 + $0x100] sm:$0xff]
  %v6483 = vld [vmem:[#allocation9 + $0x108] sm:$0xff]
  %v6484 = vld [vmem:[#allocation9 + $0x110] sm:$0xff]
  %v6485 = vld [vmem:[#allocation9 + $0x118] sm:$0xff]
  %v6486 = vld [vmem:[#allocation9 + $0x120] sm:$0xff]
  %v6487 = vld [vmem:[#allocation9 + $0x128] sm:$0xff]
  %v6488 = vld [vmem:[#allocation9 + $0x130] sm:$0xff]
  %v6489 = vld [vmem:[#allocation9 + $0x138] sm:$0xff]
  %v6490 = vld [vmem:[#allocation9 + $0x140] sm:$0xff]
  %v6491 = vld [vmem:[#allocation9 + $0x148] sm:$0xff]
  %v6492 = vld [vmem:[#allocation9 + $0x150] sm:$0xff]
  %v6493 = vld [vmem:[#allocation9 + $0x158] sm:$0xff]
  %v6494 = vld [vmem:[#allocation9 + $0x160] sm:$0xff]
  %v6495 = vld [vmem:[#allocation9 + $0x168] sm:$0xff]
  %v6496 = vld [vmem:[#allocation9 + $0x170] sm:$0xff]
  %v6497 = vld [vmem:[#allocation9 + $0x178] sm:$0xff]
  %v6498 = vld [vmem:[#allocation9 + $0x180] sm:$0xff]
  %v6499 = vld [vmem:[#allocation9 + $0x188] sm:$0xff]
  %v6500 = vld [vmem:[#allocation9 + $0x190] sm:$0xff]
  %v6501 = vld [vmem:[#allocation9 + $0x198] sm:$0xff]
  %v6502 = vld [vmem:[#allocation9 + $0x1a0] sm:$0xff]
  %v6503 = vld [vmem:[#allocation9 + $0x1a8] sm:$0xff]
  %v6504 = vld [vmem:[#allocation9 + $0x1b0] sm:$0xff]
  %v6505 = vld [vmem:[#allocation9 + $0x1b8] sm:$0xff]
  %v6506 = vld [vmem:[#allocation9 + $0x1c0] sm:$0xff]
  %v6507 = vld [vmem:[#allocation9 + $0x1c8] sm:$0xff]
  %v6508 = vld [vmem:[#allocation9 + $0x1d0] sm:$0xff]
  %v6509 = vld [vmem:[#allocation9 + $0x1d8] sm:$0xff]
  %v6510 = vld [vmem:[#allocation9 + $0x1e0] sm:$0xff]
  %v6511 = vld [vmem:[#allocation9 + $0x1e8] sm:$0xff]
  %v6512 = vld [vmem:[#allocation9 + $0x1f0] sm:$0xff]
  %v6513 = vld [vmem:[#allocation9 + $0x1f8] sm:$0xff]
  %v6514 = vld [vmem:[#allocation9 + $0x200] sm:$0xff]
  %v6515 = vld [vmem:[#allocation9 + $0x208] sm:$0xff]
  %v6516 = vld [vmem:[#allocation9 + $0x210] sm:$0xff]
  %v6517 = vld [vmem:[#allocation9 + $0x218] sm:$0xff]
  %v6518 = vld [vmem:[#allocation9 + $0x220] sm:$0xff]
  %v6519 = vld [vmem:[#allocation9 + $0x228] sm:$0xff]
  %v6520 = vld [vmem:[#allocation9 + $0x230] sm:$0xff]
  %v6521 = vld [vmem:[#allocation9 + $0x238] sm:$0xff]
  %v6522 = vld [vmem:[%s7] sm:$0xff]
  %v6523 = vld [vmem:[%s7 + $0x8] sm:$0xff]
  %v6524 = vld [vmem:[%s7 + $0x10] sm:$0xff]
  %v6525 = vld [vmem:[%s7 + $0x18] sm:$0xff]
  %v6526 = vld [vmem:[%s7 + $0x20] sm:$0xff]
  %v6527 = vld [vmem:[%s7 + $0x28] sm:$0xff]
  %v6528 = vld [vmem:[%s7 + $0x30] sm:$0xff]
  %v6529 = vld [vmem:[%s7 + $0x38] sm:$0xff]
  %v6530 = vld [vmem:[%s7 + $0x40] sm:$0xff]
  %v6531 = vld [vmem:[%s7 + $0x48] sm:$0xff]
  %v6532 = vld [vmem:[%s7 + $0x50] sm:$0xff]
  %v6533 = vld [vmem:[%s7 + $0x58] sm:$0xff]
  %v6534 = vld [vmem:[%s7 + $0x60] sm:$0xff]
  %v6535 = vld [vmem:[%s7 + $0x68] sm:$0xff]
  %v6536 = vld [vmem:[%s7 + $0x70] sm:$0xff]
  %v6537 = vld [vmem:[%s7 + $0x78] sm:$0xff]
  %v6538 = vld [vmem:[%s7 + $0x80] sm:$0xff]
  %v6539 = vld [vmem:[%s7 + $0x88] sm:$0xff]
  %v6540 = vld [vmem:[%s7 + $0x90] sm:$0xff]
  %v6541 = vld [vmem:[%s7 + $0x98] sm:$0xff]
  %v6542 = vld [vmem:[%s7 + $0xa0] sm:$0xff]
  %v6543 = vld [vmem:[%s7 + $0xa8] sm:$0xff]
  %v6544 = vld [vmem:[%s7 + $0xb0] sm:$0xff]
  %v6545 = vld [vmem:[%s7 + $0xb8] sm:$0xff]
  %v6546 = vld [vmem:[%s7 + $0xc0] sm:$0xff]
  %v6547 = vld [vmem:[%s7 + $0xc8] sm:$0xff]
  %v6548 = vld [vmem:[%s7 + $0xd0] sm:$0xff]
  %v6549 = vld [vmem:[%s7 + $0xd8] sm:$0xff]
  %v6550 = vld [vmem:[%s7 + $0xe0] sm:$0xff]
  %v6551 = vld [vmem:[%s7 + $0xe8] sm:$0xff]
  %v6552 = vld [vmem:[%s7 + $0xf0] sm:$0xff]
  %v6553 = vld [vmem:[%s7 + $0xf8] sm:$0xff]
  %v6554 = vld [vmem:[%s7 + $0x100] sm:$0xff]
  %v6555 = vld [vmem:[%s7 + $0x108] sm:$0xff]
  %v6556 = vld [vmem:[%s7 + $0x110] sm:$0xff]
  %v6557 = vld [vmem:[%s7 + $0x118] sm:$0xff]
  %v6558 = vld [vmem:[%s7 + $0x120] sm:$0xff]
  %v6559 = vld [vmem:[%s7 + $0x128] sm:$0xff]
  %v6560 = vld [vmem:[%s7 + $0x130] sm:$0xff]
  %v6561 = vld [vmem:[%s7 + $0x138] sm:$0xff]
  %v6562 = vld [vmem:[%s7 + $0x140] sm:$0xff]
  %v6563 = vld [vmem:[%s7 + $0x148] sm:$0xff]
  %v6564 = vld [vmem:[%s7 + $0x150] sm:$0xff]
  %v6565 = vld [vmem:[%s7 + $0x158] sm:$0xff]
  %v6566 = vld [vmem:[%s7 + $0x160] sm:$0xff]
  %v6567 = vld [vmem:[%s7 + $0x168] sm:$0xff]
  %v6568 = vld [vmem:[%s7 + $0x170] sm:$0xff]
  %v6569 = vld [vmem:[%s7 + $0x178] sm:$0xff]
  %v6570 = vld [vmem:[%s7 + $0x180] sm:$0xff]
  %v6571 = vld [vmem:[%s7 + $0x188] sm:$0xff]
  %v6572 = vld [vmem:[%s7 + $0x190] sm:$0xff]
  %v6573 = vld [vmem:[%s7 + $0x198] sm:$0xff]
  %v6574 = vld [vmem:[%s7 + $0x1a0] sm:$0xff]
  %v6575 = vld [vmem:[%s7 + $0x1a8] sm:$0xff]
  %v6576 = vld [vmem:[%s7 + $0x1b0] sm:$0xff]
  %v6577 = vld [vmem:[%s7 + $0x1b8] sm:$0xff]
  %v6578 = vld [vmem:[%s7 + $0x1c0] sm:$0xff]
  %v6579 = vld [vmem:[%s7 + $0x1c8] sm:$0xff]
  %v6580 = vld [vmem:[%s7 + $0x1d0] sm:$0xff]
  %v6581 = vld [vmem:[%s7 + $0x1d8] sm:$0xff]
  %v6582 = vld [vmem:[%s7 + $0x1e0] sm:$0xff]
  %v6583 = vld [vmem:[%s7 + $0x1e8] sm:$0xff]
  %v6584 = vld [vmem:[%s7 + $0x1f0] sm:$0xff]
  %v6585 = vld [vmem:[%s7 + $0x1f8] sm:$0xff]
  %v6586 = vld [vmem:[%s7 + $0x200] sm:$0xff]
  %v6587 = vld [vmem:[%s7 + $0x208] sm:$0xff]
  %v6588 = vld [vmem:[%s7 + $0x210] sm:$0xff]
  %v6589 = vld [vmem:[%s7 + $0x218] sm:$0xff]
  %v6590 = vld [vmem:[%s7 + $0x220] sm:$0xff]
  %v6591 = vld [vmem:[%s7 + $0x228] sm:$0xff]
  %v6592 = vld [vmem:[%s7 + $0x230] sm:$0xff]
  %v6593 = vld [vmem:[%s7 + $0x238] sm:$0xff]
  %v6594 = vld [vmem:[%s7 + $0x240] sm:$0xff]
  %v6595 = vld [vmem:[%s7 + $0x248] sm:$0xff]
  %v6596 = vld [vmem:[%s7 + $0x250] sm:$0xff]
  %v6597 = vld [vmem:[%s7 + $0x258] sm:$0xff]
  %v6598 = vld [vmem:[%s7 + $0x260] sm:$0xff]
  %v6599 = vld [vmem:[%s7 + $0x268] sm:$0xff]
  %v6600 = vld [vmem:[%s7 + $0x270] sm:$0xff]
  %v6601 = vld [vmem:[%s7 + $0x278] sm:$0xff]
  %v6602 = vld [vmem:[%s7 + $0x280] sm:$0xff]
  %v6603 = vld [vmem:[%s7 + $0x288] sm:$0xff]
  %v6604 = vld [vmem:[%s7 + $0x290] sm:$0xff]
  %v6605 = vld [vmem:[%s7 + $0x298] sm:$0xff]
  %v6606 = vld [vmem:[%s7 + $0x2a0] sm:$0xff]
  %v6607 = vld [vmem:[%s7 + $0x2a8] sm:$0xff]
  %v6608 = vld [vmem:[%s7 + $0x2b0] sm:$0xff]
  %v6609 = vld [vmem:[%s7 + $0x2b8] sm:$0xff]
  %v6610 = vld [vmem:[%s7 + $0x2c0] sm:$0xff]
  %v6611 = vld [vmem:[%s7 + $0x2c8] sm:$0xff]
  %v6612 = vld [vmem:[%s7 + $0x2d0] sm:$0xff]
  %v6613 = vld [vmem:[%s7 + $0x2d8] sm:$0xff]
  %v6614 = vld [vmem:[%s7 + $0x2e0] sm:$0xff]
  %v6615 = vld [vmem:[%s7 + $0x2e8] sm:$0xff]
  %v6616 = vld [vmem:[%s7 + $0x2f0] sm:$0xff]
  %v6617 = vld [vmem:[%s7 + $0x2f8] sm:$0xff]
  %v6618 = vld [vmem:[%s7 + $0x300] sm:$0xff]
  %v6619 = vld [vmem:[%s7 + $0x308] sm:$0xff]
  %v6620 = vld [vmem:[%s7 + $0x310] sm:$0xff]
  %v6621 = vld [vmem:[%s7 + $0x318] sm:$0xff]
  %v6622 = vld [vmem:[%s7 + $0x320] sm:$0xff]
  %v6623 = vld [vmem:[%s7 + $0x328] sm:$0xff]
  %v6624 = vld [vmem:[%s7 + $0x330] sm:$0xff]
  %v6625 = vld [vmem:[%s7 + $0x338] sm:$0xff]
  %v6626 = vld [vmem:[%s7 + $0x340] sm:$0xff]
  %v6627 = vld [vmem:[%s7 + $0x348] sm:$0xff]
  %v6628 = vld [vmem:[%s7 + $0x350] sm:$0xff]
  %v6629 = vld [vmem:[%s7 + $0x358] sm:$0xff]
  %v6630 = vld [vmem:[%s7 + $0x360] sm:$0xff]
  %v6631 = vld [vmem:[%s7 + $0x368] sm:$0xff]
  %v6632 = vld [vmem:[%s7 + $0x370] sm:$0xff]
  %v6633 = vld [vmem:[%s7 + $0x378] sm:$0xff]
  %v6634 = vld [vmem:[%s7 + $0x380] sm:$0xff]
  %v6635 = vld [vmem:[%s7 + $0x388] sm:$0xff]
  %v6636 = vld [vmem:[%s7 + $0x390] sm:$0xff]
  %v6637 = vld [vmem:[%s7 + $0x398] sm:$0xff]
  %v6638 = vld [vmem:[%s7 + $0x3a0] sm:$0xff]
  %v6639 = vld [vmem:[%s7 + $0x3a8] sm:$0xff]
  %v6640 = vld [vmem:[%s7 + $0x3b0] sm:$0xff]
  %v6641 = vld [vmem:[%s7 + $0x3b8] sm:$0xff]
  %v6642 = vld [vmem:[%s7 + $0x3c0] sm:$0xff]
  %v6643 = vld [vmem:[%s7 + $0x3c8] sm:$0xff]
  %v6644 = vld [vmem:[%s7 + $0x3d0] sm:$0xff]
  %v6645 = vld [vmem:[%s7 + $0x3d8] sm:$0xff]
  %v6646 = vld [vmem:[%s7 + $0x3e0] sm:$0xff]
  %v6647 = vld [vmem:[%s7 + $0x3e8] sm:$0xff]
  %v6648 = vld [vmem:[%s7 + $0x3f0] sm:$0xff]
  %v6649 = vld [vmem:[%s7 + $0x3f8] sm:$0xff]
  %v6650 = vld [vmem:[%s7 + $0x400] sm:$0xff]
  %v6651 = vld [vmem:[%s7 + $0x408] sm:$0xff]
  %v6652 = vld [vmem:[%s7 + $0x410] sm:$0xff]
  %v6653 = vld [vmem:[%s7 + $0x418] sm:$0xff]
  %v6654 = vld [vmem:[%s7 + $0x420] sm:$0xff]
  %v6655 = vld [vmem:[%s7 + $0x428] sm:$0xff]
  %v6656 = vld [vmem:[%s7 + $0x430] sm:$0xff]
  %v6657 = vld [vmem:[%s7 + $0x438] sm:$0xff]
  %v6658 = vld [vmem:[%s7 + $0x440] sm:$0xff]
  %v6659 = vld [vmem:[%s7 + $0x448] sm:$0xff]
  %v6660 = vld [vmem:[%s7 + $0x450] sm:$0xff]
  %v6661 = vld [vmem:[%s7 + $0x458] sm:$0xff]
  %v6662 = vld [vmem:[%s7 + $0x460] sm:$0xff]
  %v6663 = vld [vmem:[%s7 + $0x468] sm:$0xff]
  %v6664 = vld [vmem:[%s7 + $0x470] sm:$0xff]
  %v6665 = vld [vmem:[%s7 + $0x478] sm:$0xff]
  %v6666 = vld [vmem:[%s8] sm:$0x1]
  %v6668 = vperm.slane %v6666, 0
  %6670 = vmatpush.msra.mxu0 %v6537
  %6671 = vmatpush.msra.mxu0 %v6536
  %6672 = vmatpush.msra.mxu0 %v6535
  %6673 = vmatpush.msra.mxu0 %v6534
  %6674 = vmatpush.msra.mxu0 %v6533
  %6675 = vmatpush.msra.mxu0 %v6532
  %6676 = vmatpush.msra.mxu0 %v6531
  %6677 = vmatpush.msra.mxu0 %v6530
  %6678 = vmatpush.msra.mxu0 %v6529
  %6679 = vmatpush.msra.mxu0 %v6528
  %6680 = vmatpush.msra.mxu0 %v6527
  %6681 = vmatpush.msra.mxu0 %v6526
  %6682 = vmatpush.msra.mxu0 %v6525
  %6683 = vmatpush.msra.mxu0 %v6524
  %6684 = vmatpush.msra.mxu0 %v6523
  %6685 = vmatpush.msra.mxu0 %v6522
  %6686 = vmatmul.f32.gmra.mxu0 %v6450
  %v6687 = vpop.f32.mrf.mxu0
  %v6688 = vadd.f32 %v6668, %v6687
  %6689 = vmatmul.f32.gmra.mxu0 %v6459
  %v6690 = vpop.f32.mrf.mxu0
  %v6691 = vadd.f32 %v6668, %v6690
  %6692 = vmatmul.f32.gmra.mxu0 %v6468
  %v6693 = vpop.f32.mrf.mxu0
  %v6694 = vadd.f32 %v6668, %v6693
  %6695 = vmatmul.f32.gmra.mxu0 %v6477
  %v6696 = vpop.f32.mrf.mxu0
  %v6697 = vadd.f32 %v6668, %v6696
  %6698 = vmatmul.f32.gmra.mxu0 %v6486
  %v6699 = vpop.f32.mrf.mxu0
  %v6700 = vadd.f32 %v6668, %v6699
  %6701 = vmatmul.f32.gmra.mxu0 %v6495
  %v6702 = vpop.f32.mrf.mxu0
  %v6703 = vadd.f32 %v6668, %v6702
  %6704 = vmatmul.f32.gmra.mxu0 %v6504
  %v6705 = vpop.f32.mrf.mxu0
  %v6706 = vadd.f32 %v6668, %v6705
  %6707 = vmatmul.f32.gmra.mxu0 %v6513
  %v6708 = vpop.f32.mrf.mxu0
  %v6709 = vadd.f32 %v6668, %v6708
  %6710 = vdwg.mxu0
  %6711 = vmatpush.msra.mxu0 %v6553
  %6712 = vmatpush.msra.mxu0 %v6552
  %6713 = vmatpush.msra.mxu0 %v6551
  %6714 = vmatpush.msra.mxu0 %v6550
  %6715 = vmatpush.msra.mxu0 %v6549
  %6716 = vmatpush.msra.mxu0 %v6548
  %6717 = vmatpush.msra.mxu0 %v6547
  %6718 = vmatpush.msra.mxu0 %v6546
  %6719 = vmatpush.msra.mxu0 %v6545
  %6720 = vmatpush.msra.mxu0 %v6544
  %6721 = vmatpush.msra.mxu0 %v6543
  %6722 = vmatpush.msra.mxu0 %v6542
  %6723 = vmatpush.msra.mxu0 %v6541
  %6724 = vmatpush.msra.mxu0 %v6540
  %6725 = vmatpush.msra.mxu0 %v6539
  %6726 = vmatpush.msra.mxu0 %v6538
  %6727 = vmatmul.f32.gmra.mxu0 %v6451
  %v6728 = vpop.f32.mrf.mxu0
  %v6729 = vadd.f32 %v6688, %v6728
  %6730 = vmatmul.f32.gmra.mxu0 %v6460
  %v6731 = vpop.f32.mrf.mxu0
  %v6732 = vadd.f32 %v6691, %v6731
  %6733 = vmatmul.f32.gmra.mxu0 %v6469
  %v6734 = vpop.f32.mrf.mxu0
  %v6735 = vadd.f32 %v6694, %v6734
  %6736 = vmatmul.f32.gmra.mxu0 %v6478
  %v6737 = vpop.f32.mrf.mxu0
  %v6738 = vadd.f32 %v6697, %v6737
  %6739 = vmatmul.f32.gmra.mxu0 %v6487
  %v6740 = vpop.f32.mrf.mxu0
  %v6741 = vadd.f32 %v6700, %v6740
  %6742 = vmatmul.f32.gmra.mxu0 %v6496
  %v6743 = vpop.f32.mrf.mxu0
  %v6744 = vadd.f32 %v6703, %v6743
  %6745 = vmatmul.f32.gmra.mxu0 %v6505
  %v6746 = vpop.f32.mrf.mxu0
  %v6747 = vadd.f32 %v6706, %v6746
  %6748 = vmatmul.f32.gmra.mxu0 %v6514
  %v6749 = vpop.f32.mrf.mxu0
  %v6750 = vadd.f32 %v6709, %v6749
  %6751 = vdwg.mxu0
  %6752 = vmatpush.msra.mxu0 %v6569
  %6753 = vmatpush.msra.mxu0 %v6568
  %6754 = vmatpush.msra.mxu0 %v6567
  %6755 = vmatpush.msra.mxu0 %v6566
  %6756 = vmatpush.msra.mxu0 %v6565
  %6757 = vmatpush.msra.mxu0 %v6564
  %6758 = vmatpush.msra.mxu0 %v6563
  %6759 = vmatpush.msra.mxu0 %v6562
  %6760 = vmatpush.msra.mxu0 %v6561
  %6761 = vmatpush.msra.mxu0 %v6560
  %6762 = vmatpush.msra.mxu0 %v6559
  %6763 = vmatpush.msra.mxu0 %v6558
  %6764 = vmatpush.msra.mxu0 %v6557
  %6765 = vmatpush.msra.mxu0 %v6556
  %6766 = vmatpush.msra.mxu0 %v6555
  %6767 = vmatpush.msra.mxu0 %v6554
  %6768 = vmatmul.f32.gmra.mxu0 %v6452
  %v6769 = vpop.f32.mrf.mxu0
  %v6770 = vadd.f32 %v6729, %v6769
  %6771 = vmatmul.f32.gmra.mxu0 %v6461
  %v6772 = vpop.f32.mrf.mxu0
  %v6773 = vadd.f32 %v6732, %v6772
  %6774 = vmatmul.f32.gmra.mxu0 %v6470
  %v6775 = vpop.f32.mrf.mxu0
  %v6776 = vadd.f32 %v6735, %v6775
  %6777 = vmatmul.f32.gmra.mxu0 %v6479
  %v6778 = vpop.f32.mrf.mxu0
  %v6779 = vadd.f32 %v6738, %v6778
  %6780 = vmatmul.f32.gmra.mxu0 %v6488
  %v6781 = vpop.f32.mrf.mxu0
  %v6782 = vadd.f32 %v6741, %v6781
  %6783 = vmatmul.f32.gmra.mxu0 %v6497
  %v6784 = vpop.f32.mrf.mxu0
  %v6785 = vadd.f32 %v6744, %v6784
  %6786 = vmatmul.f32.gmra.mxu0 %v6506
  %v6787 = vpop.f32.mrf.mxu0
  %v6788 = vadd.f32 %v6747, %v6787
  %6789 = vmatmul.f32.gmra.mxu0 %v6515
  %v6790 = vpop.f32.mrf.mxu0
  %v6791 = vadd.f32 %v6750, %v6790
  %6792 = vdwg.mxu0
  %6793 = vmatpush.msra.mxu0 %v6585
  %6794 = vmatpush.msra.mxu0 %v6584
  %6795 = vmatpush.msra.mxu0 %v6583
  %6796 = vmatpush.msra.mxu0 %v6582
  %6797 = vmatpush.msra.mxu0 %v6581
  %6798 = vmatpush.msra.mxu0 %v6580
  %6799 = vmatpush.msra.mxu0 %v6579
  %6800 = vmatpush.msra.mxu0 %v6578
  %6801 = vmatpush.msra.mxu0 %v6577
  %6802 = vmatpush.msra.mxu0 %v6576
  %6803 = vmatpush.msra.mxu0 %v6575
  %6804 = vmatpush.msra.mxu0 %v6574
  %6805 = vmatpush.msra.mxu0 %v6573
  %6806 = vmatpush.msra.mxu0 %v6572
  %6807 = vmatpush.msra.mxu0 %v6571
  %6808 = vmatpush.msra.mxu0 %v6570
  %6809 = vmatmul.f32.gmra.mxu0 %v6453
  %v6810 = vpop.f32.mrf.mxu0
  %v6811 = vadd.f32 %v6770, %v6810
  %6812 = vmatmul.f32.gmra.mxu0 %v6462
  %v6813 = vpop.f32.mrf.mxu0
  %v6814 = vadd.f32 %v6773, %v6813
  %6815 = vmatmul.f32.gmra.mxu0 %v6471
  %v6816 = vpop.f32.mrf.mxu0
  %v6817 = vadd.f32 %v6776, %v6816
  %6818 = vmatmul.f32.gmra.mxu0 %v6480
  %v6819 = vpop.f32.mrf.mxu0
  %v6820 = vadd.f32 %v6779, %v6819
  %6821 = vmatmul.f32.gmra.mxu0 %v6489
  %v6822 = vpop.f32.mrf.mxu0
  %v6823 = vadd.f32 %v6782, %v6822
  %6824 = vmatmul.f32.gmra.mxu0 %v6498
  %v6825 = vpop.f32.mrf.mxu0
  %v6826 = vadd.f32 %v6785, %v6825
  %6827 = vmatmul.f32.gmra.mxu0 %v6507
  %v6828 = vpop.f32.mrf.mxu0
  %v6829 = vadd.f32 %v6788, %v6828
  %6830 = vmatmul.f32.gmra.mxu0 %v6516
  %v6831 = vpop.f32.mrf.mxu0
  %v6832 = vadd.f32 %v6791, %v6831
  %6833 = vdwg.mxu0
  %6834 = vmatpush.msra.mxu0 %v6601
  %6835 = vmatpush.msra.mxu0 %v6600
  %6836 = vmatpush.msra.mxu0 %v6599
  %6837 = vmatpush.msra.mxu0 %v6598
  %6838 = vmatpush.msra.mxu0 %v6597
  %6839 = vmatpush.msra.mxu0 %v6596
  %6840 = vmatpush.msra.mxu0 %v6595
  %6841 = vmatpush.msra.mxu0 %v6594
  %6842 = vmatpush.msra.mxu0 %v6593
  %6843 = vmatpush.msra.mxu0 %v6592
  %6844 = vmatpush.msra.mxu0 %v6591
  %6845 = vmatpush.msra.mxu0 %v6590
  %6846 = vmatpush.msra.mxu0 %v6589
  %6847 = vmatpush.msra.mxu0 %v6588
  %6848 = vmatpush.msra.mxu0 %v6587
  %6849 = vmatpush.msra.mxu0 %v6586
  %6850 = vmatmul.f32.gmra.mxu0 %v6454
  %v6851 = vpop.f32.mrf.mxu0
  %v6852 = vadd.f32 %v6811, %v6851
  %6853 = vmatmul.f32.gmra.mxu0 %v6463
  %v6854 = vpop.f32.mrf.mxu0
  %v6855 = vadd.f32 %v6814, %v6854
  %6856 = vmatmul.f32.gmra.mxu0 %v6472
  %v6857 = vpop.f32.mrf.mxu0
  %v6858 = vadd.f32 %v6817, %v6857
  %6859 = vmatmul.f32.gmra.mxu0 %v6481
  %v6860 = vpop.f32.mrf.mxu0
  %v6861 = vadd.f32 %v6820, %v6860
  %6862 = vmatmul.f32.gmra.mxu0 %v6490
  %v6863 = vpop.f32.mrf.mxu0
  %v6864 = vadd.f32 %v6823, %v6863
  %6865 = vmatmul.f32.gmra.mxu0 %v6499
  %v6866 = vpop.f32.mrf.mxu0
  %v6867 = vadd.f32 %v6826, %v6866
  %6868 = vmatmul.f32.gmra.mxu0 %v6508
  %v6869 = vpop.f32.mrf.mxu0
  %v6870 = vadd.f32 %v6829, %v6869
  %6871 = vmatmul.f32.gmra.mxu0 %v6517
  %v6872 = vpop.f32.mrf.mxu0
  %v6873 = vadd.f32 %v6832, %v6872
  %6874 = vdwg.mxu0
  %6875 = vmatpush.msra.mxu0 %v6617
  %6876 = vmatpush.msra.mxu0 %v6616
  %6877 = vmatpush.msra.mxu0 %v6615
  %6878 = vmatpush.msra.mxu0 %v6614
  %6879 = vmatpush.msra.mxu0 %v6613
  %6880 = vmatpush.msra.mxu0 %v6612
  %6881 = vmatpush.msra.mxu0 %v6611
  %6882 = vmatpush.msra.mxu0 %v6610
  %6883 = vmatpush.msra.mxu0 %v6609
  %6884 = vmatpush.msra.mxu0 %v6608
  %6885 = vmatpush.msra.mxu0 %v6607
  %6886 = vmatpush.msra.mxu0 %v6606
  %6887 = vmatpush.msra.mxu0 %v6605
  %6888 = vmatpush.msra.mxu0 %v6604
  %6889 = vmatpush.msra.mxu0 %v6603
  %6890 = vmatpush.msra.mxu0 %v6602
  %6891 = vmatmul.f32.gmra.mxu0 %v6455
  %v6892 = vpop.f32.mrf.mxu0
  %v6893 = vadd.f32 %v6852, %v6892
  %6894 = vmatmul.f32.gmra.mxu0 %v6464
  %v6895 = vpop.f32.mrf.mxu0
  %v6896 = vadd.f32 %v6855, %v6895
  %6897 = vmatmul.f32.gmra.mxu0 %v6473
  %v6898 = vpop.f32.mrf.mxu0
  %v6899 = vadd.f32 %v6858, %v6898
  %6900 = vmatmul.f32.gmra.mxu0 %v6482
  %v6901 = vpop.f32.mrf.mxu0
  %v6902 = vadd.f32 %v6861, %v6901
  %6903 = vmatmul.f32.gmra.mxu0 %v6491
  %v6904 = vpop.f32.mrf.mxu0
  %v6905 = vadd.f32 %v6864, %v6904
  %6906 = vmatmul.f32.gmra.mxu0 %v6500
  %v6907 = vpop.f32.mrf.mxu0
  %v6908 = vadd.f32 %v6867, %v6907
  %6909 = vmatmul.f32.gmra.mxu0 %v6509
  %v6910 = vpop.f32.mrf.mxu0
  %v6911 = vadd.f32 %v6870, %v6910
  %6912 = vmatmul.f32.gmra.mxu0 %v6518
  %v6913 = vpop.f32.mrf.mxu0
  %v6914 = vadd.f32 %v6873, %v6913
  %6915 = vdwg.mxu0
  %6916 = vmatpush.msra.mxu0 %v6633
  %6917 = vmatpush.msra.mxu0 %v6632
  %6918 = vmatpush.msra.mxu0 %v6631
  %6919 = vmatpush.msra.mxu0 %v6630
  %6920 = vmatpush.msra.mxu0 %v6629
  %6921 = vmatpush.msra.mxu0 %v6628
  %6922 = vmatpush.msra.mxu0 %v6627
  %6923 = vmatpush.msra.mxu0 %v6626
  %6924 = vmatpush.msra.mxu0 %v6625
  %6925 = vmatpush.msra.mxu0 %v6624
  %6926 = vmatpush.msra.mxu0 %v6623
  %6927 = vmatpush.msra.mxu0 %v6622
  %6928 = vmatpush.msra.mxu0 %v6621
  %6929 = vmatpush.msra.mxu0 %v6620
  %6930 = vmatpush.msra.mxu0 %v6619
  %6931 = vmatpush.msra.mxu0 %v6618
  %6932 = vmatmul.f32.gmra.mxu0 %v6456
  %v6933 = vpop.f32.mrf.mxu0
  %v6934 = vadd.f32 %v6893, %v6933
  %6935 = vmatmul.f32.gmra.mxu0 %v6465
  %v6936 = vpop.f32.mrf.mxu0
  %v6937 = vadd.f32 %v6896, %v6936
  %6938 = vmatmul.f32.gmra.mxu0 %v6474
  %v6939 = vpop.f32.mrf.mxu0
  %v6940 = vadd.f32 %v6899, %v6939
  %6941 = vmatmul.f32.gmra.mxu0 %v6483
  %v6942 = vpop.f32.mrf.mxu0
  %v6943 = vadd.f32 %v6902, %v6942
  %6944 = vmatmul.f32.gmra.mxu0 %v6492
  %v6945 = vpop.f32.mrf.mxu0
  %v6946 = vadd.f32 %v6905, %v6945
  %6947 = vmatmul.f32.gmra.mxu0 %v6501
  %v6948 = vpop.f32.mrf.mxu0
  %v6949 = vadd.f32 %v6908, %v6948
  %6950 = vmatmul.f32.gmra.mxu0 %v6510
  %v6951 = vpop.f32.mrf.mxu0
  %v6952 = vadd.f32 %v6911, %v6951
  %6953 = vmatmul.f32.gmra.mxu0 %v6519
  %v6954 = vpop.f32.mrf.mxu0
  %v6955 = vadd.f32 %v6914, %v6954
  %6956 = vdwg.mxu0
  %6957 = vmatpush.msra.mxu0 %v6649
  %6958 = vmatpush.msra.mxu0 %v6648
  %6959 = vmatpush.msra.mxu0 %v6647
  %6960 = vmatpush.msra.mxu0 %v6646
  %6961 = vmatpush.msra.mxu0 %v6645
  %6962 = vmatpush.msra.mxu0 %v6644
  %6963 = vmatpush.msra.mxu0 %v6643
  %6964 = vmatpush.msra.mxu0 %v6642
  %6965 = vmatpush.msra.mxu0 %v6641
  %6966 = vmatpush.msra.mxu0 %v6640
  %6967 = vmatpush.msra.mxu0 %v6639
  %6968 = vmatpush.msra.mxu0 %v6638
  %6969 = vmatpush.msra.mxu0 %v6637
  %6970 = vmatpush.msra.mxu0 %v6636
  %6971 = vmatpush.msra.mxu0 %v6635
  %6972 = vmatpush.msra.mxu0 %v6634
  %6973 = vmatmul.f32.gmra.mxu0 %v6457
  %v6974 = vpop.f32.mrf.mxu0
  %v6975 = vadd.f32 %v6934, %v6974
  %6976 = vmatmul.f32.gmra.mxu0 %v6466
  %v6977 = vpop.f32.mrf.mxu0
  %v6978 = vadd.f32 %v6937, %v6977
  %6979 = vmatmul.f32.gmra.mxu0 %v6475
  %v6980 = vpop.f32.mrf.mxu0
  %v6981 = vadd.f32 %v6940, %v6980
  %6982 = vmatmul.f32.gmra.mxu0 %v6484
  %v6983 = vpop.f32.mrf.mxu0
  %v6984 = vadd.f32 %v6943, %v6983
  %6985 = vmatmul.f32.gmra.mxu0 %v6493
  %v6986 = vpop.f32.mrf.mxu0
  %v6987 = vadd.f32 %v6946, %v6986
  %6988 = vmatmul.f32.gmra.mxu0 %v6502
  %v6989 = vpop.f32.mrf.mxu0
  %v6990 = vadd.f32 %v6949, %v6989
  %6991 = vmatmul.f32.gmra.mxu0 %v6511
  %v6992 = vpop.f32.mrf.mxu0
  %v6993 = vadd.f32 %v6952, %v6992
  %6994 = vmatmul.f32.gmra.mxu0 %v6520
  %v6995 = vpop.f32.mrf.mxu0
  %v6996 = vadd.f32 %v6955, %v6995
  %6997 = vdwg.mxu0
  %6998 = vmatpush.msra.mxu0 %v6665
  %6999 = vmatpush.msra.mxu0 %v6664
  %7000 = vmatpush.msra.mxu0 %v6663
  %7001 = vmatpush.msra.mxu0 %v6662
  %7002 = vmatpush.msra.mxu0 %v6661
  %7003 = vmatpush.msra.mxu0 %v6660
  %7004 = vmatpush.msra.mxu0 %v6659
  %7005 = vmatpush.msra.mxu0 %v6658
  %7006 = vmatpush.msra.mxu0 %v6657
  %7007 = vmatpush.msra.mxu0 %v6656
  %7008 = vmatpush.msra.mxu0 %v6655
  %7009 = vmatpush.msra.mxu0 %v6654
  %7010 = vmatpush.msra.mxu0 %v6653
  %7011 = vmatpush.msra.mxu0 %v6652
  %7012 = vmatpush.msra.mxu0 %v6651
  %7013 = vmatpush.msra.mxu0 %v6650
  %7014 = vmatmul.f32.gmra.mxu0 %v6458
  %v7015 = vpop.f32.mrf.mxu0
  %v7016 = vadd.f32 %v6975, %v7015
  %7017 = vmatmul.f32.gmra.mxu0 %v6467
  %v7018 = vpop.f32.mrf.mxu0
  %v7019 = vadd.f32 %v6978, %v7018
  %7020 = vmatmul.f32.gmra.mxu0 %v6476
  %v7021 = vpop.f32.mrf.mxu0
  %v7022 = vadd.f32 %v6981, %v7021
  %7023 = vmatmul.f32.gmra.mxu0 %v6485
  %v7024 = vpop.f32.mrf.mxu0
  %v7025 = vadd.f32 %v6984, %v7024
  %7026 = vmatmul.f32.gmra.mxu0 %v6494
  %v7027 = vpop.f32.mrf.mxu0
  %v7028 = vadd.f32 %v6987, %v7027
  %7029 = vmatmul.f32.gmra.mxu0 %v6503
  %v7030 = vpop.f32.mrf.mxu0
  %v7031 = vadd.f32 %v6990, %v7030
  %7032 = vmatmul.f32.gmra.mxu0 %v6512
  %v7033 = vpop.f32.mrf.mxu0
  %v7034 = vadd.f32 %v6993, %v7033
  %7035 = vmatmul.f32.gmra.mxu0 %v6521
  %v7036 = vpop.f32.mrf.mxu0
  %v7037 = vadd.f32 %v6996, %v7036
  %7038 = vdwg.mxu0
  %v7039 = vmax.f32 %v7016, 0.0
  %v7040 = vmax.f32 %v7019, 0.0
  %v7041 = vmax.f32 %v7022, 0.0
  %v7042 = vmax.f32 %v7025, 0.0
  %v7043 = vmax.f32 %v7028, 0.0
  %v7044 = vmax.f32 %v7031, 0.0
  %v7045 = vmax.f32 %v7034, 0.0
  %v7046 = vmax.f32 %v7037, 0.0
  %v7055 = vrot.slane %v7039, 2
  %v7056 = vrot.slane %v7039, 4
  %v7057 = vrot.slane %v7039, 6
  %v7058 = vrot.slane %v7040, 2
  %v7059 = vrot.slane %v7040, 4
  %v7060 = vrot.slane %v7040, 6
  %v7061 = vrot.slane %v7041, 2
  %v7062 = vrot.slane %v7041, 4
  %v7063 = vrot.slane %v7041, 6
  %v7064 = vrot.slane %v7042, 2
  %v7065 = vrot.slane %v7042, 4
  %v7066 = vrot.slane %v7042, 6
  %v7067 = vrot.slane %v7043, 2
  %v7068 = vrot.slane %v7043, 4
  %v7069 = vrot.slane %v7043, 6
  %v7070 = vrot.slane %v7044, 2
  %v7071 = vrot.slane %v7044, 4
  %v7072 = vrot.slane %v7044, 6
  %v7073 = vrot.slane %v7045, 2
  %v7074 = vrot.slane %v7045, 4
  %v7075 = vrot.slane %v7045, 6
  %v7076 = vrot.slane %v7046, 2
  %v7077 = vrot.slane %v7046, 4
  %v7078 = vrot.slane %v7046, 6
  %vm7103 = vcmask 1041408
  %v7104 = vsel %vm7103, %v7039, -inf
  %v7105 = vrot.slane %v7104, 4
  %v7106 = vmax.f32 %v7104, %v7105
  %v7107 = vrot.slane %v7106, 2
  %v7108 = vmax.f32 %v7106, %v7107
  %v7109 = vrot.slane %v7108, 1
  %v7110 = vmax.f32 %v7108, %v7109
  %v7111 = vsel %vm7103, %v7055, -inf
  %v7112 = vrot.slane %v7111, 4
  %v7113 = vmax.f32 %v7111, %v7112
  %v7114 = vrot.slane %v7113, 2
  %v7115 = vmax.f32 %v7113, %v7114
  %v7116 = vrot.slane %v7115, 1
  %v7117 = vmax.f32 %v7115, %v7116
  %v7118 = vsel %vm7103, %v7056, -inf
  %v7119 = vrot.slane %v7118, 4
  %v7120 = vmax.f32 %v7118, %v7119
  %v7121 = vrot.slane %v7120, 2
  %v7122 = vmax.f32 %v7120, %v7121
  %v7123 = vrot.slane %v7122, 1
  %v7124 = vmax.f32 %v7122, %v7123
  %v7125 = vsel %vm7103, %v7057, -inf
  %v7126 = vrot.slane %v7125, 4
  %v7127 = vmax.f32 %v7125, %v7126
  %v7128 = vrot.slane %v7127, 2
  %v7129 = vmax.f32 %v7127, %v7128
  %v7130 = vrot.slane %v7129, 1
  %v7131 = vmax.f32 %v7129, %v7130
  %v7132 = vsel %vm7103, %v7040, -inf
  %v7133 = vrot.slane %v7132, 4
  %v7134 = vmax.f32 %v7132, %v7133
  %v7135 = vrot.slane %v7134, 2
  %v7136 = vmax.f32 %v7134, %v7135
  %v7137 = vrot.slane %v7136, 1
  %v7138 = vmax.f32 %v7136, %v7137
  %v7139 = vsel %vm7103, %v7058, -inf
  %v7140 = vrot.slane %v7139, 4
  %v7141 = vmax.f32 %v7139, %v7140
  %v7142 = vrot.slane %v7141, 2
  %v7143 = vmax.f32 %v7141, %v7142
  %v7144 = vrot.slane %v7143, 1
  %v7145 = vmax.f32 %v7143, %v7144
  %v7146 = vsel %vm7103, %v7059, -inf
  %v7147 = vrot.slane %v7146, 4
  %v7148 = vmax.f32 %v7146, %v7147
  %v7149 = vrot.slane %v7148, 2
  %v7150 = vmax.f32 %v7148, %v7149
  %v7151 = vrot.slane %v7150, 1
  %v7152 = vmax.f32 %v7150, %v7151
  %v7153 = vsel %vm7103, %v7060, -inf
  %v7154 = vrot.slane %v7153, 4
  %v7155 = vmax.f32 %v7153, %v7154
  %v7156 = vrot.slane %v7155, 2
  %v7157 = vmax.f32 %v7155, %v7156
  %v7158 = vrot.slane %v7157, 1
  %v7159 = vmax.f32 %v7157, %v7158
  %v7160 = vsel %vm7103, %v7041, -inf
  %v7161 = vrot.slane %v7160, 4
  %v7162 = vmax.f32 %v7160, %v7161
  %v7163 = vrot.slane %v7162, 2
  %v7164 = vmax.f32 %v7162, %v7163
  %v7165 = vrot.slane %v7164, 1
  %v7166 = vmax.f32 %v7164, %v7165
  %v7167 = vsel %vm7103, %v7061, -inf
  %v7168 = vrot.slane %v7167, 4
  %v7169 = vmax.f32 %v7167, %v7168
  %v7170 = vrot.slane %v7169, 2
  %v7171 = vmax.f32 %v7169, %v7170
  %v7172 = vrot.slane %v7171, 1
  %v7173 = vmax.f32 %v7171, %v7172
  %v7174 = vsel %vm7103, %v7062, -inf
  %v7175 = vrot.slane %v7174, 4
  %v7176 = vmax.f32 %v7174, %v7175
  %v7177 = vrot.slane %v7176, 2
  %v7178 = vmax.f32 %v7176, %v7177
  %v7179 = vrot.slane %v7178, 1
  %v7180 = vmax.f32 %v7178, %v7179
  %v7181 = vsel %vm7103, %v7063, -inf
  %v7182 = vrot.slane %v7181, 4
  %v7183 = vmax.f32 %v7181, %v7182
  %v7184 = vrot.slane %v7183, 2
  %v7185 = vmax.f32 %v7183, %v7184
  %v7186 = vrot.slane %v7185, 1
  %v7187 = vmax.f32 %v7185, %v7186
  %v7188 = vsel %vm7103, %v7042, -inf
  %v7189 = vrot.slane %v7188, 4
  %v7190 = vmax.f32 %v7188, %v7189
  %v7191 = vrot.slane %v7190, 2
  %v7192 = vmax.f32 %v7190, %v7191
  %v7193 = vrot.slane %v7192, 1
  %v7194 = vmax.f32 %v7192, %v7193
  %v7195 = vsel %vm7103, %v7064, -inf
  %v7196 = vrot.slane %v7195, 4
  %v7197 = vmax.f32 %v7195, %v7196
  %v7198 = vrot.slane %v7197, 2
  %v7199 = vmax.f32 %v7197, %v7198
  %v7200 = vrot.slane %v7199, 1
  %v7201 = vmax.f32 %v7199, %v7200
  %v7202 = vsel %vm7103, %v7065, -inf
  %v7203 = vrot.slane %v7202, 4
  %v7204 = vmax.f32 %v7202, %v7203
  %v7205 = vrot.slane %v7204, 2
  %v7206 = vmax.f32 %v7204, %v7205
  %v7207 = vrot.slane %v7206, 1
  %v7208 = vmax.f32 %v7206, %v7207
  %v7209 = vsel %vm7103, %v7066, -inf
  %v7210 = vrot.slane %v7209, 4
  %v7211 = vmax.f32 %v7209, %v7210
  %v7212 = vrot.slane %v7211, 2
  %v7213 = vmax.f32 %v7211, %v7212
  %v7214 = vrot.slane %v7213, 1
  %v7215 = vmax.f32 %v7213, %v7214
  %v7216 = vsel %vm7103, %v7043, -inf
  %v7217 = vrot.slane %v7216, 4
  %v7218 = vmax.f32 %v7216, %v7217
  %v7219 = vrot.slane %v7218, 2
  %v7220 = vmax.f32 %v7218, %v7219
  %v7221 = vrot.slane %v7220, 1
  %v7222 = vmax.f32 %v7220, %v7221
  %v7223 = vsel %vm7103, %v7067, -inf
  %v7224 = vrot.slane %v7223, 4
  %v7225 = vmax.f32 %v7223, %v7224
  %v7226 = vrot.slane %v7225, 2
  %v7227 = vmax.f32 %v7225, %v7226
  %v7228 = vrot.slane %v7227, 1
  %v7229 = vmax.f32 %v7227, %v7228
  %v7230 = vsel %vm7103, %v7068, -inf
  %v7231 = vrot.slane %v7230, 4
  %v7232 = vmax.f32 %v7230, %v7231
  %v7233 = vrot.slane %v7232, 2
  %v7234 = vmax.f32 %v7232, %v7233
  %v7235 = vrot.slane %v7234, 1
  %v7236 = vmax.f32 %v7234, %v7235
  %v7237 = vsel %vm7103, %v7069, -inf
  %v7238 = vrot.slane %v7237, 4
  %v7239 = vmax.f32 %v7237, %v7238
  %v7240 = vrot.slane %v7239, 2
  %v7241 = vmax.f32 %v7239, %v7240
  %v7242 = vrot.slane %v7241, 1
  %v7243 = vmax.f32 %v7241, %v7242
  %v7244 = vsel %vm7103, %v7044, -inf
  %v7245 = vrot.slane %v7244, 4
  %v7246 = vmax.f32 %v7244, %v7245
  %v7247 = vrot.slane %v7246, 2
  %v7248 = vmax.f32 %v7246, %v7247
  %v7249 = vrot.slane %v7248, 1
  %v7250 = vmax.f32 %v7248, %v7249
  %v7251 = vsel %vm7103, %v7070, -inf
  %v7252 = vrot.slane %v7251, 4
  %v7253 = vmax.f32 %v7251, %v7252
  %v7254 = vrot.slane %v7253, 2
  %v7255 = vmax.f32 %v7253, %v7254
  %v7256 = vrot.slane %v7255, 1
  %v7257 = vmax.f32 %v7255, %v7256
  %v7258 = vsel %vm7103, %v7071, -inf
  %v7259 = vrot.slane %v7258, 4
  %v7260 = vmax.f32 %v7258, %v7259
  %v7261 = vrot.slane %v7260, 2
  %v7262 = vmax.f32 %v7260, %v7261
  %v7263 = vrot.slane %v7262, 1
  %v7264 = vmax.f32 %v7262, %v7263
  %v7265 = vsel %vm7103, %v7072, -inf
  %v7266 = vrot.slane %v7265, 4
  %v7267 = vmax.f32 %v7265, %v7266
  %v7268 = vrot.slane %v7267, 2
  %v7269 = vmax.f32 %v7267, %v7268
  %v7270 = vrot.slane %v7269, 1
  %v7271 = vmax.f32 %v7269, %v7270
  %v7272 = vsel %vm7103, %v7045, -inf
  %v7273 = vrot.slane %v7272, 4
  %v7274 = vmax.f32 %v7272, %v7273
  %v7275 = vrot.slane %v7274, 2
  %v7276 = vmax.f32 %v7274, %v7275
  %v7277 = vrot.slane %v7276, 1
  %v7278 = vmax.f32 %v7276, %v7277
  %v7279 = vsel %vm7103, %v7073, -inf
  %v7280 = vrot.slane %v7279, 4
  %v7281 = vmax.f32 %v7279, %v7280
  %v7282 = vrot.slane %v7281, 2
  %v7283 = vmax.f32 %v7281, %v7282
  %v7284 = vrot.slane %v7283, 1
  %v7285 = vmax.f32 %v7283, %v7284
  %v7286 = vsel %vm7103, %v7074, -inf
  %v7287 = vrot.slane %v7286, 4
  %v7288 = vmax.f32 %v7286, %v7287
  %v7289 = vrot.slane %v7288, 2
  %v7290 = vmax.f32 %v7288, %v7289
  %v7291 = vrot.slane %v7290, 1
  %v7292 = vmax.f32 %v7290, %v7291
  %v7293 = vsel %vm7103, %v7075, -inf
  %v7294 = vrot.slane %v7293, 4
  %v7295 = vmax.f32 %v7293, %v7294
  %v7296 = vrot.slane %v7295, 2
  %v7297 = vmax.f32 %v7295, %v7296
  %v7298 = vrot.slane %v7297, 1
  %v7299 = vmax.f32 %v7297, %v7298
  %v7300 = vsel %vm7103, %v7046, -inf
  %v7301 = vrot.slane %v7300, 4
  %v7302 = vmax.f32 %v7300, %v7301
  %v7303 = vrot.slane %v7302, 2
  %v7304 = vmax.f32 %v7302, %v7303
  %v7305 = vrot.slane %v7304, 1
  %v7306 = vmax.f32 %v7304, %v7305
  %v7307 = vsel %vm7103, %v7076, -inf
  %v7308 = vrot.slane %v7307, 4
  %v7309 = vmax.f32 %v7307, %v7308
  %v7310 = vrot.slane %v7309, 2
  %v7311 = vmax.f32 %v7309, %v7310
  %v7312 = vrot.slane %v7311, 1
  %v7313 = vmax.f32 %v7311, %v7312
  %v7314 = vsel %vm7103, %v7077, -inf
  %v7315 = vrot.slane %v7314, 4
  %v7316 = vmax.f32 %v7314, %v7315
  %v7317 = vrot.slane %v7316, 2
  %v7318 = vmax.f32 %v7316, %v7317
  %v7319 = vrot.slane %v7318, 1
  %v7320 = vmax.f32 %v7318, %v7319
  %v7321 = vsel %vm7103, %v7078, -inf
  %v7322 = vrot.slane %v7321, 4
  %v7323 = vmax.f32 %v7321, %v7322
  %v7324 = vrot.slane %v7323, 2
  %v7325 = vmax.f32 %v7323, %v7324
  %v7326 = vrot.slane %v7325, 1
  %v7327 = vmax.f32 %v7325, %v7326
  %v7328 = vmax.f32 %v7110, %v7138
  %v7329 = vmax.f32 %v7117, %v7145
  %v7330 = vmax.f32 %v7124, %v7152
  %v7331 = vmax.f32 %v7131, %v7159
  %v7332 = vmax.f32 %v7166, %v7194
  %v7333 = vmax.f32 %v7173, %v7201
  %v7334 = vmax.f32 %v7180, %v7208
  %v7335 = vmax.f32 %v7187, %v7215
  %v7336 = vmax.f32 %v7222, %v7250
  %v7337 = vmax.f32 %v7229, %v7257
  %v7338 = vmax.f32 %v7236, %v7264
  %v7339 = vmax.f32 %v7243, %v7271
  %v7340 = vmax.f32 %v7278, %v7306
  %v7341 = vmax.f32 %v7285, %v7313
  %v7342 = vmax.f32 %v7292, %v7320
  %v7343 = vmax.f32 %v7299, %v7327
  %v7360 = vsel %vm5566, %v7329, %v7328
  %v7361 = vsel %vm5568, %v7330, %v7360
  %v7362 = vsel %vm5570, %v7331, %v7361
  %v7363 = vsel %vm5566, %v7333, %v7332
  %v7364 = vsel %vm5568, %v7334, %v7363
  %v7365 = vsel %vm5570, %v7335, %v7364
  %v7366 = vsel %vm5566, %v7337, %v7336
  %v7367 = vsel %vm5568, %v7338, %v7366
  %v7368 = vsel %vm5570, %v7339, %v7367
  %v7369 = vsel %vm5566, %v7341, %v7340
  %v7370 = vsel %vm5568, %v7342, %v7369
  %v7371 = vsel %vm5570, %v7343, %v7370
  %7376 = vst [vmem:[%s9] sm:$0xf] %v7362
  %7377 = vst [vmem:[%s9 + $0x4] sm:$0xf] %v7365
  %7378 = vst [vmem:[%s9 + $0x8] sm:$0xf] %v7368
  %7379 = vst [vmem:[%s9 + $0xc] sm:$0xf] %v7371
  // Predicated region
  $region38: #{encoder_forward.2} parent=0 // pred_check
    _
  $region39: #{encoder_forward.2} parent=0 // pred_check_branch
    %7381 = sbr.rel (0) target = $region41
  $region40: #{encoder_forward.2} parent=0 // pred_region
    _
  $region41: #{encoder_forward.2} parent=0 // pred_fallthru
    _
  // Predicated region
  $region42: #{encoder_forward.2} parent=0 // pred_check
    _
  $region43: #{encoder_forward.2} parent=0 // pred_check_branch
    %7383 = sbr.rel (0) target = $region45
  $region44: #{encoder_forward.2} parent=0 // pred_region
    _
  $region45: #{encoder_forward.2} parent=0 // pred_fallthru
    _

</llo_original>
